<compile_context>
chip_gen: v7x
topology: tpu7x:2x2x1
jax: 0.10.0
libtpu: 0.0.40
codegen_flags: <defaults>
</compile_context>

<pallas_src>
import functools

import jax
import jax.numpy as jnp
from jax.experimental import pallas as pl
from jax.experimental.pallas import tpu as pltpu

C_PAD = 128          # Cout padded to one full lane width (lane-dense stores)
_SUB = 8             # sublane granularity
_VMEM_LIMIT = 32 * 1024 * 1024


def _round_up(v, m):
    return -(-v // m) * m


def _ceil_div(a, b):
    return -(-a // b)


def _tile_m(m_total, tm_max=512):
    """Pick an M tile (multiple of 8), padded total M, and grid size."""
    m8 = _round_up(m_total, _SUB)
    tm = min(tm_max, m8)
    # >= 2 tiles whenever possible: keeps both v7x TensorCores busy and gives
    # v5e/v6e a real pipeline instead of one monolithic grid step.
    if m8 > _SUB and m8 // tm < 2:
        tm = _round_up(_ceil_div(m8, 2), _SUB)
    m_pad = _round_up(m8, tm)
    return tm, m_pad, m_pad // tm


# ----------------------------------------------------------------------------
# Pallas kernels
# ----------------------------------------------------------------------------
def _conv_mm_kernel(p_ref, w_ref, b_ref, *rest, relu, has_residual):
    """One fused conv tile: single K-packed MXU dot + bias (+res) (+ReLU).

    p_ref : (TM, K_pad)   im2col patches, taps packed into K (bf16)
    w_ref : (K_pad, 128)  BN-scale-folded weights (bf16)
    b_ref : (1, 128)      folded BN bias (f32)
    rest  : [res_ref(TM,128) bf16,] out_ref(TM,128) bf16
    """
    if has_residual:
        r_ref, o_ref = rest
    else:
        (o_ref,) = rest
    acc = jnp.dot(p_ref[...], w_ref[...], preferred_element_type=jnp.float32)
    acc = acc + b_ref[...]
    if has_residual:
        acc = acc + r_ref[...].astype(jnp.float32)
    if relu:
        acc = jnp.maximum(acc, 0.0)
    o_ref[...] = acc.astype(o_ref.dtype)


def _maxpool_kernel(x_ref, o_ref, *, n_taps):
    """Running max over tap-stacked input: x_ref (T, TM, C) -> o_ref (TM, C)."""
    acc = x_ref[0]
    for t in range(1, n_taps):
        acc = jnp.maximum(acc, x_ref[t])
    o_ref[...] = acc


def _head_kernel(x_ref, w_ref, b_ref, out_ref):
    """Fused global average pool (over flattened spatial axis) + fc + bias."""
    feat = jnp.mean(x_ref[...].astype(jnp.float32), axis=1)          # (N, C)
    logits = jnp.dot(feat.astype(jnp.bfloat16), w_ref[...],
                     preferred_element_type=jnp.float32) + b_ref[...]
    out_ref[...] = logits


# ----------------------------------------------------------------------------
# XLA-side patch construction (real channel width -> tiny arrays)
# ----------------------------------------------------------------------------
def _im2col(x, kh, kw, stride, pad, k_pad):
    """NHWC x -> (N*Ho*Wo, K_pad) tap-packed patches (K = kh*kw*Cin, zero-padded)."""
    n, h, w, c = x.shape
    ho = (h + 2 * pad - kh) // stride + 1
    wo = (w + 2 * pad - kw) // stride + 1
    xp = jnp.pad(x, ((0, 0), (pad, pad), (pad, pad), (0, 0)))
    cols = []
    for di in range(kh):
        for dj in range(kw):
            cols.append(xp[:, di:di + (ho - 1) * stride + 1:stride,
                           dj:dj + (wo - 1) * stride + 1:stride, :])
    patches = jnp.concatenate(cols, axis=-1)                 # (n, ho, wo, k)
    k = kh * kw * c
    patches = patches.reshape(n * ho * wo, k)
    if k_pad > k:
        patches = jnp.pad(patches, ((0, 0), (0, k_pad - k)))
    return patches, ho, wo


# ----------------------------------------------------------------------------
# Wrappers around pallas_call
# ----------------------------------------------------------------------------
def conv_bn_act(x, cp, *, stride, pad, relu, residual=None):
    """Conv2d + folded BatchNorm (+residual) (+ReLU) on real-width NHWC."""
    n = x.shape[0]
    k_pad, cout = cp["k_pad"], cp["cout"]
    patches, ho, wo = _im2col(x, cp["kh"], cp["kw"], stride, pad, k_pad)
    m_total = n * ho * wo
    tm, m_pad, grid = _tile_m(m_total)
    if m_pad > m_total:
        patches = jnp.pad(patches, ((0, m_pad - m_total), (0, 0)))
    patches = patches.astype(jnp.bfloat16)

    args = [patches, cp["w"], cp["bias"]]
    in_specs = [
        pl.BlockSpec((tm, k_pad), lambda i: (i, 0)),
        pl.BlockSpec((k_pad, C_PAD), lambda i: (0, 0)),       # grid-invariant
        pl.BlockSpec((1, C_PAD), lambda i: (0, 0)),
    ]
    has_residual = residual is not None
    if has_residual:
        r = residual.reshape(n * ho * wo, residual.shape[-1])
        r = jnp.pad(r, ((0, m_pad - m_total), (0, C_PAD - r.shape[-1])))
        args.append(r.astype(jnp.bfloat16))
        in_specs.append(pl.BlockSpec((tm, C_PAD), lambda i: (i, 0)))

    out = pl.pallas_call(
        functools.partial(_conv_mm_kernel, relu=relu, has_residual=has_residual),
        out_shape=jax.ShapeDtypeStruct((m_pad, C_PAD), jnp.bfloat16),
        grid=(grid,),
        in_specs=in_specs,
        out_specs=pl.BlockSpec((tm, C_PAD), lambda i: (i, 0)),
        compiler_params=pltpu.CompilerParams(
            dimension_semantics=("parallel",),
            vmem_limit_bytes=_VMEM_LIMIT),
    )(*args)
    return out[:m_total, :cout].reshape(n, ho, wo, cout)


def maxpool2d(x, *, k=3, stride=2, pad=1):
    """MaxPool2d(k, stride, pad) on NHWC (zero padding is exact post-ReLU)."""
    n, h, w, c = x.shape
    ho = (h + 2 * pad - k) // stride + 1
    wo = (w + 2 * pad - k) // stride + 1
    xp = jnp.pad(x, ((0, 0), (pad, pad), (pad, pad), (0, 0)))
    taps = [xp[:, di:di + (ho - 1) * stride + 1:stride,
               dj:dj + (wo - 1) * stride + 1:stride, :]
            for di in range(k) for dj in range(k)]
    stk = jnp.stack(taps, axis=0).reshape(k * k, n * ho * wo, c)
    m_total = n * ho * wo
    tm, m_pad, grid = _tile_m(m_total)
    if m_pad > m_total:
        stk = jnp.pad(stk, ((0, 0), (0, m_pad - m_total), (0, 0)))

    out = pl.pallas_call(
        functools.partial(_maxpool_kernel, n_taps=k * k),
        out_shape=jax.ShapeDtypeStruct((m_pad, c), x.dtype),
        grid=(grid,),
        in_specs=[pl.BlockSpec((k * k, tm, c), lambda i: (0, i, 0))],
        out_specs=pl.BlockSpec((tm, c), lambda i: (i, 0)),
        compiler_params=pltpu.CompilerParams(
            dimension_semantics=("parallel",),
            vmem_limit_bytes=_VMEM_LIMIT),
    )(stk)
    return out[:m_total].reshape(n, ho, wo, c)


def avgpool_fc(x, fc_w, fc_b):
    """Fused AdaptiveAvgPool2d((1,1)) + Flatten + Linear on real-width NHWC."""
    n, h, w, c = x.shape
    xf = x.reshape(n, h * w, c)
    return pl.pallas_call(
        _head_kernel,
        out_shape=jax.ShapeDtypeStruct((n, fc_w.shape[1]), jnp.float32),
    )(xf, fc_w, fc_b)


# ----------------------------------------------------------------------------
# Deterministic synthetic parameters (ResNet-18-style, reduced width)
# ----------------------------------------------------------------------------
def _init_conv_bn(key, kh, kw, cin, cout):
    k1, k2, k3, k4, k5 = jax.random.split(key, 5)
    fan_in = kh * kw * cin
    w = jax.random.normal(k1, (kh, kw, cin, cout), jnp.float32) / (fan_in ** 0.5)
    gamma = 1.0 + 0.1 * jax.random.normal(k2, (cout,), jnp.float32)
    beta = 0.1 * jax.random.normal(k3, (cout,), jnp.float32)
    running_mean = 0.1 * jax.random.normal(k4, (cout,), jnp.float32)
    running_var = 1.0 + 0.1 * jnp.abs(jax.random.normal(k5, (cout,), jnp.float32))
    eps = 1e-5
    scale = gamma / jnp.sqrt(running_var + eps)   # folded inference-mode BN
    bias = beta - running_mean * scale
    return {"w": w, "scale": scale, "bias": bias}


def init_params(key, num_classes=10):
    widths = (8, 8, 16, 32, 64)   # conv1, layer1..4 output channels
    keys = jax.random.split(key, 16)
    ki = iter(keys)
    params = {"conv1": _init_conv_bn(next(ki), 7, 7, 3, widths[0])}
    in_ch = widths[0]
    for idx, name in enumerate(["layer1", "layer2", "layer3", "layer4"]):
        out_ch = widths[idx + 1]
        stride = 1 if idx == 0 else 2
        blk = {
            "stride": stride,
            "conv1": _init_conv_bn(next(ki), 3, 3, in_ch, out_ch),
            "conv2": _init_conv_bn(next(ki), 3, 3, out_ch, out_ch),
        }
        if stride != 1 or in_ch != out_ch:
            blk["down"] = _init_conv_bn(next(ki), 1, 1, in_ch, out_ch)
        params[name] = blk
        in_ch = out_ch
    kfc_w, kfc_b = jax.random.split(next(ki))
    params["fc"] = {
        "w": jax.random.normal(kfc_w, (in_ch, num_classes), jnp.float32) / (in_ch ** 0.5),
        "b": 0.1 * jax.random.normal(kfc_b, (num_classes,), jnp.float32),
    }
    return params


def _fold_pad_conv(p):
    """Fold BN scale into weights; pack (kh,kw,cin) into K (padded to 128n)."""
    w = p["w"] * p["scale"][None, None, None, :]
    kh, kw, cin, cout = w.shape
    k = kh * kw * cin
    k_pad = max(C_PAD, _round_up(k, C_PAD))
    wk = w.reshape(k, cout)
    wk = jnp.pad(wk, ((0, k_pad - k), (0, C_PAD - cout)))
    bias = jnp.pad(p["bias"], (0, C_PAD - cout))
    return {"w": wk.astype(jnp.bfloat16),
            "bias": bias.reshape(1, C_PAD).astype(jnp.float32),
            "kh": kh, "kw": kw, "cin": cin, "cout": cout, "k_pad": k_pad}


def prepare_inference_params(params, num_classes=10):
    ip = {"num_classes": num_classes}
    ip["conv1"] = _fold_pad_conv(params["conv1"])
    for name in ("layer1", "layer2", "layer3", "layer4"):
        blk = params[name]
        nb = {"stride": blk["stride"],
              "conv1": _fold_pad_conv(blk["conv1"]),
              "conv2": _fold_pad_conv(blk["conv2"])}
        if "down" in blk:
            nb["down"] = _fold_pad_conv(blk["down"])
        ip[name] = nb
    fcw, fcb = params["fc"]["w"], params["fc"]["b"]
    nc = fcw.shape[1]
    ip["fc"] = {"w": jnp.pad(fcw, ((0, 0), (0, C_PAD - nc))).astype(jnp.bfloat16),
                "b": jnp.pad(fcb, (0, C_PAD - nc)).reshape(1, C_PAD).astype(jnp.float32)}
    return ip


# ----------------------------------------------------------------------------
# Forward pass (matches FeatureExtractor.forward semantics, inference mode)
# ----------------------------------------------------------------------------
def feature_extractor_forward(x_nchw, ip):
    # PyTorch NCHW -> NHWC, bf16 activations at real channel width.
    x = jnp.transpose(x_nchw, (0, 2, 3, 1)).astype(jnp.bfloat16)

    # conv1 + bn1 + relu, then maxpool
    x = conv_bn_act(x, ip["conv1"], stride=2, pad=3, relu=True)
    x = maxpool2d(x, k=3, stride=2, pad=1)

    # layer1..layer4 (BasicBlock: relu(bn2(conv2(relu(bn1(conv1(x))))) + identity))
    for name in ("layer1", "layer2", "layer3", "layer4"):
        blk = ip[name]
        s = blk["stride"]
        identity = x
        h = conv_bn_act(x, blk["conv1"], stride=s, pad=1, relu=True)
        if "down" in blk:
            identity = conv_bn_act(x, blk["down"], stride=s, pad=0, relu=False)
        x = conv_bn_act(h, blk["conv2"], stride=1, pad=1, relu=True,
                        residual=identity)

    # fused avgpool + flatten + fc
    logits = avgpool_fc(x, ip["fc"]["w"], ip["fc"]["b"])
    return logits[:, :ip["num_classes"]]


# ----------------------------------------------------------------------------
if __name__ == "__main__":
    key = jax.random.PRNGKey(0)
    k_x, k_p = jax.random.split(key)
    x = jax.random.normal(k_x, (2, 3, 64, 64), jnp.float32)   # NCHW like PyTorch
    params = init_params(k_p, num_classes=10)
    iparams = prepare_inference_params(params, num_classes=10)

    fwd = jax.jit(lambda inp: feature_extractor_forward(inp, iparams))
    out = jax.block_until_ready(fwd(x))

    assert out.shape == (2, 10), out.shape
    assert bool(jnp.all(jnp.isfinite(out)))
    print("KERNEL_OK")
</pallas_src>

<mosaic_0001>
module attributes {stable_mosaic.version = 11 : i64} {
  func.func @_conv_mm_kernel(%arg0: i32, %arg1: memref<512x256xbf16, #tpu.memory_space<vmem>>, %arg2: memref<256x128xbf16, #tpu.memory_space<vmem>>, %arg3: memref<1x128xf32, #tpu.memory_space<vmem>>, %arg4: memref<512x128xbf16, #tpu.memory_space<vmem>>) attributes {dimension_semantics = [#tpu.dimension_semantics<parallel>], iteration_bounds = array<i64: 4>, scalar_prefetch = 0 : i64, scratch_operands = 0 : i64, tpu.core_type = #tpu.core_type<tc>, window_params = [{transform_indices = @transform_0, window_bounds = array<i64: 512, 256>}, {pipeline_mode = #tpu.pipeline_mode<synchronous>, transform_indices = @transform_1, window_bounds = array<i64: 256, 128>}, {pipeline_mode = #tpu.pipeline_mode<synchronous>, transform_indices = @transform_2, window_bounds = array<i64: 1, 128>}, {transform_indices = @transform_3, window_bounds = array<i64: 512, 128>}]} {
    %c0 = arith.constant 0 : index
    %c0_0 = arith.constant 0 : index
    %0 = vector.load %arg1[%c0, %c0_0] : memref<512x256xbf16, #tpu.memory_space<vmem>>, vector<512x256xbf16>
    %c0_1 = arith.constant 0 : index
    %c0_2 = arith.constant 0 : index
    %1 = vector.load %arg2[%c0_1, %c0_2] : memref<256x128xbf16, #tpu.memory_space<vmem>>, vector<256x128xbf16>
    %cst = arith.constant dense<0.000000e+00> : vector<512x128xf32>
    %2 = tpu.matmul %0, %1, %cst {dimension_numbers = #tpu.dot_dimension_numbers<[1], [0], [0], [1], [0, 0, 1, 1], [], []>} : vector<512x256xbf16>, vector<256x128xbf16>, vector<512x128xf32> -> vector<512x128xf32>
    %c0_3 = arith.constant 0 : index
    %c0_4 = arith.constant 0 : index
    %3 = vector.load %arg3[%c0_3, %c0_4] : memref<1x128xf32, #tpu.memory_space<vmem>>, vector<1x128xf32>
    %4 = vector.broadcast %3 : vector<1x128xf32> to vector<512x128xf32>
    %5 = arith.addf %2, %4 : vector<512x128xf32>
    %cst_5 = arith.constant 0.000000e+00 : f32
    %6 = vector.broadcast %cst_5 : f32 to vector<512x128xf32>
    %7 = arith.maximumf %5, %6 : vector<512x128xf32>
    %8 = arith.truncf %7 : vector<512x128xf32> to vector<512x128xbf16>
    %c0_6 = arith.constant 0 : index
    %c0_7 = arith.constant 0 : index
    %9 = vector.load %arg4[%c0_6, %c0_7] : memref<512x128xbf16, #tpu.memory_space<vmem>>, vector<512x128xbf16>
    tpu.vector_store %arg4[%c0_6, %c0_7], %8 {strides = array<i32>} : memref<512x128xbf16, #tpu.memory_space<vmem>>, vector<512x128xbf16>,
    return
  }
  func.func @transform_0(%arg0: i32) -> (i32, i32) {
    %c0_i32 = arith.constant 0 : i32
    %c0_i32_0 = arith.constant 0 : i32
    return %arg0, %c0_i32 : i32, i32
  }
  func.func @transform_1(%arg0: i32) -> (i32, i32) {
    %c0_i32 = arith.constant 0 : i32
    %c0_i32_0 = arith.constant 0 : i32
    %c0_i32_1 = arith.constant 0 : i32
    return %c0_i32, %c0_i32_0 : i32, i32
  }
  func.func @transform_2(%arg0: i32) -> (i32, i32) {
    %c0_i32 = arith.constant 0 : i32
    %c0_i32_0 = arith.constant 0 : i32
    %c0_i32_1 = arith.constant 0 : i32
    return %c0_i32, %c0_i32_0 : i32, i32
  }
  func.func @transform_3(%arg0: i32) -> (i32, i32) {
    %c0_i32 = arith.constant 0 : i32
    %c0_i32_0 = arith.constant 0 : i32
    return %arg0, %c0_i32 : i32, i32
  }
}

module attributes {stable_mosaic.version = 11 : i64} {
  func.func @_maxpool_kernel(%arg0: i32, %arg1: memref<9x256x8xbf16, #tpu.memory_space<vmem>>, %arg2: memref<256x8xbf16, #tpu.memory_space<vmem>>) attributes {dimension_semantics = [#tpu.dimension_semantics<parallel>], iteration_bounds = array<i64: 2>, scalar_prefetch = 0 : i64, scratch_operands = 0 : i64, tpu.core_type = #tpu.core_type<tc>, window_params = [{transform_indices = @transform_0, window_bounds = array<i64: 9, 256, 8>}, {transform_indices = @transform_1, window_bounds = array<i64: 256, 8>}]} {
    %c0 = arith.constant 0 : index
    %c0_0 = arith.constant 0 : index
    %c0_1 = arith.constant 0 : index
    %0 = vector.load %arg1[%c0, %c0_0, %c0_1] : memref<9x256x8xbf16, #tpu.memory_space<vmem>>, vector<1x256x8xbf16>
    %1 = vector.shape_cast %0 : vector<1x256x8xbf16> to vector<256x8xbf16>
    %c1 = arith.constant 1 : index
    %c0_2 = arith.constant 0 : index
    %c0_3 = arith.constant 0 : index
    %2 = vector.load %arg1[%c1, %c0_2, %c0_3] : memref<9x256x8xbf16, #tpu.memory_space<vmem>>, vector<1x256x8xbf16>
    %3 = vector.shape_cast %2 : vector<1x256x8xbf16> to vector<256x8xbf16>
    %4 = arith.maximumf %1, %3 : vector<256x8xbf16>
    %c2 = arith.constant 2 : index
    %c0_4 = arith.constant 0 : index
    %c0_5 = arith.constant 0 : index
    %5 = vector.load %arg1[%c2, %c0_4, %c0_5] : memref<9x256x8xbf16, #tpu.memory_space<vmem>>, vector<1x256x8xbf16>
    %6 = vector.shape_cast %5 : vector<1x256x8xbf16> to vector<256x8xbf16>
    %7 = arith.maximumf %4, %6 : vector<256x8xbf16>
    %c3 = arith.constant 3 : index
    %c0_6 = arith.constant 0 : index
    %c0_7 = arith.constant 0 : index
    %8 = vector.load %arg1[%c3, %c0_6, %c0_7] : memref<9x256x8xbf16, #tpu.memory_space<vmem>>, vector<1x256x8xbf16>
    %9 = vector.shape_cast %8 : vector<1x256x8xbf16> to vector<256x8xbf16>
    %10 = arith.maximumf %7, %9 : vector<256x8xbf16>
    %c4 = arith.constant 4 : index
    %c0_8 = arith.constant 0 : index
    %c0_9 = arith.constant 0 : index
    %11 = vector.load %arg1[%c4, %c0_8, %c0_9] : memref<9x256x8xbf16, #tpu.memory_space<vmem>>, vector<1x256x8xbf16>
    %12 = vector.shape_cast %11 : vector<1x256x8xbf16> to vector<256x8xbf16>
    %13 = arith.maximumf %10, %12 : vector<256x8xbf16>
    %c5 = arith.constant 5 : index
    %c0_10 = arith.constant 0 : index
    %c0_11 = arith.constant 0 : index
    %14 = vector.load %arg1[%c5, %c0_10, %c0_11] : memref<9x256x8xbf16, #tpu.memory_space<vmem>>, vector<1x256x8xbf16>
    %15 = vector.shape_cast %14 : vector<1x256x8xbf16> to vector<256x8xbf16>
    %16 = arith.maximumf %13, %15 : vector<256x8xbf16>
    %c6 = arith.constant 6 : index
    %c0_12 = arith.constant 0 : index
    %c0_13 = arith.constant 0 : index
    %17 = vector.load %arg1[%c6, %c0_12, %c0_13] : memref<9x256x8xbf16, #tpu.memory_space<vmem>>, vector<1x256x8xbf16>
    %18 = vector.shape_cast %17 : vector<1x256x8xbf16> to vector<256x8xbf16>
    %19 = arith.maximumf %16, %18 : vector<256x8xbf16>
    %c7 = arith.constant 7 : index
    %c0_14 = arith.constant 0 : index
    %c0_15 = arith.constant 0 : index
    %20 = vector.load %arg1[%c7, %c0_14, %c0_15] : memref<9x256x8xbf16, #tpu.memory_space<vmem>>, vector<1x256x8xbf16>
    %21 = vector.shape_cast %20 : vector<1x256x8xbf16> to vector<256x8xbf16>
    %22 = arith.maximumf %19, %21 : vector<256x8xbf16>
    %c8 = arith.constant 8 : index
    %c0_16 = arith.constant 0 : index
    %c0_17 = arith.constant 0 : index
    %23 = vector.load %arg1[%c8, %c0_16, %c0_17] : memref<9x256x8xbf16, #tpu.memory_space<vmem>>, vector<1x256x8xbf16>
    %24 = vector.shape_cast %23 : vector<1x256x8xbf16> to vector<256x8xbf16>
    %25 = arith.maximumf %22, %24 : vector<256x8xbf16>
    %c0_18 = arith.constant 0 : index
    %c0_19 = arith.constant 0 : index
    %26 = vector.load %arg2[%c0_18, %c0_19] : memref<256x8xbf16, #tpu.memory_space<vmem>>, vector<256x8xbf16>
    tpu.vector_store %arg2[%c0_18, %c0_19], %25 {strides = array<i32>} : memref<256x8xbf16, #tpu.memory_space<vmem>>, vector<256x8xbf16>,
    return
  }
  func.func @transform_0(%arg0: i32) -> (i32, i32, i32) {
    %c0_i32 = arith.constant 0 : i32
    %c0_i32_0 = arith.constant 0 : i32
    %c0_i32_1 = arith.constant 0 : i32
    return %c0_i32, %arg0, %c0_i32_0 : i32, i32, i32
  }
  func.func @transform_1(%arg0: i32) -> (i32, i32) {
    %c0_i32 = arith.constant 0 : i32
    %c0_i32_0 = arith.constant 0 : i32
    return %arg0, %c0_i32 : i32, i32
  }
}

module attributes {stable_mosaic.version = 11 : i64} {
  func.func @_conv_mm_kernel(%arg0: i32, %arg1: memref<256x128xbf16, #tpu.memory_space<vmem>>, %arg2: memref<128x128xbf16, #tpu.memory_space<vmem>>, %arg3: memref<1x128xf32, #tpu.memory_space<vmem>>, %arg4: memref<256x128xbf16, #tpu.memory_space<vmem>>) attributes {dimension_semantics = [#tpu.dimension_semantics<parallel>], iteration_bounds = array<i64: 2>, scalar_prefetch = 0 : i64, scratch_operands = 0 : i64, tpu.core_type = #tpu.core_type<tc>, window_params = [{transform_indices = @transform_0, window_bounds = array<i64: 256, 128>}, {pipeline_mode = #tpu.pipeline_mode<synchronous>, transform_indices = @transform_1, window_bounds = array<i64: 128, 128>}, {pipeline_mode = #tpu.pipeline_mode<synchronous>, transform_indices = @transform_2, window_bounds = array<i64: 1, 128>}, {transform_indices = @transform_3, window_bounds = array<i64: 256, 128>}]} {
    %c0 = arith.constant 0 : index
    %c0_0 = arith.constant 0 : index
    %0 = vector.load %arg1[%c0, %c0_0] : memref<256x128xbf16, #tpu.memory_space<vmem>>, vector<256x128xbf16>
    %c0_1 = arith.constant 0 : index
    %c0_2 = arith.constant 0 : index
    %1 = vector.load %arg2[%c0_1, %c0_2] : memref<128x128xbf16, #tpu.memory_space<vmem>>, vector<128x128xbf16>
    %cst = arith.constant dense<0.000000e+00> : vector<256x128xf32>
    %2 = tpu.matmul %0, %1, %cst {dimension_numbers = #tpu.dot_dimension_numbers<[1], [0], [0], [1], [0, 0, 1, 1], [], []>} : vector<256x128xbf16>, vector<128x128xbf16>, vector<256x128xf32> -> vector<256x128xf32>
    %c0_3 = arith.constant 0 : index
    %c0_4 = arith.constant 0 : index
    %3 = vector.load %arg3[%c0_3, %c0_4] : memref<1x128xf32, #tpu.memory_space<vmem>>, vector<1x128xf32>
    %4 = vector.broadcast %3 : vector<1x128xf32> to vector<256x128xf32>
    %5 = arith.addf %2, %4 : vector<256x128xf32>
    %cst_5 = arith.constant 0.000000e+00 : f32
    %6 = vector.broadcast %cst_5 : f32 to vector<256x128xf32>
    %7 = arith.maximumf %5, %6 : vector<256x128xf32>
    %8 = arith.truncf %7 : vector<256x128xf32> to vector<256x128xbf16>
    %c0_6 = arith.constant 0 : index
    %c0_7 = arith.constant 0 : index
    %9 = vector.load %arg4[%c0_6, %c0_7] : memref<256x128xbf16, #tpu.memory_space<vmem>>, vector<256x128xbf16>
    tpu.vector_store %arg4[%c0_6, %c0_7], %8 {strides = array<i32>} : memref<256x128xbf16, #tpu.memory_space<vmem>>, vector<256x128xbf16>,
    return
  }
  func.func @transform_0(%arg0: i32) -> (i32, i32) {
    %c0_i32 = arith.constant 0 : i32
    %c0_i32_0 = arith.constant 0 : i32
    return %arg0, %c0_i32 : i32, i32
  }
  func.func @transform_1(%arg0: i32) -> (i32, i32) {
    %c0_i32 = arith.constant 0 : i32
    %c0_i32_0 = arith.constant 0 : i32
    %c0_i32_1 = arith.constant 0 : i32
    return %c0_i32, %c0_i32_0 : i32, i32
  }
  func.func @transform_2(%arg0: i32) -> (i32, i32) {
    %c0_i32 = arith.constant 0 : i32
    %c0_i32_0 = arith.constant 0 : i32
    %c0_i32_1 = arith.constant 0 : i32
    return %c0_i32, %c0_i32_0 : i32, i32
  }
  func.func @transform_3(%arg0: i32) -> (i32, i32) {
    %c0_i32 = arith.constant 0 : i32
    %c0_i32_0 = arith.constant 0 : i32
    return %arg0, %c0_i32 : i32, i32
  }
}

module attributes {stable_mosaic.version = 11 : i64} {
  func.func @_conv_mm_kernel(%arg0: i32, %arg1: memref<64x128xbf16, #tpu.memory_space<vmem>>, %arg2: memref<128x128xbf16, #tpu.memory_space<vmem>>, %arg3: memref<1x128xf32, #tpu.memory_space<vmem>>, %arg4: memref<64x128xbf16, #tpu.memory_space<vmem>>) attributes {dimension_semantics = [#tpu.dimension_semantics<parallel>], iteration_bounds = array<i64: 2>, scalar_prefetch = 0 : i64, scratch_operands = 0 : i64, tpu.core_type = #tpu.core_type<tc>, window_params = [{transform_indices = @transform_0, window_bounds = array<i64: 64, 128>}, {pipeline_mode = #tpu.pipeline_mode<synchronous>, transform_indices = @transform_1, window_bounds = array<i64: 128, 128>}, {pipeline_mode = #tpu.pipeline_mode<synchronous>, transform_indices = @transform_2, window_bounds = array<i64: 1, 128>}, {transform_indices = @transform_3, window_bounds = array<i64: 64, 128>}]} {
    %c0 = arith.constant 0 : index
    %c0_0 = arith.constant 0 : index
    %0 = vector.load %arg1[%c0, %c0_0] : memref<64x128xbf16, #tpu.memory_space<vmem>>, vector<64x128xbf16>
    %c0_1 = arith.constant 0 : index
    %c0_2 = arith.constant 0 : index
    %1 = vector.load %arg2[%c0_1, %c0_2] : memref<128x128xbf16, #tpu.memory_space<vmem>>, vector<128x128xbf16>
    %cst = arith.constant dense<0.000000e+00> : vector<64x128xf32>
    %2 = tpu.matmul %0, %1, %cst {dimension_numbers = #tpu.dot_dimension_numbers<[1], [0], [0], [1], [0, 0, 1, 1], [], []>} : vector<64x128xbf16>, vector<128x128xbf16>, vector<64x128xf32> -> vector<64x128xf32>
    %c0_3 = arith.constant 0 : index
    %c0_4 = arith.constant 0 : index
    %3 = vector.load %arg3[%c0_3, %c0_4] : memref<1x128xf32, #tpu.memory_space<vmem>>, vector<1x128xf32>
    %4 = vector.broadcast %3 : vector<1x128xf32> to vector<64x128xf32>
    %5 = arith.addf %2, %4 : vector<64x128xf32>
    %6 = arith.truncf %5 : vector<64x128xf32> to vector<64x128xbf16>
    %c0_5 = arith.constant 0 : index
    %c0_6 = arith.constant 0 : index
    %7 = vector.load %arg4[%c0_5, %c0_6] : memref<64x128xbf16, #tpu.memory_space<vmem>>, vector<64x128xbf16>
    tpu.vector_store %arg4[%c0_5, %c0_6], %6 {strides = array<i32>} : memref<64x128xbf16, #tpu.memory_space<vmem>>, vector<64x128xbf16>,
    return
  }
  func.func @transform_0(%arg0: i32) -> (i32, i32) {
    %c0_i32 = arith.constant 0 : i32
    %c0_i32_0 = arith.constant 0 : i32
    return %arg0, %c0_i32 : i32, i32
  }
  func.func @transform_1(%arg0: i32) -> (i32, i32) {
    %c0_i32 = arith.constant 0 : i32
    %c0_i32_0 = arith.constant 0 : i32
    %c0_i32_1 = arith.constant 0 : i32
    return %c0_i32, %c0_i32_0 : i32, i32
  }
  func.func @transform_2(%arg0: i32) -> (i32, i32) {
    %c0_i32 = arith.constant 0 : i32
    %c0_i32_0 = arith.constant 0 : i32
    %c0_i32_1 = arith.constant 0 : i32
    return %c0_i32, %c0_i32_0 : i32, i32
  }
  func.func @transform_3(%arg0: i32) -> (i32, i32) {
    %c0_i32 = arith.constant 0 : i32
    %c0_i32_0 = arith.constant 0 : i32
    return %arg0, %c0_i32 : i32, i32
  }
}

module attributes {stable_mosaic.version = 11 : i64} {
  func.func @_conv_mm_kernel(%arg0: i32, %arg1: memref<256x128xbf16, #tpu.memory_space<vmem>>, %arg2: memref<128x128xbf16, #tpu.memory_space<vmem>>, %arg3: memref<1x128xf32, #tpu.memory_space<vmem>>, %arg4: memref<256x128xbf16, #tpu.memory_space<vmem>>, %arg5: memref<256x128xbf16, #tpu.memory_space<vmem>>) attributes {dimension_semantics = [#tpu.dimension_semantics<parallel>], iteration_bounds = array<i64: 2>, scalar_prefetch = 0 : i64, scratch_operands = 0 : i64, tpu.core_type = #tpu.core_type<tc>, window_params = [{transform_indices = @transform_0, window_bounds = array<i64: 256, 128>}, {pipeline_mode = #tpu.pipeline_mode<synchronous>, transform_indices = @transform_1, window_bounds = array<i64: 128, 128>}, {pipeline_mode = #tpu.pipeline_mode<synchronous>, transform_indices = @transform_2, window_bounds = array<i64: 1, 128>}, {transform_indices = @transform_3, window_bounds = array<i64: 256, 128>}, {transform_indices = @transform_4, window_bounds = array<i64: 256, 128>}]} {
    %c0 = arith.constant 0 : index
    %c0_0 = arith.constant 0 : index
    %0 = vector.load %arg1[%c0, %c0_0] : memref<256x128xbf16, #tpu.memory_space<vmem>>, vector<256x128xbf16>
    %c0_1 = arith.constant 0 : index
    %c0_2 = arith.constant 0 : index
    %1 = vector.load %arg2[%c0_1, %c0_2] : memref<128x128xbf16, #tpu.memory_space<vmem>>, vector<128x128xbf16>
    %cst = arith.constant dense<0.000000e+00> : vector<256x128xf32>
    %2 = tpu.matmul %0, %1, %cst {dimension_numbers = #tpu.dot_dimension_numbers<[1], [0], [0], [1], [0, 0, 1, 1], [], []>} : vector<256x128xbf16>, vector<128x128xbf16>, vector<256x128xf32> -> vector<256x128xf32>
    %c0_3 = arith.constant 0 : index
    %c0_4 = arith.constant 0 : index
    %3 = vector.load %arg3[%c0_3, %c0_4] : memref<1x128xf32, #tpu.memory_space<vmem>>, vector<1x128xf32>
    %4 = vector.broadcast %3 : vector<1x128xf32> to vector<256x128xf32>
    %5 = arith.addf %2, %4 : vector<256x128xf32>
    %c0_5 = arith.constant 0 : index
    %c0_6 = arith.constant 0 : index
    %6 = vector.load %arg4[%c0_5, %c0_6] : memref<256x128xbf16, #tpu.memory_space<vmem>>, vector<256x128xbf16>
    %7 = arith.extf %6 : vector<256x128xbf16> to vector<256x128xf32>
    %8 = arith.addf %5, %7 : vector<256x128xf32>
    %cst_7 = arith.constant 0.000000e+00 : f32
    %9 = vector.broadcast %cst_7 : f32 to vector<256x128xf32>
    %10 = arith.maximumf %8, %9 : vector<256x128xf32>
    %11 = arith.truncf %10 : vector<256x128xf32> to vector<256x128xbf16>
    %c0_8 = arith.constant 0 : index
    %c0_9 = arith.constant 0 : index
    %12 = vector.load %arg5[%c0_8, %c0_9] : memref<256x128xbf16, #tpu.memory_space<vmem>>, vector<256x128xbf16>
    tpu.vector_store %arg5[%c0_8, %c0_9], %11 {strides = array<i32>} : memref<256x128xbf16, #tpu.memory_space<vmem>>, vector<256x128xbf16>,
    return
  }
  func.func @transform_0(%arg0: i32) -> (i32, i32) {
    %c0_i32 = arith.constant 0 : i32
    %c0_i32_0 = arith.constant 0 : i32
    return %arg0, %c0_i32 : i32, i32
  }
  func.func @transform_1(%arg0: i32) -> (i32, i32) {
    %c0_i32 = arith.constant 0 : i32
    %c0_i32_0 = arith.constant 0 : i32
    %c0_i32_1 = arith.constant 0 : i32
    return %c0_i32, %c0_i32_0 : i32, i32
  }
  func.func @transform_2(%arg0: i32) -> (i32, i32) {
    %c0_i32 = arith.constant 0 : i32
    %c0_i32_0 = arith.constant 0 : i32
    %c0_i32_1 = arith.constant 0 : i32
    return %c0_i32, %c0_i32_0 : i32, i32
  }
  func.func @transform_3(%arg0: i32) -> (i32, i32) {
    %c0_i32 = arith.constant 0 : i32
    %c0_i32_0 = arith.constant 0 : i32
    return %arg0, %c0_i32 : i32, i32
  }
  func.func @transform_4(%arg0: i32) -> (i32, i32) {
    %c0_i32 = arith.constant 0 : i32
    %c0_i32_0 = arith.constant 0 : i32
    return %arg0, %c0_i32 : i32, i32
  }
}

module attributes {stable_mosaic.version = 11 : i64} {
  func.func @_conv_mm_kernel(%arg0: i32, %arg1: memref<64x128xbf16, #tpu.memory_space<vmem>>, %arg2: memref<128x128xbf16, #tpu.memory_space<vmem>>, %arg3: memref<1x128xf32, #tpu.memory_space<vmem>>, %arg4: memref<64x128xbf16, #tpu.memory_space<vmem>>) attributes {dimension_semantics = [#tpu.dimension_semantics<parallel>], iteration_bounds = array<i64: 2>, scalar_prefetch = 0 : i64, scratch_operands = 0 : i64, tpu.core_type = #tpu.core_type<tc>, window_params = [{transform_indices = @transform_0, window_bounds = array<i64: 64, 128>}, {pipeline_mode = #tpu.pipeline_mode<synchronous>, transform_indices = @transform_1, window_bounds = array<i64: 128, 128>}, {pipeline_mode = #tpu.pipeline_mode<synchronous>, transform_indices = @transform_2, window_bounds = array<i64: 1, 128>}, {transform_indices = @transform_3, window_bounds = array<i64: 64, 128>}]} {
    %c0 = arith.constant 0 : index
    %c0_0 = arith.constant 0 : index
    %0 = vector.load %arg1[%c0, %c0_0] : memref<64x128xbf16, #tpu.memory_space<vmem>>, vector<64x128xbf16>
    %c0_1 = arith.constant 0 : index
    %c0_2 = arith.constant 0 : index
    %1 = vector.load %arg2[%c0_1, %c0_2] : memref<128x128xbf16, #tpu.memory_space<vmem>>, vector<128x128xbf16>
    %cst = arith.constant dense<0.000000e+00> : vector<64x128xf32>
    %2 = tpu.matmul %0, %1, %cst {dimension_numbers = #tpu.dot_dimension_numbers<[1], [0], [0], [1], [0, 0, 1, 1], [], []>} : vector<64x128xbf16>, vector<128x128xbf16>, vector<64x128xf32> -> vector<64x128xf32>
    %c0_3 = arith.constant 0 : index
    %c0_4 = arith.constant 0 : index
    %3 = vector.load %arg3[%c0_3, %c0_4] : memref<1x128xf32, #tpu.memory_space<vmem>>, vector<1x128xf32>
    %4 = vector.broadcast %3 : vector<1x128xf32> to vector<64x128xf32>
    %5 = arith.addf %2, %4 : vector<64x128xf32>
    %cst_5 = arith.constant 0.000000e+00 : f32
    %6 = vector.broadcast %cst_5 : f32 to vector<64x128xf32>
    %7 = arith.maximumf %5, %6 : vector<64x128xf32>
    %8 = arith.truncf %7 : vector<64x128xf32> to vector<64x128xbf16>
    %c0_6 = arith.constant 0 : index
    %c0_7 = arith.constant 0 : index
    %9 = vector.load %arg4[%c0_6, %c0_7] : memref<64x128xbf16, #tpu.memory_space<vmem>>, vector<64x128xbf16>
    tpu.vector_store %arg4[%c0_6, %c0_7], %8 {strides = array<i32>} : memref<64x128xbf16, #tpu.memory_space<vmem>>, vector<64x128xbf16>,
    return
  }
  func.func @transform_0(%arg0: i32) -> (i32, i32) {
    %c0_i32 = arith.constant 0 : i32
    %c0_i32_0 = arith.constant 0 : i32
    return %arg0, %c0_i32 : i32, i32
  }
  func.func @transform_1(%arg0: i32) -> (i32, i32) {
    %c0_i32 = arith.constant 0 : i32
    %c0_i32_0 = arith.constant 0 : i32
    %c0_i32_1 = arith.constant 0 : i32
    return %c0_i32, %c0_i32_0 : i32, i32
  }
  func.func @transform_2(%arg0: i32) -> (i32, i32) {
    %c0_i32 = arith.constant 0 : i32
    %c0_i32_0 = arith.constant 0 : i32
    %c0_i32_1 = arith.constant 0 : i32
    return %c0_i32, %c0_i32_0 : i32, i32
  }
  func.func @transform_3(%arg0: i32) -> (i32, i32) {
    %c0_i32 = arith.constant 0 : i32
    %c0_i32_0 = arith.constant 0 : i32
    return %arg0, %c0_i32 : i32, i32
  }
}

module attributes {stable_mosaic.version = 11 : i64} {
  func.func @_conv_mm_kernel(%arg0: i32, %arg1: memref<64x256xbf16, #tpu.memory_space<vmem>>, %arg2: memref<256x128xbf16, #tpu.memory_space<vmem>>, %arg3: memref<1x128xf32, #tpu.memory_space<vmem>>, %arg4: memref<64x128xbf16, #tpu.memory_space<vmem>>, %arg5: memref<64x128xbf16, #tpu.memory_space<vmem>>) attributes {dimension_semantics = [#tpu.dimension_semantics<parallel>], iteration_bounds = array<i64: 2>, scalar_prefetch = 0 : i64, scratch_operands = 0 : i64, tpu.core_type = #tpu.core_type<tc>, window_params = [{transform_indices = @transform_0, window_bounds = array<i64: 64, 256>}, {pipeline_mode = #tpu.pipeline_mode<synchronous>, transform_indices = @transform_1, window_bounds = array<i64: 256, 128>}, {pipeline_mode = #tpu.pipeline_mode<synchronous>, transform_indices = @transform_2, window_bounds = array<i64: 1, 128>}, {transform_indices = @transform_3, window_bounds = array<i64: 64, 128>}, {transform_indices = @transform_4, window_bounds = array<i64: 64, 128>}]} {
    %c0 = arith.constant 0 : index
    %c0_0 = arith.constant 0 : index
    %0 = vector.load %arg1[%c0, %c0_0] : memref<64x256xbf16, #tpu.memory_space<vmem>>, vector<64x256xbf16>
    %c0_1 = arith.constant 0 : index
    %c0_2 = arith.constant 0 : index
    %1 = vector.load %arg2[%c0_1, %c0_2] : memref<256x128xbf16, #tpu.memory_space<vmem>>, vector<256x128xbf16>
    %cst = arith.constant dense<0.000000e+00> : vector<64x128xf32>
    %2 = tpu.matmul %0, %1, %cst {dimension_numbers = #tpu.dot_dimension_numbers<[1], [0], [0], [1], [0, 0, 1, 1], [], []>} : vector<64x256xbf16>, vector<256x128xbf16>, vector<64x128xf32> -> vector<64x128xf32>
    %c0_3 = arith.constant 0 : index
    %c0_4 = arith.constant 0 : index
    %3 = vector.load %arg3[%c0_3, %c0_4] : memref<1x128xf32, #tpu.memory_space<vmem>>, vector<1x128xf32>
    %4 = vector.broadcast %3 : vector<1x128xf32> to vector<64x128xf32>
    %5 = arith.addf %2, %4 : vector<64x128xf32>
    %c0_5 = arith.constant 0 : index
    %c0_6 = arith.constant 0 : index
    %6 = vector.load %arg4[%c0_5, %c0_6] : memref<64x128xbf16, #tpu.memory_space<vmem>>, vector<64x128xbf16>
    %7 = arith.extf %6 : vector<64x128xbf16> to vector<64x128xf32>
    %8 = arith.addf %5, %7 : vector<64x128xf32>
    %cst_7 = arith.constant 0.000000e+00 : f32
    %9 = vector.broadcast %cst_7 : f32 to vector<64x128xf32>
    %10 = arith.maximumf %8, %9 : vector<64x128xf32>
    %11 = arith.truncf %10 : vector<64x128xf32> to vector<64x128xbf16>
    %c0_8 = arith.constant 0 : index
    %c0_9 = arith.constant 0 : index
    %12 = vector.load %arg5[%c0_8, %c0_9] : memref<64x128xbf16, #tpu.memory_space<vmem>>, vector<64x128xbf16>
    tpu.vector_store %arg5[%c0_8, %c0_9], %11 {strides = array<i32>} : memref<64x128xbf16, #tpu.memory_space<vmem>>, vector<64x128xbf16>,
    return
  }
  func.func @transform_0(%arg0: i32) -> (i32, i32) {
    %c0_i32 = arith.constant 0 : i32
    %c0_i32_0 = arith.constant 0 : i32
    return %arg0, %c0_i32 : i32, i32
  }
  func.func @transform_1(%arg0: i32) -> (i32, i32) {
    %c0_i32 = arith.constant 0 : i32
    %c0_i32_0 = arith.constant 0 : i32
    %c0_i32_1 = arith.constant 0 : i32
    return %c0_i32, %c0_i32_0 : i32, i32
  }
  func.func @transform_2(%arg0: i32) -> (i32, i32) {
    %c0_i32 = arith.constant 0 : i32
    %c0_i32_0 = arith.constant 0 : i32
    %c0_i32_1 = arith.constant 0 : i32
    return %c0_i32, %c0_i32_0 : i32, i32
  }
  func.func @transform_3(%arg0: i32) -> (i32, i32) {
    %c0_i32 = arith.constant 0 : i32
    %c0_i32_0 = arith.constant 0 : i32
    return %arg0, %c0_i32 : i32, i32
  }
  func.func @transform_4(%arg0: i32) -> (i32, i32) {
    %c0_i32 = arith.constant 0 : i32
    %c0_i32_0 = arith.constant 0 : i32
    return %arg0, %c0_i32 : i32, i32
  }
}

module attributes {stable_mosaic.version = 11 : i64} {
  func.func @_conv_mm_kernel(%arg0: i32, %arg1: memref<16x128xbf16, #tpu.memory_space<vmem>>, %arg2: memref<128x128xbf16, #tpu.memory_space<vmem>>, %arg3: memref<1x128xf32, #tpu.memory_space<vmem>>, %arg4: memref<16x128xbf16, #tpu.memory_space<vmem>>) attributes {dimension_semantics = [#tpu.dimension_semantics<parallel>], iteration_bounds = array<i64: 2>, scalar_prefetch = 0 : i64, scratch_operands = 0 : i64, tpu.core_type = #tpu.core_type<tc>, window_params = [{transform_indices = @transform_0, window_bounds = array<i64: 16, 128>}, {pipeline_mode = #tpu.pipeline_mode<synchronous>, transform_indices = @transform_1, window_bounds = array<i64: 128, 128>}, {pipeline_mode = #tpu.pipeline_mode<synchronous>, transform_indices = @transform_2, window_bounds = array<i64: 1, 128>}, {transform_indices = @transform_3, window_bounds = array<i64: 16, 128>}]} {
    %c0 = arith.constant 0 : index
    %c0_0 = arith.constant 0 : index
    %0 = vector.load %arg1[%c0, %c0_0] : memref<16x128xbf16, #tpu.memory_space<vmem>>, vector<16x128xbf16>
    %c0_1 = arith.constant 0 : index
    %c0_2 = arith.constant 0 : index
    %1 = vector.load %arg2[%c0_1, %c0_2] : memref<128x128xbf16, #tpu.memory_space<vmem>>, vector<128x128xbf16>
    %cst = arith.constant dense<0.000000e+00> : vector<16x128xf32>
    %2 = tpu.matmul %0, %1, %cst {dimension_numbers = #tpu.dot_dimension_numbers<[1], [0], [0], [1], [0, 0, 1, 1], [], []>} : vector<16x128xbf16>, vector<128x128xbf16>, vector<16x128xf32> -> vector<16x128xf32>
    %c0_3 = arith.constant 0 : index
    %c0_4 = arith.constant 0 : index
    %3 = vector.load %arg3[%c0_3, %c0_4] : memref<1x128xf32, #tpu.memory_space<vmem>>, vector<1x128xf32>
    %4 = vector.broadcast %3 : vector<1x128xf32> to vector<16x128xf32>
    %5 = arith.addf %2, %4 : vector<16x128xf32>
    %6 = arith.truncf %5 : vector<16x128xf32> to vector<16x128xbf16>
    %c0_5 = arith.constant 0 : index
    %c0_6 = arith.constant 0 : index
    %7 = vector.load %arg4[%c0_5, %c0_6] : memref<16x128xbf16, #tpu.memory_space<vmem>>, vector<16x128xbf16>
    tpu.vector_store %arg4[%c0_5, %c0_6], %6 {strides = array<i32>} : memref<16x128xbf16, #tpu.memory_space<vmem>>, vector<16x128xbf16>,
    return
  }
  func.func @transform_0(%arg0: i32) -> (i32, i32) {
    %c0_i32 = arith.constant 0 : i32
    %c0_i32_0 = arith.constant 0 : i32
    return %arg0, %c0_i32 : i32, i32
  }
  func.func @transform_1(%arg0: i32) -> (i32, i32) {
    %c0_i32 = arith.constant 0 : i32
    %c0_i32_0 = arith.constant 0 : i32
    %c0_i32_1 = arith.constant 0 : i32
    return %c0_i32, %c0_i32_0 : i32, i32
  }
  func.func @transform_2(%arg0: i32) -> (i32, i32) {
    %c0_i32 = arith.constant 0 : i32
    %c0_i32_0 = arith.constant 0 : i32
    %c0_i32_1 = arith.constant 0 : i32
    return %c0_i32, %c0_i32_0 : i32, i32
  }
  func.func @transform_3(%arg0: i32) -> (i32, i32) {
    %c0_i32 = arith.constant 0 : i32
    %c0_i32_0 = arith.constant 0 : i32
    return %arg0, %c0_i32 : i32, i32
  }
}

module attributes {stable_mosaic.version = 11 : i64} {
  func.func @_conv_mm_kernel(%arg0: i32, %arg1: memref<16x256xbf16, #tpu.memory_space<vmem>>, %arg2: memref<256x128xbf16, #tpu.memory_space<vmem>>, %arg3: memref<1x128xf32, #tpu.memory_space<vmem>>, %arg4: memref<16x128xbf16, #tpu.memory_space<vmem>>) attributes {dimension_semantics = [#tpu.dimension_semantics<parallel>], iteration_bounds = array<i64: 2>, scalar_prefetch = 0 : i64, scratch_operands = 0 : i64, tpu.core_type = #tpu.core_type<tc>, window_params = [{transform_indices = @transform_0, window_bounds = array<i64: 16, 256>}, {pipeline_mode = #tpu.pipeline_mode<synchronous>, transform_indices = @transform_1, window_bounds = array<i64: 256, 128>}, {pipeline_mode = #tpu.pipeline_mode<synchronous>, transform_indices = @transform_2, window_bounds = array<i64: 1, 128>}, {transform_indices = @transform_3, window_bounds = array<i64: 16, 128>}]} {
    %c0 = arith.constant 0 : index
    %c0_0 = arith.constant 0 : index
    %0 = vector.load %arg1[%c0, %c0_0] : memref<16x256xbf16, #tpu.memory_space<vmem>>, vector<16x256xbf16>
    %c0_1 = arith.constant 0 : index
    %c0_2 = arith.constant 0 : index
    %1 = vector.load %arg2[%c0_1, %c0_2] : memref<256x128xbf16, #tpu.memory_space<vmem>>, vector<256x128xbf16>
    %cst = arith.constant dense<0.000000e+00> : vector<16x128xf32>
    %2 = tpu.matmul %0, %1, %cst {dimension_numbers = #tpu.dot_dimension_numbers<[1], [0], [0], [1], [0, 0, 1, 1], [], []>} : vector<16x256xbf16>, vector<256x128xbf16>, vector<16x128xf32> -> vector<16x128xf32>
    %c0_3 = arith.constant 0 : index
    %c0_4 = arith.constant 0 : index
    %3 = vector.load %arg3[%c0_3, %c0_4] : memref<1x128xf32, #tpu.memory_space<vmem>>, vector<1x128xf32>
    %4 = vector.broadcast %3 : vector<1x128xf32> to vector<16x128xf32>
    %5 = arith.addf %2, %4 : vector<16x128xf32>
    %cst_5 = arith.constant 0.000000e+00 : f32
    %6 = vector.broadcast %cst_5 : f32 to vector<16x128xf32>
    %7 = arith.maximumf %5, %6 : vector<16x128xf32>
    %8 = arith.truncf %7 : vector<16x128xf32> to vector<16x128xbf16>
    %c0_6 = arith.constant 0 : index
    %c0_7 = arith.constant 0 : index
    %9 = vector.load %arg4[%c0_6, %c0_7] : memref<16x128xbf16, #tpu.memory_space<vmem>>, vector<16x128xbf16>
    tpu.vector_store %arg4[%c0_6, %c0_7], %8 {strides = array<i32>} : memref<16x128xbf16, #tpu.memory_space<vmem>>, vector<16x128xbf16>,
    return
  }
  func.func @transform_0(%arg0: i32) -> (i32, i32) {
    %c0_i32 = arith.constant 0 : i32
    %c0_i32_0 = arith.constant 0 : i32
    return %arg0, %c0_i32 : i32, i32
  }
  func.func @transform_1(%arg0: i32) -> (i32, i32) {
    %c0_i32 = arith.constant 0 : i32
    %c0_i32_0 = arith.constant 0 : i32
    %c0_i32_1 = arith.constant 0 : i32
    return %c0_i32, %c0_i32_0 : i32, i32
  }
  func.func @transform_2(%arg0: i32) -> (i32, i32) {
    %c0_i32 = arith.constant 0 : i32
    %c0_i32_0 = arith.constant 0 : i32
    %c0_i32_1 = arith.constant 0 : i32
    return %c0_i32, %c0_i32_0 : i32, i32
  }
  func.func @transform_3(%arg0: i32) -> (i32, i32) {
    %c0_i32 = arith.constant 0 : i32
    %c0_i32_0 = arith.constant 0 : i32
    return %arg0, %c0_i32 : i32, i32
  }
}

module attributes {stable_mosaic.version = 11 : i64} {
  func.func @_conv_mm_kernel(%arg0: i32, %arg1: memref<8x128xbf16, #tpu.memory_space<vmem>>, %arg2: memref<128x128xbf16, #tpu.memory_space<vmem>>, %arg3: memref<1x128xf32, #tpu.memory_space<vmem>>, %arg4: memref<8x128xbf16, #tpu.memory_space<vmem>>) attributes {dimension_semantics = [#tpu.dimension_semantics<parallel>], iteration_bounds = array<i64: 1>, scalar_prefetch = 0 : i64, scratch_operands = 0 : i64, tpu.core_type = #tpu.core_type<tc>, window_params = [{transform_indices = @transform_0, window_bounds = array<i64: 8, 128>}, {pipeline_mode = #tpu.pipeline_mode<synchronous>, transform_indices = @transform_1, window_bounds = array<i64: 128, 128>}, {pipeline_mode = #tpu.pipeline_mode<synchronous>, transform_indices = @transform_2, window_bounds = array<i64: 1, 128>}, {transform_indices = @transform_3, window_bounds = array<i64: 8, 128>}]} {
    %c0 = arith.constant 0 : index
    %c0_0 = arith.constant 0 : index
    %0 = vector.load %arg1[%c0, %c0_0] : memref<8x128xbf16, #tpu.memory_space<vmem>>, vector<8x128xbf16>
    %c0_1 = arith.constant 0 : index
    %c0_2 = arith.constant 0 : index
    %1 = vector.load %arg2[%c0_1, %c0_2] : memref<128x128xbf16, #tpu.memory_space<vmem>>, vector<128x128xbf16>
    %cst = arith.constant dense<0.000000e+00> : vector<8x128xf32>
    %2 = tpu.matmul %0, %1, %cst {dimension_numbers = #tpu.dot_dimension_numbers<[1], [0], [0], [1], [0, 0, 1, 1], [], []>} : vector<8x128xbf16>, vector<128x128xbf16>, vector<8x128xf32> -> vector<8x128xf32>
    %c0_3 = arith.constant 0 : index
    %c0_4 = arith.constant 0 : index
    %3 = vector.load %arg3[%c0_3, %c0_4] : memref<1x128xf32, #tpu.memory_space<vmem>>, vector<1x128xf32>
    %4 = vector.broadcast %3 : vector<1x128xf32> to vector<8x128xf32>
    %5 = arith.addf %2, %4 : vector<8x128xf32>
    %6 = arith.truncf %5 : vector<8x128xf32> to vector<8x128xbf16>
    %c0_5 = arith.constant 0 : index
    %c0_6 = arith.constant 0 : index
    %7 = vector.load %arg4[%c0_5, %c0_6] : memref<8x128xbf16, #tpu.memory_space<vmem>>, vector<8x128xbf16>
    tpu.vector_store %arg4[%c0_5, %c0_6], %6 {strides = array<i32>} : memref<8x128xbf16, #tpu.memory_space<vmem>>, vector<8x128xbf16>,
    return
  }
  func.func @transform_0(%arg0: i32) -> (i32, i32) {
    %c0_i32 = arith.constant 0 : i32
    %c0_i32_0 = arith.constant 0 : i32
    return %arg0, %c0_i32 : i32, i32
  }
  func.func @transform_1(%arg0: i32) -> (i32, i32) {
    %c0_i32 = arith.constant 0 : i32
    %c0_i32_0 = arith.constant 0 : i32
    %c0_i32_1 = arith.constant 0 : i32
    return %c0_i32, %c0_i32_0 : i32, i32
  }
  func.func @transform_2(%arg0: i32) -> (i32, i32) {
    %c0_i32 = arith.constant 0 : i32
    %c0_i32_0 = arith.constant 0 : i32
    %c0_i32_1 = arith.constant 0 : i32
    return %c0_i32, %c0_i32_0 : i32, i32
  }
  func.func @transform_3(%arg0: i32) -> (i32, i32) {
    %c0_i32 = arith.constant 0 : i32
    %c0_i32_0 = arith.constant 0 : i32
    return %arg0, %c0_i32 : i32, i32
  }
}

module attributes {stable_mosaic.version = 11 : i64} {
  func.func @_conv_mm_kernel(%arg0: i32, %arg1: memref<16x384xbf16, #tpu.memory_space<vmem>>, %arg2: memref<384x128xbf16, #tpu.memory_space<vmem>>, %arg3: memref<1x128xf32, #tpu.memory_space<vmem>>, %arg4: memref<16x128xbf16, #tpu.memory_space<vmem>>, %arg5: memref<16x128xbf16, #tpu.memory_space<vmem>>) attributes {dimension_semantics = [#tpu.dimension_semantics<parallel>], iteration_bounds = array<i64: 2>, scalar_prefetch = 0 : i64, scratch_operands = 0 : i64, tpu.core_type = #tpu.core_type<tc>, window_params = [{transform_indices = @transform_0, window_bounds = array<i64: 16, 384>}, {pipeline_mode = #tpu.pipeline_mode<synchronous>, transform_indices = @transform_1, window_bounds = array<i64: 384, 128>}, {pipeline_mode = #tpu.pipeline_mode<synchronous>, transform_indices = @transform_2, window_bounds = array<i64: 1, 128>}, {transform_indices = @transform_3, window_bounds = array<i64: 16, 128>}, {transform_indices = @transform_4, window_bounds = array<i64: 16, 128>}]} {
    %c0 = arith.constant 0 : index
    %c0_0 = arith.constant 0 : index
    %0 = vector.load %arg1[%c0, %c0_0] : memref<16x384xbf16, #tpu.memory_space<vmem>>, vector<16x384xbf16>
    %c0_1 = arith.constant 0 : index
    %c0_2 = arith.constant 0 : index
    %1 = vector.load %arg2[%c0_1, %c0_2] : memref<384x128xbf16, #tpu.memory_space<vmem>>, vector<384x128xbf16>
    %cst = arith.constant dense<0.000000e+00> : vector<16x128xf32>
    %2 = tpu.matmul %0, %1, %cst {dimension_numbers = #tpu.dot_dimension_numbers<[1], [0], [0], [1], [0, 0, 1, 1], [], []>} : vector<16x384xbf16>, vector<384x128xbf16>, vector<16x128xf32> -> vector<16x128xf32>
    %c0_3 = arith.constant 0 : index
    %c0_4 = arith.constant 0 : index
    %3 = vector.load %arg3[%c0_3, %c0_4] : memref<1x128xf32, #tpu.memory_space<vmem>>, vector<1x128xf32>
    %4 = vector.broadcast %3 : vector<1x128xf32> to vector<16x128xf32>
    %5 = arith.addf %2, %4 : vector<16x128xf32>
    %c0_5 = arith.constant 0 : index
    %c0_6 = arith.constant 0 : index
    %6 = vector.load %arg4[%c0_5, %c0_6] : memref<16x128xbf16, #tpu.memory_space<vmem>>, vector<16x128xbf16>
    %7 = arith.extf %6 : vector<16x128xbf16> to vector<16x128xf32>
    %8 = arith.addf %5, %7 : vector<16x128xf32>
    %cst_7 = arith.constant 0.000000e+00 : f32
    %9 = vector.broadcast %cst_7 : f32 to vector<16x128xf32>
    %10 = arith.maximumf %8, %9 : vector<16x128xf32>
    %11 = arith.truncf %10 : vector<16x128xf32> to vector<16x128xbf16>
    %c0_8 = arith.constant 0 : index
    %c0_9 = arith.constant 0 : index
    %12 = vector.load %arg5[%c0_8, %c0_9] : memref<16x128xbf16, #tpu.memory_space<vmem>>, vector<16x128xbf16>
    tpu.vector_store %arg5[%c0_8, %c0_9], %11 {strides = array<i32>} : memref<16x128xbf16, #tpu.memory_space<vmem>>, vector<16x128xbf16>,
    return
  }
  func.func @transform_0(%arg0: i32) -> (i32, i32) {
    %c0_i32 = arith.constant 0 : i32
    %c0_i32_0 = arith.constant 0 : i32
    return %arg0, %c0_i32 : i32, i32
  }
  func.func @transform_1(%arg0: i32) -> (i32, i32) {
    %c0_i32 = arith.constant 0 : i32
    %c0_i32_0 = arith.constant 0 : i32
    %c0_i32_1 = arith.constant 0 : i32
    return %c0_i32, %c0_i32_0 : i32, i32
  }
  func.func @transform_2(%arg0: i32) -> (i32, i32) {
    %c0_i32 = arith.constant 0 : i32
    %c0_i32_0 = arith.constant 0 : i32
    %c0_i32_1 = arith.constant 0 : i32
    return %c0_i32, %c0_i32_0 : i32, i32
  }
  func.func @transform_3(%arg0: i32) -> (i32, i32) {
    %c0_i32 = arith.constant 0 : i32
    %c0_i32_0 = arith.constant 0 : i32
    return %arg0, %c0_i32 : i32, i32
  }
  func.func @transform_4(%arg0: i32) -> (i32, i32) {
    %c0_i32 = arith.constant 0 : i32
    %c0_i32_0 = arith.constant 0 : i32
    return %arg0, %c0_i32 : i32, i32
  }
}

module attributes {stable_mosaic.version = 11 : i64} {
  func.func @_head_kernel(%arg0: memref<2x4x64xbf16, #tpu.memory_space<vmem>>, %arg1: memref<64x128xbf16, #tpu.memory_space<vmem>>, %arg2: memref<1x128xf32, #tpu.memory_space<vmem>>, %arg3: memref<2x128xf32, #tpu.memory_space<vmem>>) attributes {dimension_semantics = [], scalar_prefetch = 0 : i64, scratch_operands = 0 : i64, tpu.core_type = #tpu.core_type<tc>} {
    %c0 = arith.constant 0 : index
    %c0_0 = arith.constant 0 : index
    %c0_1 = arith.constant 0 : index
    %0 = vector.load %arg0[%c0, %c0_0, %c0_1] : memref<2x4x64xbf16, #tpu.memory_space<vmem>>, vector<2x4x64xbf16>
    %1 = arith.extf %0 : vector<2x4x64xbf16> to vector<2x4x64xf32>
    %cst = arith.constant dense<0.000000e+00> : vector<2x64xf32>
    %2 = vector.multi_reduction <add>, %1, %cst [1] : vector<2x4x64xf32> to vector<2x64xf32>
    %cst_2 = arith.constant 4.000000e+00 : f32
    %3 = vector.broadcast %cst_2 : f32 to vector<2x64xf32>
    %4 = arith.divf %2, %3 : vector<2x64xf32>
    %5 = arith.truncf %4 : vector<2x64xf32> to vector<2x64xbf16>
    %c0_3 = arith.constant 0 : index
    %c0_4 = arith.constant 0 : index
    %6 = vector.load %arg1[%c0_3, %c0_4] : memref<64x128xbf16, #tpu.memory_space<vmem>>, vector<64x128xbf16>
    %cst_5 = arith.constant dense<0.000000e+00> : vector<2x128xf32>
    %7 = tpu.matmul %5, %6, %cst_5 {dimension_numbers = #tpu.dot_dimension_numbers<[1], [0], [0], [1], [0, 0, 1, 1], [], []>} : vector<2x64xbf16>, vector<64x128xbf16>, vector<2x128xf32> -> vector<2x128xf32>
    %c0_6 = arith.constant 0 : index
    %c0_7 = arith.constant 0 : index
    %8 = vector.load %arg2[%c0_6, %c0_7] : memref<1x128xf32, #tpu.memory_space<vmem>>, vector<1x128xf32>
    %9 = vector.broadcast %8 : vector<1x128xf32> to vector<2x128xf32>
    %10 = arith.addf %7, %9 : vector<2x128xf32>
    %c0_8 = arith.constant 0 : index
    %c0_9 = arith.constant 0 : index
    %11 = vector.load %arg3[%c0_8, %c0_9] : memref<2x128xf32, #tpu.memory_space<vmem>>, vector<2x128xf32>
    tpu.vector_store %arg3[%c0_8, %c0_9], %10 {strides = array<i32>} : memref<2x128xf32, #tpu.memory_space<vmem>>, vector<2x128xf32>,
    return
  }
}

module attributes {stable_mosaic.version = 11 : i64} {
  func.func @_conv_mm_kernel(%arg0: i32, %arg1: memref<8x640xbf16, #tpu.memory_space<vmem>>, %arg2: memref<640x128xbf16, #tpu.memory_space<vmem>>, %arg3: memref<1x128xf32, #tpu.memory_space<vmem>>, %arg4: memref<8x128xbf16, #tpu.memory_space<vmem>>, %arg5: memref<8x128xbf16, #tpu.memory_space<vmem>>) attributes {dimension_semantics = [#tpu.dimension_semantics<parallel>], iteration_bounds = array<i64: 1>, scalar_prefetch = 0 : i64, scratch_operands = 0 : i64, tpu.core_type = #tpu.core_type<tc>, window_params = [{transform_indices = @transform_0, window_bounds = array<i64: 8, 640>}, {pipeline_mode = #tpu.pipeline_mode<synchronous>, transform_indices = @transform_1, window_bounds = array<i64: 640, 128>}, {pipeline_mode = #tpu.pipeline_mode<synchronous>, transform_indices = @transform_2, window_bounds = array<i64: 1, 128>}, {transform_indices = @transform_3, window_bounds = array<i64: 8, 128>}, {transform_indices = @transform_4, window_bounds = array<i64: 8, 128>}]} {
    %c0 = arith.constant 0 : index
    %c0_0 = arith.constant 0 : index
    %0 = vector.load %arg1[%c0, %c0_0] : memref<8x640xbf16, #tpu.memory_space<vmem>>, vector<8x640xbf16>
    %c0_1 = arith.constant 0 : index
    %c0_2 = arith.constant 0 : index
    %1 = vector.load %arg2[%c0_1, %c0_2] : memref<640x128xbf16, #tpu.memory_space<vmem>>, vector<640x128xbf16>
    %cst = arith.constant dense<0.000000e+00> : vector<8x128xf32>
    %2 = tpu.matmul %0, %1, %cst {dimension_numbers = #tpu.dot_dimension_numbers<[1], [0], [0], [1], [0, 0, 1, 1], [], []>} : vector<8x640xbf16>, vector<640x128xbf16>, vector<8x128xf32> -> vector<8x128xf32>
    %c0_3 = arith.constant 0 : index
    %c0_4 = arith.constant 0 : index
    %3 = vector.load %arg3[%c0_3, %c0_4] : memref<1x128xf32, #tpu.memory_space<vmem>>, vector<1x128xf32>
    %4 = vector.broadcast %3 : vector<1x128xf32> to vector<8x128xf32>
    %5 = arith.addf %2, %4 : vector<8x128xf32>
    %c0_5 = arith.constant 0 : index
    %c0_6 = arith.constant 0 : index
    %6 = vector.load %arg4[%c0_5, %c0_6] : memref<8x128xbf16, #tpu.memory_space<vmem>>, vector<8x128xbf16>
    %7 = arith.extf %6 : vector<8x128xbf16> to vector<8x128xf32>
    %8 = arith.addf %5, %7 : vector<8x128xf32>
    %cst_7 = arith.constant 0.000000e+00 : f32
    %9 = vector.broadcast %cst_7 : f32 to vector<8x128xf32>
    %10 = arith.maximumf %8, %9 : vector<8x128xf32>
    %11 = arith.truncf %10 : vector<8x128xf32> to vector<8x128xbf16>
    %c0_8 = arith.constant 0 : index
    %c0_9 = arith.constant 0 : index
    %12 = vector.load %arg5[%c0_8, %c0_9] : memref<8x128xbf16, #tpu.memory_space<vmem>>, vector<8x128xbf16>
    tpu.vector_store %arg5[%c0_8, %c0_9], %11 {strides = array<i32>} : memref<8x128xbf16, #tpu.memory_space<vmem>>, vector<8x128xbf16>,
    return
  }
  func.func @transform_0(%arg0: i32) -> (i32, i32) {
    %c0_i32 = arith.constant 0 : i32
    %c0_i32_0 = arith.constant 0 : i32
    return %arg0, %c0_i32 : i32, i32
  }
  func.func @transform_1(%arg0: i32) -> (i32, i32) {
    %c0_i32 = arith.constant 0 : i32
    %c0_i32_0 = arith.constant 0 : i32
    %c0_i32_1 = arith.constant 0 : i32
    return %c0_i32, %c0_i32_0 : i32, i32
  }
  func.func @transform_2(%arg0: i32) -> (i32, i32) {
    %c0_i32 = arith.constant 0 : i32
    %c0_i32_0 = arith.constant 0 : i32
    %c0_i32_1 = arith.constant 0 : i32
    return %c0_i32, %c0_i32_0 : i32, i32
  }
  func.func @transform_3(%arg0: i32) -> (i32, i32) {
    %c0_i32 = arith.constant 0 : i32
    %c0_i32_0 = arith.constant 0 : i32
    return %arg0, %c0_i32 : i32, i32
  }
  func.func @transform_4(%arg0: i32) -> (i32, i32) {
    %c0_i32 = arith.constant 0 : i32
    %c0_i32_0 = arith.constant 0 : i32
    return %arg0, %c0_i32 : i32, i32
  }
}

module attributes {stable_mosaic.version = 11 : i64} {
  func.func @_conv_mm_kernel(%arg0: i32, %arg1: memref<8x384xbf16, #tpu.memory_space<vmem>>, %arg2: memref<384x128xbf16, #tpu.memory_space<vmem>>, %arg3: memref<1x128xf32, #tpu.memory_space<vmem>>, %arg4: memref<8x128xbf16, #tpu.memory_space<vmem>>) attributes {dimension_semantics = [#tpu.dimension_semantics<parallel>], iteration_bounds = array<i64: 1>, scalar_prefetch = 0 : i64, scratch_operands = 0 : i64, tpu.core_type = #tpu.core_type<tc>, window_params = [{transform_indices = @transform_0, window_bounds = array<i64: 8, 384>}, {pipeline_mode = #tpu.pipeline_mode<synchronous>, transform_indices = @transform_1, window_bounds = array<i64: 384, 128>}, {pipeline_mode = #tpu.pipeline_mode<synchronous>, transform_indices = @transform_2, window_bounds = array<i64: 1, 128>}, {transform_indices = @transform_3, window_bounds = array<i64: 8, 128>}]} {
    %c0 = arith.constant 0 : index
    %c0_0 = arith.constant 0 : index
    %0 = vector.load %arg1[%c0, %c0_0] : memref<8x384xbf16, #tpu.memory_space<vmem>>, vector<8x384xbf16>
    %c0_1 = arith.constant 0 : index
    %c0_2 = arith.constant 0 : index
    %1 = vector.load %arg2[%c0_1, %c0_2] : memref<384x128xbf16, #tpu.memory_space<vmem>>, vector<384x128xbf16>
    %cst = arith.constant dense<0.000000e+00> : vector<8x128xf32>
    %2 = tpu.matmul %0, %1, %cst {dimension_numbers = #tpu.dot_dimension_numbers<[1], [0], [0], [1], [0, 0, 1, 1], [], []>} : vector<8x384xbf16>, vector<384x128xbf16>, vector<8x128xf32> -> vector<8x128xf32>
    %c0_3 = arith.constant 0 : index
    %c0_4 = arith.constant 0 : index
    %3 = vector.load %arg3[%c0_3, %c0_4] : memref<1x128xf32, #tpu.memory_space<vmem>>, vector<1x128xf32>
    %4 = vector.broadcast %3 : vector<1x128xf32> to vector<8x128xf32>
    %5 = arith.addf %2, %4 : vector<8x128xf32>
    %cst_5 = arith.constant 0.000000e+00 : f32
    %6 = vector.broadcast %cst_5 : f32 to vector<8x128xf32>
    %7 = arith.maximumf %5, %6 : vector<8x128xf32>
    %8 = arith.truncf %7 : vector<8x128xf32> to vector<8x128xbf16>
    %c0_6 = arith.constant 0 : index
    %c0_7 = arith.constant 0 : index
    %9 = vector.load %arg4[%c0_6, %c0_7] : memref<8x128xbf16, #tpu.memory_space<vmem>>, vector<8x128xbf16>
    tpu.vector_store %arg4[%c0_6, %c0_7], %8 {strides = array<i32>} : memref<8x128xbf16, #tpu.memory_space<vmem>>, vector<8x128xbf16>,
    return
  }
  func.func @transform_0(%arg0: i32) -> (i32, i32) {
    %c0_i32 = arith.constant 0 : i32
    %c0_i32_0 = arith.constant 0 : i32
    return %arg0, %c0_i32 : i32, i32
  }
  func.func @transform_1(%arg0: i32) -> (i32, i32) {
    %c0_i32 = arith.constant 0 : i32
    %c0_i32_0 = arith.constant 0 : i32
    %c0_i32_1 = arith.constant 0 : i32
    return %c0_i32, %c0_i32_0 : i32, i32
  }
  func.func @transform_2(%arg0: i32) -> (i32, i32) {
    %c0_i32 = arith.constant 0 : i32
    %c0_i32_0 = arith.constant 0 : i32
    %c0_i32_1 = arith.constant 0 : i32
    return %c0_i32, %c0_i32_0 : i32, i32
  }
  func.func @transform_3(%arg0: i32) -> (i32, i32) {
    %c0_i32 = arith.constant 0 : i32
    %c0_i32_0 = arith.constant 0 : i32
    return %arg0, %c0_i32 : i32, i32
  }
}

</mosaic_0001>

<llo_original>
// kernel: _lambda_.14
$region0: #{_lambda_.14}
  #allocation0 [shape = 'u32[]', space=smem, size = 0x4, offset = 0x4, fixed_abs, tag = 'smem constant byte address 0x4 - core index']
  #allocation1 [shape = 'u32[144,128]{1,0:T(1,128)}', space=vmem, size = 0x12000, scoped, tag = 'internal scratch']
  %s0 = inlined_call_operand.vmem [shape: bf16[2048,256], index: 0, kind: input, shape index: {}]
  %s1 = inlined_call_operand.vmem [shape: bf16[256,128], index: 1, kind: input, shape index: {}]
  %s2 = inlined_call_operand.vmem [shape: f32[1,128], index: 2, kind: input, shape index: {}]
  %s3 = inlined_call_operand.vmem [shape: bf16[2048,128], index: 3, kind: output, shape index: {}]
  %s4 = sld [smem:[#allocation0]]
  $region45: #{_lambda_.14} parent=0
    _
  %s6 = ssub.s32 1, %s4
  %s7 = scalar_select 0, %s6, %s4
  loop: start=0, step=1, limit=6
  $region2: #{_lambda_.14} parent=0 // loop_pre_header
    _
  $region3: #{_lambda_.14} parent=0 // loop_header
    %s9 = sphi 0, %s13
    %p10 = scmp.ge.s32.totalorder %s9, 6
    %s19 = sphi 0, %s21
    %s22 = sphi 0, %s19
    %s23 = sphi 0, %s22
    %s39 = sphi 0, %s23
    %s43 = sphi 0, %s43
    %s45 = sphi 0, %s43
    %s46 = sphi 0, %s45
    %s60 = sphi 0, %s46
    %s64 = sphi 0, %s64
    %s66 = sphi 0, %s64
    %s67 = sphi 0, %s66
    %s81 = sphi 0, %s67
    %s87 = sphi 0, %s89
    %s90 = sphi 0, %s87
    %s91 = sphi 0, %s90
    %s107 = sphi 0, %s91
  $region4: #{_lambda_.14} parent=0 // loop_header_branch
    %12 = sbr.rel (%p10) target = $region8
  $region5: #{_lambda_.14} parent=0 // loop_body
    %s14 = ssub.s32 %s9, 1
    %s15 = ssub.s32 %s9, 2
    %s16 = sadd.s32 %s9, 1
    %s17 = ssub.s32 %s9, %s16
    %p18 = scmp.eq.s32.totalorder %s17, 0
    %s20 = sadd.s32 %s19, 1
    %s21 = scalar_select %p18, %s19, %s20
    %p24 = pneg %p18
    %p25 = scmp.eq.s32.totalorder %s9, 3
    %p26 = por %p24, %p25
    %p27 = scmp.ne.s32.totalorder %s19, %s22
    %p28 = scmp.eq.s32.totalorder %s9, 0
    %p29 = por %p27, %p28
    %p30 = scmp.ne.s32.totalorder %s19, %s22
    %p31 = scmp.eq.s32.totalorder %s14, 3
    %p32 = por %p30, %p31
    %p33 = scmp.ne.s32.totalorder %s22, %s23
    %p34 = scmp.eq.s32.totalorder %s14, 0
    %p35 = por %p33, %p34
    %p36 = scmp.ne.s32.totalorder %s22, %s23
    %p37 = scmp.eq.s32.totalorder %s15, 3
    %p38 = por %p36, %p37
    %p40 = scmp.ne.s32.totalorder %s23, %s39
    %p41 = scmp.eq.s32.totalorder %s15, 0
    %p42 = por %p40, %p41
    %s44 = sadd.s32 %s43, 1
    %p47 = scmp.eq.s32.totalorder %s9, 3
    %p48 = scmp.ne.s32.totalorder %s43, %s45
    %p49 = scmp.eq.s32.totalorder %s9, 0
    %p50 = por %p48, %p49
    %p51 = scmp.ne.s32.totalorder %s43, %s45
    %p52 = scmp.eq.s32.totalorder %s14, 3
    %p53 = por %p51, %p52
    %p54 = scmp.ne.s32.totalorder %s45, %s46
    %p55 = scmp.eq.s32.totalorder %s14, 0
    %p56 = por %p54, %p55
    %p57 = scmp.ne.s32.totalorder %s45, %s46
    %p58 = scmp.eq.s32.totalorder %s15, 3
    %p59 = por %p57, %p58
    %p61 = scmp.ne.s32.totalorder %s46, %s60
    %p62 = scmp.eq.s32.totalorder %s15, 0
    %p63 = por %p61, %p62
    %s65 = sadd.s32 %s64, 1
    %p68 = scmp.eq.s32.totalorder %s9, 3
    %p69 = scmp.ne.s32.totalorder %s64, %s66
    %p70 = scmp.eq.s32.totalorder %s9, 0
    %p71 = por %p69, %p70
    %p72 = scmp.ne.s32.totalorder %s64, %s66
    %p73 = scmp.eq.s32.totalorder %s14, 3
    %p74 = por %p72, %p73
    %p75 = scmp.ne.s32.totalorder %s66, %s67
    %p76 = scmp.eq.s32.totalorder %s14, 0
    %p77 = por %p75, %p76
    %p78 = scmp.ne.s32.totalorder %s66, %s67
    %p79 = scmp.eq.s32.totalorder %s15, 3
    %p80 = por %p78, %p79
    %p82 = scmp.ne.s32.totalorder %s67, %s81
    %p83 = scmp.eq.s32.totalorder %s15, 0
    %p84 = por %p82, %p83
    %s85 = ssub.s32 %s9, %s16
    %p86 = scmp.eq.s32.totalorder %s85, 0
    %s88 = sadd.s32 %s87, 1
    %s89 = scalar_select %p86, %s87, %s88
    %p92 = pneg %p86
    %p93 = scmp.eq.s32.totalorder %s9, 3
    %p94 = por %p92, %p93
    %p95 = scmp.ne.s32.totalorder %s87, %s90
    %p96 = scmp.eq.s32.totalorder %s9, 0
    %p97 = por %p95, %p96
    %p98 = scmp.ne.s32.totalorder %s87, %s90
    %p99 = scmp.eq.s32.totalorder %s14, 3
    %p100 = por %p98, %p99
    %p101 = scmp.ne.s32.totalorder %s90, %s91
    %p102 = scmp.eq.s32.totalorder %s14, 0
    %p103 = por %p101, %p102
    %p104 = scmp.ne.s32.totalorder %s90, %s91
    %p105 = scmp.eq.s32.totalorder %s15, 3
    %p106 = por %p104, %p105
    %p108 = scmp.ne.s32.totalorder %s91, %s107
    %p109 = scmp.eq.s32.totalorder %s15, 0
    %p110 = por %p108, %p109
    %p111 = scmp.le.s32.totalorder 1, %s9
    %p112 = scmp.lt.s32.totalorder %s9, 5
    %p113 = pnand %p111, %p112
    %p114 = pneg %p113
    // Predicated region
    $region9: #{_lambda_.14} parent=5 // pred_check
      _
    $region10: #{_lambda_.14} parent=5 // pred_check_branch
      %116 = sbr.rel (%p113) target = $region12
    $region11: #{_lambda_.14} parent=5 // pred_region
      %s117 = ssub.s32 %s9, 1
      // Predicated region
      $region13: #{_lambda_.14} parent=11 // pred_check
        %p118 = pneg %p56
      $region14: #{_lambda_.14} parent=11 // pred_check_branch
        %120 = sbr.rel (%p118) target = $region16
      $region15: #{_lambda_.14} parent=11 // pred_region
        _
      $region16: #{_lambda_.14} parent=11 // pred_fallthru
        _
      // Predicated region
      $region17: #{_lambda_.14} parent=11 // pred_check
        %p121 = pneg %p77
      $region18: #{_lambda_.14} parent=11 // pred_check_branch
        %123 = sbr.rel (%p121) target = $region20
      $region19: #{_lambda_.14} parent=11 // pred_region
        _
      $region20: #{_lambda_.14} parent=11 // pred_fallthru
        _
    $region12: #{_lambda_.14} parent=5 // pred_fallthru
      _
    %p124 = scmp.lt.s32.totalorder %s9, 4
    // Predicated region
    $region21: #{_lambda_.14} parent=5 // pred_check
      %p125 = pneg %p124
    $region22: #{_lambda_.14} parent=5 // pred_check_branch
      %127 = sbr.rel (%p125) target = $region24
    $region23: #{_lambda_.14} parent=5 // pred_region
      // Predicated region
      $region25: #{_lambda_.14} parent=23 // pred_check
        %p128 = pneg %p29
      $region26: #{_lambda_.14} parent=23 // pred_check_branch
        %130 = sbr.rel (%p128) target = $region28
      $region27: #{_lambda_.14} parent=23 // pred_region
        %s131 = smul.u32 64, %s9
        %p132 = scmp.lt.s32.totalorder %s131, 255
        %s133 = scalar_select %p132, %s131, 255
        %s134 = smul.addr %s133, 2
        %s135 = smul.addr %s134, 4
        %s136 = scalar_lea.vmem %s0, %s135
        %s137 = smul.u32 64, %s9
      $region28: #{_lambda_.14} parent=23 // pred_fallthru
        _
    $region24: #{_lambda_.14} parent=5 // pred_fallthru
      _
    %p138 = scmp.le.s32.totalorder 1, %s9
    %p139 = scmp.lt.s32.totalorder %s9, 5
    %p140 = pnand %p138, %p139
    %p141 = pneg %p140
    // Predicated region
    $region29: #{_lambda_.14} parent=5 // pred_check
      _
    $region30: #{_lambda_.14} parent=5 // pred_check_branch
      %143 = sbr.rel (%p140) target = $region32
    $region31: #{_lambda_.14} parent=5 // pred_region
      %s144 = ssub.s32 %s9, 1
      %s145 = smul.u32 64, %s14
      %p146 = scmp.lt.s32.totalorder %s145, 255
      %s147 = scalar_select %p146, %s145, 255
      %s148 = smul.addr %s147, 2
      %s149 = smul.addr %s148, 4
      %s150 = scalar_lea.vmem %s0, %s149
      %p151 = pneg %p35
      %p152 = pneg %p32
      %p153 = pneg %p56
      %p154 = pneg %p53
      %p155 = pneg %p77
      %p156 = pneg %p74
      %p157 = pneg %p103
      %p158 = pneg %p100
      %s159 = smul.u32 64, %s14
      %p160 = scmp.lt.s32.totalorder %s159, 255
      %s161 = scalar_select %p160, %s159, 255
      %s162 = smul.addr %s161, 4
      %s163 = scalar_lea.vmem %s3, %s162
      %s164 = smul.u32 64, %s14
      %p165 = scmp.lt.s32.totalorder %s164, 255
      %s166 = scalar_select %p165, %s164, 255
      %s167 = smul.addr %s166, 2
      %s168 = smul.addr %s167, 4
      %s169 = scalar_lea.vmem %s0, %s168
      %s170 = smul.u32 64, %s14
      %s171 = smul.u32 64, %s14
      %p172 = scmp.lt.s32.totalorder %s171, 255
      %s173 = scalar_select %p172, %s171, 255
      %s174 = smul.addr %s173, 4
      %s175 = scalar_lea.vmem %s3, %s174
      %s176 = smul.u32 64, %s14
      %v178 = vld [vmem:[%s169] sm:$0xff]
      %v179 = vld [vmem:[%s169 + $0x8] sm:$0xff]
      %v180 = vld [vmem:[%s169 + $0x10] sm:$0xff]
      %v181 = vld [vmem:[%s169 + $0x18] sm:$0xff]
      %v182 = vld [vmem:[%s169 + $0x20] sm:$0xff]
      %v183 = vld [vmem:[%s169 + $0x28] sm:$0xff]
      %v184 = vld [vmem:[%s169 + $0x30] sm:$0xff]
      %v185 = vld [vmem:[%s169 + $0x38] sm:$0xff]
      %v186 = vld [vmem:[%s169 + $0x40] sm:$0xff]
      %v187 = vld [vmem:[%s169 + $0x48] sm:$0xff]
      %v188 = vld [vmem:[%s169 + $0x50] sm:$0xff]
      %v189 = vld [vmem:[%s169 + $0x58] sm:$0xff]
      %v190 = vld [vmem:[%s169 + $0x60] sm:$0xff]
      %v191 = vld [vmem:[%s169 + $0x68] sm:$0xff]
      %v192 = vld [vmem:[%s169 + $0x70] sm:$0xff]
      %v193 = vld [vmem:[%s169 + $0x78] sm:$0xff]
      %v194 = vld [vmem:[%s169 + $0x80] sm:$0xff]
      %v195 = vld [vmem:[%s169 + $0x88] sm:$0xff]
      %v196 = vld [vmem:[%s169 + $0x90] sm:$0xff]
      %v197 = vld [vmem:[%s169 + $0x98] sm:$0xff]
      %v198 = vld [vmem:[%s169 + $0xa0] sm:$0xff]
      %v199 = vld [vmem:[%s169 + $0xa8] sm:$0xff]
      %v200 = vld [vmem:[%s169 + $0xb0] sm:$0xff]
      %v201 = vld [vmem:[%s169 + $0xb8] sm:$0xff]
      %v202 = vld [vmem:[%s169 + $0xc0] sm:$0xff]
      %v203 = vld [vmem:[%s169 + $0xc8] sm:$0xff]
      %v204 = vld [vmem:[%s169 + $0xd0] sm:$0xff]
      %v205 = vld [vmem:[%s169 + $0xd8] sm:$0xff]
      %v206 = vld [vmem:[%s169 + $0xe0] sm:$0xff]
      %v207 = vld [vmem:[%s169 + $0xe8] sm:$0xff]
      %v208 = vld [vmem:[%s169 + $0xf0] sm:$0xff]
      %v209 = vld [vmem:[%s169 + $0xf8] sm:$0xff]
      %v210 = vld [vmem:[%s169 + $0x100] sm:$0xff]
      %v211 = vld [vmem:[%s169 + $0x108] sm:$0xff]
      %v212 = vld [vmem:[%s169 + $0x110] sm:$0xff]
      %v213 = vld [vmem:[%s169 + $0x118] sm:$0xff]
      %v214 = vld [vmem:[%s169 + $0x120] sm:$0xff]
      %v215 = vld [vmem:[%s169 + $0x128] sm:$0xff]
      %v216 = vld [vmem:[%s169 + $0x130] sm:$0xff]
      %v217 = vld [vmem:[%s169 + $0x138] sm:$0xff]
      %v218 = vld [vmem:[%s169 + $0x140] sm:$0xff]
      %v219 = vld [vmem:[%s169 + $0x148] sm:$0xff]
      %v220 = vld [vmem:[%s169 + $0x150] sm:$0xff]
      %v221 = vld [vmem:[%s169 + $0x158] sm:$0xff]
      %v222 = vld [vmem:[%s169 + $0x160] sm:$0xff]
      %v223 = vld [vmem:[%s169 + $0x168] sm:$0xff]
      %v224 = vld [vmem:[%s169 + $0x170] sm:$0xff]
      %v225 = vld [vmem:[%s169 + $0x178] sm:$0xff]
      %v226 = vld [vmem:[%s169 + $0x180] sm:$0xff]
      %v227 = vld [vmem:[%s169 + $0x188] sm:$0xff]
      %v228 = vld [vmem:[%s169 + $0x190] sm:$0xff]
      %v229 = vld [vmem:[%s169 + $0x198] sm:$0xff]
      %v230 = vld [vmem:[%s169 + $0x1a0] sm:$0xff]
      %v231 = vld [vmem:[%s169 + $0x1a8] sm:$0xff]
      %v232 = vld [vmem:[%s169 + $0x1b0] sm:$0xff]
      %v233 = vld [vmem:[%s169 + $0x1b8] sm:$0xff]
      %v234 = vld [vmem:[%s169 + $0x1c0] sm:$0xff]
      %v235 = vld [vmem:[%s169 + $0x1c8] sm:$0xff]
      %v236 = vld [vmem:[%s169 + $0x1d0] sm:$0xff]
      %v237 = vld [vmem:[%s169 + $0x1d8] sm:$0xff]
      %v238 = vld [vmem:[%s169 + $0x1e0] sm:$0xff]
      %v239 = vld [vmem:[%s169 + $0x1e8] sm:$0xff]
      %v240 = vld [vmem:[%s169 + $0x1f0] sm:$0xff]
      %v241 = vld [vmem:[%s169 + $0x1f8] sm:$0xff]
      %v242 = vld [vmem:[%s1] sm:$0xf]
      %v243 = vld [vmem:[%s1 + $0x4] sm:$0xf]
      %v244 = vld [vmem:[%s1 + $0x8] sm:$0xf]
      %v245 = vld [vmem:[%s1 + $0xc] sm:$0xf]
      %v246 = vld [vmem:[%s1 + $0x10] sm:$0xf]
      %v247 = vld [vmem:[%s1 + $0x14] sm:$0xf]
      %v248 = vld [vmem:[%s1 + $0x18] sm:$0xf]
      %v249 = vld [vmem:[%s1 + $0x1c] sm:$0xf]
      %v250 = vld [vmem:[%s1 + $0x20] sm:$0xf]
      %v251 = vld [vmem:[%s1 + $0x24] sm:$0xf]
      %v252 = vld [vmem:[%s1 + $0x28] sm:$0xf]
      %v253 = vld [vmem:[%s1 + $0x2c] sm:$0xf]
      %v254 = vld [vmem:[%s1 + $0x30] sm:$0xf]
      %v255 = vld [vmem:[%s1 + $0x34] sm:$0xf]
      %v256 = vld [vmem:[%s1 + $0x38] sm:$0xf]
      %v257 = vld [vmem:[%s1 + $0x3c] sm:$0xf]
      %v258 = vld [vmem:[%s1 + $0x40] sm:$0xf]
      %v259 = vld [vmem:[%s1 + $0x44] sm:$0xf]
      %v260 = vld [vmem:[%s1 + $0x48] sm:$0xf]
      %v261 = vld [vmem:[%s1 + $0x4c] sm:$0xf]
      %v262 = vld [vmem:[%s1 + $0x50] sm:$0xf]
      %v263 = vld [vmem:[%s1 + $0x54] sm:$0xf]
      %v264 = vld [vmem:[%s1 + $0x58] sm:$0xf]
      %v265 = vld [vmem:[%s1 + $0x5c] sm:$0xf]
      %v266 = vld [vmem:[%s1 + $0x60] sm:$0xf]
      %v267 = vld [vmem:[%s1 + $0x64] sm:$0xf]
      %v268 = vld [vmem:[%s1 + $0x68] sm:$0xf]
      %v269 = vld [vmem:[%s1 + $0x6c] sm:$0xf]
      %v270 = vld [vmem:[%s1 + $0x70] sm:$0xf]
      %v271 = vld [vmem:[%s1 + $0x74] sm:$0xf]
      %v272 = vld [vmem:[%s1 + $0x78] sm:$0xf]
      %v273 = vld [vmem:[%s1 + $0x7c] sm:$0xf]
      %v274 = vld [vmem:[%s2] sm:$0x1]
      %v276 = vlaneseq
      %v277 = vshrl.u32 %v276, 7
      %v278 = vsub.s32 0, %v277
      %v279 = vrot.slane %v274, %v278
      %v345 = vunpack.c.l.b16 %v178
      %v346 = vunpack.c.h.b16 %v178
      %v347 = vunpack.c.l.b16 %v179
      %v348 = vunpack.c.h.b16 %v179
      %v349 = vunpack.c.l.b16 %v180
      %v350 = vunpack.c.h.b16 %v180
      %v351 = vunpack.c.l.b16 %v181
      %v352 = vunpack.c.h.b16 %v181
      %v353 = vunpack.c.l.b16 %v182
      %v354 = vunpack.c.h.b16 %v182
      %v355 = vunpack.c.l.b16 %v183
      %v356 = vunpack.c.h.b16 %v183
      %v357 = vunpack.c.l.b16 %v184
      %v358 = vunpack.c.h.b16 %v184
      %v359 = vunpack.c.l.b16 %v185
      %v360 = vunpack.c.h.b16 %v185
      %v361 = vunpack.c.l.b16 %v186
      %v362 = vunpack.c.h.b16 %v186
      %v363 = vunpack.c.l.b16 %v187
      %v364 = vunpack.c.h.b16 %v187
      %v365 = vunpack.c.l.b16 %v188
      %v366 = vunpack.c.h.b16 %v188
      %v367 = vunpack.c.l.b16 %v189
      %v368 = vunpack.c.h.b16 %v189
      %v369 = vunpack.c.l.b16 %v190
      %v370 = vunpack.c.h.b16 %v190
      %v371 = vunpack.c.l.b16 %v191
      %v372 = vunpack.c.h.b16 %v191
      %v373 = vunpack.c.l.b16 %v192
      %v374 = vunpack.c.h.b16 %v192
      %v375 = vunpack.c.l.b16 %v193
      %v376 = vunpack.c.h.b16 %v193
      %v377 = vunpack.c.l.b16 %v194
      %v378 = vunpack.c.h.b16 %v194
      %v379 = vunpack.c.l.b16 %v195
      %v380 = vunpack.c.h.b16 %v195
      %v381 = vunpack.c.l.b16 %v196
      %v382 = vunpack.c.h.b16 %v196
      %v383 = vunpack.c.l.b16 %v197
      %v384 = vunpack.c.h.b16 %v197
      %v385 = vunpack.c.l.b16 %v198
      %v386 = vunpack.c.h.b16 %v198
      %v387 = vunpack.c.l.b16 %v199
      %v388 = vunpack.c.h.b16 %v199
      %v389 = vunpack.c.l.b16 %v200
      %v390 = vunpack.c.h.b16 %v200
      %v391 = vunpack.c.l.b16 %v201
      %v392 = vunpack.c.h.b16 %v201
      %v393 = vunpack.c.l.b16 %v202
      %v394 = vunpack.c.h.b16 %v202
      %v395 = vunpack.c.l.b16 %v203
      %v396 = vunpack.c.h.b16 %v203
      %v397 = vunpack.c.l.b16 %v204
      %v398 = vunpack.c.h.b16 %v204
      %v399 = vunpack.c.l.b16 %v205
      %v400 = vunpack.c.h.b16 %v205
      %v401 = vunpack.c.l.b16 %v206
      %v402 = vunpack.c.h.b16 %v206
      %v403 = vunpack.c.l.b16 %v207
      %v404 = vunpack.c.h.b16 %v207
      %v405 = vunpack.c.l.b16 %v208
      %v406 = vunpack.c.h.b16 %v208
      %v407 = vunpack.c.l.b16 %v209
      %v408 = vunpack.c.h.b16 %v209
      %v409 = vunpack.c.l.b16 %v210
      %v410 = vunpack.c.h.b16 %v210
      %v411 = vunpack.c.l.b16 %v211
      %v412 = vunpack.c.h.b16 %v211
      %v413 = vunpack.c.l.b16 %v212
      %v414 = vunpack.c.h.b16 %v212
      %v415 = vunpack.c.l.b16 %v213
      %v416 = vunpack.c.h.b16 %v213
      %v417 = vunpack.c.l.b16 %v214
      %v418 = vunpack.c.h.b16 %v214
      %v419 = vunpack.c.l.b16 %v215
      %v420 = vunpack.c.h.b16 %v215
      %v421 = vunpack.c.l.b16 %v216
      %v422 = vunpack.c.h.b16 %v216
      %v423 = vunpack.c.l.b16 %v217
      %v424 = vunpack.c.h.b16 %v217
      %v425 = vunpack.c.l.b16 %v218
      %v426 = vunpack.c.h.b16 %v218
      %v427 = vunpack.c.l.b16 %v219
      %v428 = vunpack.c.h.b16 %v219
      %v429 = vunpack.c.l.b16 %v220
      %v430 = vunpack.c.h.b16 %v220
      %v431 = vunpack.c.l.b16 %v221
      %v432 = vunpack.c.h.b16 %v221
      %v433 = vunpack.c.l.b16 %v222
      %v434 = vunpack.c.h.b16 %v222
      %v435 = vunpack.c.l.b16 %v223
      %v436 = vunpack.c.h.b16 %v223
      %v437 = vunpack.c.l.b16 %v224
      %v438 = vunpack.c.h.b16 %v224
      %v439 = vunpack.c.l.b16 %v225
      %v440 = vunpack.c.h.b16 %v225
      %v441 = vunpack.c.l.b16 %v226
      %v442 = vunpack.c.h.b16 %v226
      %v443 = vunpack.c.l.b16 %v227
      %v444 = vunpack.c.h.b16 %v227
      %v445 = vunpack.c.l.b16 %v228
      %v446 = vunpack.c.h.b16 %v228
      %v447 = vunpack.c.l.b16 %v229
      %v448 = vunpack.c.h.b16 %v229
      %v449 = vunpack.c.l.b16 %v230
      %v450 = vunpack.c.h.b16 %v230
      %v451 = vunpack.c.l.b16 %v231
      %v452 = vunpack.c.h.b16 %v231
      %v453 = vunpack.c.l.b16 %v232
      %v454 = vunpack.c.h.b16 %v232
      %v455 = vunpack.c.l.b16 %v233
      %v456 = vunpack.c.h.b16 %v233
      %v457 = vunpack.c.l.b16 %v234
      %v458 = vunpack.c.h.b16 %v234
      %v459 = vunpack.c.l.b16 %v235
      %v460 = vunpack.c.h.b16 %v235
      %v461 = vunpack.c.l.b16 %v236
      %v462 = vunpack.c.h.b16 %v236
      %v463 = vunpack.c.l.b16 %v237
      %v464 = vunpack.c.h.b16 %v237
      %v465 = vunpack.c.l.b16 %v238
      %v466 = vunpack.c.h.b16 %v238
      %v467 = vunpack.c.l.b16 %v239
      %v468 = vunpack.c.h.b16 %v239
      %v469 = vunpack.c.l.b16 %v240
      %v470 = vunpack.c.h.b16 %v240
      %v471 = vunpack.c.l.b16 %v241
      %v472 = vunpack.c.h.b16 %v241
      %v473 = vpack.c.b16 %v347, %v345
      %v474 = vpack.c.b16 %v348, %v346
      %v475 = vpack.c.b16 %v351, %v349
      %v476 = vpack.c.b16 %v352, %v350
      %v477 = vpack.c.b16 %v355, %v353
      %v478 = vpack.c.b16 %v356, %v354
      %v479 = vpack.c.b16 %v359, %v357
      %v480 = vpack.c.b16 %v360, %v358
      %v481 = vpack.c.b16 %v363, %v361
      %v482 = vpack.c.b16 %v364, %v362
      %v483 = vpack.c.b16 %v367, %v365
      %v484 = vpack.c.b16 %v368, %v366
      %v485 = vpack.c.b16 %v371, %v369
      %v486 = vpack.c.b16 %v372, %v370
      %v487 = vpack.c.b16 %v375, %v373
      %v488 = vpack.c.b16 %v376, %v374
      %v489 = vpack.c.b16 %v379, %v377
      %v490 = vpack.c.b16 %v380, %v378
      %v491 = vpack.c.b16 %v383, %v381
      %v492 = vpack.c.b16 %v384, %v382
      %v493 = vpack.c.b16 %v387, %v385
      %v494 = vpack.c.b16 %v388, %v386
      %v495 = vpack.c.b16 %v391, %v389
      %v496 = vpack.c.b16 %v392, %v390
      %v497 = vpack.c.b16 %v395, %v393
      %v498 = vpack.c.b16 %v396, %v394
      %v499 = vpack.c.b16 %v399, %v397
      %v500 = vpack.c.b16 %v400, %v398
      %v501 = vpack.c.b16 %v403, %v401
      %v502 = vpack.c.b16 %v404, %v402
      %v503 = vpack.c.b16 %v407, %v405
      %v504 = vpack.c.b16 %v408, %v406
      %v505 = vpack.c.b16 %v411, %v409
      %v506 = vpack.c.b16 %v412, %v410
      %v507 = vpack.c.b16 %v415, %v413
      %v508 = vpack.c.b16 %v416, %v414
      %v509 = vpack.c.b16 %v419, %v417
      %v510 = vpack.c.b16 %v420, %v418
      %v511 = vpack.c.b16 %v423, %v421
      %v512 = vpack.c.b16 %v424, %v422
      %v513 = vpack.c.b16 %v427, %v425
      %v514 = vpack.c.b16 %v428, %v426
      %v515 = vpack.c.b16 %v431, %v429
      %v516 = vpack.c.b16 %v432, %v430
      %v517 = vpack.c.b16 %v435, %v433
      %v518 = vpack.c.b16 %v436, %v434
      %v519 = vpack.c.b16 %v439, %v437
      %v520 = vpack.c.b16 %v440, %v438
      %v521 = vpack.c.b16 %v443, %v441
      %v522 = vpack.c.b16 %v444, %v442
      %v523 = vpack.c.b16 %v447, %v445
      %v524 = vpack.c.b16 %v448, %v446
      %v525 = vpack.c.b16 %v451, %v449
      %v526 = vpack.c.b16 %v452, %v450
      %v527 = vpack.c.b16 %v455, %v453
      %v528 = vpack.c.b16 %v456, %v454
      %v529 = vpack.c.b16 %v459, %v457
      %v530 = vpack.c.b16 %v460, %v458
      %v531 = vpack.c.b16 %v463, %v461
      %v532 = vpack.c.b16 %v464, %v462
      %v533 = vpack.c.b16 %v467, %v465
      %v534 = vpack.c.b16 %v468, %v466
      %v535 = vpack.c.b16 %v471, %v469
      %v536 = vpack.c.b16 %v472, %v470
      %v633 = vunpack.c.l.b16 %v242
      %v634 = vunpack.c.l.b16 %v243
      %v635 = vunpack.c.l.b16 %v244
      %v636 = vunpack.c.l.b16 %v245
      %v637 = vunpack.c.l.b16 %v246
      %v638 = vunpack.c.l.b16 %v247
      %v639 = vunpack.c.l.b16 %v248
      %v640 = vunpack.c.l.b16 %v249
      %v641 = vunpack.c.l.b16 %v250
      %v642 = vunpack.c.l.b16 %v251
      %v643 = vunpack.c.l.b16 %v252
      %v644 = vunpack.c.l.b16 %v253
      %v645 = vunpack.c.l.b16 %v254
      %v646 = vunpack.c.l.b16 %v255
      %v647 = vunpack.c.l.b16 %v256
      %v648 = vunpack.c.l.b16 %v257
      %v649 = vunpack.c.l.b16 %v258
      %v650 = vunpack.c.l.b16 %v259
      %v651 = vunpack.c.l.b16 %v260
      %v652 = vunpack.c.l.b16 %v261
      %v653 = vunpack.c.l.b16 %v262
      %v654 = vunpack.c.l.b16 %v263
      %v655 = vunpack.c.l.b16 %v264
      %v656 = vunpack.c.l.b16 %v265
      %v657 = vunpack.c.l.b16 %v266
      %v658 = vunpack.c.l.b16 %v267
      %v659 = vunpack.c.l.b16 %v268
      %v660 = vunpack.c.l.b16 %v269
      %v661 = vunpack.c.l.b16 %v270
      %v662 = vunpack.c.l.b16 %v271
      %v663 = vunpack.c.l.b16 %v272
      %v664 = vunpack.c.l.b16 %v273
      %v665 = vpack.c.b16 %v634, %v633
      %v666 = vpack.c.b16 %v636, %v635
      %v667 = vpack.c.b16 %v638, %v637
      %v668 = vpack.c.b16 %v640, %v639
      %v669 = vpack.c.b16 %v642, %v641
      %v670 = vpack.c.b16 %v644, %v643
      %v671 = vpack.c.b16 %v646, %v645
      %v672 = vpack.c.b16 %v648, %v647
      %v673 = vpack.c.b16 %v650, %v649
      %v674 = vpack.c.b16 %v652, %v651
      %v675 = vpack.c.b16 %v654, %v653
      %v676 = vpack.c.b16 %v656, %v655
      %v677 = vpack.c.b16 %v658, %v657
      %v678 = vpack.c.b16 %v660, %v659
      %v679 = vpack.c.b16 %v662, %v661
      %v680 = vpack.c.b16 %v664, %v663
      %697 = vmatprep.subr.bf16.mxu0 0
      %698 = vmatpush1.bf16.msra.mxu0 %v665
      %699 = vmatprep.subr.bf16.mxu0 0
      %700 = vmatpush1.bf16.msra.mxu0 %v666
      %701 = vmatprep.subr.bf16.mxu0 0
      %702 = vmatpush1.bf16.msra.mxu0 %v667
      %703 = vmatprep.subr.bf16.mxu0 0
      %704 = vmatpush1.bf16.msra.mxu0 %v668
      %705 = vmatprep.subr.bf16.mxu0 0
      %706 = vmatpush1.bf16.msra.mxu0 %v669
      %707 = vmatprep.subr.bf16.mxu0 0
      %708 = vmatpush1.bf16.msra.mxu0 %v670
      %709 = vmatprep.subr.bf16.mxu0 0
      %710 = vmatpush1.bf16.msra.mxu0 %v671
      %711 = vmatprep.subr.bf16.mxu0 0
      %712 = vmatpush1.bf16.msra.mxu0 %v672
      %713 = vmatprep.subr.bf16.mxu0 0
      %714 = vmatpush1.bf16.msra.mxu0 %v673
      %715 = vmatprep.subr.bf16.mxu0 0
      %716 = vmatpush1.bf16.msra.mxu0 %v674
      %717 = vmatprep.subr.bf16.mxu0 0
      %718 = vmatpush1.bf16.msra.mxu0 %v675
      %719 = vmatprep.subr.bf16.mxu0 0
      %720 = vmatpush1.bf16.msra.mxu0 %v676
      %721 = vmatprep.subr.bf16.mxu0 0
      %722 = vmatpush1.bf16.msra.mxu0 %v677
      %723 = vmatprep.subr.bf16.mxu0 0
      %724 = vmatpush1.bf16.msra.mxu0 %v678
      %725 = vmatprep.subr.bf16.mxu0 0
      %726 = vmatpush1.bf16.msra.mxu0 %v679
      %727 = vmatprep.subr.bf16.mxu0 0
      %728 = vmatpush1.bf16.msra.mxu0 %v680
      %729 = vmatprep.mubr.bf16.mxu0 %v474
      %730 = vmatmul.mubr.bf16.gmra.mrb[0].mxu0 %v473
      %v731 = vpop.f32.mrb[0].mxu0
      %v732 = vadd.f32 %v279, %v731
      %v733 = vpop.f32.mrb[0].mxu0
      %v734 = vpop.f32.mrb[0].mxu0
      %v735 = vadd.f32 %v279, %v734
      %v736 = vpop.f32.mrb[0].mxu0
      %737 = vmatprep.mubr.bf16.mxu0 %v476
      %738 = vmatmul.mubr.bf16.gmra.mrb[0].mxu0 %v475
      %v739 = vpop.f32.mrb[0].mxu0
      %v740 = vadd.f32 %v279, %v739
      %v741 = vpop.f32.mrb[0].mxu0
      %v742 = vpop.f32.mrb[0].mxu0
      %v743 = vadd.f32 %v279, %v742
      %v744 = vpop.f32.mrb[0].mxu0
      %745 = vmatprep.mubr.bf16.mxu0 %v478
      %746 = vmatmul.mubr.bf16.gmra.mrb[0].mxu0 %v477
      %v747 = vpop.f32.mrb[0].mxu0
      %v748 = vadd.f32 %v279, %v747
      %v749 = vpop.f32.mrb[0].mxu0
      %v750 = vpop.f32.mrb[0].mxu0
      %v751 = vadd.f32 %v279, %v750
      %v752 = vpop.f32.mrb[0].mxu0
      %753 = vmatprep.mubr.bf16.mxu0 %v480
      %754 = vmatmul.mubr.bf16.gmra.mrb[0].mxu0 %v479
      %v755 = vpop.f32.mrb[0].mxu0
      %v756 = vadd.f32 %v279, %v755
      %v757 = vpop.f32.mrb[0].mxu0
      %v758 = vpop.f32.mrb[0].mxu0
      %v759 = vadd.f32 %v279, %v758
      %v760 = vpop.f32.mrb[0].mxu0
      %761 = vmatprep.mubr.bf16.mxu0 %v482
      %762 = vmatmul.mubr.bf16.gmra.mrb[0].mxu0 %v481
      %v763 = vpop.f32.mrb[0].mxu0
      %v764 = vadd.f32 %v279, %v763
      %v765 = vpop.f32.mrb[0].mxu0
      %v766 = vpop.f32.mrb[0].mxu0
      %v767 = vadd.f32 %v279, %v766
      %v768 = vpop.f32.mrb[0].mxu0
      %769 = vmatprep.mubr.bf16.mxu0 %v484
      %770 = vmatmul.mubr.bf16.gmra.mrb[0].mxu0 %v483
      %v771 = vpop.f32.mrb[0].mxu0
      %v772 = vadd.f32 %v279, %v771
      %v773 = vpop.f32.mrb[0].mxu0
      %v774 = vpop.f32.mrb[0].mxu0
      %v775 = vadd.f32 %v279, %v774
      %v776 = vpop.f32.mrb[0].mxu0
      %777 = vmatprep.mubr.bf16.mxu0 %v486
      %778 = vmatmul.mubr.bf16.gmra.mrb[0].mxu0 %v485
      %v779 = vpop.f32.mrb[0].mxu0
      %v780 = vadd.f32 %v279, %v779
      %v781 = vpop.f32.mrb[0].mxu0
      %v782 = vpop.f32.mrb[0].mxu0
      %v783 = vadd.f32 %v279, %v782
      %v784 = vpop.f32.mrb[0].mxu0
      %785 = vmatprep.mubr.bf16.mxu0 %v488
      %786 = vmatmul.mubr.bf16.gmra.mrb[0].mxu0 %v487
      %v787 = vpop.f32.mrb[0].mxu0
      %v788 = vadd.f32 %v279, %v787
      %v789 = vpop.f32.mrb[0].mxu0
      %v790 = vpop.f32.mrb[0].mxu0
      %v791 = vadd.f32 %v279, %v790
      %v792 = vpop.f32.mrb[0].mxu0
      %793 = vmatprep.mubr.bf16.mxu0 %v490
      %794 = vmatmul.mubr.bf16.gmra.mrb[0].mxu0 %v489
      %v795 = vpop.f32.mrb[0].mxu0
      %v796 = vadd.f32 %v279, %v795
      %v797 = vpop.f32.mrb[0].mxu0
      %v798 = vpop.f32.mrb[0].mxu0
      %v799 = vadd.f32 %v279, %v798
      %v800 = vpop.f32.mrb[0].mxu0
      %801 = vmatprep.mubr.bf16.mxu0 %v492
      %802 = vmatmul.mubr.bf16.gmra.mrb[0].mxu0 %v491
      %v803 = vpop.f32.mrb[0].mxu0
      %v804 = vadd.f32 %v279, %v803
      %v805 = vpop.f32.mrb[0].mxu0
      %v806 = vpop.f32.mrb[0].mxu0
      %v807 = vadd.f32 %v279, %v806
      %v808 = vpop.f32.mrb[0].mxu0
      %809 = vmatprep.mubr.bf16.mxu0 %v494
      %810 = vmatmul.mubr.bf16.gmra.mrb[0].mxu0 %v493
      %v811 = vpop.f32.mrb[0].mxu0
      %v812 = vadd.f32 %v279, %v811
      %v813 = vpop.f32.mrb[0].mxu0
      %v814 = vpop.f32.mrb[0].mxu0
      %v815 = vadd.f32 %v279, %v814
      %v816 = vpop.f32.mrb[0].mxu0
      %817 = vmatprep.mubr.bf16.mxu0 %v496
      %818 = vmatmul.mubr.bf16.gmra.mrb[0].mxu0 %v495
      %v819 = vpop.f32.mrb[0].mxu0
      %v820 = vadd.f32 %v279, %v819
      %v821 = vpop.f32.mrb[0].mxu0
      %v822 = vpop.f32.mrb[0].mxu0
      %v823 = vadd.f32 %v279, %v822
      %v824 = vpop.f32.mrb[0].mxu0
      %825 = vmatprep.mubr.bf16.mxu0 %v498
      %826 = vmatmul.mubr.bf16.gmra.mrb[0].mxu0 %v497
      %v827 = vpop.f32.mrb[0].mxu0
      %v828 = vadd.f32 %v279, %v827
      %v829 = vpop.f32.mrb[0].mxu0
      %v830 = vpop.f32.mrb[0].mxu0
      %v831 = vadd.f32 %v279, %v830
      %v832 = vpop.f32.mrb[0].mxu0
      %833 = vmatprep.mubr.bf16.mxu0 %v500
      %834 = vmatmul.mubr.bf16.gmra.mrb[0].mxu0 %v499
      %v835 = vpop.f32.mrb[0].mxu0
      %v836 = vadd.f32 %v279, %v835
      %v837 = vpop.f32.mrb[0].mxu0
      %v838 = vpop.f32.mrb[0].mxu0
      %v839 = vadd.f32 %v279, %v838
      %v840 = vpop.f32.mrb[0].mxu0
      %841 = vmatprep.mubr.bf16.mxu0 %v502
      %842 = vmatmul.mubr.bf16.gmra.mrb[0].mxu0 %v501
      %v843 = vpop.f32.mrb[0].mxu0
      %v844 = vadd.f32 %v279, %v843
      %v845 = vpop.f32.mrb[0].mxu0
      %v846 = vpop.f32.mrb[0].mxu0
      %v847 = vadd.f32 %v279, %v846
      %v848 = vpop.f32.mrb[0].mxu0
      %849 = vmatprep.mubr.bf16.mxu0 %v504
      %850 = vmatmul.mubr.bf16.gmra.mrb[0].mxu0 %v503
      %v851 = vpop.f32.mrb[0].mxu0
      %v852 = vadd.f32 %v279, %v851
      %v853 = vpop.f32.mrb[0].mxu0
      %v854 = vpop.f32.mrb[0].mxu0
      %v855 = vadd.f32 %v279, %v854
      %v856 = vpop.f32.mrb[0].mxu0
      %857 = vmatprep.mubr.bf16.mxu0 %v506
      %858 = vmatmul.mubr.bf16.gmra.mrb[0].mxu0 %v505
      %v859 = vpop.f32.mrb[0].mxu0
      %v860 = vadd.f32 %v279, %v859
      %v861 = vpop.f32.mrb[0].mxu0
      %v862 = vpop.f32.mrb[0].mxu0
      %v863 = vadd.f32 %v279, %v862
      %v864 = vpop.f32.mrb[0].mxu0
      %865 = vmatprep.mubr.bf16.mxu0 %v508
      %866 = vmatmul.mubr.bf16.gmra.mrb[0].mxu0 %v507
      %v867 = vpop.f32.mrb[0].mxu0
      %v868 = vadd.f32 %v279, %v867
      %v869 = vpop.f32.mrb[0].mxu0
      %v870 = vpop.f32.mrb[0].mxu0
      %v871 = vadd.f32 %v279, %v870
      %v872 = vpop.f32.mrb[0].mxu0
      %873 = vmatprep.mubr.bf16.mxu0 %v510
      %874 = vmatmul.mubr.bf16.gmra.mrb[0].mxu0 %v509
      %v875 = vpop.f32.mrb[0].mxu0
      %v876 = vadd.f32 %v279, %v875
      %v877 = vpop.f32.mrb[0].mxu0
      %v878 = vpop.f32.mrb[0].mxu0
      %v879 = vadd.f32 %v279, %v878
      %v880 = vpop.f32.mrb[0].mxu0
      %881 = vmatprep.mubr.bf16.mxu0 %v512
      %882 = vmatmul.mubr.bf16.gmra.mrb[0].mxu0 %v511
      %v883 = vpop.f32.mrb[0].mxu0
      %v884 = vadd.f32 %v279, %v883
      %v885 = vpop.f32.mrb[0].mxu0
      %v886 = vpop.f32.mrb[0].mxu0
      %v887 = vadd.f32 %v279, %v886
      %v888 = vpop.f32.mrb[0].mxu0
      %889 = vmatprep.mubr.bf16.mxu0 %v514
      %890 = vmatmul.mubr.bf16.gmra.mrb[0].mxu0 %v513
      %v891 = vpop.f32.mrb[0].mxu0
      %v892 = vadd.f32 %v279, %v891
      %v893 = vpop.f32.mrb[0].mxu0
      %v894 = vpop.f32.mrb[0].mxu0
      %v895 = vadd.f32 %v279, %v894
      %v896 = vpop.f32.mrb[0].mxu0
      %897 = vmatprep.mubr.bf16.mxu0 %v516
      %898 = vmatmul.mubr.bf16.gmra.mrb[0].mxu0 %v515
      %v899 = vpop.f32.mrb[0].mxu0
      %v900 = vadd.f32 %v279, %v899
      %v901 = vpop.f32.mrb[0].mxu0
      %v902 = vpop.f32.mrb[0].mxu0
      %v903 = vadd.f32 %v279, %v902
      %v904 = vpop.f32.mrb[0].mxu0
      %905 = vmatprep.mubr.bf16.mxu0 %v518
      %906 = vmatmul.mubr.bf16.gmra.mrb[0].mxu0 %v517
      %v907 = vpop.f32.mrb[0].mxu0
      %v908 = vadd.f32 %v279, %v907
      %v909 = vpop.f32.mrb[0].mxu0
      %v910 = vpop.f32.mrb[0].mxu0
      %v911 = vadd.f32 %v279, %v910
      %v912 = vpop.f32.mrb[0].mxu0
      %913 = vmatprep.mubr.bf16.mxu0 %v520
      %914 = vmatmul.mubr.bf16.gmra.mrb[0].mxu0 %v519
      %v915 = vpop.f32.mrb[0].mxu0
      %v916 = vadd.f32 %v279, %v915
      %v917 = vpop.f32.mrb[0].mxu0
      %v918 = vpop.f32.mrb[0].mxu0
      %v919 = vadd.f32 %v279, %v918
      %v920 = vpop.f32.mrb[0].mxu0
      %921 = vmatprep.mubr.bf16.mxu0 %v522
      %922 = vmatmul.mubr.bf16.gmra.mrb[0].mxu0 %v521
      %v923 = vpop.f32.mrb[0].mxu0
      %v924 = vadd.f32 %v279, %v923
      %v925 = vpop.f32.mrb[0].mxu0
      %v926 = vpop.f32.mrb[0].mxu0
      %v927 = vadd.f32 %v279, %v926
      %v928 = vpop.f32.mrb[0].mxu0
      %929 = vmatprep.mubr.bf16.mxu0 %v524
      %930 = vmatmul.mubr.bf16.gmra.mrb[0].mxu0 %v523
      %v931 = vpop.f32.mrb[0].mxu0
      %v932 = vadd.f32 %v279, %v931
      %v933 = vpop.f32.mrb[0].mxu0
      %v934 = vpop.f32.mrb[0].mxu0
      %v935 = vadd.f32 %v279, %v934
      %v936 = vpop.f32.mrb[0].mxu0
      %937 = vmatprep.mubr.bf16.mxu0 %v526
      %938 = vmatmul.mubr.bf16.gmra.mrb[0].mxu0 %v525
      %v939 = vpop.f32.mrb[0].mxu0
      %v940 = vadd.f32 %v279, %v939
      %v941 = vpop.f32.mrb[0].mxu0
      %v942 = vpop.f32.mrb[0].mxu0
      %v943 = vadd.f32 %v279, %v942
      %v944 = vpop.f32.mrb[0].mxu0
      %945 = vmatprep.mubr.bf16.mxu0 %v528
      %946 = vmatmul.mubr.bf16.gmra.mrb[0].mxu0 %v527
      %v947 = vpop.f32.mrb[0].mxu0
      %v948 = vadd.f32 %v279, %v947
      %v949 = vpop.f32.mrb[0].mxu0
      %v950 = vpop.f32.mrb[0].mxu0
      %v951 = vadd.f32 %v279, %v950
      %v952 = vpop.f32.mrb[0].mxu0
      %953 = vmatprep.mubr.bf16.mxu0 %v530
      %954 = vmatmul.mubr.bf16.gmra.mrb[0].mxu0 %v529
      %v955 = vpop.f32.mrb[0].mxu0
      %v956 = vadd.f32 %v279, %v955
      %v957 = vpop.f32.mrb[0].mxu0
      %v958 = vpop.f32.mrb[0].mxu0
      %v959 = vadd.f32 %v279, %v958
      %v960 = vpop.f32.mrb[0].mxu0
      %961 = vmatprep.mubr.bf16.mxu0 %v532
      %962 = vmatmul.mubr.bf16.gmra.mrb[0].mxu0 %v531
      %v963 = vpop.f32.mrb[0].mxu0
      %v964 = vadd.f32 %v279, %v963
      %v965 = vpop.f32.mrb[0].mxu0
      %v966 = vpop.f32.mrb[0].mxu0
      %v967 = vadd.f32 %v279, %v966
      %v968 = vpop.f32.mrb[0].mxu0
      %969 = vmatprep.mubr.bf16.mxu0 %v534
      %970 = vmatmul.mubr.bf16.gmra.mrb[0].mxu0 %v533
      %v971 = vpop.f32.mrb[0].mxu0
      %v972 = vadd.f32 %v279, %v971
      %v973 = vpop.f32.mrb[0].mxu0
      %v974 = vpop.f32.mrb[0].mxu0
      %v975 = vadd.f32 %v279, %v974
      %v976 = vpop.f32.mrb[0].mxu0
      %977 = vmatprep.mubr.bf16.mxu0 %v536
      %978 = vmatmul.mubr.bf16.gmra.mrb[0].mxu0 %v535
      %v979 = vpop.f32.mrb[0].mxu0
      %v980 = vadd.f32 %v279, %v979
      %v981 = vpop.f32.mrb[0].mxu0
      %v982 = vpop.f32.mrb[0].mxu0
      %v983 = vadd.f32 %v279, %v982
      %v984 = vpop.f32.mrb[0].mxu0
      %985 = vdwg.mxu0
      %v986 = vmax.f32 %v732, 0.0
      %v987 = vmax.f32 %v735, 0.0
      %v988 = vmax.f32 %v740, 0.0
      %v989 = vmax.f32 %v743, 0.0
      %v990 = vmax.f32 %v748, 0.0
      %v991 = vmax.f32 %v751, 0.0
      %v992 = vmax.f32 %v756, 0.0
      %v993 = vmax.f32 %v759, 0.0
      %v994 = vmax.f32 %v764, 0.0
      %v995 = vmax.f32 %v767, 0.0
      %v996 = vmax.f32 %v772, 0.0
      %v997 = vmax.f32 %v775, 0.0
      %v998 = vmax.f32 %v780, 0.0
      %v999 = vmax.f32 %v783, 0.0
      %v1000 = vmax.f32 %v788, 0.0
      %v1001 = vmax.f32 %v791, 0.0
      %v1002 = vmax.f32 %v796, 0.0
      %v1003 = vmax.f32 %v799, 0.0
      %v1004 = vmax.f32 %v804, 0.0
      %v1005 = vmax.f32 %v807, 0.0
      %v1006 = vmax.f32 %v812, 0.0
      %v1007 = vmax.f32 %v815, 0.0
      %v1008 = vmax.f32 %v820, 0.0
      %v1009 = vmax.f32 %v823, 0.0
      %v1010 = vmax.f32 %v828, 0.0
      %v1011 = vmax.f32 %v831, 0.0
      %v1012 = vmax.f32 %v836, 0.0
      %v1013 = vmax.f32 %v839, 0.0
      %v1014 = vmax.f32 %v844, 0.0
      %v1015 = vmax.f32 %v847, 0.0
      %v1016 = vmax.f32 %v852, 0.0
      %v1017 = vmax.f32 %v855, 0.0
      %v1018 = vmax.f32 %v860, 0.0
      %v1019 = vmax.f32 %v863, 0.0
      %v1020 = vmax.f32 %v868, 0.0
      %v1021 = vmax.f32 %v871, 0.0
      %v1022 = vmax.f32 %v876, 0.0
      %v1023 = vmax.f32 %v879, 0.0
      %v1024 = vmax.f32 %v884, 0.0
      %v1025 = vmax.f32 %v887, 0.0
      %v1026 = vmax.f32 %v892, 0.0
      %v1027 = vmax.f32 %v895, 0.0
      %v1028 = vmax.f32 %v900, 0.0
      %v1029 = vmax.f32 %v903, 0.0
      %v1030 = vmax.f32 %v908, 0.0
      %v1031 = vmax.f32 %v911, 0.0
      %v1032 = vmax.f32 %v916, 0.0
      %v1033 = vmax.f32 %v919, 0.0
      %v1034 = vmax.f32 %v924, 0.0
      %v1035 = vmax.f32 %v927, 0.0
      %v1036 = vmax.f32 %v932, 0.0
      %v1037 = vmax.f32 %v935, 0.0
      %v1038 = vmax.f32 %v940, 0.0
      %v1039 = vmax.f32 %v943, 0.0
      %v1040 = vmax.f32 %v948, 0.0
      %v1041 = vmax.f32 %v951, 0.0
      %v1042 = vmax.f32 %v956, 0.0
      %v1043 = vmax.f32 %v959, 0.0
      %v1044 = vmax.f32 %v964, 0.0
      %v1045 = vmax.f32 %v967, 0.0
      %v1046 = vmax.f32 %v972, 0.0
      %v1047 = vmax.f32 %v975, 0.0
      %v1048 = vmax.f32 %v980, 0.0
      %v1049 = vmax.f32 %v983, 0.0
      %v1050 = vpack.c.bf16 %v987, %v986
      %v1051 = vpack.c.bf16 %v989, %v988
      %v1052 = vpack.c.bf16 %v991, %v990
      %v1053 = vpack.c.bf16 %v993, %v992
      %v1054 = vpack.c.bf16 %v995, %v994
      %v1055 = vpack.c.bf16 %v997, %v996
      %v1056 = vpack.c.bf16 %v999, %v998
      %v1057 = vpack.c.bf16 %v1001, %v1000
      %v1058 = vpack.c.bf16 %v1003, %v1002
      %v1059 = vpack.c.bf16 %v1005, %v1004
      %v1060 = vpack.c.bf16 %v1007, %v1006
      %v1061 = vpack.c.bf16 %v1009, %v1008
      %v1062 = vpack.c.bf16 %v1011, %v1010
      %v1063 = vpack.c.bf16 %v1013, %v1012
      %v1064 = vpack.c.bf16 %v1015, %v1014
      %v1065 = vpack.c.bf16 %v1017, %v1016
      %v1066 = vpack.c.bf16 %v1019, %v1018
      %v1067 = vpack.c.bf16 %v1021, %v1020
      %v1068 = vpack.c.bf16 %v1023, %v1022
      %v1069 = vpack.c.bf16 %v1025, %v1024
      %v1070 = vpack.c.bf16 %v1027, %v1026
      %v1071 = vpack.c.bf16 %v1029, %v1028
      %v1072 = vpack.c.bf16 %v1031, %v1030
      %v1073 = vpack.c.bf16 %v1033, %v1032
      %v1074 = vpack.c.bf16 %v1035, %v1034
      %v1075 = vpack.c.bf16 %v1037, %v1036
      %v1076 = vpack.c.bf16 %v1039, %v1038
      %v1077 = vpack.c.bf16 %v1041, %v1040
      %v1078 = vpack.c.bf16 %v1043, %v1042
      %v1079 = vpack.c.bf16 %v1045, %v1044
      %v1080 = vpack.c.bf16 %v1047, %v1046
      %v1081 = vpack.c.bf16 %v1049, %v1048
      %v1114 = vunpack.c.l.b16 %v1050
      %v1115 = vunpack.c.h.b16 %v1050
      %v1116 = vunpack.c.l.b16 %v1051
      %v1117 = vunpack.c.h.b16 %v1051
      %v1118 = vunpack.c.l.b16 %v1052
      %v1119 = vunpack.c.h.b16 %v1052
      %v1120 = vunpack.c.l.b16 %v1053
      %v1121 = vunpack.c.h.b16 %v1053
      %v1122 = vunpack.c.l.b16 %v1054
      %v1123 = vunpack.c.h.b16 %v1054
      %v1124 = vunpack.c.l.b16 %v1055
      %v1125 = vunpack.c.h.b16 %v1055
      %v1126 = vunpack.c.l.b16 %v1056
      %v1127 = vunpack.c.h.b16 %v1056
      %v1128 = vunpack.c.l.b16 %v1057
      %v1129 = vunpack.c.h.b16 %v1057
      %v1130 = vunpack.c.l.b16 %v1058
      %v1131 = vunpack.c.h.b16 %v1058
      %v1132 = vunpack.c.l.b16 %v1059
      %v1133 = vunpack.c.h.b16 %v1059
      %v1134 = vunpack.c.l.b16 %v1060
      %v1135 = vunpack.c.h.b16 %v1060
      %v1136 = vunpack.c.l.b16 %v1061
      %v1137 = vunpack.c.h.b16 %v1061
      %v1138 = vunpack.c.l.b16 %v1062
      %v1139 = vunpack.c.h.b16 %v1062
      %v1140 = vunpack.c.l.b16 %v1063
      %v1141 = vunpack.c.h.b16 %v1063
      %v1142 = vunpack.c.l.b16 %v1064
      %v1143 = vunpack.c.h.b16 %v1064
      %v1144 = vunpack.c.l.b16 %v1065
      %v1145 = vunpack.c.h.b16 %v1065
      %v1146 = vunpack.c.l.b16 %v1066
      %v1147 = vunpack.c.h.b16 %v1066
      %v1148 = vunpack.c.l.b16 %v1067
      %v1149 = vunpack.c.h.b16 %v1067
      %v1150 = vunpack.c.l.b16 %v1068
      %v1151 = vunpack.c.h.b16 %v1068
      %v1152 = vunpack.c.l.b16 %v1069
      %v1153 = vunpack.c.h.b16 %v1069
      %v1154 = vunpack.c.l.b16 %v1070
      %v1155 = vunpack.c.h.b16 %v1070
      %v1156 = vunpack.c.l.b16 %v1071
      %v1157 = vunpack.c.h.b16 %v1071
      %v1158 = vunpack.c.l.b16 %v1072
      %v1159 = vunpack.c.h.b16 %v1072
      %v1160 = vunpack.c.l.b16 %v1073
      %v1161 = vunpack.c.h.b16 %v1073
      %v1162 = vunpack.c.l.b16 %v1074
      %v1163 = vunpack.c.h.b16 %v1074
      %v1164 = vunpack.c.l.b16 %v1075
      %v1165 = vunpack.c.h.b16 %v1075
      %v1166 = vunpack.c.l.b16 %v1076
      %v1167 = vunpack.c.h.b16 %v1076
      %v1168 = vunpack.c.l.b16 %v1077
      %v1169 = vunpack.c.h.b16 %v1077
      %v1170 = vunpack.c.l.b16 %v1078
      %v1171 = vunpack.c.h.b16 %v1078
      %v1172 = vunpack.c.l.b16 %v1079
      %v1173 = vunpack.c.h.b16 %v1079
      %v1174 = vunpack.c.l.b16 %v1080
      %v1175 = vunpack.c.h.b16 %v1080
      %v1176 = vunpack.c.l.b16 %v1081
      %v1177 = vunpack.c.h.b16 %v1081
      %v1178 = vpack.c.b16 %v1114, %v1114
      %v1179 = vpack.c.b16 %v1115, %v1115
      %v1180 = vpack.c.b16 %v1116, %v1116
      %v1181 = vpack.c.b16 %v1117, %v1117
      %v1182 = vpack.c.b16 %v1118, %v1118
      %v1183 = vpack.c.b16 %v1119, %v1119
      %v1184 = vpack.c.b16 %v1120, %v1120
      %v1185 = vpack.c.b16 %v1121, %v1121
      %v1186 = vpack.c.b16 %v1122, %v1122
      %v1187 = vpack.c.b16 %v1123, %v1123
      %v1188 = vpack.c.b16 %v1124, %v1124
      %v1189 = vpack.c.b16 %v1125, %v1125
      %v1190 = vpack.c.b16 %v1126, %v1126
      %v1191 = vpack.c.b16 %v1127, %v1127
      %v1192 = vpack.c.b16 %v1128, %v1128
      %v1193 = vpack.c.b16 %v1129, %v1129
      %v1194 = vpack.c.b16 %v1130, %v1130
      %v1195 = vpack.c.b16 %v1131, %v1131
      %v1196 = vpack.c.b16 %v1132, %v1132
      %v1197 = vpack.c.b16 %v1133, %v1133
      %v1198 = vpack.c.b16 %v1134, %v1134
      %v1199 = vpack.c.b16 %v1135, %v1135
      %v1200 = vpack.c.b16 %v1136, %v1136
      %v1201 = vpack.c.b16 %v1137, %v1137
      %v1202 = vpack.c.b16 %v1138, %v1138
      %v1203 = vpack.c.b16 %v1139, %v1139
      %v1204 = vpack.c.b16 %v1140, %v1140
      %v1205 = vpack.c.b16 %v1141, %v1141
      %v1206 = vpack.c.b16 %v1142, %v1142
      %v1207 = vpack.c.b16 %v1143, %v1143
      %v1208 = vpack.c.b16 %v1144, %v1144
      %v1209 = vpack.c.b16 %v1145, %v1145
      %v1210 = vpack.c.b16 %v1146, %v1146
      %v1211 = vpack.c.b16 %v1147, %v1147
      %v1212 = vpack.c.b16 %v1148, %v1148
      %v1213 = vpack.c.b16 %v1149, %v1149
      %v1214 = vpack.c.b16 %v1150, %v1150
      %v1215 = vpack.c.b16 %v1151, %v1151
      %v1216 = vpack.c.b16 %v1152, %v1152
      %v1217 = vpack.c.b16 %v1153, %v1153
      %v1218 = vpack.c.b16 %v1154, %v1154
      %v1219 = vpack.c.b16 %v1155, %v1155
      %v1220 = vpack.c.b16 %v1156, %v1156
      %v1221 = vpack.c.b16 %v1157, %v1157
      %v1222 = vpack.c.b16 %v1158, %v1158
      %v1223 = vpack.c.b16 %v1159, %v1159
      %v1224 = vpack.c.b16 %v1160, %v1160
      %v1225 = vpack.c.b16 %v1161, %v1161
      %v1226 = vpack.c.b16 %v1162, %v1162
      %v1227 = vpack.c.b16 %v1163, %v1163
      %v1228 = vpack.c.b16 %v1164, %v1164
      %v1229 = vpack.c.b16 %v1165, %v1165
      %v1230 = vpack.c.b16 %v1166, %v1166
      %v1231 = vpack.c.b16 %v1167, %v1167
      %v1232 = vpack.c.b16 %v1168, %v1168
      %v1233 = vpack.c.b16 %v1169, %v1169
      %v1234 = vpack.c.b16 %v1170, %v1170
      %v1235 = vpack.c.b16 %v1171, %v1171
      %v1236 = vpack.c.b16 %v1172, %v1172
      %v1237 = vpack.c.b16 %v1173, %v1173
      %v1238 = vpack.c.b16 %v1174, %v1174
      %v1239 = vpack.c.b16 %v1175, %v1175
      %v1240 = vpack.c.b16 %v1176, %v1176
      %v1241 = vpack.c.b16 %v1177, %v1177
      %1306 = vst [vmem:[%s175] sm:$0xf] %v1178
      %1307 = vst [vmem:[%s175 + $0x4] sm:$0xf] %v1179
      %1308 = vst [vmem:[%s175 + $0x8] sm:$0xf] %v1180
      %1309 = vst [vmem:[%s175 + $0xc] sm:$0xf] %v1181
      %1310 = vst [vmem:[%s175 + $0x10] sm:$0xf] %v1182
      %1311 = vst [vmem:[%s175 + $0x14] sm:$0xf] %v1183
      %1312 = vst [vmem:[%s175 + $0x18] sm:$0xf] %v1184
      %1313 = vst [vmem:[%s175 + $0x1c] sm:$0xf] %v1185
      %1314 = vst [vmem:[%s175 + $0x20] sm:$0xf] %v1186
      %1315 = vst [vmem:[%s175 + $0x24] sm:$0xf] %v1187
      %1316 = vst [vmem:[%s175 + $0x28] sm:$0xf] %v1188
      %1317 = vst [vmem:[%s175 + $0x2c] sm:$0xf] %v1189
      %1318 = vst [vmem:[%s175 + $0x30] sm:$0xf] %v1190
      %1319 = vst [vmem:[%s175 + $0x34] sm:$0xf] %v1191
      %1320 = vst [vmem:[%s175 + $0x38] sm:$0xf] %v1192
      %1321 = vst [vmem:[%s175 + $0x3c] sm:$0xf] %v1193
      %1322 = vst [vmem:[%s175 + $0x40] sm:$0xf] %v1194
      %1323 = vst [vmem:[%s175 + $0x44] sm:$0xf] %v1195
      %1324 = vst [vmem:[%s175 + $0x48] sm:$0xf] %v1196
      %1325 = vst [vmem:[%s175 + $0x4c] sm:$0xf] %v1197
      %1326 = vst [vmem:[%s175 + $0x50] sm:$0xf] %v1198
      %1327 = vst [vmem:[%s175 + $0x54] sm:$0xf] %v1199
      %1328 = vst [vmem:[%s175 + $0x58] sm:$0xf] %v1200
      %1329 = vst [vmem:[%s175 + $0x5c] sm:$0xf] %v1201
      %1330 = vst [vmem:[%s175 + $0x60] sm:$0xf] %v1202
      %1331 = vst [vmem:[%s175 + $0x64] sm:$0xf] %v1203
      %1332 = vst [vmem:[%s175 + $0x68] sm:$0xf] %v1204
      %1333 = vst [vmem:[%s175 + $0x6c] sm:$0xf] %v1205
      %1334 = vst [vmem:[%s175 + $0x70] sm:$0xf] %v1206
      %1335 = vst [vmem:[%s175 + $0x74] sm:$0xf] %v1207
      %1336 = vst [vmem:[%s175 + $0x78] sm:$0xf] %v1208
      %1337 = vst [vmem:[%s175 + $0x7c] sm:$0xf] %v1209
      %1338 = vst [vmem:[%s175 + $0x80] sm:$0xf] %v1210
      %1339 = vst [vmem:[%s175 + $0x84] sm:$0xf] %v1211
      %1340 = vst [vmem:[%s175 + $0x88] sm:$0xf] %v1212
      %1341 = vst [vmem:[%s175 + $0x8c] sm:$0xf] %v1213
      %1342 = vst [vmem:[%s175 + $0x90] sm:$0xf] %v1214
      %1343 = vst [vmem:[%s175 + $0x94] sm:$0xf] %v1215
      %1344 = vst [vmem:[%s175 + $0x98] sm:$0xf] %v1216
      %1345 = vst [vmem:[%s175 + $0x9c] sm:$0xf] %v1217
      %1346 = vst [vmem:[%s175 + $0xa0] sm:$0xf] %v1218
      %1347 = vst [vmem:[%s175 + $0xa4] sm:$0xf] %v1219
      %1348 = vst [vmem:[%s175 + $0xa8] sm:$0xf] %v1220
      %1349 = vst [vmem:[%s175 + $0xac] sm:$0xf] %v1221
      %1350 = vst [vmem:[%s175 + $0xb0] sm:$0xf] %v1222
      %1351 = vst [vmem:[%s175 + $0xb4] sm:$0xf] %v1223
      %1352 = vst [vmem:[%s175 + $0xb8] sm:$0xf] %v1224
      %1353 = vst [vmem:[%s175 + $0xbc] sm:$0xf] %v1225
      %1354 = vst [vmem:[%s175 + $0xc0] sm:$0xf] %v1226
      %1355 = vst [vmem:[%s175 + $0xc4] sm:$0xf] %v1227
      %1356 = vst [vmem:[%s175 + $0xc8] sm:$0xf] %v1228
      %1357 = vst [vmem:[%s175 + $0xcc] sm:$0xf] %v1229
      %1358 = vst [vmem:[%s175 + $0xd0] sm:$0xf] %v1230
      %1359 = vst [vmem:[%s175 + $0xd4] sm:$0xf] %v1231
      %1360 = vst [vmem:[%s175 + $0xd8] sm:$0xf] %v1232
      %1361 = vst [vmem:[%s175 + $0xdc] sm:$0xf] %v1233
      %1362 = vst [vmem:[%s175 + $0xe0] sm:$0xf] %v1234
      %1363 = vst [vmem:[%s175 + $0xe4] sm:$0xf] %v1235
      %1364 = vst [vmem:[%s175 + $0xe8] sm:$0xf] %v1236
      %1365 = vst [vmem:[%s175 + $0xec] sm:$0xf] %v1237
      %1366 = vst [vmem:[%s175 + $0xf0] sm:$0xf] %v1238
      %1367 = vst [vmem:[%s175 + $0xf4] sm:$0xf] %v1239
      %1368 = vst [vmem:[%s175 + $0xf8] sm:$0xf] %v1240
      %1369 = vst [vmem:[%s175 + $0xfc] sm:$0xf] %v1241
      %s1370 = smul.u32 64, %s14
      %p1371 = scmp.lt.s32.totalorder %s1370, 255
      %s1372 = scalar_select %p1371, %s1370, 255
      %s1373 = smul.addr %s1372, 4
      %s1374 = scalar_lea.vmem %s3, %s1373
      // Predicated region
      $region33: #{_lambda_.14} parent=31 // pred_check
        %p1375 = pneg %p100
      $region34: #{_lambda_.14} parent=31 // pred_check_branch
        %1377 = sbr.rel (%p1375) target = $region36
      $region35: #{_lambda_.14} parent=31 // pred_region
        %s1378 = smul.u32 64, %s14
      $region36: #{_lambda_.14} parent=31 // pred_fallthru
        _
    $region32: #{_lambda_.14} parent=5 // pred_fallthru
      _
    %p1379 = scmp.le.s32.totalorder 2, %s9
    // Predicated region
    $region37: #{_lambda_.14} parent=5 // pred_check
      %p1380 = pneg %p1379
    $region38: #{_lambda_.14} parent=5 // pred_check_branch
      %1382 = sbr.rel (%p1380) target = $region40
    $region39: #{_lambda_.14} parent=5 // pred_region
      %s1383 = ssub.s32 %s9, 2
      // Predicated region
      $region41: #{_lambda_.14} parent=39 // pred_check
        %p1384 = pneg %p106
      $region42: #{_lambda_.14} parent=39 // pred_check_branch
        %1386 = sbr.rel (%p1384) target = $region44
      $region43: #{_lambda_.14} parent=39 // pred_region
        %s1387 = smul.u32 64, %s15
        %p1388 = scmp.lt.s32.totalorder %s1387, 255
        %s1389 = scalar_select %p1388, %s1387, 255
        %s1390 = smul.addr %s1389, 4
        %s1391 = scalar_lea.vmem %s3, %s1390
      $region44: #{_lambda_.14} parent=39 // pred_fallthru
        _
    $region40: #{_lambda_.14} parent=5 // pred_fallthru
      _
  $region6: #{_lambda_.14} parent=0 // loop_footer
    %s13 = sadd.s32 1, %s9
  $region7: #{_lambda_.14} parent=0 // loop_footer_branch
    %8 = sbr.rel target = $region3
  $region8: #{_lambda_.14} parent=0 // loop_exit
    _

// kernel: _lambda_.15
$region0: #{_lambda_.15}
  #allocation0 [shape = 'u32[]', space=smem, size = 0x4, offset = 0x4, fixed_abs, tag = 'smem constant byte address 0x4 - core index']
  #allocation1 [shape = 'u32[144,128]{1,0:T(1,128)}', space=vmem, size = 0x12000, scoped, tag = 'internal scratch']
  %s0 = inlined_call_operand.vmem [shape: bf16[9,512,8], index: 0, kind: input, shape index: {}]
  %s1 = inlined_call_operand.vmem [shape: bf16[512,8], index: 1, kind: output, shape index: {}]
  %s2 = sld [smem:[#allocation0]]
  $region78: #{_lambda_.15} parent=0
    _
  %s4 = ssub.s32 1, %s2
  %s5 = scalar_select 0, %s4, %s2
  $region1: #{_lambda_.15} parent=0
    #allocation2 [shape = 'u8[1179648]{0}', space=vmem, size = 0x120000, scoped, tag = 'input window, operand 0']
    loop: start=0, step=1, limit=4
    $region2: #{_lambda_.15} parent=1 // loop_pre_header
      _
    $region3: #{_lambda_.15} parent=1 // loop_header
      %s7 = sphi 0, %s11
      %p8 = scmp.ge.s32.totalorder %s7, 4
      %s17 = sphi 0, %s19
      %s20 = sphi 0, %s17
      %s21 = sphi 0, %s20
      %s37 = sphi 0, %s21
      %s43 = sphi 0, %s45
      %s46 = sphi 0, %s43
      %s47 = sphi 0, %s46
      %s63 = sphi 0, %s47
    $region4: #{_lambda_.15} parent=1 // loop_header_branch
      %10 = sbr.rel (%p8) target = $region8
    $region5: #{_lambda_.15} parent=1 // loop_body
      %s12 = ssub.s32 %s7, 1
      %s13 = ssub.s32 %s7, 2
      %s14 = sadd.s32 %s7, 1
      %s15 = ssub.s32 %s7, %s14
      %p16 = scmp.eq.s32.totalorder %s15, 0
      %s18 = sadd.s32 %s17, 1
      %s19 = scalar_select %p16, %s17, %s18
      %p22 = pneg %p16
      %p23 = scmp.eq.s32.totalorder %s7, 1
      %p24 = por %p22, %p23
      %p25 = scmp.ne.s32.totalorder %s17, %s20
      %p26 = scmp.eq.s32.totalorder %s7, 0
      %p27 = por %p25, %p26
      %p28 = scmp.ne.s32.totalorder %s17, %s20
      %p29 = scmp.eq.s32.totalorder %s12, 1
      %p30 = por %p28, %p29
      %p31 = scmp.ne.s32.totalorder %s20, %s21
      %p32 = scmp.eq.s32.totalorder %s12, 0
      %p33 = por %p31, %p32
      %p34 = scmp.ne.s32.totalorder %s20, %s21
      %p35 = scmp.eq.s32.totalorder %s13, 1
      %p36 = por %p34, %p35
      %p38 = scmp.ne.s32.totalorder %s21, %s37
      %p39 = scmp.eq.s32.totalorder %s13, 0
      %p40 = por %p38, %p39
      %s41 = ssub.s32 %s7, %s14
      %p42 = scmp.eq.s32.totalorder %s41, 0
      %s44 = sadd.s32 %s43, 1
      %s45 = scalar_select %p42, %s43, %s44
      %p48 = pneg %p42
      %p49 = scmp.eq.s32.totalorder %s7, 1
      %p50 = por %p48, %p49
      %p51 = scmp.ne.s32.totalorder %s43, %s46
      %p52 = scmp.eq.s32.totalorder %s7, 0
      %p53 = por %p51, %p52
      %p54 = scmp.ne.s32.totalorder %s43, %s46
      %p55 = scmp.eq.s32.totalorder %s12, 1
      %p56 = por %p54, %p55
      %p57 = scmp.ne.s32.totalorder %s46, %s47
      %p58 = scmp.eq.s32.totalorder %s12, 0
      %p59 = por %p57, %p58
      %p60 = scmp.ne.s32.totalorder %s46, %s47
      %p61 = scmp.eq.s32.totalorder %s13, 1
      %p62 = por %p60, %p61
      %p64 = scmp.ne.s32.totalorder %s47, %s63
      %p65 = scmp.eq.s32.totalorder %s13, 0
      %p66 = por %p64, %p65
      %p67 = scmp.le.s32.totalorder 1, %s7
      %p68 = scmp.lt.s32.totalorder %s7, 3
      %p69 = pnand %p67, %p68
      %p70 = pneg %p69
      // Predicated region
      $region9: #{_lambda_.15} parent=5 // pred_check
        _
      $region10: #{_lambda_.15} parent=5 // pred_check_branch
        %72 = sbr.rel (%p69) target = $region12
      $region11: #{_lambda_.15} parent=5 // pred_region
        %s73 = ssub.s32 %s7, 1
      $region12: #{_lambda_.15} parent=5 // pred_fallthru
        _
      %p74 = scmp.lt.s32.totalorder %s7, 2
      // Predicated region
      $region13: #{_lambda_.15} parent=5 // pred_check
        %p75 = pneg %p74
      $region14: #{_lambda_.15} parent=5 // pred_check_branch
        %77 = sbr.rel (%p75) target = $region16
      $region15: #{_lambda_.15} parent=5 // pred_region
        // Predicated region
        $region17: #{_lambda_.15} parent=15 // pred_check
          %p78 = pneg %p27
        $region18: #{_lambda_.15} parent=15 // pred_check_branch
          %80 = sbr.rel (%p78) target = $region20
        $region19: #{_lambda_.15} parent=15 // pred_region
          %s81 = sand.u32 %s17, 1
          %s82 = sand.u32 %s17, 1
          %s83 = smul.addr %s82, 1152
          %s84 = scalar_lea.vmem [#allocation2], %s83
          %s85 = smul.u32 32, %s7
          %s86 = smul.addr %s85, 4
          %s87 = scalar_lea.vmem %s0, %s86
          // Predicated region
          $region21: #{_lambda_.15} parent=19 // pred_check
            _
          $region22: #{_lambda_.15} parent=19 // pred_check_branch
            %89 = sbr.rel (0) target = $region24
          $region23: #{_lambda_.15} parent=19 // pred_region
            // Predicated region
            $region25: #{_lambda_.15} parent=23 // pred_check
              _
            $region26: #{_lambda_.15} parent=23 // pred_check_branch
              %91 = sbr.rel target = $region28
            $region27: #{_lambda_.15} parent=23 // pred_region
              // Predicated region
              $region40: #{_lambda_.15} parent=27 // pred_check
                _
              $region41: #{_lambda_.15} parent=27 // pred_check_branch
                %680 = sbr.rel (0) target = $region43
              $region42: #{_lambda_.15} parent=27 // pred_region
                loop: start=0, step=1, limit=1
                $region44: #{_lambda_.15} parent=42 // loop_pre_header
                  _
                $region45: #{_lambda_.15} parent=42 // loop_header
                  %s682 = sphi 0, %s686
                  %p683 = scmp.ge.s32.totalorder %s682, 1
                  %s687 = sphi %s87, %s87
                  %s688 = sphi %s84, %s84
                $region46: #{_lambda_.15} parent=42 // loop_header_branch
                  %685 = sbr.rel (%p683) target = $region50
                $region47: #{_lambda_.15} parent=42 // loop_body
                  _
                $region48: #{_lambda_.15} parent=42 // loop_footer
                  %s686 = sadd.s32 1, %s682
                $region49: #{_lambda_.15} parent=42 // loop_footer_branch
                  %681 = sbr.rel target = $region45
                $region50: #{_lambda_.15} parent=42 // loop_exit
                  _
                loop: start=0, step=1, limit=1
                $region51: #{_lambda_.15} parent=42 // loop_pre_header
                  _
                $region52: #{_lambda_.15} parent=42 // loop_header
                  %s691 = sphi 0, %s695
                  %p692 = scmp.ge.s32.totalorder %s691, 1
                  %s696 = sphi %s87, %s87
                  %s697 = sphi %s84, %s84
                $region53: #{_lambda_.15} parent=42 // loop_header_branch
                  %694 = sbr.rel (%p692) target = $region57
                $region54: #{_lambda_.15} parent=42 // loop_body
                  %v698 = vld [vmem:[%s696] sm:$0xf]
                  %699 = vst [vmem:[%s697] sm:$0xf] %v698
                  %v700 = vld [vmem:[%s696 + $0x4] sm:$0xf]
                  %701 = vst [vmem:[%s697 + $0x4] sm:$0xf] %v700
                  %v702 = vld [vmem:[%s696 + $0x8] sm:$0xf]
                  %703 = vst [vmem:[%s697 + $0x8] sm:$0xf] %v702
                  %v704 = vld [vmem:[%s696 + $0xc] sm:$0xf]
                  %705 = vst [vmem:[%s697 + $0xc] sm:$0xf] %v704
                  %v706 = vld [vmem:[%s696 + $0x10] sm:$0xf]
                  %707 = vst [vmem:[%s697 + $0x10] sm:$0xf] %v706
                  %v708 = vld [vmem:[%s696 + $0x14] sm:$0xf]
                  %709 = vst [vmem:[%s697 + $0x14] sm:$0xf] %v708
                  %v710 = vld [vmem:[%s696 + $0x18] sm:$0xf]
                  %711 = vst [vmem:[%s697 + $0x18] sm:$0xf] %v710
                  %v712 = vld [vmem:[%s696 + $0x1c] sm:$0xf]
                  %713 = vst [vmem:[%s697 + $0x1c] sm:$0xf] %v712
                  %v714 = vld [vmem:[%s696 + $0x20] sm:$0xf]
                  %715 = vst [vmem:[%s697 + $0x20] sm:$0xf] %v714
                  %v716 = vld [vmem:[%s696 + $0x24] sm:$0xf]
                  %717 = vst [vmem:[%s697 + $0x24] sm:$0xf] %v716
                  %v718 = vld [vmem:[%s696 + $0x28] sm:$0xf]
                  %719 = vst [vmem:[%s697 + $0x28] sm:$0xf] %v718
                  %v720 = vld [vmem:[%s696 + $0x2c] sm:$0xf]
                  %721 = vst [vmem:[%s697 + $0x2c] sm:$0xf] %v720
                  %v722 = vld [vmem:[%s696 + $0x30] sm:$0xf]
                  %723 = vst [vmem:[%s697 + $0x30] sm:$0xf] %v722
                  %v724 = vld [vmem:[%s696 + $0x34] sm:$0xf]
                  %725 = vst [vmem:[%s697 + $0x34] sm:$0xf] %v724
                  %v726 = vld [vmem:[%s696 + $0x38] sm:$0xf]
                  %727 = vst [vmem:[%s697 + $0x38] sm:$0xf] %v726
                  %v728 = vld [vmem:[%s696 + $0x3c] sm:$0xf]
                  %729 = vst [vmem:[%s697 + $0x3c] sm:$0xf] %v728
                  %v730 = vld [vmem:[%s696 + $0x40] sm:$0xf]
                  %731 = vst [vmem:[%s697 + $0x40] sm:$0xf] %v730
                  %v732 = vld [vmem:[%s696 + $0x44] sm:$0xf]
                  %733 = vst [vmem:[%s697 + $0x44] sm:$0xf] %v732
                  %v734 = vld [vmem:[%s696 + $0x48] sm:$0xf]
                  %735 = vst [vmem:[%s697 + $0x48] sm:$0xf] %v734
                  %v736 = vld [vmem:[%s696 + $0x4c] sm:$0xf]
                  %737 = vst [vmem:[%s697 + $0x4c] sm:$0xf] %v736
                  %v738 = vld [vmem:[%s696 + $0x50] sm:$0xf]
                  %739 = vst [vmem:[%s697 + $0x50] sm:$0xf] %v738
                  %v740 = vld [vmem:[%s696 + $0x54] sm:$0xf]
                  %741 = vst [vmem:[%s697 + $0x54] sm:$0xf] %v740
                  %v742 = vld [vmem:[%s696 + $0x58] sm:$0xf]
                  %743 = vst [vmem:[%s697 + $0x58] sm:$0xf] %v742
                  %v744 = vld [vmem:[%s696 + $0x5c] sm:$0xf]
                  %745 = vst [vmem:[%s697 + $0x5c] sm:$0xf] %v744
                  %v746 = vld [vmem:[%s696 + $0x60] sm:$0xf]
                  %747 = vst [vmem:[%s697 + $0x60] sm:$0xf] %v746
                  %v748 = vld [vmem:[%s696 + $0x64] sm:$0xf]
                  %749 = vst [vmem:[%s697 + $0x64] sm:$0xf] %v748
                  %v750 = vld [vmem:[%s696 + $0x68] sm:$0xf]
                  %751 = vst [vmem:[%s697 + $0x68] sm:$0xf] %v750
                  %v752 = vld [vmem:[%s696 + $0x6c] sm:$0xf]
                  %753 = vst [vmem:[%s697 + $0x6c] sm:$0xf] %v752
                  %v754 = vld [vmem:[%s696 + $0x70] sm:$0xf]
                  %755 = vst [vmem:[%s697 + $0x70] sm:$0xf] %v754
                  %v756 = vld [vmem:[%s696 + $0x74] sm:$0xf]
                  %757 = vst [vmem:[%s697 + $0x74] sm:$0xf] %v756
                  %v758 = vld [vmem:[%s696 + $0x78] sm:$0xf]
                  %759 = vst [vmem:[%s697 + $0x78] sm:$0xf] %v758
                  %v760 = vld [vmem:[%s696 + $0x7c] sm:$0xf]
                  %761 = vst [vmem:[%s697 + $0x7c] sm:$0xf] %v760
                  %v762 = vld [vmem:[%s696 + $0x100] sm:$0xf]
                  %763 = vst [vmem:[%s697 + $0x80] sm:$0xf] %v762
                  %v764 = vld [vmem:[%s696 + $0x104] sm:$0xf]
                  %765 = vst [vmem:[%s697 + $0x84] sm:$0xf] %v764
                  %v766 = vld [vmem:[%s696 + $0x108] sm:$0xf]
                  %767 = vst [vmem:[%s697 + $0x88] sm:$0xf] %v766
                  %v768 = vld [vmem:[%s696 + $0x10c] sm:$0xf]
                  %769 = vst [vmem:[%s697 + $0x8c] sm:$0xf] %v768
                  %v770 = vld [vmem:[%s696 + $0x110] sm:$0xf]
                  %771 = vst [vmem:[%s697 + $0x90] sm:$0xf] %v770
                  %v772 = vld [vmem:[%s696 + $0x114] sm:$0xf]
                  %773 = vst [vmem:[%s697 + $0x94] sm:$0xf] %v772
                  %v774 = vld [vmem:[%s696 + $0x118] sm:$0xf]
                  %775 = vst [vmem:[%s697 + $0x98] sm:$0xf] %v774
                  %v776 = vld [vmem:[%s696 + $0x11c] sm:$0xf]
                  %777 = vst [vmem:[%s697 + $0x9c] sm:$0xf] %v776
                  %v778 = vld [vmem:[%s696 + $0x120] sm:$0xf]
                  %779 = vst [vmem:[%s697 + $0xa0] sm:$0xf] %v778
                  %v780 = vld [vmem:[%s696 + $0x124] sm:$0xf]
                  %781 = vst [vmem:[%s697 + $0xa4] sm:$0xf] %v780
                  %v782 = vld [vmem:[%s696 + $0x128] sm:$0xf]
                  %783 = vst [vmem:[%s697 + $0xa8] sm:$0xf] %v782
                  %v784 = vld [vmem:[%s696 + $0x12c] sm:$0xf]
                  %785 = vst [vmem:[%s697 + $0xac] sm:$0xf] %v784
                  %v786 = vld [vmem:[%s696 + $0x130] sm:$0xf]
                  %787 = vst [vmem:[%s697 + $0xb0] sm:$0xf] %v786
                  %v788 = vld [vmem:[%s696 + $0x134] sm:$0xf]
                  %789 = vst [vmem:[%s697 + $0xb4] sm:$0xf] %v788
                  %v790 = vld [vmem:[%s696 + $0x138] sm:$0xf]
                  %791 = vst [vmem:[%s697 + $0xb8] sm:$0xf] %v790
                  %v792 = vld [vmem:[%s696 + $0x13c] sm:$0xf]
                  %793 = vst [vmem:[%s697 + $0xbc] sm:$0xf] %v792
                  %v794 = vld [vmem:[%s696 + $0x140] sm:$0xf]
                  %795 = vst [vmem:[%s697 + $0xc0] sm:$0xf] %v794
                  %v796 = vld [vmem:[%s696 + $0x144] sm:$0xf]
                  %797 = vst [vmem:[%s697 + $0xc4] sm:$0xf] %v796
                  %v798 = vld [vmem:[%s696 + $0x148] sm:$0xf]
                  %799 = vst [vmem:[%s697 + $0xc8] sm:$0xf] %v798
                  %v800 = vld [vmem:[%s696 + $0x14c] sm:$0xf]
                  %801 = vst [vmem:[%s697 + $0xcc] sm:$0xf] %v800
                  %v802 = vld [vmem:[%s696 + $0x150] sm:$0xf]
                  %803 = vst [vmem:[%s697 + $0xd0] sm:$0xf] %v802
                  %v804 = vld [vmem:[%s696 + $0x154] sm:$0xf]
                  %805 = vst [vmem:[%s697 + $0xd4] sm:$0xf] %v804
                  %v806 = vld [vmem:[%s696 + $0x158] sm:$0xf]
                  %807 = vst [vmem:[%s697 + $0xd8] sm:$0xf] %v806
                  %v808 = vld [vmem:[%s696 + $0x15c] sm:$0xf]
                  %809 = vst [vmem:[%s697 + $0xdc] sm:$0xf] %v808
                  %v810 = vld [vmem:[%s696 + $0x160] sm:$0xf]
                  %811 = vst [vmem:[%s697 + $0xe0] sm:$0xf] %v810
                  %v812 = vld [vmem:[%s696 + $0x164] sm:$0xf]
                  %813 = vst [vmem:[%s697 + $0xe4] sm:$0xf] %v812
                  %v814 = vld [vmem:[%s696 + $0x168] sm:$0xf]
                  %815 = vst [vmem:[%s697 + $0xe8] sm:$0xf] %v814
                  %v816 = vld [vmem:[%s696 + $0x16c] sm:$0xf]
                  %817 = vst [vmem:[%s697 + $0xec] sm:$0xf] %v816
                  %v818 = vld [vmem:[%s696 + $0x170] sm:$0xf]
                  %819 = vst [vmem:[%s697 + $0xf0] sm:$0xf] %v818
                  %v820 = vld [vmem:[%s696 + $0x174] sm:$0xf]
                  %821 = vst [vmem:[%s697 + $0xf4] sm:$0xf] %v820
                  %v822 = vld [vmem:[%s696 + $0x178] sm:$0xf]
                  %823 = vst [vmem:[%s697 + $0xf8] sm:$0xf] %v822
                  %v824 = vld [vmem:[%s696 + $0x17c] sm:$0xf]
                  %825 = vst [vmem:[%s697 + $0xfc] sm:$0xf] %v824
                  %v826 = vld [vmem:[%s696 + $0x200] sm:$0xf]
                  %827 = vst [vmem:[%s697 + $0x100] sm:$0xf] %v826
                  %v828 = vld [vmem:[%s696 + $0x204] sm:$0xf]
                  %829 = vst [vmem:[%s697 + $0x104] sm:$0xf] %v828
                  %v830 = vld [vmem:[%s696 + $0x208] sm:$0xf]
                  %831 = vst [vmem:[%s697 + $0x108] sm:$0xf] %v830
                  %v832 = vld [vmem:[%s696 + $0x20c] sm:$0xf]
                  %833 = vst [vmem:[%s697 + $0x10c] sm:$0xf] %v832
                  %v834 = vld [vmem:[%s696 + $0x210] sm:$0xf]
                  %835 = vst [vmem:[%s697 + $0x110] sm:$0xf] %v834
                  %v836 = vld [vmem:[%s696 + $0x214] sm:$0xf]
                  %837 = vst [vmem:[%s697 + $0x114] sm:$0xf] %v836
                  %v838 = vld [vmem:[%s696 + $0x218] sm:$0xf]
                  %839 = vst [vmem:[%s697 + $0x118] sm:$0xf] %v838
                  %v840 = vld [vmem:[%s696 + $0x21c] sm:$0xf]
                  %841 = vst [vmem:[%s697 + $0x11c] sm:$0xf] %v840
                  %v842 = vld [vmem:[%s696 + $0x220] sm:$0xf]
                  %843 = vst [vmem:[%s697 + $0x120] sm:$0xf] %v842
                  %v844 = vld [vmem:[%s696 + $0x224] sm:$0xf]
                  %845 = vst [vmem:[%s697 + $0x124] sm:$0xf] %v844
                  %v846 = vld [vmem:[%s696 + $0x228] sm:$0xf]
                  %847 = vst [vmem:[%s697 + $0x128] sm:$0xf] %v846
                  %v848 = vld [vmem:[%s696 + $0x22c] sm:$0xf]
                  %849 = vst [vmem:[%s697 + $0x12c] sm:$0xf] %v848
                  %v850 = vld [vmem:[%s696 + $0x230] sm:$0xf]
                  %851 = vst [vmem:[%s697 + $0x130] sm:$0xf] %v850
                  %v852 = vld [vmem:[%s696 + $0x234] sm:$0xf]
                  %853 = vst [vmem:[%s697 + $0x134] sm:$0xf] %v852
                  %v854 = vld [vmem:[%s696 + $0x238] sm:$0xf]
                  %855 = vst [vmem:[%s697 + $0x138] sm:$0xf] %v854
                  %v856 = vld [vmem:[%s696 + $0x23c] sm:$0xf]
                  %857 = vst [vmem:[%s697 + $0x13c] sm:$0xf] %v856
                  %v858 = vld [vmem:[%s696 + $0x240] sm:$0xf]
                  %859 = vst [vmem:[%s697 + $0x140] sm:$0xf] %v858
                  %v860 = vld [vmem:[%s696 + $0x244] sm:$0xf]
                  %861 = vst [vmem:[%s697 + $0x144] sm:$0xf] %v860
                  %v862 = vld [vmem:[%s696 + $0x248] sm:$0xf]
                  %863 = vst [vmem:[%s697 + $0x148] sm:$0xf] %v862
                  %v864 = vld [vmem:[%s696 + $0x24c] sm:$0xf]
                  %865 = vst [vmem:[%s697 + $0x14c] sm:$0xf] %v864
                  %v866 = vld [vmem:[%s696 + $0x250] sm:$0xf]
                  %867 = vst [vmem:[%s697 + $0x150] sm:$0xf] %v866
                  %v868 = vld [vmem:[%s696 + $0x254] sm:$0xf]
                  %869 = vst [vmem:[%s697 + $0x154] sm:$0xf] %v868
                  %v870 = vld [vmem:[%s696 + $0x258] sm:$0xf]
                  %871 = vst [vmem:[%s697 + $0x158] sm:$0xf] %v870
                  %v872 = vld [vmem:[%s696 + $0x25c] sm:$0xf]
                  %873 = vst [vmem:[%s697 + $0x15c] sm:$0xf] %v872
                  %v874 = vld [vmem:[%s696 + $0x260] sm:$0xf]
                  %875 = vst [vmem:[%s697 + $0x160] sm:$0xf] %v874
                  %v876 = vld [vmem:[%s696 + $0x264] sm:$0xf]
                  %877 = vst [vmem:[%s697 + $0x164] sm:$0xf] %v876
                  %v878 = vld [vmem:[%s696 + $0x268] sm:$0xf]
                  %879 = vst [vmem:[%s697 + $0x168] sm:$0xf] %v878
                  %v880 = vld [vmem:[%s696 + $0x26c] sm:$0xf]
                  %881 = vst [vmem:[%s697 + $0x16c] sm:$0xf] %v880
                  %v882 = vld [vmem:[%s696 + $0x270] sm:$0xf]
                  %883 = vst [vmem:[%s697 + $0x170] sm:$0xf] %v882
                  %v884 = vld [vmem:[%s696 + $0x274] sm:$0xf]
                  %885 = vst [vmem:[%s697 + $0x174] sm:$0xf] %v884
                  %v886 = vld [vmem:[%s696 + $0x278] sm:$0xf]
                  %887 = vst [vmem:[%s697 + $0x178] sm:$0xf] %v886
                  %v888 = vld [vmem:[%s696 + $0x27c] sm:$0xf]
                  %889 = vst [vmem:[%s697 + $0x17c] sm:$0xf] %v888
                  %v890 = vld [vmem:[%s696 + $0x300] sm:$0xf]
                  %891 = vst [vmem:[%s697 + $0x180] sm:$0xf] %v890
                  %v892 = vld [vmem:[%s696 + $0x304] sm:$0xf]
                  %893 = vst [vmem:[%s697 + $0x184] sm:$0xf] %v892
                  %v894 = vld [vmem:[%s696 + $0x308] sm:$0xf]
                  %895 = vst [vmem:[%s697 + $0x188] sm:$0xf] %v894
                  %v896 = vld [vmem:[%s696 + $0x30c] sm:$0xf]
                  %897 = vst [vmem:[%s697 + $0x18c] sm:$0xf] %v896
                  %v898 = vld [vmem:[%s696 + $0x310] sm:$0xf]
                  %899 = vst [vmem:[%s697 + $0x190] sm:$0xf] %v898
                  %v900 = vld [vmem:[%s696 + $0x314] sm:$0xf]
                  %901 = vst [vmem:[%s697 + $0x194] sm:$0xf] %v900
                  %v902 = vld [vmem:[%s696 + $0x318] sm:$0xf]
                  %903 = vst [vmem:[%s697 + $0x198] sm:$0xf] %v902
                  %v904 = vld [vmem:[%s696 + $0x31c] sm:$0xf]
                  %905 = vst [vmem:[%s697 + $0x19c] sm:$0xf] %v904
                  %v906 = vld [vmem:[%s696 + $0x320] sm:$0xf]
                  %907 = vst [vmem:[%s697 + $0x1a0] sm:$0xf] %v906
                  %v908 = vld [vmem:[%s696 + $0x324] sm:$0xf]
                  %909 = vst [vmem:[%s697 + $0x1a4] sm:$0xf] %v908
                  %v910 = vld [vmem:[%s696 + $0x328] sm:$0xf]
                  %911 = vst [vmem:[%s697 + $0x1a8] sm:$0xf] %v910
                  %v912 = vld [vmem:[%s696 + $0x32c] sm:$0xf]
                  %913 = vst [vmem:[%s697 + $0x1ac] sm:$0xf] %v912
                  %v914 = vld [vmem:[%s696 + $0x330] sm:$0xf]
                  %915 = vst [vmem:[%s697 + $0x1b0] sm:$0xf] %v914
                  %v916 = vld [vmem:[%s696 + $0x334] sm:$0xf]
                  %917 = vst [vmem:[%s697 + $0x1b4] sm:$0xf] %v916
                  %v918 = vld [vmem:[%s696 + $0x338] sm:$0xf]
                  %919 = vst [vmem:[%s697 + $0x1b8] sm:$0xf] %v918
                  %v920 = vld [vmem:[%s696 + $0x33c] sm:$0xf]
                  %921 = vst [vmem:[%s697 + $0x1bc] sm:$0xf] %v920
                  %v922 = vld [vmem:[%s696 + $0x340] sm:$0xf]
                  %923 = vst [vmem:[%s697 + $0x1c0] sm:$0xf] %v922
                  %v924 = vld [vmem:[%s696 + $0x344] sm:$0xf]
                  %925 = vst [vmem:[%s697 + $0x1c4] sm:$0xf] %v924
                  %v926 = vld [vmem:[%s696 + $0x348] sm:$0xf]
                  %927 = vst [vmem:[%s697 + $0x1c8] sm:$0xf] %v926
                  %v928 = vld [vmem:[%s696 + $0x34c] sm:$0xf]
                  %929 = vst [vmem:[%s697 + $0x1cc] sm:$0xf] %v928
                  %v930 = vld [vmem:[%s696 + $0x350] sm:$0xf]
                  %931 = vst [vmem:[%s697 + $0x1d0] sm:$0xf] %v930
                  %v932 = vld [vmem:[%s696 + $0x354] sm:$0xf]
                  %933 = vst [vmem:[%s697 + $0x1d4] sm:$0xf] %v932
                  %v934 = vld [vmem:[%s696 + $0x358] sm:$0xf]
                  %935 = vst [vmem:[%s697 + $0x1d8] sm:$0xf] %v934
                  %v936 = vld [vmem:[%s696 + $0x35c] sm:$0xf]
                  %937 = vst [vmem:[%s697 + $0x1dc] sm:$0xf] %v936
                  %v938 = vld [vmem:[%s696 + $0x360] sm:$0xf]
                  %939 = vst [vmem:[%s697 + $0x1e0] sm:$0xf] %v938
                  %v940 = vld [vmem:[%s696 + $0x364] sm:$0xf]
                  %941 = vst [vmem:[%s697 + $0x1e4] sm:$0xf] %v940
                  %v942 = vld [vmem:[%s696 + $0x368] sm:$0xf]
                  %943 = vst [vmem:[%s697 + $0x1e8] sm:$0xf] %v942
                  %v944 = vld [vmem:[%s696 + $0x36c] sm:$0xf]
                  %945 = vst [vmem:[%s697 + $0x1ec] sm:$0xf] %v944
                  %v946 = vld [vmem:[%s696 + $0x370] sm:$0xf]
                  %947 = vst [vmem:[%s697 + $0x1f0] sm:$0xf] %v946
                  %v948 = vld [vmem:[%s696 + $0x374] sm:$0xf]
                  %949 = vst [vmem:[%s697 + $0x1f4] sm:$0xf] %v948
                  %v950 = vld [vmem:[%s696 + $0x378] sm:$0xf]
                  %951 = vst [vmem:[%s697 + $0x1f8] sm:$0xf] %v950
                  %v952 = vld [vmem:[%s696 + $0x37c] sm:$0xf]
                  %953 = vst [vmem:[%s697 + $0x1fc] sm:$0xf] %v952
                  %v954 = vld [vmem:[%s696 + $0x400] sm:$0xf]
                  %955 = vst [vmem:[%s697 + $0x200] sm:$0xf] %v954
                  %v956 = vld [vmem:[%s696 + $0x404] sm:$0xf]
                  %957 = vst [vmem:[%s697 + $0x204] sm:$0xf] %v956
                  %v958 = vld [vmem:[%s696 + $0x408] sm:$0xf]
                  %959 = vst [vmem:[%s697 + $0x208] sm:$0xf] %v958
                  %v960 = vld [vmem:[%s696 + $0x40c] sm:$0xf]
                  %961 = vst [vmem:[%s697 + $0x20c] sm:$0xf] %v960
                  %v962 = vld [vmem:[%s696 + $0x410] sm:$0xf]
                  %963 = vst [vmem:[%s697 + $0x210] sm:$0xf] %v962
                  %v964 = vld [vmem:[%s696 + $0x414] sm:$0xf]
                  %965 = vst [vmem:[%s697 + $0x214] sm:$0xf] %v964
                  %v966 = vld [vmem:[%s696 + $0x418] sm:$0xf]
                  %967 = vst [vmem:[%s697 + $0x218] sm:$0xf] %v966
                  %v968 = vld [vmem:[%s696 + $0x41c] sm:$0xf]
                  %969 = vst [vmem:[%s697 + $0x21c] sm:$0xf] %v968
                  %v970 = vld [vmem:[%s696 + $0x420] sm:$0xf]
                  %971 = vst [vmem:[%s697 + $0x220] sm:$0xf] %v970
                  %v972 = vld [vmem:[%s696 + $0x424] sm:$0xf]
                  %973 = vst [vmem:[%s697 + $0x224] sm:$0xf] %v972
                  %v974 = vld [vmem:[%s696 + $0x428] sm:$0xf]
                  %975 = vst [vmem:[%s697 + $0x228] sm:$0xf] %v974
                  %v976 = vld [vmem:[%s696 + $0x42c] sm:$0xf]
                  %977 = vst [vmem:[%s697 + $0x22c] sm:$0xf] %v976
                  %v978 = vld [vmem:[%s696 + $0x430] sm:$0xf]
                  %979 = vst [vmem:[%s697 + $0x230] sm:$0xf] %v978
                  %v980 = vld [vmem:[%s696 + $0x434] sm:$0xf]
                  %981 = vst [vmem:[%s697 + $0x234] sm:$0xf] %v980
                  %v982 = vld [vmem:[%s696 + $0x438] sm:$0xf]
                  %983 = vst [vmem:[%s697 + $0x238] sm:$0xf] %v982
                  %v984 = vld [vmem:[%s696 + $0x43c] sm:$0xf]
                  %985 = vst [vmem:[%s697 + $0x23c] sm:$0xf] %v984
                  %v986 = vld [vmem:[%s696 + $0x440] sm:$0xf]
                  %987 = vst [vmem:[%s697 + $0x240] sm:$0xf] %v986
                  %v988 = vld [vmem:[%s696 + $0x444] sm:$0xf]
                  %989 = vst [vmem:[%s697 + $0x244] sm:$0xf] %v988
                  %v990 = vld [vmem:[%s696 + $0x448] sm:$0xf]
                  %991 = vst [vmem:[%s697 + $0x248] sm:$0xf] %v990
                  %v992 = vld [vmem:[%s696 + $0x44c] sm:$0xf]
                  %993 = vst [vmem:[%s697 + $0x24c] sm:$0xf] %v992
                  %v994 = vld [vmem:[%s696 + $0x450] sm:$0xf]
                  %995 = vst [vmem:[%s697 + $0x250] sm:$0xf] %v994
                  %v996 = vld [vmem:[%s696 + $0x454] sm:$0xf]
                  %997 = vst [vmem:[%s697 + $0x254] sm:$0xf] %v996
                  %v998 = vld [vmem:[%s696 + $0x458] sm:$0xf]
                  %999 = vst [vmem:[%s697 + $0x258] sm:$0xf] %v998
                  %v1000 = vld [vmem:[%s696 + $0x45c] sm:$0xf]
                  %1001 = vst [vmem:[%s697 + $0x25c] sm:$0xf] %v1000
                  %v1002 = vld [vmem:[%s696 + $0x460] sm:$0xf]
                  %1003 = vst [vmem:[%s697 + $0x260] sm:$0xf] %v1002
                  %v1004 = vld [vmem:[%s696 + $0x464] sm:$0xf]
                  %1005 = vst [vmem:[%s697 + $0x264] sm:$0xf] %v1004
                  %v1006 = vld [vmem:[%s696 + $0x468] sm:$0xf]
                  %1007 = vst [vmem:[%s697 + $0x268] sm:$0xf] %v1006
                  %v1008 = vld [vmem:[%s696 + $0x46c] sm:$0xf]
                  %1009 = vst [vmem:[%s697 + $0x26c] sm:$0xf] %v1008
                  %v1010 = vld [vmem:[%s696 + $0x470] sm:$0xf]
                  %1011 = vst [vmem:[%s697 + $0x270] sm:$0xf] %v1010
                  %v1012 = vld [vmem:[%s696 + $0x474] sm:$0xf]
                  %1013 = vst [vmem:[%s697 + $0x274] sm:$0xf] %v1012
                  %v1014 = vld [vmem:[%s696 + $0x478] sm:$0xf]
                  %1015 = vst [vmem:[%s697 + $0x278] sm:$0xf] %v1014
                  %v1016 = vld [vmem:[%s696 + $0x47c] sm:$0xf]
                  %1017 = vst [vmem:[%s697 + $0x27c] sm:$0xf] %v1016
                  %v1018 = vld [vmem:[%s696 + $0x500] sm:$0xf]
                  %1019 = vst [vmem:[%s697 + $0x280] sm:$0xf] %v1018
                  %v1020 = vld [vmem:[%s696 + $0x504] sm:$0xf]
                  %1021 = vst [vmem:[%s697 + $0x284] sm:$0xf] %v1020
                  %v1022 = vld [vmem:[%s696 + $0x508] sm:$0xf]
                  %1023 = vst [vmem:[%s697 + $0x288] sm:$0xf] %v1022
                  %v1024 = vld [vmem:[%s696 + $0x50c] sm:$0xf]
                  %1025 = vst [vmem:[%s697 + $0x28c] sm:$0xf] %v1024
                  %v1026 = vld [vmem:[%s696 + $0x510] sm:$0xf]
                  %1027 = vst [vmem:[%s697 + $0x290] sm:$0xf] %v1026
                  %v1028 = vld [vmem:[%s696 + $0x514] sm:$0xf]
                  %1029 = vst [vmem:[%s697 + $0x294] sm:$0xf] %v1028
                  %v1030 = vld [vmem:[%s696 + $0x518] sm:$0xf]
                  %1031 = vst [vmem:[%s697 + $0x298] sm:$0xf] %v1030
                  %v1032 = vld [vmem:[%s696 + $0x51c] sm:$0xf]
                  %1033 = vst [vmem:[%s697 + $0x29c] sm:$0xf] %v1032
                  %v1034 = vld [vmem:[%s696 + $0x520] sm:$0xf]
                  %1035 = vst [vmem:[%s697 + $0x2a0] sm:$0xf] %v1034
                  %v1036 = vld [vmem:[%s696 + $0x524] sm:$0xf]
                  %1037 = vst [vmem:[%s697 + $0x2a4] sm:$0xf] %v1036
                  %v1038 = vld [vmem:[%s696 + $0x528] sm:$0xf]
                  %1039 = vst [vmem:[%s697 + $0x2a8] sm:$0xf] %v1038
                  %v1040 = vld [vmem:[%s696 + $0x52c] sm:$0xf]
                  %1041 = vst [vmem:[%s697 + $0x2ac] sm:$0xf] %v1040
                  %v1042 = vld [vmem:[%s696 + $0x530] sm:$0xf]
                  %1043 = vst [vmem:[%s697 + $0x2b0] sm:$0xf] %v1042
                  %v1044 = vld [vmem:[%s696 + $0x534] sm:$0xf]
                  %1045 = vst [vmem:[%s697 + $0x2b4] sm:$0xf] %v1044
                  %v1046 = vld [vmem:[%s696 + $0x538] sm:$0xf]
                  %1047 = vst [vmem:[%s697 + $0x2b8] sm:$0xf] %v1046
                  %v1048 = vld [vmem:[%s696 + $0x53c] sm:$0xf]
                  %1049 = vst [vmem:[%s697 + $0x2bc] sm:$0xf] %v1048
                  %v1050 = vld [vmem:[%s696 + $0x540] sm:$0xf]
                  %1051 = vst [vmem:[%s697 + $0x2c0] sm:$0xf] %v1050
                  %v1052 = vld [vmem:[%s696 + $0x544] sm:$0xf]
                  %1053 = vst [vmem:[%s697 + $0x2c4] sm:$0xf] %v1052
                  %v1054 = vld [vmem:[%s696 + $0x548] sm:$0xf]
                  %1055 = vst [vmem:[%s697 + $0x2c8] sm:$0xf] %v1054
                  %v1056 = vld [vmem:[%s696 + $0x54c] sm:$0xf]
                  %1057 = vst [vmem:[%s697 + $0x2cc] sm:$0xf] %v1056
                  %v1058 = vld [vmem:[%s696 + $0x550] sm:$0xf]
                  %1059 = vst [vmem:[%s697 + $0x2d0] sm:$0xf] %v1058
                  %v1060 = vld [vmem:[%s696 + $0x554] sm:$0xf]
                  %1061 = vst [vmem:[%s697 + $0x2d4] sm:$0xf] %v1060
                  %v1062 = vld [vmem:[%s696 + $0x558] sm:$0xf]
                  %1063 = vst [vmem:[%s697 + $0x2d8] sm:$0xf] %v1062
                  %v1064 = vld [vmem:[%s696 + $0x55c] sm:$0xf]
                  %1065 = vst [vmem:[%s697 + $0x2dc] sm:$0xf] %v1064
                  %v1066 = vld [vmem:[%s696 + $0x560] sm:$0xf]
                  %1067 = vst [vmem:[%s697 + $0x2e0] sm:$0xf] %v1066
                  %v1068 = vld [vmem:[%s696 + $0x564] sm:$0xf]
                  %1069 = vst [vmem:[%s697 + $0x2e4] sm:$0xf] %v1068
                  %v1070 = vld [vmem:[%s696 + $0x568] sm:$0xf]
                  %1071 = vst [vmem:[%s697 + $0x2e8] sm:$0xf] %v1070
                  %v1072 = vld [vmem:[%s696 + $0x56c] sm:$0xf]
                  %1073 = vst [vmem:[%s697 + $0x2ec] sm:$0xf] %v1072
                  %v1074 = vld [vmem:[%s696 + $0x570] sm:$0xf]
                  %1075 = vst [vmem:[%s697 + $0x2f0] sm:$0xf] %v1074
                  %v1076 = vld [vmem:[%s696 + $0x574] sm:$0xf]
                  %1077 = vst [vmem:[%s697 + $0x2f4] sm:$0xf] %v1076
                  %v1078 = vld [vmem:[%s696 + $0x578] sm:$0xf]
                  %1079 = vst [vmem:[%s697 + $0x2f8] sm:$0xf] %v1078
                  %v1080 = vld [vmem:[%s696 + $0x57c] sm:$0xf]
                  %1081 = vst [vmem:[%s697 + $0x2fc] sm:$0xf] %v1080
                  %v1082 = vld [vmem:[%s696 + $0x600] sm:$0xf]
                  %1083 = vst [vmem:[%s697 + $0x300] sm:$0xf] %v1082
                  %v1084 = vld [vmem:[%s696 + $0x604] sm:$0xf]
                  %1085 = vst [vmem:[%s697 + $0x304] sm:$0xf] %v1084
                  %v1086 = vld [vmem:[%s696 + $0x608] sm:$0xf]
                  %1087 = vst [vmem:[%s697 + $0x308] sm:$0xf] %v1086
                  %v1088 = vld [vmem:[%s696 + $0x60c] sm:$0xf]
                  %1089 = vst [vmem:[%s697 + $0x30c] sm:$0xf] %v1088
                  %v1090 = vld [vmem:[%s696 + $0x610] sm:$0xf]
                  %1091 = vst [vmem:[%s697 + $0x310] sm:$0xf] %v1090
                  %v1092 = vld [vmem:[%s696 + $0x614] sm:$0xf]
                  %1093 = vst [vmem:[%s697 + $0x314] sm:$0xf] %v1092
                  %v1094 = vld [vmem:[%s696 + $0x618] sm:$0xf]
                  %1095 = vst [vmem:[%s697 + $0x318] sm:$0xf] %v1094
                  %v1096 = vld [vmem:[%s696 + $0x61c] sm:$0xf]
                  %1097 = vst [vmem:[%s697 + $0x31c] sm:$0xf] %v1096
                  %v1098 = vld [vmem:[%s696 + $0x620] sm:$0xf]
                  %1099 = vst [vmem:[%s697 + $0x320] sm:$0xf] %v1098
                  %v1100 = vld [vmem:[%s696 + $0x624] sm:$0xf]
                  %1101 = vst [vmem:[%s697 + $0x324] sm:$0xf] %v1100
                  %v1102 = vld [vmem:[%s696 + $0x628] sm:$0xf]
                  %1103 = vst [vmem:[%s697 + $0x328] sm:$0xf] %v1102
                  %v1104 = vld [vmem:[%s696 + $0x62c] sm:$0xf]
                  %1105 = vst [vmem:[%s697 + $0x32c] sm:$0xf] %v1104
                  %v1106 = vld [vmem:[%s696 + $0x630] sm:$0xf]
                  %1107 = vst [vmem:[%s697 + $0x330] sm:$0xf] %v1106
                  %v1108 = vld [vmem:[%s696 + $0x634] sm:$0xf]
                  %1109 = vst [vmem:[%s697 + $0x334] sm:$0xf] %v1108
                  %v1110 = vld [vmem:[%s696 + $0x638] sm:$0xf]
                  %1111 = vst [vmem:[%s697 + $0x338] sm:$0xf] %v1110
                  %v1112 = vld [vmem:[%s696 + $0x63c] sm:$0xf]
                  %1113 = vst [vmem:[%s697 + $0x33c] sm:$0xf] %v1112
                  %v1114 = vld [vmem:[%s696 + $0x640] sm:$0xf]
                  %1115 = vst [vmem:[%s697 + $0x340] sm:$0xf] %v1114
                  %v1116 = vld [vmem:[%s696 + $0x644] sm:$0xf]
                  %1117 = vst [vmem:[%s697 + $0x344] sm:$0xf] %v1116
                  %v1118 = vld [vmem:[%s696 + $0x648] sm:$0xf]
                  %1119 = vst [vmem:[%s697 + $0x348] sm:$0xf] %v1118
                  %v1120 = vld [vmem:[%s696 + $0x64c] sm:$0xf]
                  %1121 = vst [vmem:[%s697 + $0x34c] sm:$0xf] %v1120
                  %v1122 = vld [vmem:[%s696 + $0x650] sm:$0xf]
                  %1123 = vst [vmem:[%s697 + $0x350] sm:$0xf] %v1122
                  %v1124 = vld [vmem:[%s696 + $0x654] sm:$0xf]
                  %1125 = vst [vmem:[%s697 + $0x354] sm:$0xf] %v1124
                  %v1126 = vld [vmem:[%s696 + $0x658] sm:$0xf]
                  %1127 = vst [vmem:[%s697 + $0x358] sm:$0xf] %v1126
                  %v1128 = vld [vmem:[%s696 + $0x65c] sm:$0xf]
                  %1129 = vst [vmem:[%s697 + $0x35c] sm:$0xf] %v1128
                  %v1130 = vld [vmem:[%s696 + $0x660] sm:$0xf]
                  %1131 = vst [vmem:[%s697 + $0x360] sm:$0xf] %v1130
                  %v1132 = vld [vmem:[%s696 + $0x664] sm:$0xf]
                  %1133 = vst [vmem:[%s697 + $0x364] sm:$0xf] %v1132
                  %v1134 = vld [vmem:[%s696 + $0x668] sm:$0xf]
                  %1135 = vst [vmem:[%s697 + $0x368] sm:$0xf] %v1134
                  %v1136 = vld [vmem:[%s696 + $0x66c] sm:$0xf]
                  %1137 = vst [vmem:[%s697 + $0x36c] sm:$0xf] %v1136
                  %v1138 = vld [vmem:[%s696 + $0x670] sm:$0xf]
                  %1139 = vst [vmem:[%s697 + $0x370] sm:$0xf] %v1138
                  %v1140 = vld [vmem:[%s696 + $0x674] sm:$0xf]
                  %1141 = vst [vmem:[%s697 + $0x374] sm:$0xf] %v1140
                  %v1142 = vld [vmem:[%s696 + $0x678] sm:$0xf]
                  %1143 = vst [vmem:[%s697 + $0x378] sm:$0xf] %v1142
                  %v1144 = vld [vmem:[%s696 + $0x67c] sm:$0xf]
                  %1145 = vst [vmem:[%s697 + $0x37c] sm:$0xf] %v1144
                  %v1146 = vld [vmem:[%s696 + $0x700] sm:$0xf]
                  %1147 = vst [vmem:[%s697 + $0x380] sm:$0xf] %v1146
                  %v1148 = vld [vmem:[%s696 + $0x704] sm:$0xf]
                  %1149 = vst [vmem:[%s697 + $0x384] sm:$0xf] %v1148
                  %v1150 = vld [vmem:[%s696 + $0x708] sm:$0xf]
                  %1151 = vst [vmem:[%s697 + $0x388] sm:$0xf] %v1150
                  %v1152 = vld [vmem:[%s696 + $0x70c] sm:$0xf]
                  %1153 = vst [vmem:[%s697 + $0x38c] sm:$0xf] %v1152
                  %v1154 = vld [vmem:[%s696 + $0x710] sm:$0xf]
                  %1155 = vst [vmem:[%s697 + $0x390] sm:$0xf] %v1154
                  %v1156 = vld [vmem:[%s696 + $0x714] sm:$0xf]
                  %1157 = vst [vmem:[%s697 + $0x394] sm:$0xf] %v1156
                  %v1158 = vld [vmem:[%s696 + $0x718] sm:$0xf]
                  %1159 = vst [vmem:[%s697 + $0x398] sm:$0xf] %v1158
                  %v1160 = vld [vmem:[%s696 + $0x71c] sm:$0xf]
                  %1161 = vst [vmem:[%s697 + $0x39c] sm:$0xf] %v1160
                  %v1162 = vld [vmem:[%s696 + $0x720] sm:$0xf]
                  %1163 = vst [vmem:[%s697 + $0x3a0] sm:$0xf] %v1162
                  %v1164 = vld [vmem:[%s696 + $0x724] sm:$0xf]
                  %1165 = vst [vmem:[%s697 + $0x3a4] sm:$0xf] %v1164
                  %v1166 = vld [vmem:[%s696 + $0x728] sm:$0xf]
                  %1167 = vst [vmem:[%s697 + $0x3a8] sm:$0xf] %v1166
                  %v1168 = vld [vmem:[%s696 + $0x72c] sm:$0xf]
                  %1169 = vst [vmem:[%s697 + $0x3ac] sm:$0xf] %v1168
                  %v1170 = vld [vmem:[%s696 + $0x730] sm:$0xf]
                  %1171 = vst [vmem:[%s697 + $0x3b0] sm:$0xf] %v1170
                  %v1172 = vld [vmem:[%s696 + $0x734] sm:$0xf]
                  %1173 = vst [vmem:[%s697 + $0x3b4] sm:$0xf] %v1172
                  %v1174 = vld [vmem:[%s696 + $0x738] sm:$0xf]
                  %1175 = vst [vmem:[%s697 + $0x3b8] sm:$0xf] %v1174
                  %v1176 = vld [vmem:[%s696 + $0x73c] sm:$0xf]
                  %1177 = vst [vmem:[%s697 + $0x3bc] sm:$0xf] %v1176
                  %v1178 = vld [vmem:[%s696 + $0x740] sm:$0xf]
                  %1179 = vst [vmem:[%s697 + $0x3c0] sm:$0xf] %v1178
                  %v1180 = vld [vmem:[%s696 + $0x744] sm:$0xf]
                  %1181 = vst [vmem:[%s697 + $0x3c4] sm:$0xf] %v1180
                  %v1182 = vld [vmem:[%s696 + $0x748] sm:$0xf]
                  %1183 = vst [vmem:[%s697 + $0x3c8] sm:$0xf] %v1182
                  %v1184 = vld [vmem:[%s696 + $0x74c] sm:$0xf]
                  %1185 = vst [vmem:[%s697 + $0x3cc] sm:$0xf] %v1184
                  %v1186 = vld [vmem:[%s696 + $0x750] sm:$0xf]
                  %1187 = vst [vmem:[%s697 + $0x3d0] sm:$0xf] %v1186
                  %v1188 = vld [vmem:[%s696 + $0x754] sm:$0xf]
                  %1189 = vst [vmem:[%s697 + $0x3d4] sm:$0xf] %v1188
                  %v1190 = vld [vmem:[%s696 + $0x758] sm:$0xf]
                  %1191 = vst [vmem:[%s697 + $0x3d8] sm:$0xf] %v1190
                  %v1192 = vld [vmem:[%s696 + $0x75c] sm:$0xf]
                  %1193 = vst [vmem:[%s697 + $0x3dc] sm:$0xf] %v1192
                  %v1194 = vld [vmem:[%s696 + $0x760] sm:$0xf]
                  %1195 = vst [vmem:[%s697 + $0x3e0] sm:$0xf] %v1194
                  %v1196 = vld [vmem:[%s696 + $0x764] sm:$0xf]
                  %1197 = vst [vmem:[%s697 + $0x3e4] sm:$0xf] %v1196
                  %v1198 = vld [vmem:[%s696 + $0x768] sm:$0xf]
                  %1199 = vst [vmem:[%s697 + $0x3e8] sm:$0xf] %v1198
                  %v1200 = vld [vmem:[%s696 + $0x76c] sm:$0xf]
                  %1201 = vst [vmem:[%s697 + $0x3ec] sm:$0xf] %v1200
                  %v1202 = vld [vmem:[%s696 + $0x770] sm:$0xf]
                  %1203 = vst [vmem:[%s697 + $0x3f0] sm:$0xf] %v1202
                  %v1204 = vld [vmem:[%s696 + $0x774] sm:$0xf]
                  %1205 = vst [vmem:[%s697 + $0x3f4] sm:$0xf] %v1204
                  %v1206 = vld [vmem:[%s696 + $0x778] sm:$0xf]
                  %1207 = vst [vmem:[%s697 + $0x3f8] sm:$0xf] %v1206
                  %v1208 = vld [vmem:[%s696 + $0x77c] sm:$0xf]
                  %1209 = vst [vmem:[%s697 + $0x3fc] sm:$0xf] %v1208
                  %v1210 = vld [vmem:[%s696 + $0x800] sm:$0xf]
                  %1211 = vst [vmem:[%s697 + $0x400] sm:$0xf] %v1210
                  %v1212 = vld [vmem:[%s696 + $0x804] sm:$0xf]
                  %1213 = vst [vmem:[%s697 + $0x404] sm:$0xf] %v1212
                  %v1214 = vld [vmem:[%s696 + $0x808] sm:$0xf]
                  %1215 = vst [vmem:[%s697 + $0x408] sm:$0xf] %v1214
                  %v1216 = vld [vmem:[%s696 + $0x80c] sm:$0xf]
                  %1217 = vst [vmem:[%s697 + $0x40c] sm:$0xf] %v1216
                  %v1218 = vld [vmem:[%s696 + $0x810] sm:$0xf]
                  %1219 = vst [vmem:[%s697 + $0x410] sm:$0xf] %v1218
                  %v1220 = vld [vmem:[%s696 + $0x814] sm:$0xf]
                  %1221 = vst [vmem:[%s697 + $0x414] sm:$0xf] %v1220
                  %v1222 = vld [vmem:[%s696 + $0x818] sm:$0xf]
                  %1223 = vst [vmem:[%s697 + $0x418] sm:$0xf] %v1222
                  %v1224 = vld [vmem:[%s696 + $0x81c] sm:$0xf]
                  %1225 = vst [vmem:[%s697 + $0x41c] sm:$0xf] %v1224
                  %v1226 = vld [vmem:[%s696 + $0x820] sm:$0xf]
                  %1227 = vst [vmem:[%s697 + $0x420] sm:$0xf] %v1226
                  %v1228 = vld [vmem:[%s696 + $0x824] sm:$0xf]
                  %1229 = vst [vmem:[%s697 + $0x424] sm:$0xf] %v1228
                  %v1230 = vld [vmem:[%s696 + $0x828] sm:$0xf]
                  %1231 = vst [vmem:[%s697 + $0x428] sm:$0xf] %v1230
                  %v1232 = vld [vmem:[%s696 + $0x82c] sm:$0xf]
                  %1233 = vst [vmem:[%s697 + $0x42c] sm:$0xf] %v1232
                  %v1234 = vld [vmem:[%s696 + $0x830] sm:$0xf]
                  %1235 = vst [vmem:[%s697 + $0x430] sm:$0xf] %v1234
                  %v1236 = vld [vmem:[%s696 + $0x834] sm:$0xf]
                  %1237 = vst [vmem:[%s697 + $0x434] sm:$0xf] %v1236
                  %v1238 = vld [vmem:[%s696 + $0x838] sm:$0xf]
                  %1239 = vst [vmem:[%s697 + $0x438] sm:$0xf] %v1238
                  %v1240 = vld [vmem:[%s696 + $0x83c] sm:$0xf]
                  %1241 = vst [vmem:[%s697 + $0x43c] sm:$0xf] %v1240
                  %v1242 = vld [vmem:[%s696 + $0x840] sm:$0xf]
                  %1243 = vst [vmem:[%s697 + $0x440] sm:$0xf] %v1242
                  %v1244 = vld [vmem:[%s696 + $0x844] sm:$0xf]
                  %1245 = vst [vmem:[%s697 + $0x444] sm:$0xf] %v1244
                  %v1246 = vld [vmem:[%s696 + $0x848] sm:$0xf]
                  %1247 = vst [vmem:[%s697 + $0x448] sm:$0xf] %v1246
                  %v1248 = vld [vmem:[%s696 + $0x84c] sm:$0xf]
                  %1249 = vst [vmem:[%s697 + $0x44c] sm:$0xf] %v1248
                  %v1250 = vld [vmem:[%s696 + $0x850] sm:$0xf]
                  %1251 = vst [vmem:[%s697 + $0x450] sm:$0xf] %v1250
                  %v1252 = vld [vmem:[%s696 + $0x854] sm:$0xf]
                  %1253 = vst [vmem:[%s697 + $0x454] sm:$0xf] %v1252
                  %v1254 = vld [vmem:[%s696 + $0x858] sm:$0xf]
                  %1255 = vst [vmem:[%s697 + $0x458] sm:$0xf] %v1254
                  %v1256 = vld [vmem:[%s696 + $0x85c] sm:$0xf]
                  %1257 = vst [vmem:[%s697 + $0x45c] sm:$0xf] %v1256
                  %v1258 = vld [vmem:[%s696 + $0x860] sm:$0xf]
                  %1259 = vst [vmem:[%s697 + $0x460] sm:$0xf] %v1258
                  %v1260 = vld [vmem:[%s696 + $0x864] sm:$0xf]
                  %1261 = vst [vmem:[%s697 + $0x464] sm:$0xf] %v1260
                  %v1262 = vld [vmem:[%s696 + $0x868] sm:$0xf]
                  %1263 = vst [vmem:[%s697 + $0x468] sm:$0xf] %v1262
                  %v1264 = vld [vmem:[%s696 + $0x86c] sm:$0xf]
                  %1265 = vst [vmem:[%s697 + $0x46c] sm:$0xf] %v1264
                  %v1266 = vld [vmem:[%s696 + $0x870] sm:$0xf]
                  %1267 = vst [vmem:[%s697 + $0x470] sm:$0xf] %v1266
                  %v1268 = vld [vmem:[%s696 + $0x874] sm:$0xf]
                  %1269 = vst [vmem:[%s697 + $0x474] sm:$0xf] %v1268
                  %v1270 = vld [vmem:[%s696 + $0x878] sm:$0xf]
                  %1271 = vst [vmem:[%s697 + $0x478] sm:$0xf] %v1270
                  %v1272 = vld [vmem:[%s696 + $0x87c] sm:$0xf]
                  %1273 = vst [vmem:[%s697 + $0x47c] sm:$0xf] %v1272
                $region55: #{_lambda_.15} parent=42 // loop_footer
                  %s695 = sadd.s32 1, %s691
                $region56: #{_lambda_.15} parent=42 // loop_footer_branch
                  %690 = sbr.rel target = $region52
                $region57: #{_lambda_.15} parent=42 // loop_exit
                  _
              $region43: #{_lambda_.15} parent=27 // pred_fallthru
                _
            $region28: #{_lambda_.15} parent=23 // pred_fallthru
              _
            // Predicated region
            $region29: #{_lambda_.15} parent=23 // pred_check
              _
            $region30: #{_lambda_.15} parent=23 // pred_check_branch
              %93 = sbr.rel (0) target = $region32
            $region31: #{_lambda_.15} parent=23 // pred_region
              loop: start=0, step=1, limit=1
              $region33: #{_lambda_.15} parent=31 // loop_pre_header
                _
              $region34: #{_lambda_.15} parent=31 // loop_header
                %s96 = sphi 0, %s100
                %p97 = scmp.ge.s32.totalorder %s96, 1
                %s101 = sphi %s87, %s87
                %s102 = sphi %s84, %s84
              $region35: #{_lambda_.15} parent=31 // loop_header_branch
                %99 = sbr.rel (%p97) target = $region39
              $region36: #{_lambda_.15} parent=31 // loop_body
                %v103 = vld [vmem:[%s101] sm:$0xf]
                %104 = vst [vmem:[%s102] sm:$0xf] %v103
                %v105 = vld [vmem:[%s101 + $0x4] sm:$0xf]
                %106 = vst [vmem:[%s102 + $0x4] sm:$0xf] %v105
                %v107 = vld [vmem:[%s101 + $0x8] sm:$0xf]
                %108 = vst [vmem:[%s102 + $0x8] sm:$0xf] %v107
                %v109 = vld [vmem:[%s101 + $0xc] sm:$0xf]
                %110 = vst [vmem:[%s102 + $0xc] sm:$0xf] %v109
                %v111 = vld [vmem:[%s101 + $0x10] sm:$0xf]
                %112 = vst [vmem:[%s102 + $0x10] sm:$0xf] %v111
                %v113 = vld [vmem:[%s101 + $0x14] sm:$0xf]
                %114 = vst [vmem:[%s102 + $0x14] sm:$0xf] %v113
                %v115 = vld [vmem:[%s101 + $0x18] sm:$0xf]
                %116 = vst [vmem:[%s102 + $0x18] sm:$0xf] %v115
                %v117 = vld [vmem:[%s101 + $0x1c] sm:$0xf]
                %118 = vst [vmem:[%s102 + $0x1c] sm:$0xf] %v117
                %v119 = vld [vmem:[%s101 + $0x20] sm:$0xf]
                %120 = vst [vmem:[%s102 + $0x20] sm:$0xf] %v119
                %v121 = vld [vmem:[%s101 + $0x24] sm:$0xf]
                %122 = vst [vmem:[%s102 + $0x24] sm:$0xf] %v121
                %v123 = vld [vmem:[%s101 + $0x28] sm:$0xf]
                %124 = vst [vmem:[%s102 + $0x28] sm:$0xf] %v123
                %v125 = vld [vmem:[%s101 + $0x2c] sm:$0xf]
                %126 = vst [vmem:[%s102 + $0x2c] sm:$0xf] %v125
                %v127 = vld [vmem:[%s101 + $0x30] sm:$0xf]
                %128 = vst [vmem:[%s102 + $0x30] sm:$0xf] %v127
                %v129 = vld [vmem:[%s101 + $0x34] sm:$0xf]
                %130 = vst [vmem:[%s102 + $0x34] sm:$0xf] %v129
                %v131 = vld [vmem:[%s101 + $0x38] sm:$0xf]
                %132 = vst [vmem:[%s102 + $0x38] sm:$0xf] %v131
                %v133 = vld [vmem:[%s101 + $0x3c] sm:$0xf]
                %134 = vst [vmem:[%s102 + $0x3c] sm:$0xf] %v133
                %v135 = vld [vmem:[%s101 + $0x40] sm:$0xf]
                %136 = vst [vmem:[%s102 + $0x40] sm:$0xf] %v135
                %v137 = vld [vmem:[%s101 + $0x44] sm:$0xf]
                %138 = vst [vmem:[%s102 + $0x44] sm:$0xf] %v137
                %v139 = vld [vmem:[%s101 + $0x48] sm:$0xf]
                %140 = vst [vmem:[%s102 + $0x48] sm:$0xf] %v139
                %v141 = vld [vmem:[%s101 + $0x4c] sm:$0xf]
                %142 = vst [vmem:[%s102 + $0x4c] sm:$0xf] %v141
                %v143 = vld [vmem:[%s101 + $0x50] sm:$0xf]
                %144 = vst [vmem:[%s102 + $0x50] sm:$0xf] %v143
                %v145 = vld [vmem:[%s101 + $0x54] sm:$0xf]
                %146 = vst [vmem:[%s102 + $0x54] sm:$0xf] %v145
                %v147 = vld [vmem:[%s101 + $0x58] sm:$0xf]
                %148 = vst [vmem:[%s102 + $0x58] sm:$0xf] %v147
                %v149 = vld [vmem:[%s101 + $0x5c] sm:$0xf]
                %150 = vst [vmem:[%s102 + $0x5c] sm:$0xf] %v149
                %v151 = vld [vmem:[%s101 + $0x60] sm:$0xf]
                %152 = vst [vmem:[%s102 + $0x60] sm:$0xf] %v151
                %v153 = vld [vmem:[%s101 + $0x64] sm:$0xf]
                %154 = vst [vmem:[%s102 + $0x64] sm:$0xf] %v153
                %v155 = vld [vmem:[%s101 + $0x68] sm:$0xf]
                %156 = vst [vmem:[%s102 + $0x68] sm:$0xf] %v155
                %v157 = vld [vmem:[%s101 + $0x6c] sm:$0xf]
                %158 = vst [vmem:[%s102 + $0x6c] sm:$0xf] %v157
                %v159 = vld [vmem:[%s101 + $0x70] sm:$0xf]
                %160 = vst [vmem:[%s102 + $0x70] sm:$0xf] %v159
                %v161 = vld [vmem:[%s101 + $0x74] sm:$0xf]
                %162 = vst [vmem:[%s102 + $0x74] sm:$0xf] %v161
                %v163 = vld [vmem:[%s101 + $0x78] sm:$0xf]
                %164 = vst [vmem:[%s102 + $0x78] sm:$0xf] %v163
                %v165 = vld [vmem:[%s101 + $0x7c] sm:$0xf]
                %166 = vst [vmem:[%s102 + $0x7c] sm:$0xf] %v165
                %v167 = vld [vmem:[%s101 + $0x100] sm:$0xf]
                %168 = vst [vmem:[%s102 + $0x80] sm:$0xf] %v167
                %v169 = vld [vmem:[%s101 + $0x104] sm:$0xf]
                %170 = vst [vmem:[%s102 + $0x84] sm:$0xf] %v169
                %v171 = vld [vmem:[%s101 + $0x108] sm:$0xf]
                %172 = vst [vmem:[%s102 + $0x88] sm:$0xf] %v171
                %v173 = vld [vmem:[%s101 + $0x10c] sm:$0xf]
                %174 = vst [vmem:[%s102 + $0x8c] sm:$0xf] %v173
                %v175 = vld [vmem:[%s101 + $0x110] sm:$0xf]
                %176 = vst [vmem:[%s102 + $0x90] sm:$0xf] %v175
                %v177 = vld [vmem:[%s101 + $0x114] sm:$0xf]
                %178 = vst [vmem:[%s102 + $0x94] sm:$0xf] %v177
                %v179 = vld [vmem:[%s101 + $0x118] sm:$0xf]
                %180 = vst [vmem:[%s102 + $0x98] sm:$0xf] %v179
                %v181 = vld [vmem:[%s101 + $0x11c] sm:$0xf]
                %182 = vst [vmem:[%s102 + $0x9c] sm:$0xf] %v181
                %v183 = vld [vmem:[%s101 + $0x120] sm:$0xf]
                %184 = vst [vmem:[%s102 + $0xa0] sm:$0xf] %v183
                %v185 = vld [vmem:[%s101 + $0x124] sm:$0xf]
                %186 = vst [vmem:[%s102 + $0xa4] sm:$0xf] %v185
                %v187 = vld [vmem:[%s101 + $0x128] sm:$0xf]
                %188 = vst [vmem:[%s102 + $0xa8] sm:$0xf] %v187
                %v189 = vld [vmem:[%s101 + $0x12c] sm:$0xf]
                %190 = vst [vmem:[%s102 + $0xac] sm:$0xf] %v189
                %v191 = vld [vmem:[%s101 + $0x130] sm:$0xf]
                %192 = vst [vmem:[%s102 + $0xb0] sm:$0xf] %v191
                %v193 = vld [vmem:[%s101 + $0x134] sm:$0xf]
                %194 = vst [vmem:[%s102 + $0xb4] sm:$0xf] %v193
                %v195 = vld [vmem:[%s101 + $0x138] sm:$0xf]
                %196 = vst [vmem:[%s102 + $0xb8] sm:$0xf] %v195
                %v197 = vld [vmem:[%s101 + $0x13c] sm:$0xf]
                %198 = vst [vmem:[%s102 + $0xbc] sm:$0xf] %v197
                %v199 = vld [vmem:[%s101 + $0x140] sm:$0xf]
                %200 = vst [vmem:[%s102 + $0xc0] sm:$0xf] %v199
                %v201 = vld [vmem:[%s101 + $0x144] sm:$0xf]
                %202 = vst [vmem:[%s102 + $0xc4] sm:$0xf] %v201
                %v203 = vld [vmem:[%s101 + $0x148] sm:$0xf]
                %204 = vst [vmem:[%s102 + $0xc8] sm:$0xf] %v203
                %v205 = vld [vmem:[%s101 + $0x14c] sm:$0xf]
                %206 = vst [vmem:[%s102 + $0xcc] sm:$0xf] %v205
                %v207 = vld [vmem:[%s101 + $0x150] sm:$0xf]
                %208 = vst [vmem:[%s102 + $0xd0] sm:$0xf] %v207
                %v209 = vld [vmem:[%s101 + $0x154] sm:$0xf]
                %210 = vst [vmem:[%s102 + $0xd4] sm:$0xf] %v209
                %v211 = vld [vmem:[%s101 + $0x158] sm:$0xf]
                %212 = vst [vmem:[%s102 + $0xd8] sm:$0xf] %v211
                %v213 = vld [vmem:[%s101 + $0x15c] sm:$0xf]
                %214 = vst [vmem:[%s102 + $0xdc] sm:$0xf] %v213
                %v215 = vld [vmem:[%s101 + $0x160] sm:$0xf]
                %216 = vst [vmem:[%s102 + $0xe0] sm:$0xf] %v215
                %v217 = vld [vmem:[%s101 + $0x164] sm:$0xf]
                %218 = vst [vmem:[%s102 + $0xe4] sm:$0xf] %v217
                %v219 = vld [vmem:[%s101 + $0x168] sm:$0xf]
                %220 = vst [vmem:[%s102 + $0xe8] sm:$0xf] %v219
                %v221 = vld [vmem:[%s101 + $0x16c] sm:$0xf]
                %222 = vst [vmem:[%s102 + $0xec] sm:$0xf] %v221
                %v223 = vld [vmem:[%s101 + $0x170] sm:$0xf]
                %224 = vst [vmem:[%s102 + $0xf0] sm:$0xf] %v223
                %v225 = vld [vmem:[%s101 + $0x174] sm:$0xf]
                %226 = vst [vmem:[%s102 + $0xf4] sm:$0xf] %v225
                %v227 = vld [vmem:[%s101 + $0x178] sm:$0xf]
                %228 = vst [vmem:[%s102 + $0xf8] sm:$0xf] %v227
                %v229 = vld [vmem:[%s101 + $0x17c] sm:$0xf]
                %230 = vst [vmem:[%s102 + $0xfc] sm:$0xf] %v229
                %v231 = vld [vmem:[%s101 + $0x200] sm:$0xf]
                %232 = vst [vmem:[%s102 + $0x100] sm:$0xf] %v231
                %v233 = vld [vmem:[%s101 + $0x204] sm:$0xf]
                %234 = vst [vmem:[%s102 + $0x104] sm:$0xf] %v233
                %v235 = vld [vmem:[%s101 + $0x208] sm:$0xf]
                %236 = vst [vmem:[%s102 + $0x108] sm:$0xf] %v235
                %v237 = vld [vmem:[%s101 + $0x20c] sm:$0xf]
                %238 = vst [vmem:[%s102 + $0x10c] sm:$0xf] %v237
                %v239 = vld [vmem:[%s101 + $0x210] sm:$0xf]
                %240 = vst [vmem:[%s102 + $0x110] sm:$0xf] %v239
                %v241 = vld [vmem:[%s101 + $0x214] sm:$0xf]
                %242 = vst [vmem:[%s102 + $0x114] sm:$0xf] %v241
                %v243 = vld [vmem:[%s101 + $0x218] sm:$0xf]
                %244 = vst [vmem:[%s102 + $0x118] sm:$0xf] %v243
                %v245 = vld [vmem:[%s101 + $0x21c] sm:$0xf]
                %246 = vst [vmem:[%s102 + $0x11c] sm:$0xf] %v245
                %v247 = vld [vmem:[%s101 + $0x220] sm:$0xf]
                %248 = vst [vmem:[%s102 + $0x120] sm:$0xf] %v247
                %v249 = vld [vmem:[%s101 + $0x224] sm:$0xf]
                %250 = vst [vmem:[%s102 + $0x124] sm:$0xf] %v249
                %v251 = vld [vmem:[%s101 + $0x228] sm:$0xf]
                %252 = vst [vmem:[%s102 + $0x128] sm:$0xf] %v251
                %v253 = vld [vmem:[%s101 + $0x22c] sm:$0xf]
                %254 = vst [vmem:[%s102 + $0x12c] sm:$0xf] %v253
                %v255 = vld [vmem:[%s101 + $0x230] sm:$0xf]
                %256 = vst [vmem:[%s102 + $0x130] sm:$0xf] %v255
                %v257 = vld [vmem:[%s101 + $0x234] sm:$0xf]
                %258 = vst [vmem:[%s102 + $0x134] sm:$0xf] %v257
                %v259 = vld [vmem:[%s101 + $0x238] sm:$0xf]
                %260 = vst [vmem:[%s102 + $0x138] sm:$0xf] %v259
                %v261 = vld [vmem:[%s101 + $0x23c] sm:$0xf]
                %262 = vst [vmem:[%s102 + $0x13c] sm:$0xf] %v261
                %v263 = vld [vmem:[%s101 + $0x240] sm:$0xf]
                %264 = vst [vmem:[%s102 + $0x140] sm:$0xf] %v263
                %v265 = vld [vmem:[%s101 + $0x244] sm:$0xf]
                %266 = vst [vmem:[%s102 + $0x144] sm:$0xf] %v265
                %v267 = vld [vmem:[%s101 + $0x248] sm:$0xf]
                %268 = vst [vmem:[%s102 + $0x148] sm:$0xf] %v267
                %v269 = vld [vmem:[%s101 + $0x24c] sm:$0xf]
                %270 = vst [vmem:[%s102 + $0x14c] sm:$0xf] %v269
                %v271 = vld [vmem:[%s101 + $0x250] sm:$0xf]
                %272 = vst [vmem:[%s102 + $0x150] sm:$0xf] %v271
                %v273 = vld [vmem:[%s101 + $0x254] sm:$0xf]
                %274 = vst [vmem:[%s102 + $0x154] sm:$0xf] %v273
                %v275 = vld [vmem:[%s101 + $0x258] sm:$0xf]
                %276 = vst [vmem:[%s102 + $0x158] sm:$0xf] %v275
                %v277 = vld [vmem:[%s101 + $0x25c] sm:$0xf]
                %278 = vst [vmem:[%s102 + $0x15c] sm:$0xf] %v277
                %v279 = vld [vmem:[%s101 + $0x260] sm:$0xf]
                %280 = vst [vmem:[%s102 + $0x160] sm:$0xf] %v279
                %v281 = vld [vmem:[%s101 + $0x264] sm:$0xf]
                %282 = vst [vmem:[%s102 + $0x164] sm:$0xf] %v281
                %v283 = vld [vmem:[%s101 + $0x268] sm:$0xf]
                %284 = vst [vmem:[%s102 + $0x168] sm:$0xf] %v283
                %v285 = vld [vmem:[%s101 + $0x26c] sm:$0xf]
                %286 = vst [vmem:[%s102 + $0x16c] sm:$0xf] %v285
                %v287 = vld [vmem:[%s101 + $0x270] sm:$0xf]
                %288 = vst [vmem:[%s102 + $0x170] sm:$0xf] %v287
                %v289 = vld [vmem:[%s101 + $0x274] sm:$0xf]
                %290 = vst [vmem:[%s102 + $0x174] sm:$0xf] %v289
                %v291 = vld [vmem:[%s101 + $0x278] sm:$0xf]
                %292 = vst [vmem:[%s102 + $0x178] sm:$0xf] %v291
                %v293 = vld [vmem:[%s101 + $0x27c] sm:$0xf]
                %294 = vst [vmem:[%s102 + $0x17c] sm:$0xf] %v293
                %v295 = vld [vmem:[%s101 + $0x300] sm:$0xf]
                %296 = vst [vmem:[%s102 + $0x180] sm:$0xf] %v295
                %v297 = vld [vmem:[%s101 + $0x304] sm:$0xf]
                %298 = vst [vmem:[%s102 + $0x184] sm:$0xf] %v297
                %v299 = vld [vmem:[%s101 + $0x308] sm:$0xf]
                %300 = vst [vmem:[%s102 + $0x188] sm:$0xf] %v299
                %v301 = vld [vmem:[%s101 + $0x30c] sm:$0xf]
                %302 = vst [vmem:[%s102 + $0x18c] sm:$0xf] %v301
                %v303 = vld [vmem:[%s101 + $0x310] sm:$0xf]
                %304 = vst [vmem:[%s102 + $0x190] sm:$0xf] %v303
                %v305 = vld [vmem:[%s101 + $0x314] sm:$0xf]
                %306 = vst [vmem:[%s102 + $0x194] sm:$0xf] %v305
                %v307 = vld [vmem:[%s101 + $0x318] sm:$0xf]
                %308 = vst [vmem:[%s102 + $0x198] sm:$0xf] %v307
                %v309 = vld [vmem:[%s101 + $0x31c] sm:$0xf]
                %310 = vst [vmem:[%s102 + $0x19c] sm:$0xf] %v309
                %v311 = vld [vmem:[%s101 + $0x320] sm:$0xf]
                %312 = vst [vmem:[%s102 + $0x1a0] sm:$0xf] %v311
                %v313 = vld [vmem:[%s101 + $0x324] sm:$0xf]
                %314 = vst [vmem:[%s102 + $0x1a4] sm:$0xf] %v313
                %v315 = vld [vmem:[%s101 + $0x328] sm:$0xf]
                %316 = vst [vmem:[%s102 + $0x1a8] sm:$0xf] %v315
                %v317 = vld [vmem:[%s101 + $0x32c] sm:$0xf]
                %318 = vst [vmem:[%s102 + $0x1ac] sm:$0xf] %v317
                %v319 = vld [vmem:[%s101 + $0x330] sm:$0xf]
                %320 = vst [vmem:[%s102 + $0x1b0] sm:$0xf] %v319
                %v321 = vld [vmem:[%s101 + $0x334] sm:$0xf]
                %322 = vst [vmem:[%s102 + $0x1b4] sm:$0xf] %v321
                %v323 = vld [vmem:[%s101 + $0x338] sm:$0xf]
                %324 = vst [vmem:[%s102 + $0x1b8] sm:$0xf] %v323
                %v325 = vld [vmem:[%s101 + $0x33c] sm:$0xf]
                %326 = vst [vmem:[%s102 + $0x1bc] sm:$0xf] %v325
                %v327 = vld [vmem:[%s101 + $0x340] sm:$0xf]
                %328 = vst [vmem:[%s102 + $0x1c0] sm:$0xf] %v327
                %v329 = vld [vmem:[%s101 + $0x344] sm:$0xf]
                %330 = vst [vmem:[%s102 + $0x1c4] sm:$0xf] %v329
                %v331 = vld [vmem:[%s101 + $0x348] sm:$0xf]
                %332 = vst [vmem:[%s102 + $0x1c8] sm:$0xf] %v331
                %v333 = vld [vmem:[%s101 + $0x34c] sm:$0xf]
                %334 = vst [vmem:[%s102 + $0x1cc] sm:$0xf] %v333
                %v335 = vld [vmem:[%s101 + $0x350] sm:$0xf]
                %336 = vst [vmem:[%s102 + $0x1d0] sm:$0xf] %v335
                %v337 = vld [vmem:[%s101 + $0x354] sm:$0xf]
                %338 = vst [vmem:[%s102 + $0x1d4] sm:$0xf] %v337
                %v339 = vld [vmem:[%s101 + $0x358] sm:$0xf]
                %340 = vst [vmem:[%s102 + $0x1d8] sm:$0xf] %v339
                %v341 = vld [vmem:[%s101 + $0x35c] sm:$0xf]
                %342 = vst [vmem:[%s102 + $0x1dc] sm:$0xf] %v341
                %v343 = vld [vmem:[%s101 + $0x360] sm:$0xf]
                %344 = vst [vmem:[%s102 + $0x1e0] sm:$0xf] %v343
                %v345 = vld [vmem:[%s101 + $0x364] sm:$0xf]
                %346 = vst [vmem:[%s102 + $0x1e4] sm:$0xf] %v345
                %v347 = vld [vmem:[%s101 + $0x368] sm:$0xf]
                %348 = vst [vmem:[%s102 + $0x1e8] sm:$0xf] %v347
                %v349 = vld [vmem:[%s101 + $0x36c] sm:$0xf]
                %350 = vst [vmem:[%s102 + $0x1ec] sm:$0xf] %v349
                %v351 = vld [vmem:[%s101 + $0x370] sm:$0xf]
                %352 = vst [vmem:[%s102 + $0x1f0] sm:$0xf] %v351
                %v353 = vld [vmem:[%s101 + $0x374] sm:$0xf]
                %354 = vst [vmem:[%s102 + $0x1f4] sm:$0xf] %v353
                %v355 = vld [vmem:[%s101 + $0x378] sm:$0xf]
                %356 = vst [vmem:[%s102 + $0x1f8] sm:$0xf] %v355
                %v357 = vld [vmem:[%s101 + $0x37c] sm:$0xf]
                %358 = vst [vmem:[%s102 + $0x1fc] sm:$0xf] %v357
                %v359 = vld [vmem:[%s101 + $0x400] sm:$0xf]
                %360 = vst [vmem:[%s102 + $0x200] sm:$0xf] %v359
                %v361 = vld [vmem:[%s101 + $0x404] sm:$0xf]
                %362 = vst [vmem:[%s102 + $0x204] sm:$0xf] %v361
                %v363 = vld [vmem:[%s101 + $0x408] sm:$0xf]
                %364 = vst [vmem:[%s102 + $0x208] sm:$0xf] %v363
                %v365 = vld [vmem:[%s101 + $0x40c] sm:$0xf]
                %366 = vst [vmem:[%s102 + $0x20c] sm:$0xf] %v365
                %v367 = vld [vmem:[%s101 + $0x410] sm:$0xf]
                %368 = vst [vmem:[%s102 + $0x210] sm:$0xf] %v367
                %v369 = vld [vmem:[%s101 + $0x414] sm:$0xf]
                %370 = vst [vmem:[%s102 + $0x214] sm:$0xf] %v369
                %v371 = vld [vmem:[%s101 + $0x418] sm:$0xf]
                %372 = vst [vmem:[%s102 + $0x218] sm:$0xf] %v371
                %v373 = vld [vmem:[%s101 + $0x41c] sm:$0xf]
                %374 = vst [vmem:[%s102 + $0x21c] sm:$0xf] %v373
                %v375 = vld [vmem:[%s101 + $0x420] sm:$0xf]
                %376 = vst [vmem:[%s102 + $0x220] sm:$0xf] %v375
                %v377 = vld [vmem:[%s101 + $0x424] sm:$0xf]
                %378 = vst [vmem:[%s102 + $0x224] sm:$0xf] %v377
                %v379 = vld [vmem:[%s101 + $0x428] sm:$0xf]
                %380 = vst [vmem:[%s102 + $0x228] sm:$0xf] %v379
                %v381 = vld [vmem:[%s101 + $0x42c] sm:$0xf]
                %382 = vst [vmem:[%s102 + $0x22c] sm:$0xf] %v381
                %v383 = vld [vmem:[%s101 + $0x430] sm:$0xf]
                %384 = vst [vmem:[%s102 + $0x230] sm:$0xf] %v383
                %v385 = vld [vmem:[%s101 + $0x434] sm:$0xf]
                %386 = vst [vmem:[%s102 + $0x234] sm:$0xf] %v385
                %v387 = vld [vmem:[%s101 + $0x438] sm:$0xf]
                %388 = vst [vmem:[%s102 + $0x238] sm:$0xf] %v387
                %v389 = vld [vmem:[%s101 + $0x43c] sm:$0xf]
                %390 = vst [vmem:[%s102 + $0x23c] sm:$0xf] %v389
                %v391 = vld [vmem:[%s101 + $0x440] sm:$0xf]
                %392 = vst [vmem:[%s102 + $0x240] sm:$0xf] %v391
                %v393 = vld [vmem:[%s101 + $0x444] sm:$0xf]
                %394 = vst [vmem:[%s102 + $0x244] sm:$0xf] %v393
                %v395 = vld [vmem:[%s101 + $0x448] sm:$0xf]
                %396 = vst [vmem:[%s102 + $0x248] sm:$0xf] %v395
                %v397 = vld [vmem:[%s101 + $0x44c] sm:$0xf]
                %398 = vst [vmem:[%s102 + $0x24c] sm:$0xf] %v397
                %v399 = vld [vmem:[%s101 + $0x450] sm:$0xf]
                %400 = vst [vmem:[%s102 + $0x250] sm:$0xf] %v399
                %v401 = vld [vmem:[%s101 + $0x454] sm:$0xf]
                %402 = vst [vmem:[%s102 + $0x254] sm:$0xf] %v401
                %v403 = vld [vmem:[%s101 + $0x458] sm:$0xf]
                %404 = vst [vmem:[%s102 + $0x258] sm:$0xf] %v403
                %v405 = vld [vmem:[%s101 + $0x45c] sm:$0xf]
                %406 = vst [vmem:[%s102 + $0x25c] sm:$0xf] %v405
                %v407 = vld [vmem:[%s101 + $0x460] sm:$0xf]
                %408 = vst [vmem:[%s102 + $0x260] sm:$0xf] %v407
                %v409 = vld [vmem:[%s101 + $0x464] sm:$0xf]
                %410 = vst [vmem:[%s102 + $0x264] sm:$0xf] %v409
                %v411 = vld [vmem:[%s101 + $0x468] sm:$0xf]
                %412 = vst [vmem:[%s102 + $0x268] sm:$0xf] %v411
                %v413 = vld [vmem:[%s101 + $0x46c] sm:$0xf]
                %414 = vst [vmem:[%s102 + $0x26c] sm:$0xf] %v413
                %v415 = vld [vmem:[%s101 + $0x470] sm:$0xf]
                %416 = vst [vmem:[%s102 + $0x270] sm:$0xf] %v415
                %v417 = vld [vmem:[%s101 + $0x474] sm:$0xf]
                %418 = vst [vmem:[%s102 + $0x274] sm:$0xf] %v417
                %v419 = vld [vmem:[%s101 + $0x478] sm:$0xf]
                %420 = vst [vmem:[%s102 + $0x278] sm:$0xf] %v419
                %v421 = vld [vmem:[%s101 + $0x47c] sm:$0xf]
                %422 = vst [vmem:[%s102 + $0x27c] sm:$0xf] %v421
                %v423 = vld [vmem:[%s101 + $0x500] sm:$0xf]
                %424 = vst [vmem:[%s102 + $0x280] sm:$0xf] %v423
                %v425 = vld [vmem:[%s101 + $0x504] sm:$0xf]
                %426 = vst [vmem:[%s102 + $0x284] sm:$0xf] %v425
                %v427 = vld [vmem:[%s101 + $0x508] sm:$0xf]
                %428 = vst [vmem:[%s102 + $0x288] sm:$0xf] %v427
                %v429 = vld [vmem:[%s101 + $0x50c] sm:$0xf]
                %430 = vst [vmem:[%s102 + $0x28c] sm:$0xf] %v429
                %v431 = vld [vmem:[%s101 + $0x510] sm:$0xf]
                %432 = vst [vmem:[%s102 + $0x290] sm:$0xf] %v431
                %v433 = vld [vmem:[%s101 + $0x514] sm:$0xf]
                %434 = vst [vmem:[%s102 + $0x294] sm:$0xf] %v433
                %v435 = vld [vmem:[%s101 + $0x518] sm:$0xf]
                %436 = vst [vmem:[%s102 + $0x298] sm:$0xf] %v435
                %v437 = vld [vmem:[%s101 + $0x51c] sm:$0xf]
                %438 = vst [vmem:[%s102 + $0x29c] sm:$0xf] %v437
                %v439 = vld [vmem:[%s101 + $0x520] sm:$0xf]
                %440 = vst [vmem:[%s102 + $0x2a0] sm:$0xf] %v439
                %v441 = vld [vmem:[%s101 + $0x524] sm:$0xf]
                %442 = vst [vmem:[%s102 + $0x2a4] sm:$0xf] %v441
                %v443 = vld [vmem:[%s101 + $0x528] sm:$0xf]
                %444 = vst [vmem:[%s102 + $0x2a8] sm:$0xf] %v443
                %v445 = vld [vmem:[%s101 + $0x52c] sm:$0xf]
                %446 = vst [vmem:[%s102 + $0x2ac] sm:$0xf] %v445
                %v447 = vld [vmem:[%s101 + $0x530] sm:$0xf]
                %448 = vst [vmem:[%s102 + $0x2b0] sm:$0xf] %v447
                %v449 = vld [vmem:[%s101 + $0x534] sm:$0xf]
                %450 = vst [vmem:[%s102 + $0x2b4] sm:$0xf] %v449
                %v451 = vld [vmem:[%s101 + $0x538] sm:$0xf]
                %452 = vst [vmem:[%s102 + $0x2b8] sm:$0xf] %v451
                %v453 = vld [vmem:[%s101 + $0x53c] sm:$0xf]
                %454 = vst [vmem:[%s102 + $0x2bc] sm:$0xf] %v453
                %v455 = vld [vmem:[%s101 + $0x540] sm:$0xf]
                %456 = vst [vmem:[%s102 + $0x2c0] sm:$0xf] %v455
                %v457 = vld [vmem:[%s101 + $0x544] sm:$0xf]
                %458 = vst [vmem:[%s102 + $0x2c4] sm:$0xf] %v457
                %v459 = vld [vmem:[%s101 + $0x548] sm:$0xf]
                %460 = vst [vmem:[%s102 + $0x2c8] sm:$0xf] %v459
                %v461 = vld [vmem:[%s101 + $0x54c] sm:$0xf]
                %462 = vst [vmem:[%s102 + $0x2cc] sm:$0xf] %v461
                %v463 = vld [vmem:[%s101 + $0x550] sm:$0xf]
                %464 = vst [vmem:[%s102 + $0x2d0] sm:$0xf] %v463
                %v465 = vld [vmem:[%s101 + $0x554] sm:$0xf]
                %466 = vst [vmem:[%s102 + $0x2d4] sm:$0xf] %v465
                %v467 = vld [vmem:[%s101 + $0x558] sm:$0xf]
                %468 = vst [vmem:[%s102 + $0x2d8] sm:$0xf] %v467
                %v469 = vld [vmem:[%s101 + $0x55c] sm:$0xf]
                %470 = vst [vmem:[%s102 + $0x2dc] sm:$0xf] %v469
                %v471 = vld [vmem:[%s101 + $0x560] sm:$0xf]
                %472 = vst [vmem:[%s102 + $0x2e0] sm:$0xf] %v471
                %v473 = vld [vmem:[%s101 + $0x564] sm:$0xf]
                %474 = vst [vmem:[%s102 + $0x2e4] sm:$0xf] %v473
                %v475 = vld [vmem:[%s101 + $0x568] sm:$0xf]
                %476 = vst [vmem:[%s102 + $0x2e8] sm:$0xf] %v475
                %v477 = vld [vmem:[%s101 + $0x56c] sm:$0xf]
                %478 = vst [vmem:[%s102 + $0x2ec] sm:$0xf] %v477
                %v479 = vld [vmem:[%s101 + $0x570] sm:$0xf]
                %480 = vst [vmem:[%s102 + $0x2f0] sm:$0xf] %v479
                %v481 = vld [vmem:[%s101 + $0x574] sm:$0xf]
                %482 = vst [vmem:[%s102 + $0x2f4] sm:$0xf] %v481
                %v483 = vld [vmem:[%s101 + $0x578] sm:$0xf]
                %484 = vst [vmem:[%s102 + $0x2f8] sm:$0xf] %v483
                %v485 = vld [vmem:[%s101 + $0x57c] sm:$0xf]
                %486 = vst [vmem:[%s102 + $0x2fc] sm:$0xf] %v485
                %v487 = vld [vmem:[%s101 + $0x600] sm:$0xf]
                %488 = vst [vmem:[%s102 + $0x300] sm:$0xf] %v487
                %v489 = vld [vmem:[%s101 + $0x604] sm:$0xf]
                %490 = vst [vmem:[%s102 + $0x304] sm:$0xf] %v489
                %v491 = vld [vmem:[%s101 + $0x608] sm:$0xf]
                %492 = vst [vmem:[%s102 + $0x308] sm:$0xf] %v491
                %v493 = vld [vmem:[%s101 + $0x60c] sm:$0xf]
                %494 = vst [vmem:[%s102 + $0x30c] sm:$0xf] %v493
                %v495 = vld [vmem:[%s101 + $0x610] sm:$0xf]
                %496 = vst [vmem:[%s102 + $0x310] sm:$0xf] %v495
                %v497 = vld [vmem:[%s101 + $0x614] sm:$0xf]
                %498 = vst [vmem:[%s102 + $0x314] sm:$0xf] %v497
                %v499 = vld [vmem:[%s101 + $0x618] sm:$0xf]
                %500 = vst [vmem:[%s102 + $0x318] sm:$0xf] %v499
                %v501 = vld [vmem:[%s101 + $0x61c] sm:$0xf]
                %502 = vst [vmem:[%s102 + $0x31c] sm:$0xf] %v501
                %v503 = vld [vmem:[%s101 + $0x620] sm:$0xf]
                %504 = vst [vmem:[%s102 + $0x320] sm:$0xf] %v503
                %v505 = vld [vmem:[%s101 + $0x624] sm:$0xf]
                %506 = vst [vmem:[%s102 + $0x324] sm:$0xf] %v505
                %v507 = vld [vmem:[%s101 + $0x628] sm:$0xf]
                %508 = vst [vmem:[%s102 + $0x328] sm:$0xf] %v507
                %v509 = vld [vmem:[%s101 + $0x62c] sm:$0xf]
                %510 = vst [vmem:[%s102 + $0x32c] sm:$0xf] %v509
                %v511 = vld [vmem:[%s101 + $0x630] sm:$0xf]
                %512 = vst [vmem:[%s102 + $0x330] sm:$0xf] %v511
                %v513 = vld [vmem:[%s101 + $0x634] sm:$0xf]
                %514 = vst [vmem:[%s102 + $0x334] sm:$0xf] %v513
                %v515 = vld [vmem:[%s101 + $0x638] sm:$0xf]
                %516 = vst [vmem:[%s102 + $0x338] sm:$0xf] %v515
                %v517 = vld [vmem:[%s101 + $0x63c] sm:$0xf]
                %518 = vst [vmem:[%s102 + $0x33c] sm:$0xf] %v517
                %v519 = vld [vmem:[%s101 + $0x640] sm:$0xf]
                %520 = vst [vmem:[%s102 + $0x340] sm:$0xf] %v519
                %v521 = vld [vmem:[%s101 + $0x644] sm:$0xf]
                %522 = vst [vmem:[%s102 + $0x344] sm:$0xf] %v521
                %v523 = vld [vmem:[%s101 + $0x648] sm:$0xf]
                %524 = vst [vmem:[%s102 + $0x348] sm:$0xf] %v523
                %v525 = vld [vmem:[%s101 + $0x64c] sm:$0xf]
                %526 = vst [vmem:[%s102 + $0x34c] sm:$0xf] %v525
                %v527 = vld [vmem:[%s101 + $0x650] sm:$0xf]
                %528 = vst [vmem:[%s102 + $0x350] sm:$0xf] %v527
                %v529 = vld [vmem:[%s101 + $0x654] sm:$0xf]
                %530 = vst [vmem:[%s102 + $0x354] sm:$0xf] %v529
                %v531 = vld [vmem:[%s101 + $0x658] sm:$0xf]
                %532 = vst [vmem:[%s102 + $0x358] sm:$0xf] %v531
                %v533 = vld [vmem:[%s101 + $0x65c] sm:$0xf]
                %534 = vst [vmem:[%s102 + $0x35c] sm:$0xf] %v533
                %v535 = vld [vmem:[%s101 + $0x660] sm:$0xf]
                %536 = vst [vmem:[%s102 + $0x360] sm:$0xf] %v535
                %v537 = vld [vmem:[%s101 + $0x664] sm:$0xf]
                %538 = vst [vmem:[%s102 + $0x364] sm:$0xf] %v537
                %v539 = vld [vmem:[%s101 + $0x668] sm:$0xf]
                %540 = vst [vmem:[%s102 + $0x368] sm:$0xf] %v539
                %v541 = vld [vmem:[%s101 + $0x66c] sm:$0xf]
                %542 = vst [vmem:[%s102 + $0x36c] sm:$0xf] %v541
                %v543 = vld [vmem:[%s101 + $0x670] sm:$0xf]
                %544 = vst [vmem:[%s102 + $0x370] sm:$0xf] %v543
                %v545 = vld [vmem:[%s101 + $0x674] sm:$0xf]
                %546 = vst [vmem:[%s102 + $0x374] sm:$0xf] %v545
                %v547 = vld [vmem:[%s101 + $0x678] sm:$0xf]
                %548 = vst [vmem:[%s102 + $0x378] sm:$0xf] %v547
                %v549 = vld [vmem:[%s101 + $0x67c] sm:$0xf]
                %550 = vst [vmem:[%s102 + $0x37c] sm:$0xf] %v549
                %v551 = vld [vmem:[%s101 + $0x700] sm:$0xf]
                %552 = vst [vmem:[%s102 + $0x380] sm:$0xf] %v551
                %v553 = vld [vmem:[%s101 + $0x704] sm:$0xf]
                %554 = vst [vmem:[%s102 + $0x384] sm:$0xf] %v553
                %v555 = vld [vmem:[%s101 + $0x708] sm:$0xf]
                %556 = vst [vmem:[%s102 + $0x388] sm:$0xf] %v555
                %v557 = vld [vmem:[%s101 + $0x70c] sm:$0xf]
                %558 = vst [vmem:[%s102 + $0x38c] sm:$0xf] %v557
                %v559 = vld [vmem:[%s101 + $0x710] sm:$0xf]
                %560 = vst [vmem:[%s102 + $0x390] sm:$0xf] %v559
                %v561 = vld [vmem:[%s101 + $0x714] sm:$0xf]
                %562 = vst [vmem:[%s102 + $0x394] sm:$0xf] %v561
                %v563 = vld [vmem:[%s101 + $0x718] sm:$0xf]
                %564 = vst [vmem:[%s102 + $0x398] sm:$0xf] %v563
                %v565 = vld [vmem:[%s101 + $0x71c] sm:$0xf]
                %566 = vst [vmem:[%s102 + $0x39c] sm:$0xf] %v565
                %v567 = vld [vmem:[%s101 + $0x720] sm:$0xf]
                %568 = vst [vmem:[%s102 + $0x3a0] sm:$0xf] %v567
                %v569 = vld [vmem:[%s101 + $0x724] sm:$0xf]
                %570 = vst [vmem:[%s102 + $0x3a4] sm:$0xf] %v569
                %v571 = vld [vmem:[%s101 + $0x728] sm:$0xf]
                %572 = vst [vmem:[%s102 + $0x3a8] sm:$0xf] %v571
                %v573 = vld [vmem:[%s101 + $0x72c] sm:$0xf]
                %574 = vst [vmem:[%s102 + $0x3ac] sm:$0xf] %v573
                %v575 = vld [vmem:[%s101 + $0x730] sm:$0xf]
                %576 = vst [vmem:[%s102 + $0x3b0] sm:$0xf] %v575
                %v577 = vld [vmem:[%s101 + $0x734] sm:$0xf]
                %578 = vst [vmem:[%s102 + $0x3b4] sm:$0xf] %v577
                %v579 = vld [vmem:[%s101 + $0x738] sm:$0xf]
                %580 = vst [vmem:[%s102 + $0x3b8] sm:$0xf] %v579
                %v581 = vld [vmem:[%s101 + $0x73c] sm:$0xf]
                %582 = vst [vmem:[%s102 + $0x3bc] sm:$0xf] %v581
                %v583 = vld [vmem:[%s101 + $0x740] sm:$0xf]
                %584 = vst [vmem:[%s102 + $0x3c0] sm:$0xf] %v583
                %v585 = vld [vmem:[%s101 + $0x744] sm:$0xf]
                %586 = vst [vmem:[%s102 + $0x3c4] sm:$0xf] %v585
                %v587 = vld [vmem:[%s101 + $0x748] sm:$0xf]
                %588 = vst [vmem:[%s102 + $0x3c8] sm:$0xf] %v587
                %v589 = vld [vmem:[%s101 + $0x74c] sm:$0xf]
                %590 = vst [vmem:[%s102 + $0x3cc] sm:$0xf] %v589
                %v591 = vld [vmem:[%s101 + $0x750] sm:$0xf]
                %592 = vst [vmem:[%s102 + $0x3d0] sm:$0xf] %v591
                %v593 = vld [vmem:[%s101 + $0x754] sm:$0xf]
                %594 = vst [vmem:[%s102 + $0x3d4] sm:$0xf] %v593
                %v595 = vld [vmem:[%s101 + $0x758] sm:$0xf]
                %596 = vst [vmem:[%s102 + $0x3d8] sm:$0xf] %v595
                %v597 = vld [vmem:[%s101 + $0x75c] sm:$0xf]
                %598 = vst [vmem:[%s102 + $0x3dc] sm:$0xf] %v597
                %v599 = vld [vmem:[%s101 + $0x760] sm:$0xf]
                %600 = vst [vmem:[%s102 + $0x3e0] sm:$0xf] %v599
                %v601 = vld [vmem:[%s101 + $0x764] sm:$0xf]
                %602 = vst [vmem:[%s102 + $0x3e4] sm:$0xf] %v601
                %v603 = vld [vmem:[%s101 + $0x768] sm:$0xf]
                %604 = vst [vmem:[%s102 + $0x3e8] sm:$0xf] %v603
                %v605 = vld [vmem:[%s101 + $0x76c] sm:$0xf]
                %606 = vst [vmem:[%s102 + $0x3ec] sm:$0xf] %v605
                %v607 = vld [vmem:[%s101 + $0x770] sm:$0xf]
                %608 = vst [vmem:[%s102 + $0x3f0] sm:$0xf] %v607
                %v609 = vld [vmem:[%s101 + $0x774] sm:$0xf]
                %610 = vst [vmem:[%s102 + $0x3f4] sm:$0xf] %v609
                %v611 = vld [vmem:[%s101 + $0x778] sm:$0xf]
                %612 = vst [vmem:[%s102 + $0x3f8] sm:$0xf] %v611
                %v613 = vld [vmem:[%s101 + $0x77c] sm:$0xf]
                %614 = vst [vmem:[%s102 + $0x3fc] sm:$0xf] %v613
                %v615 = vld [vmem:[%s101 + $0x800] sm:$0xf]
                %616 = vst [vmem:[%s102 + $0x400] sm:$0xf] %v615
                %v617 = vld [vmem:[%s101 + $0x804] sm:$0xf]
                %618 = vst [vmem:[%s102 + $0x404] sm:$0xf] %v617
                %v619 = vld [vmem:[%s101 + $0x808] sm:$0xf]
                %620 = vst [vmem:[%s102 + $0x408] sm:$0xf] %v619
                %v621 = vld [vmem:[%s101 + $0x80c] sm:$0xf]
                %622 = vst [vmem:[%s102 + $0x40c] sm:$0xf] %v621
                %v623 = vld [vmem:[%s101 + $0x810] sm:$0xf]
                %624 = vst [vmem:[%s102 + $0x410] sm:$0xf] %v623
                %v625 = vld [vmem:[%s101 + $0x814] sm:$0xf]
                %626 = vst [vmem:[%s102 + $0x414] sm:$0xf] %v625
                %v627 = vld [vmem:[%s101 + $0x818] sm:$0xf]
                %628 = vst [vmem:[%s102 + $0x418] sm:$0xf] %v627
                %v629 = vld [vmem:[%s101 + $0x81c] sm:$0xf]
                %630 = vst [vmem:[%s102 + $0x41c] sm:$0xf] %v629
                %v631 = vld [vmem:[%s101 + $0x820] sm:$0xf]
                %632 = vst [vmem:[%s102 + $0x420] sm:$0xf] %v631
                %v633 = vld [vmem:[%s101 + $0x824] sm:$0xf]
                %634 = vst [vmem:[%s102 + $0x424] sm:$0xf] %v633
                %v635 = vld [vmem:[%s101 + $0x828] sm:$0xf]
                %636 = vst [vmem:[%s102 + $0x428] sm:$0xf] %v635
                %v637 = vld [vmem:[%s101 + $0x82c] sm:$0xf]
                %638 = vst [vmem:[%s102 + $0x42c] sm:$0xf] %v637
                %v639 = vld [vmem:[%s101 + $0x830] sm:$0xf]
                %640 = vst [vmem:[%s102 + $0x430] sm:$0xf] %v639
                %v641 = vld [vmem:[%s101 + $0x834] sm:$0xf]
                %642 = vst [vmem:[%s102 + $0x434] sm:$0xf] %v641
                %v643 = vld [vmem:[%s101 + $0x838] sm:$0xf]
                %644 = vst [vmem:[%s102 + $0x438] sm:$0xf] %v643
                %v645 = vld [vmem:[%s101 + $0x83c] sm:$0xf]
                %646 = vst [vmem:[%s102 + $0x43c] sm:$0xf] %v645
                %v647 = vld [vmem:[%s101 + $0x840] sm:$0xf]
                %648 = vst [vmem:[%s102 + $0x440] sm:$0xf] %v647
                %v649 = vld [vmem:[%s101 + $0x844] sm:$0xf]
                %650 = vst [vmem:[%s102 + $0x444] sm:$0xf] %v649
                %v651 = vld [vmem:[%s101 + $0x848] sm:$0xf]
                %652 = vst [vmem:[%s102 + $0x448] sm:$0xf] %v651
                %v653 = vld [vmem:[%s101 + $0x84c] sm:$0xf]
                %654 = vst [vmem:[%s102 + $0x44c] sm:$0xf] %v653
                %v655 = vld [vmem:[%s101 + $0x850] sm:$0xf]
                %656 = vst [vmem:[%s102 + $0x450] sm:$0xf] %v655
                %v657 = vld [vmem:[%s101 + $0x854] sm:$0xf]
                %658 = vst [vmem:[%s102 + $0x454] sm:$0xf] %v657
                %v659 = vld [vmem:[%s101 + $0x858] sm:$0xf]
                %660 = vst [vmem:[%s102 + $0x458] sm:$0xf] %v659
                %v661 = vld [vmem:[%s101 + $0x85c] sm:$0xf]
                %662 = vst [vmem:[%s102 + $0x45c] sm:$0xf] %v661
                %v663 = vld [vmem:[%s101 + $0x860] sm:$0xf]
                %664 = vst [vmem:[%s102 + $0x460] sm:$0xf] %v663
                %v665 = vld [vmem:[%s101 + $0x864] sm:$0xf]
                %666 = vst [vmem:[%s102 + $0x464] sm:$0xf] %v665
                %v667 = vld [vmem:[%s101 + $0x868] sm:$0xf]
                %668 = vst [vmem:[%s102 + $0x468] sm:$0xf] %v667
                %v669 = vld [vmem:[%s101 + $0x86c] sm:$0xf]
                %670 = vst [vmem:[%s102 + $0x46c] sm:$0xf] %v669
                %v671 = vld [vmem:[%s101 + $0x870] sm:$0xf]
                %672 = vst [vmem:[%s102 + $0x470] sm:$0xf] %v671
                %v673 = vld [vmem:[%s101 + $0x874] sm:$0xf]
                %674 = vst [vmem:[%s102 + $0x474] sm:$0xf] %v673
                %v675 = vld [vmem:[%s101 + $0x878] sm:$0xf]
                %676 = vst [vmem:[%s102 + $0x478] sm:$0xf] %v675
                %v677 = vld [vmem:[%s101 + $0x87c] sm:$0xf]
                %678 = vst [vmem:[%s102 + $0x47c] sm:$0xf] %v677
              $region37: #{_lambda_.15} parent=31 // loop_footer
                %s100 = sadd.s32 1, %s96
              $region38: #{_lambda_.15} parent=31 // loop_footer_branch
                %95 = sbr.rel target = $region34
              $region39: #{_lambda_.15} parent=31 // loop_exit
                _
            $region32: #{_lambda_.15} parent=23 // pred_fallthru
              _
          $region24: #{_lambda_.15} parent=19 // pred_fallthru
            _
          %1274 = vnop
        $region20: #{_lambda_.15} parent=15 // pred_fallthru
          _
      $region16: #{_lambda_.15} parent=5 // pred_fallthru
        _
      %p1275 = scmp.le.s32.totalorder 1, %s7
      %p1276 = scmp.lt.s32.totalorder %s7, 3
      %p1277 = pnand %p1275, %p1276
      %p1278 = pneg %p1277
      // Predicated region
      $region58: #{_lambda_.15} parent=5 // pred_check
        _
      $region59: #{_lambda_.15} parent=5 // pred_check_branch
        %1280 = sbr.rel (%p1277) target = $region61
      $region60: #{_lambda_.15} parent=5 // pred_region
        %s1281 = ssub.s32 %s7, 1
        %s1282 = sand.u32 %s20, 1
        %s1283 = sand.u32 %s20, 1
        %s1284 = smul.addr %s1283, 1152
        %s1285 = scalar_lea.vmem [#allocation2], %s1284
        // Predicated region
        $region62: #{_lambda_.15} parent=60 // pred_check
          %p1286 = pneg %p33
        $region63: #{_lambda_.15} parent=60 // pred_check_branch
          %1288 = sbr.rel (%p1286) target = $region65
        $region64: #{_lambda_.15} parent=60 // pred_region
          _
        $region65: #{_lambda_.15} parent=60 // pred_fallthru
          _
        %s1289 = sand.u32 %s20, 1
        %s1290 = sand.u32 %s20, 1
        %s1291 = smul.addr %s1290, 1152
        %s1292 = scalar_lea.vmem [#allocation2], %s1291
        %p1293 = pneg %p33
        %p1294 = pneg %p30
        %p1295 = pneg %p59
        %p1296 = pneg %p56
        %s1297 = smul.u32 32, %s12
        %p1298 = scmp.lt.s32.totalorder %s1297, 63
        %s1299 = scalar_select %p1298, %s1297, 63
        %s1300 = smul.addr %s1299, 4
        %s1301 = scalar_lea.vmem %s1, %s1300
        %s1302 = smul.u32 32, %s12
        %s1303 = smul.u32 32, %s12
        %p1304 = scmp.lt.s32.totalorder %s1303, 63
        %s1305 = scalar_select %p1304, %s1303, 63
        %s1306 = smul.addr %s1305, 4
        %s1307 = scalar_lea.vmem %s1, %s1306
        %s1308 = smul.u32 32, %s12
        %v1309 = vld [vmem:[%s1285] sm:$0xf]
        %v1310 = vld [vmem:[%s1285 + $0x4] sm:$0xf]
        %v1311 = vld [vmem:[%s1285 + $0x8] sm:$0xf]
        %v1312 = vld [vmem:[%s1285 + $0xc] sm:$0xf]
        %v1313 = vld [vmem:[%s1285 + $0x10] sm:$0xf]
        %v1314 = vld [vmem:[%s1285 + $0x14] sm:$0xf]
        %v1315 = vld [vmem:[%s1285 + $0x18] sm:$0xf]
        %v1316 = vld [vmem:[%s1285 + $0x1c] sm:$0xf]
        %v1317 = vld [vmem:[%s1285 + $0x20] sm:$0xf]
        %v1318 = vld [vmem:[%s1285 + $0x24] sm:$0xf]
        %v1319 = vld [vmem:[%s1285 + $0x28] sm:$0xf]
        %v1320 = vld [vmem:[%s1285 + $0x2c] sm:$0xf]
        %v1321 = vld [vmem:[%s1285 + $0x30] sm:$0xf]
        %v1322 = vld [vmem:[%s1285 + $0x34] sm:$0xf]
        %v1323 = vld [vmem:[%s1285 + $0x38] sm:$0xf]
        %v1324 = vld [vmem:[%s1285 + $0x3c] sm:$0xf]
        %v1325 = vld [vmem:[%s1285 + $0x40] sm:$0xf]
        %v1326 = vld [vmem:[%s1285 + $0x44] sm:$0xf]
        %v1327 = vld [vmem:[%s1285 + $0x48] sm:$0xf]
        %v1328 = vld [vmem:[%s1285 + $0x4c] sm:$0xf]
        %v1329 = vld [vmem:[%s1285 + $0x50] sm:$0xf]
        %v1330 = vld [vmem:[%s1285 + $0x54] sm:$0xf]
        %v1331 = vld [vmem:[%s1285 + $0x58] sm:$0xf]
        %v1332 = vld [vmem:[%s1285 + $0x5c] sm:$0xf]
        %v1333 = vld [vmem:[%s1285 + $0x60] sm:$0xf]
        %v1334 = vld [vmem:[%s1285 + $0x64] sm:$0xf]
        %v1335 = vld [vmem:[%s1285 + $0x68] sm:$0xf]
        %v1336 = vld [vmem:[%s1285 + $0x6c] sm:$0xf]
        %v1337 = vld [vmem:[%s1285 + $0x70] sm:$0xf]
        %v1338 = vld [vmem:[%s1285 + $0x74] sm:$0xf]
        %v1339 = vld [vmem:[%s1285 + $0x78] sm:$0xf]
        %v1340 = vld [vmem:[%s1285 + $0x7c] sm:$0xf]
        %s1341 = scalar_lea.vmem %s1285, 128 [#allocation2]
        %v1342 = vld [vmem:[%s1341] sm:$0xf]
        %v1343 = vld [vmem:[%s1341 + $0x4] sm:$0xf]
        %v1344 = vld [vmem:[%s1341 + $0x8] sm:$0xf]
        %v1345 = vld [vmem:[%s1341 + $0xc] sm:$0xf]
        %v1346 = vld [vmem:[%s1341 + $0x10] sm:$0xf]
        %v1347 = vld [vmem:[%s1341 + $0x14] sm:$0xf]
        %v1348 = vld [vmem:[%s1341 + $0x18] sm:$0xf]
        %v1349 = vld [vmem:[%s1341 + $0x1c] sm:$0xf]
        %v1350 = vld [vmem:[%s1341 + $0x20] sm:$0xf]
        %v1351 = vld [vmem:[%s1341 + $0x24] sm:$0xf]
        %v1352 = vld [vmem:[%s1341 + $0x28] sm:$0xf]
        %v1353 = vld [vmem:[%s1341 + $0x2c] sm:$0xf]
        %v1354 = vld [vmem:[%s1341 + $0x30] sm:$0xf]
        %v1355 = vld [vmem:[%s1341 + $0x34] sm:$0xf]
        %v1356 = vld [vmem:[%s1341 + $0x38] sm:$0xf]
        %v1357 = vld [vmem:[%s1341 + $0x3c] sm:$0xf]
        %v1358 = vld [vmem:[%s1341 + $0x40] sm:$0xf]
        %v1359 = vld [vmem:[%s1341 + $0x44] sm:$0xf]
        %v1360 = vld [vmem:[%s1341 + $0x48] sm:$0xf]
        %v1361 = vld [vmem:[%s1341 + $0x4c] sm:$0xf]
        %v1362 = vld [vmem:[%s1341 + $0x50] sm:$0xf]
        %v1363 = vld [vmem:[%s1341 + $0x54] sm:$0xf]
        %v1364 = vld [vmem:[%s1341 + $0x58] sm:$0xf]
        %v1365 = vld [vmem:[%s1341 + $0x5c] sm:$0xf]
        %v1366 = vld [vmem:[%s1341 + $0x60] sm:$0xf]
        %v1367 = vld [vmem:[%s1341 + $0x64] sm:$0xf]
        %v1368 = vld [vmem:[%s1341 + $0x68] sm:$0xf]
        %v1369 = vld [vmem:[%s1341 + $0x6c] sm:$0xf]
        %v1370 = vld [vmem:[%s1341 + $0x70] sm:$0xf]
        %v1371 = vld [vmem:[%s1341 + $0x74] sm:$0xf]
        %v1372 = vld [vmem:[%s1341 + $0x78] sm:$0xf]
        %v1373 = vld [vmem:[%s1341 + $0x7c] sm:$0xf]
        %v1374 = vmax.bf16 %v1309, %v1342
        %v1375 = vmax.bf16 %v1310, %v1343
        %v1376 = vmax.bf16 %v1311, %v1344
        %v1377 = vmax.bf16 %v1312, %v1345
        %v1378 = vmax.bf16 %v1313, %v1346
        %v1379 = vmax.bf16 %v1314, %v1347
        %v1380 = vmax.bf16 %v1315, %v1348
        %v1381 = vmax.bf16 %v1316, %v1349
        %v1382 = vmax.bf16 %v1317, %v1350
        %v1383 = vmax.bf16 %v1318, %v1351
        %v1384 = vmax.bf16 %v1319, %v1352
        %v1385 = vmax.bf16 %v1320, %v1353
        %v1386 = vmax.bf16 %v1321, %v1354
        %v1387 = vmax.bf16 %v1322, %v1355
        %v1388 = vmax.bf16 %v1323, %v1356
        %v1389 = vmax.bf16 %v1324, %v1357
        %v1390 = vmax.bf16 %v1325, %v1358
        %v1391 = vmax.bf16 %v1326, %v1359
        %v1392 = vmax.bf16 %v1327, %v1360
        %v1393 = vmax.bf16 %v1328, %v1361
        %v1394 = vmax.bf16 %v1329, %v1362
        %v1395 = vmax.bf16 %v1330, %v1363
        %v1396 = vmax.bf16 %v1331, %v1364
        %v1397 = vmax.bf16 %v1332, %v1365
        %v1398 = vmax.bf16 %v1333, %v1366
        %v1399 = vmax.bf16 %v1334, %v1367
        %v1400 = vmax.bf16 %v1335, %v1368
        %v1401 = vmax.bf16 %v1336, %v1369
        %v1402 = vmax.bf16 %v1337, %v1370
        %v1403 = vmax.bf16 %v1338, %v1371
        %v1404 = vmax.bf16 %v1339, %v1372
        %v1405 = vmax.bf16 %v1340, %v1373
        %s1406 = scalar_lea.vmem %s1285, 256 [#allocation2]
        %v1407 = vld [vmem:[%s1406] sm:$0xf]
        %v1408 = vld [vmem:[%s1406 + $0x4] sm:$0xf]
        %v1409 = vld [vmem:[%s1406 + $0x8] sm:$0xf]
        %v1410 = vld [vmem:[%s1406 + $0xc] sm:$0xf]
        %v1411 = vld [vmem:[%s1406 + $0x10] sm:$0xf]
        %v1412 = vld [vmem:[%s1406 + $0x14] sm:$0xf]
        %v1413 = vld [vmem:[%s1406 + $0x18] sm:$0xf]
        %v1414 = vld [vmem:[%s1406 + $0x1c] sm:$0xf]
        %v1415 = vld [vmem:[%s1406 + $0x20] sm:$0xf]
        %v1416 = vld [vmem:[%s1406 + $0x24] sm:$0xf]
        %v1417 = vld [vmem:[%s1406 + $0x28] sm:$0xf]
        %v1418 = vld [vmem:[%s1406 + $0x2c] sm:$0xf]
        %v1419 = vld [vmem:[%s1406 + $0x30] sm:$0xf]
        %v1420 = vld [vmem:[%s1406 + $0x34] sm:$0xf]
        %v1421 = vld [vmem:[%s1406 + $0x38] sm:$0xf]
        %v1422 = vld [vmem:[%s1406 + $0x3c] sm:$0xf]
        %v1423 = vld [vmem:[%s1406 + $0x40] sm:$0xf]
        %v1424 = vld [vmem:[%s1406 + $0x44] sm:$0xf]
        %v1425 = vld [vmem:[%s1406 + $0x48] sm:$0xf]
        %v1426 = vld [vmem:[%s1406 + $0x4c] sm:$0xf]
        %v1427 = vld [vmem:[%s1406 + $0x50] sm:$0xf]
        %v1428 = vld [vmem:[%s1406 + $0x54] sm:$0xf]
        %v1429 = vld [vmem:[%s1406 + $0x58] sm:$0xf]
        %v1430 = vld [vmem:[%s1406 + $0x5c] sm:$0xf]
        %v1431 = vld [vmem:[%s1406 + $0x60] sm:$0xf]
        %v1432 = vld [vmem:[%s1406 + $0x64] sm:$0xf]
        %v1433 = vld [vmem:[%s1406 + $0x68] sm:$0xf]
        %v1434 = vld [vmem:[%s1406 + $0x6c] sm:$0xf]
        %v1435 = vld [vmem:[%s1406 + $0x70] sm:$0xf]
        %v1436 = vld [vmem:[%s1406 + $0x74] sm:$0xf]
        %v1437 = vld [vmem:[%s1406 + $0x78] sm:$0xf]
        %v1438 = vld [vmem:[%s1406 + $0x7c] sm:$0xf]
        %v1439 = vmax.bf16 %v1374, %v1407
        %v1440 = vmax.bf16 %v1375, %v1408
        %v1441 = vmax.bf16 %v1376, %v1409
        %v1442 = vmax.bf16 %v1377, %v1410
        %v1443 = vmax.bf16 %v1378, %v1411
        %v1444 = vmax.bf16 %v1379, %v1412
        %v1445 = vmax.bf16 %v1380, %v1413
        %v1446 = vmax.bf16 %v1381, %v1414
        %v1447 = vmax.bf16 %v1382, %v1415
        %v1448 = vmax.bf16 %v1383, %v1416
        %v1449 = vmax.bf16 %v1384, %v1417
        %v1450 = vmax.bf16 %v1385, %v1418
        %v1451 = vmax.bf16 %v1386, %v1419
        %v1452 = vmax.bf16 %v1387, %v1420
        %v1453 = vmax.bf16 %v1388, %v1421
        %v1454 = vmax.bf16 %v1389, %v1422
        %v1455 = vmax.bf16 %v1390, %v1423
        %v1456 = vmax.bf16 %v1391, %v1424
        %v1457 = vmax.bf16 %v1392, %v1425
        %v1458 = vmax.bf16 %v1393, %v1426
        %v1459 = vmax.bf16 %v1394, %v1427
        %v1460 = vmax.bf16 %v1395, %v1428
        %v1461 = vmax.bf16 %v1396, %v1429
        %v1462 = vmax.bf16 %v1397, %v1430
        %v1463 = vmax.bf16 %v1398, %v1431
        %v1464 = vmax.bf16 %v1399, %v1432
        %v1465 = vmax.bf16 %v1400, %v1433
        %v1466 = vmax.bf16 %v1401, %v1434
        %v1467 = vmax.bf16 %v1402, %v1435
        %v1468 = vmax.bf16 %v1403, %v1436
        %v1469 = vmax.bf16 %v1404, %v1437
        %v1470 = vmax.bf16 %v1405, %v1438
        %s1471 = scalar_lea.vmem %s1285, 384 [#allocation2]
        %v1472 = vld [vmem:[%s1471] sm:$0xf]
        %v1473 = vld [vmem:[%s1471 + $0x4] sm:$0xf]
        %v1474 = vld [vmem:[%s1471 + $0x8] sm:$0xf]
        %v1475 = vld [vmem:[%s1471 + $0xc] sm:$0xf]
        %v1476 = vld [vmem:[%s1471 + $0x10] sm:$0xf]
        %v1477 = vld [vmem:[%s1471 + $0x14] sm:$0xf]
        %v1478 = vld [vmem:[%s1471 + $0x18] sm:$0xf]
        %v1479 = vld [vmem:[%s1471 + $0x1c] sm:$0xf]
        %v1480 = vld [vmem:[%s1471 + $0x20] sm:$0xf]
        %v1481 = vld [vmem:[%s1471 + $0x24] sm:$0xf]
        %v1482 = vld [vmem:[%s1471 + $0x28] sm:$0xf]
        %v1483 = vld [vmem:[%s1471 + $0x2c] sm:$0xf]
        %v1484 = vld [vmem:[%s1471 + $0x30] sm:$0xf]
        %v1485 = vld [vmem:[%s1471 + $0x34] sm:$0xf]
        %v1486 = vld [vmem:[%s1471 + $0x38] sm:$0xf]
        %v1487 = vld [vmem:[%s1471 + $0x3c] sm:$0xf]
        %v1488 = vld [vmem:[%s1471 + $0x40] sm:$0xf]
        %v1489 = vld [vmem:[%s1471 + $0x44] sm:$0xf]
        %v1490 = vld [vmem:[%s1471 + $0x48] sm:$0xf]
        %v1491 = vld [vmem:[%s1471 + $0x4c] sm:$0xf]
        %v1492 = vld [vmem:[%s1471 + $0x50] sm:$0xf]
        %v1493 = vld [vmem:[%s1471 + $0x54] sm:$0xf]
        %v1494 = vld [vmem:[%s1471 + $0x58] sm:$0xf]
        %v1495 = vld [vmem:[%s1471 + $0x5c] sm:$0xf]
        %v1496 = vld [vmem:[%s1471 + $0x60] sm:$0xf]
        %v1497 = vld [vmem:[%s1471 + $0x64] sm:$0xf]
        %v1498 = vld [vmem:[%s1471 + $0x68] sm:$0xf]
        %v1499 = vld [vmem:[%s1471 + $0x6c] sm:$0xf]
        %v1500 = vld [vmem:[%s1471 + $0x70] sm:$0xf]
        %v1501 = vld [vmem:[%s1471 + $0x74] sm:$0xf]
        %v1502 = vld [vmem:[%s1471 + $0x78] sm:$0xf]
        %v1503 = vld [vmem:[%s1471 + $0x7c] sm:$0xf]
        %v1504 = vmax.bf16 %v1439, %v1472
        %v1505 = vmax.bf16 %v1440, %v1473
        %v1506 = vmax.bf16 %v1441, %v1474
        %v1507 = vmax.bf16 %v1442, %v1475
        %v1508 = vmax.bf16 %v1443, %v1476
        %v1509 = vmax.bf16 %v1444, %v1477
        %v1510 = vmax.bf16 %v1445, %v1478
        %v1511 = vmax.bf16 %v1446, %v1479
        %v1512 = vmax.bf16 %v1447, %v1480
        %v1513 = vmax.bf16 %v1448, %v1481
        %v1514 = vmax.bf16 %v1449, %v1482
        %v1515 = vmax.bf16 %v1450, %v1483
        %v1516 = vmax.bf16 %v1451, %v1484
        %v1517 = vmax.bf16 %v1452, %v1485
        %v1518 = vmax.bf16 %v1453, %v1486
        %v1519 = vmax.bf16 %v1454, %v1487
        %v1520 = vmax.bf16 %v1455, %v1488
        %v1521 = vmax.bf16 %v1456, %v1489
        %v1522 = vmax.bf16 %v1457, %v1490
        %v1523 = vmax.bf16 %v1458, %v1491
        %v1524 = vmax.bf16 %v1459, %v1492
        %v1525 = vmax.bf16 %v1460, %v1493
        %v1526 = vmax.bf16 %v1461, %v1494
        %v1527 = vmax.bf16 %v1462, %v1495
        %v1528 = vmax.bf16 %v1463, %v1496
        %v1529 = vmax.bf16 %v1464, %v1497
        %v1530 = vmax.bf16 %v1465, %v1498
        %v1531 = vmax.bf16 %v1466, %v1499
        %v1532 = vmax.bf16 %v1467, %v1500
        %v1533 = vmax.bf16 %v1468, %v1501
        %v1534 = vmax.bf16 %v1469, %v1502
        %v1535 = vmax.bf16 %v1470, %v1503
        %s1536 = scalar_lea.vmem %s1285, 512 [#allocation2]
        %v1537 = vld [vmem:[%s1536] sm:$0xf]
        %v1538 = vld [vmem:[%s1536 + $0x4] sm:$0xf]
        %v1539 = vld [vmem:[%s1536 + $0x8] sm:$0xf]
        %v1540 = vld [vmem:[%s1536 + $0xc] sm:$0xf]
        %v1541 = vld [vmem:[%s1536 + $0x10] sm:$0xf]
        %v1542 = vld [vmem:[%s1536 + $0x14] sm:$0xf]
        %v1543 = vld [vmem:[%s1536 + $0x18] sm:$0xf]
        %v1544 = vld [vmem:[%s1536 + $0x1c] sm:$0xf]
        %v1545 = vld [vmem:[%s1536 + $0x20] sm:$0xf]
        %v1546 = vld [vmem:[%s1536 + $0x24] sm:$0xf]
        %v1547 = vld [vmem:[%s1536 + $0x28] sm:$0xf]
        %v1548 = vld [vmem:[%s1536 + $0x2c] sm:$0xf]
        %v1549 = vld [vmem:[%s1536 + $0x30] sm:$0xf]
        %v1550 = vld [vmem:[%s1536 + $0x34] sm:$0xf]
        %v1551 = vld [vmem:[%s1536 + $0x38] sm:$0xf]
        %v1552 = vld [vmem:[%s1536 + $0x3c] sm:$0xf]
        %v1553 = vld [vmem:[%s1536 + $0x40] sm:$0xf]
        %v1554 = vld [vmem:[%s1536 + $0x44] sm:$0xf]
        %v1555 = vld [vmem:[%s1536 + $0x48] sm:$0xf]
        %v1556 = vld [vmem:[%s1536 + $0x4c] sm:$0xf]
        %v1557 = vld [vmem:[%s1536 + $0x50] sm:$0xf]
        %v1558 = vld [vmem:[%s1536 + $0x54] sm:$0xf]
        %v1559 = vld [vmem:[%s1536 + $0x58] sm:$0xf]
        %v1560 = vld [vmem:[%s1536 + $0x5c] sm:$0xf]
        %v1561 = vld [vmem:[%s1536 + $0x60] sm:$0xf]
        %v1562 = vld [vmem:[%s1536 + $0x64] sm:$0xf]
        %v1563 = vld [vmem:[%s1536 + $0x68] sm:$0xf]
        %v1564 = vld [vmem:[%s1536 + $0x6c] sm:$0xf]
        %v1565 = vld [vmem:[%s1536 + $0x70] sm:$0xf]
        %v1566 = vld [vmem:[%s1536 + $0x74] sm:$0xf]
        %v1567 = vld [vmem:[%s1536 + $0x78] sm:$0xf]
        %v1568 = vld [vmem:[%s1536 + $0x7c] sm:$0xf]
        %v1569 = vmax.bf16 %v1504, %v1537
        %v1570 = vmax.bf16 %v1505, %v1538
        %v1571 = vmax.bf16 %v1506, %v1539
        %v1572 = vmax.bf16 %v1507, %v1540
        %v1573 = vmax.bf16 %v1508, %v1541
        %v1574 = vmax.bf16 %v1509, %v1542
        %v1575 = vmax.bf16 %v1510, %v1543
        %v1576 = vmax.bf16 %v1511, %v1544
        %v1577 = vmax.bf16 %v1512, %v1545
        %v1578 = vmax.bf16 %v1513, %v1546
        %v1579 = vmax.bf16 %v1514, %v1547
        %v1580 = vmax.bf16 %v1515, %v1548
        %v1581 = vmax.bf16 %v1516, %v1549
        %v1582 = vmax.bf16 %v1517, %v1550
        %v1583 = vmax.bf16 %v1518, %v1551
        %v1584 = vmax.bf16 %v1519, %v1552
        %v1585 = vmax.bf16 %v1520, %v1553
        %v1586 = vmax.bf16 %v1521, %v1554
        %v1587 = vmax.bf16 %v1522, %v1555
        %v1588 = vmax.bf16 %v1523, %v1556
        %v1589 = vmax.bf16 %v1524, %v1557
        %v1590 = vmax.bf16 %v1525, %v1558
        %v1591 = vmax.bf16 %v1526, %v1559
        %v1592 = vmax.bf16 %v1527, %v1560
        %v1593 = vmax.bf16 %v1528, %v1561
        %v1594 = vmax.bf16 %v1529, %v1562
        %v1595 = vmax.bf16 %v1530, %v1563
        %v1596 = vmax.bf16 %v1531, %v1564
        %v1597 = vmax.bf16 %v1532, %v1565
        %v1598 = vmax.bf16 %v1533, %v1566
        %v1599 = vmax.bf16 %v1534, %v1567
        %v1600 = vmax.bf16 %v1535, %v1568
        %s1601 = scalar_lea.vmem %s1285, 640 [#allocation2]
        %v1602 = vld [vmem:[%s1601] sm:$0xf]
        %v1603 = vld [vmem:[%s1601 + $0x4] sm:$0xf]
        %v1604 = vld [vmem:[%s1601 + $0x8] sm:$0xf]
        %v1605 = vld [vmem:[%s1601 + $0xc] sm:$0xf]
        %v1606 = vld [vmem:[%s1601 + $0x10] sm:$0xf]
        %v1607 = vld [vmem:[%s1601 + $0x14] sm:$0xf]
        %v1608 = vld [vmem:[%s1601 + $0x18] sm:$0xf]
        %v1609 = vld [vmem:[%s1601 + $0x1c] sm:$0xf]
        %v1610 = vld [vmem:[%s1601 + $0x20] sm:$0xf]
        %v1611 = vld [vmem:[%s1601 + $0x24] sm:$0xf]
        %v1612 = vld [vmem:[%s1601 + $0x28] sm:$0xf]
        %v1613 = vld [vmem:[%s1601 + $0x2c] sm:$0xf]
        %v1614 = vld [vmem:[%s1601 + $0x30] sm:$0xf]
        %v1615 = vld [vmem:[%s1601 + $0x34] sm:$0xf]
        %v1616 = vld [vmem:[%s1601 + $0x38] sm:$0xf]
        %v1617 = vld [vmem:[%s1601 + $0x3c] sm:$0xf]
        %v1618 = vld [vmem:[%s1601 + $0x40] sm:$0xf]
        %v1619 = vld [vmem:[%s1601 + $0x44] sm:$0xf]
        %v1620 = vld [vmem:[%s1601 + $0x48] sm:$0xf]
        %v1621 = vld [vmem:[%s1601 + $0x4c] sm:$0xf]
        %v1622 = vld [vmem:[%s1601 + $0x50] sm:$0xf]
        %v1623 = vld [vmem:[%s1601 + $0x54] sm:$0xf]
        %v1624 = vld [vmem:[%s1601 + $0x58] sm:$0xf]
        %v1625 = vld [vmem:[%s1601 + $0x5c] sm:$0xf]
        %v1626 = vld [vmem:[%s1601 + $0x60] sm:$0xf]
        %v1627 = vld [vmem:[%s1601 + $0x64] sm:$0xf]
        %v1628 = vld [vmem:[%s1601 + $0x68] sm:$0xf]
        %v1629 = vld [vmem:[%s1601 + $0x6c] sm:$0xf]
        %v1630 = vld [vmem:[%s1601 + $0x70] sm:$0xf]
        %v1631 = vld [vmem:[%s1601 + $0x74] sm:$0xf]
        %v1632 = vld [vmem:[%s1601 + $0x78] sm:$0xf]
        %v1633 = vld [vmem:[%s1601 + $0x7c] sm:$0xf]
        %v1634 = vmax.bf16 %v1569, %v1602
        %v1635 = vmax.bf16 %v1570, %v1603
        %v1636 = vmax.bf16 %v1571, %v1604
        %v1637 = vmax.bf16 %v1572, %v1605
        %v1638 = vmax.bf16 %v1573, %v1606
        %v1639 = vmax.bf16 %v1574, %v1607
        %v1640 = vmax.bf16 %v1575, %v1608
        %v1641 = vmax.bf16 %v1576, %v1609
        %v1642 = vmax.bf16 %v1577, %v1610
        %v1643 = vmax.bf16 %v1578, %v1611
        %v1644 = vmax.bf16 %v1579, %v1612
        %v1645 = vmax.bf16 %v1580, %v1613
        %v1646 = vmax.bf16 %v1581, %v1614
        %v1647 = vmax.bf16 %v1582, %v1615
        %v1648 = vmax.bf16 %v1583, %v1616
        %v1649 = vmax.bf16 %v1584, %v1617
        %v1650 = vmax.bf16 %v1585, %v1618
        %v1651 = vmax.bf16 %v1586, %v1619
        %v1652 = vmax.bf16 %v1587, %v1620
        %v1653 = vmax.bf16 %v1588, %v1621
        %v1654 = vmax.bf16 %v1589, %v1622
        %v1655 = vmax.bf16 %v1590, %v1623
        %v1656 = vmax.bf16 %v1591, %v1624
        %v1657 = vmax.bf16 %v1592, %v1625
        %v1658 = vmax.bf16 %v1593, %v1626
        %v1659 = vmax.bf16 %v1594, %v1627
        %v1660 = vmax.bf16 %v1595, %v1628
        %v1661 = vmax.bf16 %v1596, %v1629
        %v1662 = vmax.bf16 %v1597, %v1630
        %v1663 = vmax.bf16 %v1598, %v1631
        %v1664 = vmax.bf16 %v1599, %v1632
        %v1665 = vmax.bf16 %v1600, %v1633
        %s1666 = scalar_lea.vmem %s1285, 768 [#allocation2]
        %v1667 = vld [vmem:[%s1666] sm:$0xf]
        %v1668 = vld [vmem:[%s1666 + $0x4] sm:$0xf]
        %v1669 = vld [vmem:[%s1666 + $0x8] sm:$0xf]
        %v1670 = vld [vmem:[%s1666 + $0xc] sm:$0xf]
        %v1671 = vld [vmem:[%s1666 + $0x10] sm:$0xf]
        %v1672 = vld [vmem:[%s1666 + $0x14] sm:$0xf]
        %v1673 = vld [vmem:[%s1666 + $0x18] sm:$0xf]
        %v1674 = vld [vmem:[%s1666 + $0x1c] sm:$0xf]
        %v1675 = vld [vmem:[%s1666 + $0x20] sm:$0xf]
        %v1676 = vld [vmem:[%s1666 + $0x24] sm:$0xf]
        %v1677 = vld [vmem:[%s1666 + $0x28] sm:$0xf]
        %v1678 = vld [vmem:[%s1666 + $0x2c] sm:$0xf]
        %v1679 = vld [vmem:[%s1666 + $0x30] sm:$0xf]
        %v1680 = vld [vmem:[%s1666 + $0x34] sm:$0xf]
        %v1681 = vld [vmem:[%s1666 + $0x38] sm:$0xf]
        %v1682 = vld [vmem:[%s1666 + $0x3c] sm:$0xf]
        %v1683 = vld [vmem:[%s1666 + $0x40] sm:$0xf]
        %v1684 = vld [vmem:[%s1666 + $0x44] sm:$0xf]
        %v1685 = vld [vmem:[%s1666 + $0x48] sm:$0xf]
        %v1686 = vld [vmem:[%s1666 + $0x4c] sm:$0xf]
        %v1687 = vld [vmem:[%s1666 + $0x50] sm:$0xf]
        %v1688 = vld [vmem:[%s1666 + $0x54] sm:$0xf]
        %v1689 = vld [vmem:[%s1666 + $0x58] sm:$0xf]
        %v1690 = vld [vmem:[%s1666 + $0x5c] sm:$0xf]
        %v1691 = vld [vmem:[%s1666 + $0x60] sm:$0xf]
        %v1692 = vld [vmem:[%s1666 + $0x64] sm:$0xf]
        %v1693 = vld [vmem:[%s1666 + $0x68] sm:$0xf]
        %v1694 = vld [vmem:[%s1666 + $0x6c] sm:$0xf]
        %v1695 = vld [vmem:[%s1666 + $0x70] sm:$0xf]
        %v1696 = vld [vmem:[%s1666 + $0x74] sm:$0xf]
        %v1697 = vld [vmem:[%s1666 + $0x78] sm:$0xf]
        %v1698 = vld [vmem:[%s1666 + $0x7c] sm:$0xf]
        %v1699 = vmax.bf16 %v1634, %v1667
        %v1700 = vmax.bf16 %v1635, %v1668
        %v1701 = vmax.bf16 %v1636, %v1669
        %v1702 = vmax.bf16 %v1637, %v1670
        %v1703 = vmax.bf16 %v1638, %v1671
        %v1704 = vmax.bf16 %v1639, %v1672
        %v1705 = vmax.bf16 %v1640, %v1673
        %v1706 = vmax.bf16 %v1641, %v1674
        %v1707 = vmax.bf16 %v1642, %v1675
        %v1708 = vmax.bf16 %v1643, %v1676
        %v1709 = vmax.bf16 %v1644, %v1677
        %v1710 = vmax.bf16 %v1645, %v1678
        %v1711 = vmax.bf16 %v1646, %v1679
        %v1712 = vmax.bf16 %v1647, %v1680
        %v1713 = vmax.bf16 %v1648, %v1681
        %v1714 = vmax.bf16 %v1649, %v1682
        %v1715 = vmax.bf16 %v1650, %v1683
        %v1716 = vmax.bf16 %v1651, %v1684
        %v1717 = vmax.bf16 %v1652, %v1685
        %v1718 = vmax.bf16 %v1653, %v1686
        %v1719 = vmax.bf16 %v1654, %v1687
        %v1720 = vmax.bf16 %v1655, %v1688
        %v1721 = vmax.bf16 %v1656, %v1689
        %v1722 = vmax.bf16 %v1657, %v1690
        %v1723 = vmax.bf16 %v1658, %v1691
        %v1724 = vmax.bf16 %v1659, %v1692
        %v1725 = vmax.bf16 %v1660, %v1693
        %v1726 = vmax.bf16 %v1661, %v1694
        %v1727 = vmax.bf16 %v1662, %v1695
        %v1728 = vmax.bf16 %v1663, %v1696
        %v1729 = vmax.bf16 %v1664, %v1697
        %v1730 = vmax.bf16 %v1665, %v1698
        %s1731 = scalar_lea.vmem %s1285, 896 [#allocation2]
        %v1732 = vld [vmem:[%s1731] sm:$0xf]
        %v1733 = vld [vmem:[%s1731 + $0x4] sm:$0xf]
        %v1734 = vld [vmem:[%s1731 + $0x8] sm:$0xf]
        %v1735 = vld [vmem:[%s1731 + $0xc] sm:$0xf]
        %v1736 = vld [vmem:[%s1731 + $0x10] sm:$0xf]
        %v1737 = vld [vmem:[%s1731 + $0x14] sm:$0xf]
        %v1738 = vld [vmem:[%s1731 + $0x18] sm:$0xf]
        %v1739 = vld [vmem:[%s1731 + $0x1c] sm:$0xf]
        %v1740 = vld [vmem:[%s1731 + $0x20] sm:$0xf]
        %v1741 = vld [vmem:[%s1731 + $0x24] sm:$0xf]
        %v1742 = vld [vmem:[%s1731 + $0x28] sm:$0xf]
        %v1743 = vld [vmem:[%s1731 + $0x2c] sm:$0xf]
        %v1744 = vld [vmem:[%s1731 + $0x30] sm:$0xf]
        %v1745 = vld [vmem:[%s1731 + $0x34] sm:$0xf]
        %v1746 = vld [vmem:[%s1731 + $0x38] sm:$0xf]
        %v1747 = vld [vmem:[%s1731 + $0x3c] sm:$0xf]
        %v1748 = vld [vmem:[%s1731 + $0x40] sm:$0xf]
        %v1749 = vld [vmem:[%s1731 + $0x44] sm:$0xf]
        %v1750 = vld [vmem:[%s1731 + $0x48] sm:$0xf]
        %v1751 = vld [vmem:[%s1731 + $0x4c] sm:$0xf]
        %v1752 = vld [vmem:[%s1731 + $0x50] sm:$0xf]
        %v1753 = vld [vmem:[%s1731 + $0x54] sm:$0xf]
        %v1754 = vld [vmem:[%s1731 + $0x58] sm:$0xf]
        %v1755 = vld [vmem:[%s1731 + $0x5c] sm:$0xf]
        %v1756 = vld [vmem:[%s1731 + $0x60] sm:$0xf]
        %v1757 = vld [vmem:[%s1731 + $0x64] sm:$0xf]
        %v1758 = vld [vmem:[%s1731 + $0x68] sm:$0xf]
        %v1759 = vld [vmem:[%s1731 + $0x6c] sm:$0xf]
        %v1760 = vld [vmem:[%s1731 + $0x70] sm:$0xf]
        %v1761 = vld [vmem:[%s1731 + $0x74] sm:$0xf]
        %v1762 = vld [vmem:[%s1731 + $0x78] sm:$0xf]
        %v1763 = vld [vmem:[%s1731 + $0x7c] sm:$0xf]
        %v1764 = vmax.bf16 %v1699, %v1732
        %v1765 = vmax.bf16 %v1700, %v1733
        %v1766 = vmax.bf16 %v1701, %v1734
        %v1767 = vmax.bf16 %v1702, %v1735
        %v1768 = vmax.bf16 %v1703, %v1736
        %v1769 = vmax.bf16 %v1704, %v1737
        %v1770 = vmax.bf16 %v1705, %v1738
        %v1771 = vmax.bf16 %v1706, %v1739
        %v1772 = vmax.bf16 %v1707, %v1740
        %v1773 = vmax.bf16 %v1708, %v1741
        %v1774 = vmax.bf16 %v1709, %v1742
        %v1775 = vmax.bf16 %v1710, %v1743
        %v1776 = vmax.bf16 %v1711, %v1744
        %v1777 = vmax.bf16 %v1712, %v1745
        %v1778 = vmax.bf16 %v1713, %v1746
        %v1779 = vmax.bf16 %v1714, %v1747
        %v1780 = vmax.bf16 %v1715, %v1748
        %v1781 = vmax.bf16 %v1716, %v1749
        %v1782 = vmax.bf16 %v1717, %v1750
        %v1783 = vmax.bf16 %v1718, %v1751
        %v1784 = vmax.bf16 %v1719, %v1752
        %v1785 = vmax.bf16 %v1720, %v1753
        %v1786 = vmax.bf16 %v1721, %v1754
        %v1787 = vmax.bf16 %v1722, %v1755
        %v1788 = vmax.bf16 %v1723, %v1756
        %v1789 = vmax.bf16 %v1724, %v1757
        %v1790 = vmax.bf16 %v1725, %v1758
        %v1791 = vmax.bf16 %v1726, %v1759
        %v1792 = vmax.bf16 %v1727, %v1760
        %v1793 = vmax.bf16 %v1728, %v1761
        %v1794 = vmax.bf16 %v1729, %v1762
        %v1795 = vmax.bf16 %v1730, %v1763
        %s1796 = scalar_lea.vmem %s1285, 1024 [#allocation2]
        %v1797 = vld [vmem:[%s1796] sm:$0xf]
        %v1798 = vld [vmem:[%s1796 + $0x4] sm:$0xf]
        %v1799 = vld [vmem:[%s1796 + $0x8] sm:$0xf]
        %v1800 = vld [vmem:[%s1796 + $0xc] sm:$0xf]
        %v1801 = vld [vmem:[%s1796 + $0x10] sm:$0xf]
        %v1802 = vld [vmem:[%s1796 + $0x14] sm:$0xf]
        %v1803 = vld [vmem:[%s1796 + $0x18] sm:$0xf]
        %v1804 = vld [vmem:[%s1796 + $0x1c] sm:$0xf]
        %v1805 = vld [vmem:[%s1796 + $0x20] sm:$0xf]
        %v1806 = vld [vmem:[%s1796 + $0x24] sm:$0xf]
        %v1807 = vld [vmem:[%s1796 + $0x28] sm:$0xf]
        %v1808 = vld [vmem:[%s1796 + $0x2c] sm:$0xf]
        %v1809 = vld [vmem:[%s1796 + $0x30] sm:$0xf]
        %v1810 = vld [vmem:[%s1796 + $0x34] sm:$0xf]
        %v1811 = vld [vmem:[%s1796 + $0x38] sm:$0xf]
        %v1812 = vld [vmem:[%s1796 + $0x3c] sm:$0xf]
        %v1813 = vld [vmem:[%s1796 + $0x40] sm:$0xf]
        %v1814 = vld [vmem:[%s1796 + $0x44] sm:$0xf]
        %v1815 = vld [vmem:[%s1796 + $0x48] sm:$0xf]
        %v1816 = vld [vmem:[%s1796 + $0x4c] sm:$0xf]
        %v1817 = vld [vmem:[%s1796 + $0x50] sm:$0xf]
        %v1818 = vld [vmem:[%s1796 + $0x54] sm:$0xf]
        %v1819 = vld [vmem:[%s1796 + $0x58] sm:$0xf]
        %v1820 = vld [vmem:[%s1796 + $0x5c] sm:$0xf]
        %v1821 = vld [vmem:[%s1796 + $0x60] sm:$0xf]
        %v1822 = vld [vmem:[%s1796 + $0x64] sm:$0xf]
        %v1823 = vld [vmem:[%s1796 + $0x68] sm:$0xf]
        %v1824 = vld [vmem:[%s1796 + $0x6c] sm:$0xf]
        %v1825 = vld [vmem:[%s1796 + $0x70] sm:$0xf]
        %v1826 = vld [vmem:[%s1796 + $0x74] sm:$0xf]
        %v1827 = vld [vmem:[%s1796 + $0x78] sm:$0xf]
        %v1828 = vld [vmem:[%s1796 + $0x7c] sm:$0xf]
        %v1829 = vmax.bf16 %v1764, %v1797
        %v1830 = vmax.bf16 %v1765, %v1798
        %v1831 = vmax.bf16 %v1766, %v1799
        %v1832 = vmax.bf16 %v1767, %v1800
        %v1833 = vmax.bf16 %v1768, %v1801
        %v1834 = vmax.bf16 %v1769, %v1802
        %v1835 = vmax.bf16 %v1770, %v1803
        %v1836 = vmax.bf16 %v1771, %v1804
        %v1837 = vmax.bf16 %v1772, %v1805
        %v1838 = vmax.bf16 %v1773, %v1806
        %v1839 = vmax.bf16 %v1774, %v1807
        %v1840 = vmax.bf16 %v1775, %v1808
        %v1841 = vmax.bf16 %v1776, %v1809
        %v1842 = vmax.bf16 %v1777, %v1810
        %v1843 = vmax.bf16 %v1778, %v1811
        %v1844 = vmax.bf16 %v1779, %v1812
        %v1845 = vmax.bf16 %v1780, %v1813
        %v1846 = vmax.bf16 %v1781, %v1814
        %v1847 = vmax.bf16 %v1782, %v1815
        %v1848 = vmax.bf16 %v1783, %v1816
        %v1849 = vmax.bf16 %v1784, %v1817
        %v1850 = vmax.bf16 %v1785, %v1818
        %v1851 = vmax.bf16 %v1786, %v1819
        %v1852 = vmax.bf16 %v1787, %v1820
        %v1853 = vmax.bf16 %v1788, %v1821
        %v1854 = vmax.bf16 %v1789, %v1822
        %v1855 = vmax.bf16 %v1790, %v1823
        %v1856 = vmax.bf16 %v1791, %v1824
        %v1857 = vmax.bf16 %v1792, %v1825
        %v1858 = vmax.bf16 %v1793, %v1826
        %v1859 = vmax.bf16 %v1794, %v1827
        %v1860 = vmax.bf16 %v1795, %v1828
        %vm1861 = vcmask 60416
        %1862 = vst.msk [vmem:[%s1307] sm:$0xf] %vm1861, %v1829
        %1863 = vst.msk [vmem:[%s1307 + $0x4] sm:$0xf] %vm1861, %v1830
        %1864 = vst.msk [vmem:[%s1307 + $0x8] sm:$0xf] %vm1861, %v1831
        %1865 = vst.msk [vmem:[%s1307 + $0xc] sm:$0xf] %vm1861, %v1832
        %1866 = vst.msk [vmem:[%s1307 + $0x10] sm:$0xf] %vm1861, %v1833
        %1867 = vst.msk [vmem:[%s1307 + $0x14] sm:$0xf] %vm1861, %v1834
        %1868 = vst.msk [vmem:[%s1307 + $0x18] sm:$0xf] %vm1861, %v1835
        %1869 = vst.msk [vmem:[%s1307 + $0x1c] sm:$0xf] %vm1861, %v1836
        %1870 = vst.msk [vmem:[%s1307 + $0x20] sm:$0xf] %vm1861, %v1837
        %1871 = vst.msk [vmem:[%s1307 + $0x24] sm:$0xf] %vm1861, %v1838
        %1872 = vst.msk [vmem:[%s1307 + $0x28] sm:$0xf] %vm1861, %v1839
        %1873 = vst.msk [vmem:[%s1307 + $0x2c] sm:$0xf] %vm1861, %v1840
        %1874 = vst.msk [vmem:[%s1307 + $0x30] sm:$0xf] %vm1861, %v1841
        %1875 = vst.msk [vmem:[%s1307 + $0x34] sm:$0xf] %vm1861, %v1842
        %1876 = vst.msk [vmem:[%s1307 + $0x38] sm:$0xf] %vm1861, %v1843
        %1877 = vst.msk [vmem:[%s1307 + $0x3c] sm:$0xf] %vm1861, %v1844
        %1878 = vst.msk [vmem:[%s1307 + $0x40] sm:$0xf] %vm1861, %v1845
        %1879 = vst.msk [vmem:[%s1307 + $0x44] sm:$0xf] %vm1861, %v1846
        %1880 = vst.msk [vmem:[%s1307 + $0x48] sm:$0xf] %vm1861, %v1847
        %1881 = vst.msk [vmem:[%s1307 + $0x4c] sm:$0xf] %vm1861, %v1848
        %1882 = vst.msk [vmem:[%s1307 + $0x50] sm:$0xf] %vm1861, %v1849
        %1883 = vst.msk [vmem:[%s1307 + $0x54] sm:$0xf] %vm1861, %v1850
        %1884 = vst.msk [vmem:[%s1307 + $0x58] sm:$0xf] %vm1861, %v1851
        %1885 = vst.msk [vmem:[%s1307 + $0x5c] sm:$0xf] %vm1861, %v1852
        %1886 = vst.msk [vmem:[%s1307 + $0x60] sm:$0xf] %vm1861, %v1853
        %1887 = vst.msk [vmem:[%s1307 + $0x64] sm:$0xf] %vm1861, %v1854
        %1888 = vst.msk [vmem:[%s1307 + $0x68] sm:$0xf] %vm1861, %v1855
        %1889 = vst.msk [vmem:[%s1307 + $0x6c] sm:$0xf] %vm1861, %v1856
        %1890 = vst.msk [vmem:[%s1307 + $0x70] sm:$0xf] %vm1861, %v1857
        %1891 = vst.msk [vmem:[%s1307 + $0x74] sm:$0xf] %vm1861, %v1858
        %1892 = vst.msk [vmem:[%s1307 + $0x78] sm:$0xf] %vm1861, %v1859
        %1893 = vst.msk [vmem:[%s1307 + $0x7c] sm:$0xf] %vm1861, %v1860
        %s1894 = smul.u32 32, %s12
        %p1895 = scmp.lt.s32.totalorder %s1894, 63
        %s1896 = scalar_select %p1895, %s1894, 63
        %s1897 = smul.addr %s1896, 4
        %s1898 = scalar_lea.vmem %s1, %s1897
        // Predicated region
        $region66: #{_lambda_.15} parent=60 // pred_check
          %p1899 = pneg %p56
        $region67: #{_lambda_.15} parent=60 // pred_check_branch
          %1901 = sbr.rel (%p1899) target = $region69
        $region68: #{_lambda_.15} parent=60 // pred_region
          %s1902 = smul.u32 32, %s12
        $region69: #{_lambda_.15} parent=60 // pred_fallthru
          _
      $region61: #{_lambda_.15} parent=5 // pred_fallthru
        _
      %p1903 = scmp.le.s32.totalorder 2, %s7
      // Predicated region
      $region70: #{_lambda_.15} parent=5 // pred_check
        %p1904 = pneg %p1903
      $region71: #{_lambda_.15} parent=5 // pred_check_branch
        %1906 = sbr.rel (%p1904) target = $region73
      $region72: #{_lambda_.15} parent=5 // pred_region
        %s1907 = ssub.s32 %s7, 2
        // Predicated region
        $region74: #{_lambda_.15} parent=72 // pred_check
          %p1908 = pneg %p62
        $region75: #{_lambda_.15} parent=72 // pred_check_branch
          %1910 = sbr.rel (%p1908) target = $region77
        $region76: #{_lambda_.15} parent=72 // pred_region
          %s1911 = smul.u32 32, %s13
          %p1912 = scmp.lt.s32.totalorder %s1911, 63
          %s1913 = scalar_select %p1912, %s1911, 63
          %s1914 = smul.addr %s1913, 4
          %s1915 = scalar_lea.vmem %s1, %s1914
        $region77: #{_lambda_.15} parent=72 // pred_fallthru
          _
      $region73: #{_lambda_.15} parent=5 // pred_fallthru
        _
    $region6: #{_lambda_.15} parent=1 // loop_footer
      %s11 = sadd.s32 1, %s7
    $region7: #{_lambda_.15} parent=1 // loop_footer_branch
      %6 = sbr.rel target = $region3
    $region8: #{_lambda_.15} parent=1 // loop_exit
      _

// kernel: _lambda_.16
$region0: #{_lambda_.16}
  #allocation0 [shape = 'u32[]', space=smem, size = 0x4, offset = 0x4, fixed_abs, tag = 'smem constant byte address 0x4 - core index']
  #allocation1 [shape = 'u32[144,128]{1,0:T(1,128)}', space=vmem, size = 0x12000, scoped, tag = 'internal scratch']
  %s0 = inlined_call_operand.vmem [shape: bf16[512,128], index: 0, kind: input, shape index: {}]
  %s1 = inlined_call_operand.vmem [shape: bf16[128,128], index: 1, kind: input, shape index: {}]
  %s2 = inlined_call_operand.vmem [shape: f32[1,128], index: 2, kind: input, shape index: {}]
  %s3 = inlined_call_operand.vmem [shape: bf16[512,128], index: 3, kind: output, shape index: {}]
  %s4 = sld [smem:[#allocation0]]
  $region45: #{_lambda_.16} parent=0
    _
  %s6 = ssub.s32 1, %s4
  %s7 = scalar_select 0, %s6, %s4
  loop: start=0, step=1, limit=4
  $region2: #{_lambda_.16} parent=0 // loop_pre_header
    _
  $region3: #{_lambda_.16} parent=0 // loop_header
    %s9 = sphi 0, %s13
    %p10 = scmp.ge.s32.totalorder %s9, 4
    %s19 = sphi 0, %s21
    %s22 = sphi 0, %s19
    %s23 = sphi 0, %s22
    %s39 = sphi 0, %s23
    %s43 = sphi 0, %s43
    %s45 = sphi 0, %s43
    %s46 = sphi 0, %s45
    %s60 = sphi 0, %s46
    %s64 = sphi 0, %s64
    %s66 = sphi 0, %s64
    %s67 = sphi 0, %s66
    %s81 = sphi 0, %s67
    %s87 = sphi 0, %s89
    %s90 = sphi 0, %s87
    %s91 = sphi 0, %s90
    %s107 = sphi 0, %s91
  $region4: #{_lambda_.16} parent=0 // loop_header_branch
    %12 = sbr.rel (%p10) target = $region8
  $region5: #{_lambda_.16} parent=0 // loop_body
    %s14 = ssub.s32 %s9, 1
    %s15 = ssub.s32 %s9, 2
    %s16 = sadd.s32 %s9, 1
    %s17 = ssub.s32 %s9, %s16
    %p18 = scmp.eq.s32.totalorder %s17, 0
    %s20 = sadd.s32 %s19, 1
    %s21 = scalar_select %p18, %s19, %s20
    %p24 = pneg %p18
    %p25 = scmp.eq.s32.totalorder %s9, 1
    %p26 = por %p24, %p25
    %p27 = scmp.ne.s32.totalorder %s19, %s22
    %p28 = scmp.eq.s32.totalorder %s9, 0
    %p29 = por %p27, %p28
    %p30 = scmp.ne.s32.totalorder %s19, %s22
    %p31 = scmp.eq.s32.totalorder %s14, 1
    %p32 = por %p30, %p31
    %p33 = scmp.ne.s32.totalorder %s22, %s23
    %p34 = scmp.eq.s32.totalorder %s14, 0
    %p35 = por %p33, %p34
    %p36 = scmp.ne.s32.totalorder %s22, %s23
    %p37 = scmp.eq.s32.totalorder %s15, 1
    %p38 = por %p36, %p37
    %p40 = scmp.ne.s32.totalorder %s23, %s39
    %p41 = scmp.eq.s32.totalorder %s15, 0
    %p42 = por %p40, %p41
    %s44 = sadd.s32 %s43, 1
    %p47 = scmp.eq.s32.totalorder %s9, 1
    %p48 = scmp.ne.s32.totalorder %s43, %s45
    %p49 = scmp.eq.s32.totalorder %s9, 0
    %p50 = por %p48, %p49
    %p51 = scmp.ne.s32.totalorder %s43, %s45
    %p52 = scmp.eq.s32.totalorder %s14, 1
    %p53 = por %p51, %p52
    %p54 = scmp.ne.s32.totalorder %s45, %s46
    %p55 = scmp.eq.s32.totalorder %s14, 0
    %p56 = por %p54, %p55
    %p57 = scmp.ne.s32.totalorder %s45, %s46
    %p58 = scmp.eq.s32.totalorder %s15, 1
    %p59 = por %p57, %p58
    %p61 = scmp.ne.s32.totalorder %s46, %s60
    %p62 = scmp.eq.s32.totalorder %s15, 0
    %p63 = por %p61, %p62
    %s65 = sadd.s32 %s64, 1
    %p68 = scmp.eq.s32.totalorder %s9, 1
    %p69 = scmp.ne.s32.totalorder %s64, %s66
    %p70 = scmp.eq.s32.totalorder %s9, 0
    %p71 = por %p69, %p70
    %p72 = scmp.ne.s32.totalorder %s64, %s66
    %p73 = scmp.eq.s32.totalorder %s14, 1
    %p74 = por %p72, %p73
    %p75 = scmp.ne.s32.totalorder %s66, %s67
    %p76 = scmp.eq.s32.totalorder %s14, 0
    %p77 = por %p75, %p76
    %p78 = scmp.ne.s32.totalorder %s66, %s67
    %p79 = scmp.eq.s32.totalorder %s15, 1
    %p80 = por %p78, %p79
    %p82 = scmp.ne.s32.totalorder %s67, %s81
    %p83 = scmp.eq.s32.totalorder %s15, 0
    %p84 = por %p82, %p83
    %s85 = ssub.s32 %s9, %s16
    %p86 = scmp.eq.s32.totalorder %s85, 0
    %s88 = sadd.s32 %s87, 1
    %s89 = scalar_select %p86, %s87, %s88
    %p92 = pneg %p86
    %p93 = scmp.eq.s32.totalorder %s9, 1
    %p94 = por %p92, %p93
    %p95 = scmp.ne.s32.totalorder %s87, %s90
    %p96 = scmp.eq.s32.totalorder %s9, 0
    %p97 = por %p95, %p96
    %p98 = scmp.ne.s32.totalorder %s87, %s90
    %p99 = scmp.eq.s32.totalorder %s14, 1
    %p100 = por %p98, %p99
    %p101 = scmp.ne.s32.totalorder %s90, %s91
    %p102 = scmp.eq.s32.totalorder %s14, 0
    %p103 = por %p101, %p102
    %p104 = scmp.ne.s32.totalorder %s90, %s91
    %p105 = scmp.eq.s32.totalorder %s15, 1
    %p106 = por %p104, %p105
    %p108 = scmp.ne.s32.totalorder %s91, %s107
    %p109 = scmp.eq.s32.totalorder %s15, 0
    %p110 = por %p108, %p109
    %p111 = scmp.le.s32.totalorder 1, %s9
    %p112 = scmp.lt.s32.totalorder %s9, 3
    %p113 = pnand %p111, %p112
    %p114 = pneg %p113
    // Predicated region
    $region9: #{_lambda_.16} parent=5 // pred_check
      _
    $region10: #{_lambda_.16} parent=5 // pred_check_branch
      %116 = sbr.rel (%p113) target = $region12
    $region11: #{_lambda_.16} parent=5 // pred_region
      %s117 = ssub.s32 %s9, 1
      // Predicated region
      $region13: #{_lambda_.16} parent=11 // pred_check
        %p118 = pneg %p56
      $region14: #{_lambda_.16} parent=11 // pred_check_branch
        %120 = sbr.rel (%p118) target = $region16
      $region15: #{_lambda_.16} parent=11 // pred_region
        _
      $region16: #{_lambda_.16} parent=11 // pred_fallthru
        _
      // Predicated region
      $region17: #{_lambda_.16} parent=11 // pred_check
        %p121 = pneg %p77
      $region18: #{_lambda_.16} parent=11 // pred_check_branch
        %123 = sbr.rel (%p121) target = $region20
      $region19: #{_lambda_.16} parent=11 // pred_region
        _
      $region20: #{_lambda_.16} parent=11 // pred_fallthru
        _
    $region12: #{_lambda_.16} parent=5 // pred_fallthru
      _
    %p124 = scmp.lt.s32.totalorder %s9, 2
    // Predicated region
    $region21: #{_lambda_.16} parent=5 // pred_check
      %p125 = pneg %p124
    $region22: #{_lambda_.16} parent=5 // pred_check_branch
      %127 = sbr.rel (%p125) target = $region24
    $region23: #{_lambda_.16} parent=5 // pred_region
      // Predicated region
      $region25: #{_lambda_.16} parent=23 // pred_check
        %p128 = pneg %p29
      $region26: #{_lambda_.16} parent=23 // pred_check_branch
        %130 = sbr.rel (%p128) target = $region28
      $region27: #{_lambda_.16} parent=23 // pred_region
        %s131 = smul.u32 32, %s9
        %p132 = scmp.lt.s32.totalorder %s131, 63
        %s133 = scalar_select %p132, %s131, 63
        %s134 = smul.addr %s133, 4
        %s135 = scalar_lea.vmem %s0, %s134
        %s136 = smul.u32 32, %s9
      $region28: #{_lambda_.16} parent=23 // pred_fallthru
        _
    $region24: #{_lambda_.16} parent=5 // pred_fallthru
      _
    %p137 = scmp.le.s32.totalorder 1, %s9
    %p138 = scmp.lt.s32.totalorder %s9, 3
    %p139 = pnand %p137, %p138
    %p140 = pneg %p139
    // Predicated region
    $region29: #{_lambda_.16} parent=5 // pred_check
      _
    $region30: #{_lambda_.16} parent=5 // pred_check_branch
      %142 = sbr.rel (%p139) target = $region32
    $region31: #{_lambda_.16} parent=5 // pred_region
      %s143 = ssub.s32 %s9, 1
      %s144 = smul.u32 32, %s14
      %p145 = scmp.lt.s32.totalorder %s144, 63
      %s146 = scalar_select %p145, %s144, 63
      %s147 = smul.addr %s146, 4
      %s148 = scalar_lea.vmem %s0, %s147
      %p149 = pneg %p35
      %p150 = pneg %p32
      %p151 = pneg %p56
      %p152 = pneg %p53
      %p153 = pneg %p77
      %p154 = pneg %p74
      %p155 = pneg %p103
      %p156 = pneg %p100
      %s157 = smul.u32 32, %s14
      %p158 = scmp.lt.s32.totalorder %s157, 63
      %s159 = scalar_select %p158, %s157, 63
      %s160 = smul.addr %s159, 4
      %s161 = scalar_lea.vmem %s3, %s160
      %s162 = smul.u32 32, %s14
      %p163 = scmp.lt.s32.totalorder %s162, 63
      %s164 = scalar_select %p163, %s162, 63
      %s165 = smul.addr %s164, 4
      %s166 = scalar_lea.vmem %s0, %s165
      %s167 = smul.u32 32, %s14
      %s168 = smul.u32 32, %s14
      %p169 = scmp.lt.s32.totalorder %s168, 63
      %s170 = scalar_select %p169, %s168, 63
      %s171 = smul.addr %s170, 4
      %s172 = scalar_lea.vmem %s3, %s171
      %s173 = smul.u32 32, %s14
      %v175 = vld [vmem:[%s166] sm:$0xf]
      %v176 = vld [vmem:[%s166 + $0x4] sm:$0xf]
      %v177 = vld [vmem:[%s166 + $0x8] sm:$0xf]
      %v178 = vld [vmem:[%s166 + $0xc] sm:$0xf]
      %v179 = vld [vmem:[%s166 + $0x10] sm:$0xf]
      %v180 = vld [vmem:[%s166 + $0x14] sm:$0xf]
      %v181 = vld [vmem:[%s166 + $0x18] sm:$0xf]
      %v182 = vld [vmem:[%s166 + $0x1c] sm:$0xf]
      %v183 = vld [vmem:[%s166 + $0x20] sm:$0xf]
      %v184 = vld [vmem:[%s166 + $0x24] sm:$0xf]
      %v185 = vld [vmem:[%s166 + $0x28] sm:$0xf]
      %v186 = vld [vmem:[%s166 + $0x2c] sm:$0xf]
      %v187 = vld [vmem:[%s166 + $0x30] sm:$0xf]
      %v188 = vld [vmem:[%s166 + $0x34] sm:$0xf]
      %v189 = vld [vmem:[%s166 + $0x38] sm:$0xf]
      %v190 = vld [vmem:[%s166 + $0x3c] sm:$0xf]
      %v191 = vld [vmem:[%s166 + $0x40] sm:$0xf]
      %v192 = vld [vmem:[%s166 + $0x44] sm:$0xf]
      %v193 = vld [vmem:[%s166 + $0x48] sm:$0xf]
      %v194 = vld [vmem:[%s166 + $0x4c] sm:$0xf]
      %v195 = vld [vmem:[%s166 + $0x50] sm:$0xf]
      %v196 = vld [vmem:[%s166 + $0x54] sm:$0xf]
      %v197 = vld [vmem:[%s166 + $0x58] sm:$0xf]
      %v198 = vld [vmem:[%s166 + $0x5c] sm:$0xf]
      %v199 = vld [vmem:[%s166 + $0x60] sm:$0xf]
      %v200 = vld [vmem:[%s166 + $0x64] sm:$0xf]
      %v201 = vld [vmem:[%s166 + $0x68] sm:$0xf]
      %v202 = vld [vmem:[%s166 + $0x6c] sm:$0xf]
      %v203 = vld [vmem:[%s166 + $0x70] sm:$0xf]
      %v204 = vld [vmem:[%s166 + $0x74] sm:$0xf]
      %v205 = vld [vmem:[%s166 + $0x78] sm:$0xf]
      %v206 = vld [vmem:[%s166 + $0x7c] sm:$0xf]
      %v207 = vld [vmem:[%s1] sm:$0xf]
      %v208 = vld [vmem:[%s1 + $0x4] sm:$0xf]
      %v209 = vld [vmem:[%s1 + $0x8] sm:$0xf]
      %v210 = vld [vmem:[%s1 + $0xc] sm:$0xf]
      %v211 = vld [vmem:[%s1 + $0x10] sm:$0xf]
      %v212 = vld [vmem:[%s1 + $0x14] sm:$0xf]
      %v213 = vld [vmem:[%s1 + $0x18] sm:$0xf]
      %v214 = vld [vmem:[%s1 + $0x1c] sm:$0xf]
      %v215 = vld [vmem:[%s1 + $0x20] sm:$0xf]
      %v216 = vld [vmem:[%s1 + $0x24] sm:$0xf]
      %v217 = vld [vmem:[%s1 + $0x28] sm:$0xf]
      %v218 = vld [vmem:[%s1 + $0x2c] sm:$0xf]
      %v219 = vld [vmem:[%s1 + $0x30] sm:$0xf]
      %v220 = vld [vmem:[%s1 + $0x34] sm:$0xf]
      %v221 = vld [vmem:[%s1 + $0x38] sm:$0xf]
      %v222 = vld [vmem:[%s1 + $0x3c] sm:$0xf]
      %v223 = vld [vmem:[%s2] sm:$0x1]
      %v225 = vlaneseq
      %v226 = vshrl.u32 %v225, 7
      %v227 = vsub.s32 0, %v226
      %v228 = vrot.slane %v223, %v227
      %v262 = vunpack.c.l.b16 %v175
      %v263 = vunpack.c.l.b16 %v176
      %v264 = vunpack.c.l.b16 %v177
      %v265 = vunpack.c.l.b16 %v178
      %v266 = vunpack.c.l.b16 %v179
      %v267 = vunpack.c.l.b16 %v180
      %v268 = vunpack.c.l.b16 %v181
      %v269 = vunpack.c.l.b16 %v182
      %v270 = vunpack.c.l.b16 %v183
      %v271 = vunpack.c.l.b16 %v184
      %v272 = vunpack.c.l.b16 %v185
      %v273 = vunpack.c.l.b16 %v186
      %v274 = vunpack.c.l.b16 %v187
      %v275 = vunpack.c.l.b16 %v188
      %v276 = vunpack.c.l.b16 %v189
      %v277 = vunpack.c.l.b16 %v190
      %v278 = vunpack.c.l.b16 %v191
      %v279 = vunpack.c.l.b16 %v192
      %v280 = vunpack.c.l.b16 %v193
      %v281 = vunpack.c.l.b16 %v194
      %v282 = vunpack.c.l.b16 %v195
      %v283 = vunpack.c.l.b16 %v196
      %v284 = vunpack.c.l.b16 %v197
      %v285 = vunpack.c.l.b16 %v198
      %v286 = vunpack.c.l.b16 %v199
      %v287 = vunpack.c.l.b16 %v200
      %v288 = vunpack.c.l.b16 %v201
      %v289 = vunpack.c.l.b16 %v202
      %v290 = vunpack.c.l.b16 %v203
      %v291 = vunpack.c.l.b16 %v204
      %v292 = vunpack.c.l.b16 %v205
      %v293 = vunpack.c.l.b16 %v206
      %v294 = vpack.c.b16 %v263, %v262
      %v295 = vpack.c.b16 %v265, %v264
      %v296 = vpack.c.b16 %v267, %v266
      %v297 = vpack.c.b16 %v269, %v268
      %v298 = vpack.c.b16 %v271, %v270
      %v299 = vpack.c.b16 %v273, %v272
      %v300 = vpack.c.b16 %v275, %v274
      %v301 = vpack.c.b16 %v277, %v276
      %v302 = vpack.c.b16 %v279, %v278
      %v303 = vpack.c.b16 %v281, %v280
      %v304 = vpack.c.b16 %v283, %v282
      %v305 = vpack.c.b16 %v285, %v284
      %v306 = vpack.c.b16 %v287, %v286
      %v307 = vpack.c.b16 %v289, %v288
      %v308 = vpack.c.b16 %v291, %v290
      %v309 = vpack.c.b16 %v293, %v292
      %v342 = vunpack.c.l.b16 %v207
      %v343 = vunpack.c.l.b16 %v208
      %v344 = vunpack.c.l.b16 %v209
      %v345 = vunpack.c.l.b16 %v210
      %v346 = vunpack.c.l.b16 %v211
      %v347 = vunpack.c.l.b16 %v212
      %v348 = vunpack.c.l.b16 %v213
      %v349 = vunpack.c.l.b16 %v214
      %v350 = vunpack.c.l.b16 %v215
      %v351 = vunpack.c.l.b16 %v216
      %v352 = vunpack.c.l.b16 %v217
      %v353 = vunpack.c.l.b16 %v218
      %v354 = vunpack.c.l.b16 %v219
      %v355 = vunpack.c.l.b16 %v220
      %v356 = vunpack.c.l.b16 %v221
      %v357 = vunpack.c.l.b16 %v222
      %v358 = vpack.c.b16 %v343, %v342
      %v359 = vpack.c.b16 %v345, %v344
      %v360 = vpack.c.b16 %v347, %v346
      %v361 = vpack.c.b16 %v349, %v348
      %v362 = vpack.c.b16 %v351, %v350
      %v363 = vpack.c.b16 %v353, %v352
      %v364 = vpack.c.b16 %v355, %v354
      %v365 = vpack.c.b16 %v357, %v356
      %374 = vmatprep.subr.bf16.mxu0 0
      %375 = vmatpush1.bf16.msra.mxu0 %v358
      %376 = vmatprep.subr.bf16.mxu0 0
      %377 = vmatpush1.bf16.msra.mxu0 %v359
      %378 = vmatprep.subr.bf16.mxu0 0
      %379 = vmatpush1.bf16.msra.mxu0 %v360
      %380 = vmatprep.subr.bf16.mxu0 0
      %381 = vmatpush1.bf16.msra.mxu0 %v361
      %382 = vmatprep.subr.bf16.mxu0 0
      %383 = vmatpush1.bf16.msra.mxu0 %v362
      %384 = vmatprep.subr.bf16.mxu0 0
      %385 = vmatpush1.bf16.msra.mxu0 %v363
      %386 = vmatprep.subr.bf16.mxu0 0
      %387 = vmatpush1.bf16.msra.mxu0 %v364
      %388 = vmatprep.subr.bf16.mxu0 0
      %389 = vmatpush1.bf16.msra.mxu0 %v365
      %390 = vmatprep.subr.bf16.mxu0 0
      %391 = vmatpush1.bf16.msra.mxu0 0
      %392 = vmatprep.subr.bf16.mxu0 0
      %393 = vmatpush1.bf16.msra.mxu0 0
      %394 = vmatprep.subr.bf16.mxu0 0
      %395 = vmatpush1.bf16.msra.mxu0 0
      %396 = vmatprep.subr.bf16.mxu0 0
      %397 = vmatpush1.bf16.msra.mxu0 0
      %398 = vmatprep.subr.bf16.mxu0 0
      %399 = vmatpush1.bf16.msra.mxu0 0
      %400 = vmatprep.subr.bf16.mxu0 0
      %401 = vmatpush1.bf16.msra.mxu0 0
      %402 = vmatprep.subr.bf16.mxu0 0
      %403 = vmatpush1.bf16.msra.mxu0 0
      %404 = vmatprep.subr.bf16.mxu0 0
      %405 = vmatpush1.bf16.msra.mxu0 0
      %406 = vmatprep.mubr.bf16.mxu0 0
      %407 = vmatmul.mubr.bf16.gmra.mrb[0].mxu0 %v294
      %v408 = vpop.f32.mrb[0].mxu0
      %v409 = vadd.f32 %v228, %v408
      %v410 = vpop.f32.mrb[0].mxu0
      %v411 = vpop.f32.mrb[0].mxu0
      %v412 = vadd.f32 %v228, %v411
      %v413 = vpop.f32.mrb[0].mxu0
      %414 = vmatprep.mubr.bf16.mxu0 0
      %415 = vmatmul.mubr.bf16.gmra.mrb[0].mxu0 %v295
      %v416 = vpop.f32.mrb[0].mxu0
      %v417 = vadd.f32 %v228, %v416
      %v418 = vpop.f32.mrb[0].mxu0
      %v419 = vpop.f32.mrb[0].mxu0
      %v420 = vadd.f32 %v228, %v419
      %v421 = vpop.f32.mrb[0].mxu0
      %422 = vmatprep.mubr.bf16.mxu0 0
      %423 = vmatmul.mubr.bf16.gmra.mrb[0].mxu0 %v296
      %v424 = vpop.f32.mrb[0].mxu0
      %v425 = vadd.f32 %v228, %v424
      %v426 = vpop.f32.mrb[0].mxu0
      %v427 = vpop.f32.mrb[0].mxu0
      %v428 = vadd.f32 %v228, %v427
      %v429 = vpop.f32.mrb[0].mxu0
      %430 = vmatprep.mubr.bf16.mxu0 0
      %431 = vmatmul.mubr.bf16.gmra.mrb[0].mxu0 %v297
      %v432 = vpop.f32.mrb[0].mxu0
      %v433 = vadd.f32 %v228, %v432
      %v434 = vpop.f32.mrb[0].mxu0
      %v435 = vpop.f32.mrb[0].mxu0
      %v436 = vadd.f32 %v228, %v435
      %v437 = vpop.f32.mrb[0].mxu0
      %438 = vmatprep.mubr.bf16.mxu0 0
      %439 = vmatmul.mubr.bf16.gmra.mrb[0].mxu0 %v298
      %v440 = vpop.f32.mrb[0].mxu0
      %v441 = vadd.f32 %v228, %v440
      %v442 = vpop.f32.mrb[0].mxu0
      %v443 = vpop.f32.mrb[0].mxu0
      %v444 = vadd.f32 %v228, %v443
      %v445 = vpop.f32.mrb[0].mxu0
      %446 = vmatprep.mubr.bf16.mxu0 0
      %447 = vmatmul.mubr.bf16.gmra.mrb[0].mxu0 %v299
      %v448 = vpop.f32.mrb[0].mxu0
      %v449 = vadd.f32 %v228, %v448
      %v450 = vpop.f32.mrb[0].mxu0
      %v451 = vpop.f32.mrb[0].mxu0
      %v452 = vadd.f32 %v228, %v451
      %v453 = vpop.f32.mrb[0].mxu0
      %454 = vmatprep.mubr.bf16.mxu0 0
      %455 = vmatmul.mubr.bf16.gmra.mrb[0].mxu0 %v300
      %v456 = vpop.f32.mrb[0].mxu0
      %v457 = vadd.f32 %v228, %v456
      %v458 = vpop.f32.mrb[0].mxu0
      %v459 = vpop.f32.mrb[0].mxu0
      %v460 = vadd.f32 %v228, %v459
      %v461 = vpop.f32.mrb[0].mxu0
      %462 = vmatprep.mubr.bf16.mxu0 0
      %463 = vmatmul.mubr.bf16.gmra.mrb[0].mxu0 %v301
      %v464 = vpop.f32.mrb[0].mxu0
      %v465 = vadd.f32 %v228, %v464
      %v466 = vpop.f32.mrb[0].mxu0
      %v467 = vpop.f32.mrb[0].mxu0
      %v468 = vadd.f32 %v228, %v467
      %v469 = vpop.f32.mrb[0].mxu0
      %470 = vmatprep.mubr.bf16.mxu0 0
      %471 = vmatmul.mubr.bf16.gmra.mrb[0].mxu0 %v302
      %v472 = vpop.f32.mrb[0].mxu0
      %v473 = vadd.f32 %v228, %v472
      %v474 = vpop.f32.mrb[0].mxu0
      %v475 = vpop.f32.mrb[0].mxu0
      %v476 = vadd.f32 %v228, %v475
      %v477 = vpop.f32.mrb[0].mxu0
      %478 = vmatprep.mubr.bf16.mxu0 0
      %479 = vmatmul.mubr.bf16.gmra.mrb[0].mxu0 %v303
      %v480 = vpop.f32.mrb[0].mxu0
      %v481 = vadd.f32 %v228, %v480
      %v482 = vpop.f32.mrb[0].mxu0
      %v483 = vpop.f32.mrb[0].mxu0
      %v484 = vadd.f32 %v228, %v483
      %v485 = vpop.f32.mrb[0].mxu0
      %486 = vmatprep.mubr.bf16.mxu0 0
      %487 = vmatmul.mubr.bf16.gmra.mrb[0].mxu0 %v304
      %v488 = vpop.f32.mrb[0].mxu0
      %v489 = vadd.f32 %v228, %v488
      %v490 = vpop.f32.mrb[0].mxu0
      %v491 = vpop.f32.mrb[0].mxu0
      %v492 = vadd.f32 %v228, %v491
      %v493 = vpop.f32.mrb[0].mxu0
      %494 = vmatprep.mubr.bf16.mxu0 0
      %495 = vmatmul.mubr.bf16.gmra.mrb[0].mxu0 %v305
      %v496 = vpop.f32.mrb[0].mxu0
      %v497 = vadd.f32 %v228, %v496
      %v498 = vpop.f32.mrb[0].mxu0
      %v499 = vpop.f32.mrb[0].mxu0
      %v500 = vadd.f32 %v228, %v499
      %v501 = vpop.f32.mrb[0].mxu0
      %502 = vmatprep.mubr.bf16.mxu0 0
      %503 = vmatmul.mubr.bf16.gmra.mrb[0].mxu0 %v306
      %v504 = vpop.f32.mrb[0].mxu0
      %v505 = vadd.f32 %v228, %v504
      %v506 = vpop.f32.mrb[0].mxu0
      %v507 = vpop.f32.mrb[0].mxu0
      %v508 = vadd.f32 %v228, %v507
      %v509 = vpop.f32.mrb[0].mxu0
      %510 = vmatprep.mubr.bf16.mxu0 0
      %511 = vmatmul.mubr.bf16.gmra.mrb[0].mxu0 %v307
      %v512 = vpop.f32.mrb[0].mxu0
      %v513 = vadd.f32 %v228, %v512
      %v514 = vpop.f32.mrb[0].mxu0
      %v515 = vpop.f32.mrb[0].mxu0
      %v516 = vadd.f32 %v228, %v515
      %v517 = vpop.f32.mrb[0].mxu0
      %518 = vmatprep.mubr.bf16.mxu0 0
      %519 = vmatmul.mubr.bf16.gmra.mrb[0].mxu0 %v308
      %v520 = vpop.f32.mrb[0].mxu0
      %v521 = vadd.f32 %v228, %v520
      %v522 = vpop.f32.mrb[0].mxu0
      %v523 = vpop.f32.mrb[0].mxu0
      %v524 = vadd.f32 %v228, %v523
      %v525 = vpop.f32.mrb[0].mxu0
      %526 = vmatprep.mubr.bf16.mxu0 0
      %527 = vmatmul.mubr.bf16.gmra.mrb[0].mxu0 %v309
      %v528 = vpop.f32.mrb[0].mxu0
      %v529 = vadd.f32 %v228, %v528
      %v530 = vpop.f32.mrb[0].mxu0
      %v531 = vpop.f32.mrb[0].mxu0
      %v532 = vadd.f32 %v228, %v531
      %v533 = vpop.f32.mrb[0].mxu0
      %534 = vdwg.mxu0
      %v535 = vmax.f32 %v409, 0.0
      %v536 = vmax.f32 %v412, 0.0
      %v537 = vmax.f32 %v417, 0.0
      %v538 = vmax.f32 %v420, 0.0
      %v539 = vmax.f32 %v425, 0.0
      %v540 = vmax.f32 %v428, 0.0
      %v541 = vmax.f32 %v433, 0.0
      %v542 = vmax.f32 %v436, 0.0
      %v543 = vmax.f32 %v441, 0.0
      %v544 = vmax.f32 %v444, 0.0
      %v545 = vmax.f32 %v449, 0.0
      %v546 = vmax.f32 %v452, 0.0
      %v547 = vmax.f32 %v457, 0.0
      %v548 = vmax.f32 %v460, 0.0
      %v549 = vmax.f32 %v465, 0.0
      %v550 = vmax.f32 %v468, 0.0
      %v551 = vmax.f32 %v473, 0.0
      %v552 = vmax.f32 %v476, 0.0
      %v553 = vmax.f32 %v481, 0.0
      %v554 = vmax.f32 %v484, 0.0
      %v555 = vmax.f32 %v489, 0.0
      %v556 = vmax.f32 %v492, 0.0
      %v557 = vmax.f32 %v497, 0.0
      %v558 = vmax.f32 %v500, 0.0
      %v559 = vmax.f32 %v505, 0.0
      %v560 = vmax.f32 %v508, 0.0
      %v561 = vmax.f32 %v513, 0.0
      %v562 = vmax.f32 %v516, 0.0
      %v563 = vmax.f32 %v521, 0.0
      %v564 = vmax.f32 %v524, 0.0
      %v565 = vmax.f32 %v529, 0.0
      %v566 = vmax.f32 %v532, 0.0
      %v567 = vpack.c.bf16 %v536, %v535
      %v568 = vpack.c.bf16 %v538, %v537
      %v569 = vpack.c.bf16 %v540, %v539
      %v570 = vpack.c.bf16 %v542, %v541
      %v571 = vpack.c.bf16 %v544, %v543
      %v572 = vpack.c.bf16 %v546, %v545
      %v573 = vpack.c.bf16 %v548, %v547
      %v574 = vpack.c.bf16 %v550, %v549
      %v575 = vpack.c.bf16 %v552, %v551
      %v576 = vpack.c.bf16 %v554, %v553
      %v577 = vpack.c.bf16 %v556, %v555
      %v578 = vpack.c.bf16 %v558, %v557
      %v579 = vpack.c.bf16 %v560, %v559
      %v580 = vpack.c.bf16 %v562, %v561
      %v581 = vpack.c.bf16 %v564, %v563
      %v582 = vpack.c.bf16 %v566, %v565
      %v599 = vunpack.c.l.b16 %v567
      %v600 = vunpack.c.h.b16 %v567
      %v601 = vunpack.c.l.b16 %v568
      %v602 = vunpack.c.h.b16 %v568
      %v603 = vunpack.c.l.b16 %v569
      %v604 = vunpack.c.h.b16 %v569
      %v605 = vunpack.c.l.b16 %v570
      %v606 = vunpack.c.h.b16 %v570
      %v607 = vunpack.c.l.b16 %v571
      %v608 = vunpack.c.h.b16 %v571
      %v609 = vunpack.c.l.b16 %v572
      %v610 = vunpack.c.h.b16 %v572
      %v611 = vunpack.c.l.b16 %v573
      %v612 = vunpack.c.h.b16 %v573
      %v613 = vunpack.c.l.b16 %v574
      %v614 = vunpack.c.h.b16 %v574
      %v615 = vunpack.c.l.b16 %v575
      %v616 = vunpack.c.h.b16 %v575
      %v617 = vunpack.c.l.b16 %v576
      %v618 = vunpack.c.h.b16 %v576
      %v619 = vunpack.c.l.b16 %v577
      %v620 = vunpack.c.h.b16 %v577
      %v621 = vunpack.c.l.b16 %v578
      %v622 = vunpack.c.h.b16 %v578
      %v623 = vunpack.c.l.b16 %v579
      %v624 = vunpack.c.h.b16 %v579
      %v625 = vunpack.c.l.b16 %v580
      %v626 = vunpack.c.h.b16 %v580
      %v627 = vunpack.c.l.b16 %v581
      %v628 = vunpack.c.h.b16 %v581
      %v629 = vunpack.c.l.b16 %v582
      %v630 = vunpack.c.h.b16 %v582
      %v631 = vpack.c.b16 %v599, %v599
      %v632 = vpack.c.b16 %v600, %v600
      %v633 = vpack.c.b16 %v601, %v601
      %v634 = vpack.c.b16 %v602, %v602
      %v635 = vpack.c.b16 %v603, %v603
      %v636 = vpack.c.b16 %v604, %v604
      %v637 = vpack.c.b16 %v605, %v605
      %v638 = vpack.c.b16 %v606, %v606
      %v639 = vpack.c.b16 %v607, %v607
      %v640 = vpack.c.b16 %v608, %v608
      %v641 = vpack.c.b16 %v609, %v609
      %v642 = vpack.c.b16 %v610, %v610
      %v643 = vpack.c.b16 %v611, %v611
      %v644 = vpack.c.b16 %v612, %v612
      %v645 = vpack.c.b16 %v613, %v613
      %v646 = vpack.c.b16 %v614, %v614
      %v647 = vpack.c.b16 %v615, %v615
      %v648 = vpack.c.b16 %v616, %v616
      %v649 = vpack.c.b16 %v617, %v617
      %v650 = vpack.c.b16 %v618, %v618
      %v651 = vpack.c.b16 %v619, %v619
      %v652 = vpack.c.b16 %v620, %v620
      %v653 = vpack.c.b16 %v621, %v621
      %v654 = vpack.c.b16 %v622, %v622
      %v655 = vpack.c.b16 %v623, %v623
      %v656 = vpack.c.b16 %v624, %v624
      %v657 = vpack.c.b16 %v625, %v625
      %v658 = vpack.c.b16 %v626, %v626
      %v659 = vpack.c.b16 %v627, %v627
      %v660 = vpack.c.b16 %v628, %v628
      %v661 = vpack.c.b16 %v629, %v629
      %v662 = vpack.c.b16 %v630, %v630
      %695 = vst [vmem:[%s172] sm:$0xf] %v631
      %696 = vst [vmem:[%s172 + $0x4] sm:$0xf] %v632
      %697 = vst [vmem:[%s172 + $0x8] sm:$0xf] %v633
      %698 = vst [vmem:[%s172 + $0xc] sm:$0xf] %v634
      %699 = vst [vmem:[%s172 + $0x10] sm:$0xf] %v635
      %700 = vst [vmem:[%s172 + $0x14] sm:$0xf] %v636
      %701 = vst [vmem:[%s172 + $0x18] sm:$0xf] %v637
      %702 = vst [vmem:[%s172 + $0x1c] sm:$0xf] %v638
      %703 = vst [vmem:[%s172 + $0x20] sm:$0xf] %v639
      %704 = vst [vmem:[%s172 + $0x24] sm:$0xf] %v640
      %705 = vst [vmem:[%s172 + $0x28] sm:$0xf] %v641
      %706 = vst [vmem:[%s172 + $0x2c] sm:$0xf] %v642
      %707 = vst [vmem:[%s172 + $0x30] sm:$0xf] %v643
      %708 = vst [vmem:[%s172 + $0x34] sm:$0xf] %v644
      %709 = vst [vmem:[%s172 + $0x38] sm:$0xf] %v645
      %710 = vst [vmem:[%s172 + $0x3c] sm:$0xf] %v646
      %711 = vst [vmem:[%s172 + $0x40] sm:$0xf] %v647
      %712 = vst [vmem:[%s172 + $0x44] sm:$0xf] %v648
      %713 = vst [vmem:[%s172 + $0x48] sm:$0xf] %v649
      %714 = vst [vmem:[%s172 + $0x4c] sm:$0xf] %v650
      %715 = vst [vmem:[%s172 + $0x50] sm:$0xf] %v651
      %716 = vst [vmem:[%s172 + $0x54] sm:$0xf] %v652
      %717 = vst [vmem:[%s172 + $0x58] sm:$0xf] %v653
      %718 = vst [vmem:[%s172 + $0x5c] sm:$0xf] %v654
      %719 = vst [vmem:[%s172 + $0x60] sm:$0xf] %v655
      %720 = vst [vmem:[%s172 + $0x64] sm:$0xf] %v656
      %721 = vst [vmem:[%s172 + $0x68] sm:$0xf] %v657
      %722 = vst [vmem:[%s172 + $0x6c] sm:$0xf] %v658
      %723 = vst [vmem:[%s172 + $0x70] sm:$0xf] %v659
      %724 = vst [vmem:[%s172 + $0x74] sm:$0xf] %v660
      %725 = vst [vmem:[%s172 + $0x78] sm:$0xf] %v661
      %726 = vst [vmem:[%s172 + $0x7c] sm:$0xf] %v662
      %s727 = smul.u32 32, %s14
      %p728 = scmp.lt.s32.totalorder %s727, 63
      %s729 = scalar_select %p728, %s727, 63
      %s730 = smul.addr %s729, 4
      %s731 = scalar_lea.vmem %s3, %s730
      // Predicated region
      $region33: #{_lambda_.16} parent=31 // pred_check
        %p732 = pneg %p100
      $region34: #{_lambda_.16} parent=31 // pred_check_branch
        %734 = sbr.rel (%p732) target = $region36
      $region35: #{_lambda_.16} parent=31 // pred_region
        %s735 = smul.u32 32, %s14
      $region36: #{_lambda_.16} parent=31 // pred_fallthru
        _
    $region32: #{_lambda_.16} parent=5 // pred_fallthru
      _
    %p736 = scmp.le.s32.totalorder 2, %s9
    // Predicated region
    $region37: #{_lambda_.16} parent=5 // pred_check
      %p737 = pneg %p736
    $region38: #{_lambda_.16} parent=5 // pred_check_branch
      %739 = sbr.rel (%p737) target = $region40
    $region39: #{_lambda_.16} parent=5 // pred_region
      %s740 = ssub.s32 %s9, 2
      // Predicated region
      $region41: #{_lambda_.16} parent=39 // pred_check
        %p741 = pneg %p106
      $region42: #{_lambda_.16} parent=39 // pred_check_branch
        %743 = sbr.rel (%p741) target = $region44
      $region43: #{_lambda_.16} parent=39 // pred_region
        %s744 = smul.u32 32, %s15
        %p745 = scmp.lt.s32.totalorder %s744, 63
        %s746 = scalar_select %p745, %s744, 63
        %s747 = smul.addr %s746, 4
        %s748 = scalar_lea.vmem %s3, %s747
      $region44: #{_lambda_.16} parent=39 // pred_fallthru
        _
    $region40: #{_lambda_.16} parent=5 // pred_fallthru
      _
  $region6: #{_lambda_.16} parent=0 // loop_footer
    %s13 = sadd.s32 1, %s9
  $region7: #{_lambda_.16} parent=0 // loop_footer_branch
    %8 = sbr.rel target = $region3
  $region8: #{_lambda_.16} parent=0 // loop_exit
    _

// kernel: _lambda_.19
$region0: #{_lambda_.19}
  #allocation0 [shape = 'u32[]', space=smem, size = 0x4, offset = 0x4, fixed_abs, tag = 'smem constant byte address 0x4 - core index']
  #allocation1 [shape = 'u32[144,128]{1,0:T(1,128)}', space=vmem, size = 0x12000, scoped, tag = 'internal scratch']
  %s0 = inlined_call_operand.vmem [shape: bf16[128,128], index: 0, kind: input, shape index: {}]
  %s1 = inlined_call_operand.vmem [shape: bf16[128,128], index: 1, kind: input, shape index: {}]
  %s2 = inlined_call_operand.vmem [shape: f32[1,128], index: 2, kind: input, shape index: {}]
  %s3 = inlined_call_operand.vmem [shape: bf16[128,128], index: 3, kind: output, shape index: {}]
  %s4 = sld [smem:[#allocation0]]
  $region45: #{_lambda_.19} parent=0
    _
  %s6 = ssub.s32 1, %s4
  %s7 = scalar_select 0, %s6, %s4
  loop: start=0, step=1, limit=4
  $region2: #{_lambda_.19} parent=0 // loop_pre_header
    _
  $region3: #{_lambda_.19} parent=0 // loop_header
    %s9 = sphi 0, %s13
    %p10 = scmp.ge.s32.totalorder %s9, 4
    %s19 = sphi 0, %s21
    %s22 = sphi 0, %s19
    %s23 = sphi 0, %s22
    %s39 = sphi 0, %s23
    %s43 = sphi 0, %s43
    %s45 = sphi 0, %s43
    %s46 = sphi 0, %s45
    %s60 = sphi 0, %s46
    %s64 = sphi 0, %s64
    %s66 = sphi 0, %s64
    %s67 = sphi 0, %s66
    %s81 = sphi 0, %s67
    %s87 = sphi 0, %s89
    %s90 = sphi 0, %s87
    %s91 = sphi 0, %s90
    %s107 = sphi 0, %s91
  $region4: #{_lambda_.19} parent=0 // loop_header_branch
    %12 = sbr.rel (%p10) target = $region8
  $region5: #{_lambda_.19} parent=0 // loop_body
    %s14 = ssub.s32 %s9, 1
    %s15 = ssub.s32 %s9, 2
    %s16 = sadd.s32 %s9, 1
    %s17 = ssub.s32 %s9, %s16
    %p18 = scmp.eq.s32.totalorder %s17, 0
    %s20 = sadd.s32 %s19, 1
    %s21 = scalar_select %p18, %s19, %s20
    %p24 = pneg %p18
    %p25 = scmp.eq.s32.totalorder %s9, 1
    %p26 = por %p24, %p25
    %p27 = scmp.ne.s32.totalorder %s19, %s22
    %p28 = scmp.eq.s32.totalorder %s9, 0
    %p29 = por %p27, %p28
    %p30 = scmp.ne.s32.totalorder %s19, %s22
    %p31 = scmp.eq.s32.totalorder %s14, 1
    %p32 = por %p30, %p31
    %p33 = scmp.ne.s32.totalorder %s22, %s23
    %p34 = scmp.eq.s32.totalorder %s14, 0
    %p35 = por %p33, %p34
    %p36 = scmp.ne.s32.totalorder %s22, %s23
    %p37 = scmp.eq.s32.totalorder %s15, 1
    %p38 = por %p36, %p37
    %p40 = scmp.ne.s32.totalorder %s23, %s39
    %p41 = scmp.eq.s32.totalorder %s15, 0
    %p42 = por %p40, %p41
    %s44 = sadd.s32 %s43, 1
    %p47 = scmp.eq.s32.totalorder %s9, 1
    %p48 = scmp.ne.s32.totalorder %s43, %s45
    %p49 = scmp.eq.s32.totalorder %s9, 0
    %p50 = por %p48, %p49
    %p51 = scmp.ne.s32.totalorder %s43, %s45
    %p52 = scmp.eq.s32.totalorder %s14, 1
    %p53 = por %p51, %p52
    %p54 = scmp.ne.s32.totalorder %s45, %s46
    %p55 = scmp.eq.s32.totalorder %s14, 0
    %p56 = por %p54, %p55
    %p57 = scmp.ne.s32.totalorder %s45, %s46
    %p58 = scmp.eq.s32.totalorder %s15, 1
    %p59 = por %p57, %p58
    %p61 = scmp.ne.s32.totalorder %s46, %s60
    %p62 = scmp.eq.s32.totalorder %s15, 0
    %p63 = por %p61, %p62
    %s65 = sadd.s32 %s64, 1
    %p68 = scmp.eq.s32.totalorder %s9, 1
    %p69 = scmp.ne.s32.totalorder %s64, %s66
    %p70 = scmp.eq.s32.totalorder %s9, 0
    %p71 = por %p69, %p70
    %p72 = scmp.ne.s32.totalorder %s64, %s66
    %p73 = scmp.eq.s32.totalorder %s14, 1
    %p74 = por %p72, %p73
    %p75 = scmp.ne.s32.totalorder %s66, %s67
    %p76 = scmp.eq.s32.totalorder %s14, 0
    %p77 = por %p75, %p76
    %p78 = scmp.ne.s32.totalorder %s66, %s67
    %p79 = scmp.eq.s32.totalorder %s15, 1
    %p80 = por %p78, %p79
    %p82 = scmp.ne.s32.totalorder %s67, %s81
    %p83 = scmp.eq.s32.totalorder %s15, 0
    %p84 = por %p82, %p83
    %s85 = ssub.s32 %s9, %s16
    %p86 = scmp.eq.s32.totalorder %s85, 0
    %s88 = sadd.s32 %s87, 1
    %s89 = scalar_select %p86, %s87, %s88
    %p92 = pneg %p86
    %p93 = scmp.eq.s32.totalorder %s9, 1
    %p94 = por %p92, %p93
    %p95 = scmp.ne.s32.totalorder %s87, %s90
    %p96 = scmp.eq.s32.totalorder %s9, 0
    %p97 = por %p95, %p96
    %p98 = scmp.ne.s32.totalorder %s87, %s90
    %p99 = scmp.eq.s32.totalorder %s14, 1
    %p100 = por %p98, %p99
    %p101 = scmp.ne.s32.totalorder %s90, %s91
    %p102 = scmp.eq.s32.totalorder %s14, 0
    %p103 = por %p101, %p102
    %p104 = scmp.ne.s32.totalorder %s90, %s91
    %p105 = scmp.eq.s32.totalorder %s15, 1
    %p106 = por %p104, %p105
    %p108 = scmp.ne.s32.totalorder %s91, %s107
    %p109 = scmp.eq.s32.totalorder %s15, 0
    %p110 = por %p108, %p109
    %p111 = scmp.le.s32.totalorder 1, %s9
    %p112 = scmp.lt.s32.totalorder %s9, 3
    %p113 = pnand %p111, %p112
    %p114 = pneg %p113
    // Predicated region
    $region9: #{_lambda_.19} parent=5 // pred_check
      _
    $region10: #{_lambda_.19} parent=5 // pred_check_branch
      %116 = sbr.rel (%p113) target = $region12
    $region11: #{_lambda_.19} parent=5 // pred_region
      %s117 = ssub.s32 %s9, 1
      // Predicated region
      $region13: #{_lambda_.19} parent=11 // pred_check
        %p118 = pneg %p56
      $region14: #{_lambda_.19} parent=11 // pred_check_branch
        %120 = sbr.rel (%p118) target = $region16
      $region15: #{_lambda_.19} parent=11 // pred_region
        _
      $region16: #{_lambda_.19} parent=11 // pred_fallthru
        _
      // Predicated region
      $region17: #{_lambda_.19} parent=11 // pred_check
        %p121 = pneg %p77
      $region18: #{_lambda_.19} parent=11 // pred_check_branch
        %123 = sbr.rel (%p121) target = $region20
      $region19: #{_lambda_.19} parent=11 // pred_region
        _
      $region20: #{_lambda_.19} parent=11 // pred_fallthru
        _
    $region12: #{_lambda_.19} parent=5 // pred_fallthru
      _
    %p124 = scmp.lt.s32.totalorder %s9, 2
    // Predicated region
    $region21: #{_lambda_.19} parent=5 // pred_check
      %p125 = pneg %p124
    $region22: #{_lambda_.19} parent=5 // pred_check_branch
      %127 = sbr.rel (%p125) target = $region24
    $region23: #{_lambda_.19} parent=5 // pred_region
      // Predicated region
      $region25: #{_lambda_.19} parent=23 // pred_check
        %p128 = pneg %p29
      $region26: #{_lambda_.19} parent=23 // pred_check_branch
        %130 = sbr.rel (%p128) target = $region28
      $region27: #{_lambda_.19} parent=23 // pred_region
        %s131 = smul.u32 8, %s9
        %p132 = scmp.lt.s32.totalorder %s131, 15
        %s133 = scalar_select %p132, %s131, 15
        %s134 = smul.addr %s133, 4
        %s135 = scalar_lea.vmem %s0, %s134
        %s136 = smul.u32 8, %s9
      $region28: #{_lambda_.19} parent=23 // pred_fallthru
        _
    $region24: #{_lambda_.19} parent=5 // pred_fallthru
      _
    %p137 = scmp.le.s32.totalorder 1, %s9
    %p138 = scmp.lt.s32.totalorder %s9, 3
    %p139 = pnand %p137, %p138
    %p140 = pneg %p139
    // Predicated region
    $region29: #{_lambda_.19} parent=5 // pred_check
      _
    $region30: #{_lambda_.19} parent=5 // pred_check_branch
      %142 = sbr.rel (%p139) target = $region32
    $region31: #{_lambda_.19} parent=5 // pred_region
      %s143 = ssub.s32 %s9, 1
      %s144 = smul.u32 8, %s14
      %p145 = scmp.lt.s32.totalorder %s144, 15
      %s146 = scalar_select %p145, %s144, 15
      %s147 = smul.addr %s146, 4
      %s148 = scalar_lea.vmem %s0, %s147
      %p149 = pneg %p35
      %p150 = pneg %p32
      %p151 = pneg %p56
      %p152 = pneg %p53
      %p153 = pneg %p77
      %p154 = pneg %p74
      %p155 = pneg %p103
      %p156 = pneg %p100
      %s157 = smul.u32 8, %s14
      %p158 = scmp.lt.s32.totalorder %s157, 15
      %s159 = scalar_select %p158, %s157, 15
      %s160 = smul.addr %s159, 4
      %s161 = scalar_lea.vmem %s3, %s160
      %s162 = smul.u32 8, %s14
      %p163 = scmp.lt.s32.totalorder %s162, 15
      %s164 = scalar_select %p163, %s162, 15
      %s165 = smul.addr %s164, 4
      %s166 = scalar_lea.vmem %s0, %s165
      %s167 = smul.u32 8, %s14
      %s168 = smul.u32 8, %s14
      %p169 = scmp.lt.s32.totalorder %s168, 15
      %s170 = scalar_select %p169, %s168, 15
      %s171 = smul.addr %s170, 4
      %s172 = scalar_lea.vmem %s3, %s171
      %s173 = smul.u32 8, %s14
      %v175 = vld [vmem:[%s166] sm:$0xf]
      %v176 = vld [vmem:[%s166 + $0x4] sm:$0xf]
      %v177 = vld [vmem:[%s166 + $0x8] sm:$0xf]
      %v178 = vld [vmem:[%s166 + $0xc] sm:$0xf]
      %v179 = vld [vmem:[%s166 + $0x10] sm:$0xf]
      %v180 = vld [vmem:[%s166 + $0x14] sm:$0xf]
      %v181 = vld [vmem:[%s166 + $0x18] sm:$0xf]
      %v182 = vld [vmem:[%s166 + $0x1c] sm:$0xf]
      %v183 = vld [vmem:[%s1] sm:$0xf]
      %v184 = vld [vmem:[%s1 + $0x4] sm:$0xf]
      %v185 = vld [vmem:[%s1 + $0x8] sm:$0xf]
      %v186 = vld [vmem:[%s1 + $0xc] sm:$0xf]
      %v187 = vld [vmem:[%s1 + $0x10] sm:$0xf]
      %v188 = vld [vmem:[%s1 + $0x14] sm:$0xf]
      %v189 = vld [vmem:[%s1 + $0x18] sm:$0xf]
      %v190 = vld [vmem:[%s1 + $0x1c] sm:$0xf]
      %v191 = vld [vmem:[%s1 + $0x20] sm:$0xf]
      %v192 = vld [vmem:[%s1 + $0x24] sm:$0xf]
      %v193 = vld [vmem:[%s1 + $0x28] sm:$0xf]
      %v194 = vld [vmem:[%s1 + $0x2c] sm:$0xf]
      %v195 = vld [vmem:[%s1 + $0x30] sm:$0xf]
      %v196 = vld [vmem:[%s1 + $0x34] sm:$0xf]
      %v197 = vld [vmem:[%s1 + $0x38] sm:$0xf]
      %v198 = vld [vmem:[%s1 + $0x3c] sm:$0xf]
      %v199 = vld [vmem:[%s2] sm:$0x1]
      %v201 = vlaneseq
      %v202 = vshrl.u32 %v201, 7
      %v203 = vsub.s32 0, %v202
      %v204 = vrot.slane %v199, %v203
      %v214 = vunpack.c.l.b16 %v175
      %v215 = vunpack.c.l.b16 %v176
      %v216 = vunpack.c.l.b16 %v177
      %v217 = vunpack.c.l.b16 %v178
      %v218 = vunpack.c.l.b16 %v179
      %v219 = vunpack.c.l.b16 %v180
      %v220 = vunpack.c.l.b16 %v181
      %v221 = vunpack.c.l.b16 %v182
      %v222 = vpack.c.b16 %v215, %v214
      %v223 = vpack.c.b16 %v217, %v216
      %v224 = vpack.c.b16 %v219, %v218
      %v225 = vpack.c.b16 %v221, %v220
      %v246 = vunpack.c.l.b16 %v183
      %v247 = vunpack.c.l.b16 %v184
      %v248 = vunpack.c.l.b16 %v185
      %v249 = vunpack.c.l.b16 %v186
      %v250 = vunpack.c.l.b16 %v187
      %v251 = vunpack.c.l.b16 %v188
      %v252 = vunpack.c.l.b16 %v189
      %v253 = vunpack.c.l.b16 %v190
      %v254 = vunpack.c.l.b16 %v191
      %v255 = vunpack.c.l.b16 %v192
      %v256 = vunpack.c.l.b16 %v193
      %v257 = vunpack.c.l.b16 %v194
      %v258 = vunpack.c.l.b16 %v195
      %v259 = vunpack.c.l.b16 %v196
      %v260 = vunpack.c.l.b16 %v197
      %v261 = vunpack.c.l.b16 %v198
      %v262 = vpack.c.b16 %v247, %v246
      %v263 = vpack.c.b16 %v249, %v248
      %v264 = vpack.c.b16 %v251, %v250
      %v265 = vpack.c.b16 %v253, %v252
      %v266 = vpack.c.b16 %v255, %v254
      %v267 = vpack.c.b16 %v257, %v256
      %v268 = vpack.c.b16 %v259, %v258
      %v269 = vpack.c.b16 %v261, %v260
      %278 = vmatprep.subr.bf16.mxu0 0
      %279 = vmatpush1.bf16.msra.mxu0 %v262
      %280 = vmatprep.subr.bf16.mxu0 0
      %281 = vmatpush1.bf16.msra.mxu0 %v263
      %282 = vmatprep.subr.bf16.mxu0 0
      %283 = vmatpush1.bf16.msra.mxu0 %v264
      %284 = vmatprep.subr.bf16.mxu0 0
      %285 = vmatpush1.bf16.msra.mxu0 %v265
      %286 = vmatprep.subr.bf16.mxu0 0
      %287 = vmatpush1.bf16.msra.mxu0 %v266
      %288 = vmatprep.subr.bf16.mxu0 0
      %289 = vmatpush1.bf16.msra.mxu0 %v267
      %290 = vmatprep.subr.bf16.mxu0 0
      %291 = vmatpush1.bf16.msra.mxu0 %v268
      %292 = vmatprep.subr.bf16.mxu0 0
      %293 = vmatpush1.bf16.msra.mxu0 %v269
      %294 = vmatprep.subr.bf16.mxu0 0
      %295 = vmatpush1.bf16.msra.mxu0 0
      %296 = vmatprep.subr.bf16.mxu0 0
      %297 = vmatpush1.bf16.msra.mxu0 0
      %298 = vmatprep.subr.bf16.mxu0 0
      %299 = vmatpush1.bf16.msra.mxu0 0
      %300 = vmatprep.subr.bf16.mxu0 0
      %301 = vmatpush1.bf16.msra.mxu0 0
      %302 = vmatprep.subr.bf16.mxu0 0
      %303 = vmatpush1.bf16.msra.mxu0 0
      %304 = vmatprep.subr.bf16.mxu0 0
      %305 = vmatpush1.bf16.msra.mxu0 0
      %306 = vmatprep.subr.bf16.mxu0 0
      %307 = vmatpush1.bf16.msra.mxu0 0
      %308 = vmatprep.subr.bf16.mxu0 0
      %309 = vmatpush1.bf16.msra.mxu0 0
      %310 = vmatprep.mubr.bf16.mxu0 0
      %311 = vmatmul.mubr.bf16.gmra.mrb[0].mxu0 %v222
      %v312 = vpop.f32.mrb[0].mxu0
      %v313 = vadd.f32 %v204, %v312
      %v314 = vpop.f32.mrb[0].mxu0
      %v315 = vpop.f32.mrb[0].mxu0
      %v316 = vadd.f32 %v204, %v315
      %v317 = vpop.f32.mrb[0].mxu0
      %318 = vmatprep.mubr.bf16.mxu0 0
      %319 = vmatmul.mubr.bf16.gmra.mrb[0].mxu0 %v223
      %v320 = vpop.f32.mrb[0].mxu0
      %v321 = vadd.f32 %v204, %v320
      %v322 = vpop.f32.mrb[0].mxu0
      %v323 = vpop.f32.mrb[0].mxu0
      %v324 = vadd.f32 %v204, %v323
      %v325 = vpop.f32.mrb[0].mxu0
      %326 = vmatprep.mubr.bf16.mxu0 0
      %327 = vmatmul.mubr.bf16.gmra.mrb[0].mxu0 %v224
      %v328 = vpop.f32.mrb[0].mxu0
      %v329 = vadd.f32 %v204, %v328
      %v330 = vpop.f32.mrb[0].mxu0
      %v331 = vpop.f32.mrb[0].mxu0
      %v332 = vadd.f32 %v204, %v331
      %v333 = vpop.f32.mrb[0].mxu0
      %334 = vmatprep.mubr.bf16.mxu0 0
      %335 = vmatmul.mubr.bf16.gmra.mrb[0].mxu0 %v225
      %v336 = vpop.f32.mrb[0].mxu0
      %v337 = vadd.f32 %v204, %v336
      %v338 = vpop.f32.mrb[0].mxu0
      %v339 = vpop.f32.mrb[0].mxu0
      %v340 = vadd.f32 %v204, %v339
      %v341 = vpop.f32.mrb[0].mxu0
      %342 = vdwg.mxu0
      %v343 = vpack.c.bf16 %v316, %v313
      %v344 = vpack.c.bf16 %v324, %v321
      %v345 = vpack.c.bf16 %v332, %v329
      %v346 = vpack.c.bf16 %v340, %v337
      %v351 = vunpack.c.l.b16 %v343
      %v352 = vunpack.c.h.b16 %v343
      %v353 = vunpack.c.l.b16 %v344
      %v354 = vunpack.c.h.b16 %v344
      %v355 = vunpack.c.l.b16 %v345
      %v356 = vunpack.c.h.b16 %v345
      %v357 = vunpack.c.l.b16 %v346
      %v358 = vunpack.c.h.b16 %v346
      %v359 = vpack.c.b16 %v351, %v351
      %v360 = vpack.c.b16 %v352, %v352
      %v361 = vpack.c.b16 %v353, %v353
      %v362 = vpack.c.b16 %v354, %v354
      %v363 = vpack.c.b16 %v355, %v355
      %v364 = vpack.c.b16 %v356, %v356
      %v365 = vpack.c.b16 %v357, %v357
      %v366 = vpack.c.b16 %v358, %v358
      %375 = vst [vmem:[%s172] sm:$0xf] %v359
      %376 = vst [vmem:[%s172 + $0x4] sm:$0xf] %v360
      %377 = vst [vmem:[%s172 + $0x8] sm:$0xf] %v361
      %378 = vst [vmem:[%s172 + $0xc] sm:$0xf] %v362
      %379 = vst [vmem:[%s172 + $0x10] sm:$0xf] %v363
      %380 = vst [vmem:[%s172 + $0x14] sm:$0xf] %v364
      %381 = vst [vmem:[%s172 + $0x18] sm:$0xf] %v365
      %382 = vst [vmem:[%s172 + $0x1c] sm:$0xf] %v366
      %s383 = smul.u32 8, %s14
      %p384 = scmp.lt.s32.totalorder %s383, 15
      %s385 = scalar_select %p384, %s383, 15
      %s386 = smul.addr %s385, 4
      %s387 = scalar_lea.vmem %s3, %s386
      // Predicated region
      $region33: #{_lambda_.19} parent=31 // pred_check
        %p388 = pneg %p100
      $region34: #{_lambda_.19} parent=31 // pred_check_branch
        %390 = sbr.rel (%p388) target = $region36
      $region35: #{_lambda_.19} parent=31 // pred_region
        %s391 = smul.u32 8, %s14
      $region36: #{_lambda_.19} parent=31 // pred_fallthru
        _
    $region32: #{_lambda_.19} parent=5 // pred_fallthru
      _
    %p392 = scmp.le.s32.totalorder 2, %s9
    // Predicated region
    $region37: #{_lambda_.19} parent=5 // pred_check
      %p393 = pneg %p392
    $region38: #{_lambda_.19} parent=5 // pred_check_branch
      %395 = sbr.rel (%p393) target = $region40
    $region39: #{_lambda_.19} parent=5 // pred_region
      %s396 = ssub.s32 %s9, 2
      // Predicated region
      $region41: #{_lambda_.19} parent=39 // pred_check
        %p397 = pneg %p106
      $region42: #{_lambda_.19} parent=39 // pred_check_branch
        %399 = sbr.rel (%p397) target = $region44
      $region43: #{_lambda_.19} parent=39 // pred_region
        %s400 = smul.u32 8, %s15
        %p401 = scmp.lt.s32.totalorder %s400, 15
        %s402 = scalar_select %p401, %s400, 15
        %s403 = smul.addr %s402, 4
        %s404 = scalar_lea.vmem %s3, %s403
      $region44: #{_lambda_.19} parent=39 // pred_fallthru
        _
    $region40: #{_lambda_.19} parent=5 // pred_fallthru
      _
  $region6: #{_lambda_.19} parent=0 // loop_footer
    %s13 = sadd.s32 1, %s9
  $region7: #{_lambda_.19} parent=0 // loop_footer_branch
    %8 = sbr.rel target = $region3
  $region8: #{_lambda_.19} parent=0 // loop_exit
    _

// kernel: _lambda_.17
$region0: #{_lambda_.17}
  #allocation0 [shape = 'u32[]', space=smem, size = 0x4, offset = 0x4, fixed_abs, tag = 'smem constant byte address 0x4 - core index']
  #allocation1 [shape = 'u32[144,128]{1,0:T(1,128)}', space=vmem, size = 0x12000, scoped, tag = 'internal scratch']
  %s0 = inlined_call_operand.vmem [shape: bf16[512,128], index: 0, kind: input, shape index: {}]
  %s1 = inlined_call_operand.vmem [shape: bf16[128,128], index: 1, kind: input, shape index: {}]
  %s2 = inlined_call_operand.vmem [shape: f32[1,128], index: 2, kind: input, shape index: {}]
  %s3 = inlined_call_operand.vmem [shape: bf16[512,128], index: 3, kind: input, shape index: {}]
  %s4 = inlined_call_operand.vmem [shape: bf16[512,128], index: 4, kind: output, shape index: {}]
  %s5 = sld [smem:[#allocation0]]
  $region49: #{_lambda_.17} parent=0
    _
  %s7 = ssub.s32 1, %s5
  %s8 = scalar_select 0, %s7, %s5
  loop: start=0, step=1, limit=4
  $region2: #{_lambda_.17} parent=0 // loop_pre_header
    _
  $region3: #{_lambda_.17} parent=0 // loop_header
    %s10 = sphi 0, %s14
    %p11 = scmp.ge.s32.totalorder %s10, 4
    %s20 = sphi 0, %s22
    %s23 = sphi 0, %s20
    %s24 = sphi 0, %s23
    %s40 = sphi 0, %s24
    %s44 = sphi 0, %s44
    %s46 = sphi 0, %s44
    %s47 = sphi 0, %s46
    %s61 = sphi 0, %s47
    %s65 = sphi 0, %s65
    %s67 = sphi 0, %s65
    %s68 = sphi 0, %s67
    %s82 = sphi 0, %s68
    %s88 = sphi 0, %s90
    %s91 = sphi 0, %s88
    %s92 = sphi 0, %s91
    %s108 = sphi 0, %s92
    %s114 = sphi 0, %s116
    %s117 = sphi 0, %s114
    %s118 = sphi 0, %s117
    %s134 = sphi 0, %s118
  $region4: #{_lambda_.17} parent=0 // loop_header_branch
    %13 = sbr.rel (%p11) target = $region8
  $region5: #{_lambda_.17} parent=0 // loop_body
    %s15 = ssub.s32 %s10, 1
    %s16 = ssub.s32 %s10, 2
    %s17 = sadd.s32 %s10, 1
    %s18 = ssub.s32 %s10, %s17
    %p19 = scmp.eq.s32.totalorder %s18, 0
    %s21 = sadd.s32 %s20, 1
    %s22 = scalar_select %p19, %s20, %s21
    %p25 = pneg %p19
    %p26 = scmp.eq.s32.totalorder %s10, 1
    %p27 = por %p25, %p26
    %p28 = scmp.ne.s32.totalorder %s20, %s23
    %p29 = scmp.eq.s32.totalorder %s10, 0
    %p30 = por %p28, %p29
    %p31 = scmp.ne.s32.totalorder %s20, %s23
    %p32 = scmp.eq.s32.totalorder %s15, 1
    %p33 = por %p31, %p32
    %p34 = scmp.ne.s32.totalorder %s23, %s24
    %p35 = scmp.eq.s32.totalorder %s15, 0
    %p36 = por %p34, %p35
    %p37 = scmp.ne.s32.totalorder %s23, %s24
    %p38 = scmp.eq.s32.totalorder %s16, 1
    %p39 = por %p37, %p38
    %p41 = scmp.ne.s32.totalorder %s24, %s40
    %p42 = scmp.eq.s32.totalorder %s16, 0
    %p43 = por %p41, %p42
    %s45 = sadd.s32 %s44, 1
    %p48 = scmp.eq.s32.totalorder %s10, 1
    %p49 = scmp.ne.s32.totalorder %s44, %s46
    %p50 = scmp.eq.s32.totalorder %s10, 0
    %p51 = por %p49, %p50
    %p52 = scmp.ne.s32.totalorder %s44, %s46
    %p53 = scmp.eq.s32.totalorder %s15, 1
    %p54 = por %p52, %p53
    %p55 = scmp.ne.s32.totalorder %s46, %s47
    %p56 = scmp.eq.s32.totalorder %s15, 0
    %p57 = por %p55, %p56
    %p58 = scmp.ne.s32.totalorder %s46, %s47
    %p59 = scmp.eq.s32.totalorder %s16, 1
    %p60 = por %p58, %p59
    %p62 = scmp.ne.s32.totalorder %s47, %s61
    %p63 = scmp.eq.s32.totalorder %s16, 0
    %p64 = por %p62, %p63
    %s66 = sadd.s32 %s65, 1
    %p69 = scmp.eq.s32.totalorder %s10, 1
    %p70 = scmp.ne.s32.totalorder %s65, %s67
    %p71 = scmp.eq.s32.totalorder %s10, 0
    %p72 = por %p70, %p71
    %p73 = scmp.ne.s32.totalorder %s65, %s67
    %p74 = scmp.eq.s32.totalorder %s15, 1
    %p75 = por %p73, %p74
    %p76 = scmp.ne.s32.totalorder %s67, %s68
    %p77 = scmp.eq.s32.totalorder %s15, 0
    %p78 = por %p76, %p77
    %p79 = scmp.ne.s32.totalorder %s67, %s68
    %p80 = scmp.eq.s32.totalorder %s16, 1
    %p81 = por %p79, %p80
    %p83 = scmp.ne.s32.totalorder %s68, %s82
    %p84 = scmp.eq.s32.totalorder %s16, 0
    %p85 = por %p83, %p84
    %s86 = ssub.s32 %s10, %s17
    %p87 = scmp.eq.s32.totalorder %s86, 0
    %s89 = sadd.s32 %s88, 1
    %s90 = scalar_select %p87, %s88, %s89
    %p93 = pneg %p87
    %p94 = scmp.eq.s32.totalorder %s10, 1
    %p95 = por %p93, %p94
    %p96 = scmp.ne.s32.totalorder %s88, %s91
    %p97 = scmp.eq.s32.totalorder %s10, 0
    %p98 = por %p96, %p97
    %p99 = scmp.ne.s32.totalorder %s88, %s91
    %p100 = scmp.eq.s32.totalorder %s15, 1
    %p101 = por %p99, %p100
    %p102 = scmp.ne.s32.totalorder %s91, %s92
    %p103 = scmp.eq.s32.totalorder %s15, 0
    %p104 = por %p102, %p103
    %p105 = scmp.ne.s32.totalorder %s91, %s92
    %p106 = scmp.eq.s32.totalorder %s16, 1
    %p107 = por %p105, %p106
    %p109 = scmp.ne.s32.totalorder %s92, %s108
    %p110 = scmp.eq.s32.totalorder %s16, 0
    %p111 = por %p109, %p110
    %s112 = ssub.s32 %s10, %s17
    %p113 = scmp.eq.s32.totalorder %s112, 0
    %s115 = sadd.s32 %s114, 1
    %s116 = scalar_select %p113, %s114, %s115
    %p119 = pneg %p113
    %p120 = scmp.eq.s32.totalorder %s10, 1
    %p121 = por %p119, %p120
    %p122 = scmp.ne.s32.totalorder %s114, %s117
    %p123 = scmp.eq.s32.totalorder %s10, 0
    %p124 = por %p122, %p123
    %p125 = scmp.ne.s32.totalorder %s114, %s117
    %p126 = scmp.eq.s32.totalorder %s15, 1
    %p127 = por %p125, %p126
    %p128 = scmp.ne.s32.totalorder %s117, %s118
    %p129 = scmp.eq.s32.totalorder %s15, 0
    %p130 = por %p128, %p129
    %p131 = scmp.ne.s32.totalorder %s117, %s118
    %p132 = scmp.eq.s32.totalorder %s16, 1
    %p133 = por %p131, %p132
    %p135 = scmp.ne.s32.totalorder %s118, %s134
    %p136 = scmp.eq.s32.totalorder %s16, 0
    %p137 = por %p135, %p136
    %p138 = scmp.le.s32.totalorder 1, %s10
    %p139 = scmp.lt.s32.totalorder %s10, 3
    %p140 = pnand %p138, %p139
    %p141 = pneg %p140
    // Predicated region
    $region9: #{_lambda_.17} parent=5 // pred_check
      _
    $region10: #{_lambda_.17} parent=5 // pred_check_branch
      %143 = sbr.rel (%p140) target = $region12
    $region11: #{_lambda_.17} parent=5 // pred_region
      %s144 = ssub.s32 %s10, 1
      // Predicated region
      $region13: #{_lambda_.17} parent=11 // pred_check
        %p145 = pneg %p57
      $region14: #{_lambda_.17} parent=11 // pred_check_branch
        %147 = sbr.rel (%p145) target = $region16
      $region15: #{_lambda_.17} parent=11 // pred_region
        _
      $region16: #{_lambda_.17} parent=11 // pred_fallthru
        _
      // Predicated region
      $region17: #{_lambda_.17} parent=11 // pred_check
        %p148 = pneg %p78
      $region18: #{_lambda_.17} parent=11 // pred_check_branch
        %150 = sbr.rel (%p148) target = $region20
      $region19: #{_lambda_.17} parent=11 // pred_region
        _
      $region20: #{_lambda_.17} parent=11 // pred_fallthru
        _
    $region12: #{_lambda_.17} parent=5 // pred_fallthru
      _
    %p151 = scmp.lt.s32.totalorder %s10, 2
    // Predicated region
    $region21: #{_lambda_.17} parent=5 // pred_check
      %p152 = pneg %p151
    $region22: #{_lambda_.17} parent=5 // pred_check_branch
      %154 = sbr.rel (%p152) target = $region24
    $region23: #{_lambda_.17} parent=5 // pred_region
      // Predicated region
      $region25: #{_lambda_.17} parent=23 // pred_check
        %p155 = pneg %p30
      $region26: #{_lambda_.17} parent=23 // pred_check_branch
        %157 = sbr.rel (%p155) target = $region28
      $region27: #{_lambda_.17} parent=23 // pred_region
        %s158 = smul.u32 32, %s10
        %p159 = scmp.lt.s32.totalorder %s158, 63
        %s160 = scalar_select %p159, %s158, 63
        %s161 = smul.addr %s160, 4
        %s162 = scalar_lea.vmem %s0, %s161
        %s163 = smul.u32 32, %s10
      $region28: #{_lambda_.17} parent=23 // pred_fallthru
        _
      // Predicated region
      $region29: #{_lambda_.17} parent=23 // pred_check
        %p164 = pneg %p98
      $region30: #{_lambda_.17} parent=23 // pred_check_branch
        %166 = sbr.rel (%p164) target = $region32
      $region31: #{_lambda_.17} parent=23 // pred_region
        %s167 = smul.u32 32, %s10
        %p168 = scmp.lt.s32.totalorder %s167, 63
        %s169 = scalar_select %p168, %s167, 63
        %s170 = smul.addr %s169, 4
        %s171 = scalar_lea.vmem %s3, %s170
        %s172 = smul.u32 32, %s10
      $region32: #{_lambda_.17} parent=23 // pred_fallthru
        _
    $region24: #{_lambda_.17} parent=5 // pred_fallthru
      _
    %p173 = scmp.le.s32.totalorder 1, %s10
    %p174 = scmp.lt.s32.totalorder %s10, 3
    %p175 = pnand %p173, %p174
    %p176 = pneg %p175
    // Predicated region
    $region33: #{_lambda_.17} parent=5 // pred_check
      _
    $region34: #{_lambda_.17} parent=5 // pred_check_branch
      %178 = sbr.rel (%p175) target = $region36
    $region35: #{_lambda_.17} parent=5 // pred_region
      %s179 = ssub.s32 %s10, 1
      %s180 = smul.u32 32, %s15
      %p181 = scmp.lt.s32.totalorder %s180, 63
      %s182 = scalar_select %p181, %s180, 63
      %s183 = smul.addr %s182, 4
      %s184 = scalar_lea.vmem %s0, %s183
      %p185 = pneg %p36
      %p186 = pneg %p33
      %p187 = pneg %p57
      %p188 = pneg %p54
      %p189 = pneg %p78
      %p190 = pneg %p75
      %s191 = smul.u32 32, %s15
      %p192 = scmp.lt.s32.totalorder %s191, 63
      %s193 = scalar_select %p192, %s191, 63
      %s194 = smul.addr %s193, 4
      %s195 = scalar_lea.vmem %s3, %s194
      %p196 = pneg %p104
      %p197 = pneg %p101
      %p198 = pneg %p130
      %p199 = pneg %p127
      %s200 = smul.u32 32, %s15
      %p201 = scmp.lt.s32.totalorder %s200, 63
      %s202 = scalar_select %p201, %s200, 63
      %s203 = smul.addr %s202, 4
      %s204 = scalar_lea.vmem %s4, %s203
      %s205 = smul.u32 32, %s15
      %p206 = scmp.lt.s32.totalorder %s205, 63
      %s207 = scalar_select %p206, %s205, 63
      %s208 = smul.addr %s207, 4
      %s209 = scalar_lea.vmem %s0, %s208
      %s210 = smul.u32 32, %s15
      %s211 = smul.u32 32, %s15
      %p212 = scmp.lt.s32.totalorder %s211, 63
      %s213 = scalar_select %p212, %s211, 63
      %s214 = smul.addr %s213, 4
      %s215 = scalar_lea.vmem %s3, %s214
      %s216 = smul.u32 32, %s15
      %s217 = smul.u32 32, %s15
      %p218 = scmp.lt.s32.totalorder %s217, 63
      %s219 = scalar_select %p218, %s217, 63
      %s220 = smul.addr %s219, 4
      %s221 = scalar_lea.vmem %s4, %s220
      %s222 = smul.u32 32, %s15
      %v224 = vld [vmem:[%s209] sm:$0xf]
      %v225 = vld [vmem:[%s209 + $0x4] sm:$0xf]
      %v226 = vld [vmem:[%s209 + $0x8] sm:$0xf]
      %v227 = vld [vmem:[%s209 + $0xc] sm:$0xf]
      %v228 = vld [vmem:[%s209 + $0x10] sm:$0xf]
      %v229 = vld [vmem:[%s209 + $0x14] sm:$0xf]
      %v230 = vld [vmem:[%s209 + $0x18] sm:$0xf]
      %v231 = vld [vmem:[%s209 + $0x1c] sm:$0xf]
      %v232 = vld [vmem:[%s209 + $0x20] sm:$0xf]
      %v233 = vld [vmem:[%s209 + $0x24] sm:$0xf]
      %v234 = vld [vmem:[%s209 + $0x28] sm:$0xf]
      %v235 = vld [vmem:[%s209 + $0x2c] sm:$0xf]
      %v236 = vld [vmem:[%s209 + $0x30] sm:$0xf]
      %v237 = vld [vmem:[%s209 + $0x34] sm:$0xf]
      %v238 = vld [vmem:[%s209 + $0x38] sm:$0xf]
      %v239 = vld [vmem:[%s209 + $0x3c] sm:$0xf]
      %v240 = vld [vmem:[%s209 + $0x40] sm:$0xf]
      %v241 = vld [vmem:[%s209 + $0x44] sm:$0xf]
      %v242 = vld [vmem:[%s209 + $0x48] sm:$0xf]
      %v243 = vld [vmem:[%s209 + $0x4c] sm:$0xf]
      %v244 = vld [vmem:[%s209 + $0x50] sm:$0xf]
      %v245 = vld [vmem:[%s209 + $0x54] sm:$0xf]
      %v246 = vld [vmem:[%s209 + $0x58] sm:$0xf]
      %v247 = vld [vmem:[%s209 + $0x5c] sm:$0xf]
      %v248 = vld [vmem:[%s209 + $0x60] sm:$0xf]
      %v249 = vld [vmem:[%s209 + $0x64] sm:$0xf]
      %v250 = vld [vmem:[%s209 + $0x68] sm:$0xf]
      %v251 = vld [vmem:[%s209 + $0x6c] sm:$0xf]
      %v252 = vld [vmem:[%s209 + $0x70] sm:$0xf]
      %v253 = vld [vmem:[%s209 + $0x74] sm:$0xf]
      %v254 = vld [vmem:[%s209 + $0x78] sm:$0xf]
      %v255 = vld [vmem:[%s209 + $0x7c] sm:$0xf]
      %v256 = vld [vmem:[%s1] sm:$0xf]
      %v257 = vld [vmem:[%s1 + $0x4] sm:$0xf]
      %v258 = vld [vmem:[%s1 + $0x8] sm:$0xf]
      %v259 = vld [vmem:[%s1 + $0xc] sm:$0xf]
      %v260 = vld [vmem:[%s1 + $0x10] sm:$0xf]
      %v261 = vld [vmem:[%s1 + $0x14] sm:$0xf]
      %v262 = vld [vmem:[%s1 + $0x18] sm:$0xf]
      %v263 = vld [vmem:[%s1 + $0x1c] sm:$0xf]
      %v264 = vld [vmem:[%s1 + $0x20] sm:$0xf]
      %v265 = vld [vmem:[%s1 + $0x24] sm:$0xf]
      %v266 = vld [vmem:[%s1 + $0x28] sm:$0xf]
      %v267 = vld [vmem:[%s1 + $0x2c] sm:$0xf]
      %v268 = vld [vmem:[%s1 + $0x30] sm:$0xf]
      %v269 = vld [vmem:[%s1 + $0x34] sm:$0xf]
      %v270 = vld [vmem:[%s1 + $0x38] sm:$0xf]
      %v271 = vld [vmem:[%s1 + $0x3c] sm:$0xf]
      %v272 = vld [vmem:[%s2] sm:$0x1]
      %v274 = vlaneseq
      %v275 = vshrl.u32 %v274, 7
      %v276 = vsub.s32 0, %v275
      %v277 = vrot.slane %v272, %v276
      %v311 = vunpack.c.l.b16 %v224
      %v312 = vunpack.c.l.b16 %v225
      %v313 = vunpack.c.l.b16 %v226
      %v314 = vunpack.c.l.b16 %v227
      %v315 = vunpack.c.l.b16 %v228
      %v316 = vunpack.c.l.b16 %v229
      %v317 = vunpack.c.l.b16 %v230
      %v318 = vunpack.c.l.b16 %v231
      %v319 = vunpack.c.l.b16 %v232
      %v320 = vunpack.c.l.b16 %v233
      %v321 = vunpack.c.l.b16 %v234
      %v322 = vunpack.c.l.b16 %v235
      %v323 = vunpack.c.l.b16 %v236
      %v324 = vunpack.c.l.b16 %v237
      %v325 = vunpack.c.l.b16 %v238
      %v326 = vunpack.c.l.b16 %v239
      %v327 = vunpack.c.l.b16 %v240
      %v328 = vunpack.c.l.b16 %v241
      %v329 = vunpack.c.l.b16 %v242
      %v330 = vunpack.c.l.b16 %v243
      %v331 = vunpack.c.l.b16 %v244
      %v332 = vunpack.c.l.b16 %v245
      %v333 = vunpack.c.l.b16 %v246
      %v334 = vunpack.c.l.b16 %v247
      %v335 = vunpack.c.l.b16 %v248
      %v336 = vunpack.c.l.b16 %v249
      %v337 = vunpack.c.l.b16 %v250
      %v338 = vunpack.c.l.b16 %v251
      %v339 = vunpack.c.l.b16 %v252
      %v340 = vunpack.c.l.b16 %v253
      %v341 = vunpack.c.l.b16 %v254
      %v342 = vunpack.c.l.b16 %v255
      %v343 = vpack.c.b16 %v312, %v311
      %v344 = vpack.c.b16 %v314, %v313
      %v345 = vpack.c.b16 %v316, %v315
      %v346 = vpack.c.b16 %v318, %v317
      %v347 = vpack.c.b16 %v320, %v319
      %v348 = vpack.c.b16 %v322, %v321
      %v349 = vpack.c.b16 %v324, %v323
      %v350 = vpack.c.b16 %v326, %v325
      %v351 = vpack.c.b16 %v328, %v327
      %v352 = vpack.c.b16 %v330, %v329
      %v353 = vpack.c.b16 %v332, %v331
      %v354 = vpack.c.b16 %v334, %v333
      %v355 = vpack.c.b16 %v336, %v335
      %v356 = vpack.c.b16 %v338, %v337
      %v357 = vpack.c.b16 %v340, %v339
      %v358 = vpack.c.b16 %v342, %v341
      %v391 = vunpack.c.l.b16 %v256
      %v392 = vunpack.c.l.b16 %v257
      %v393 = vunpack.c.l.b16 %v258
      %v394 = vunpack.c.l.b16 %v259
      %v395 = vunpack.c.l.b16 %v260
      %v396 = vunpack.c.l.b16 %v261
      %v397 = vunpack.c.l.b16 %v262
      %v398 = vunpack.c.l.b16 %v263
      %v399 = vunpack.c.l.b16 %v264
      %v400 = vunpack.c.l.b16 %v265
      %v401 = vunpack.c.l.b16 %v266
      %v402 = vunpack.c.l.b16 %v267
      %v403 = vunpack.c.l.b16 %v268
      %v404 = vunpack.c.l.b16 %v269
      %v405 = vunpack.c.l.b16 %v270
      %v406 = vunpack.c.l.b16 %v271
      %v407 = vpack.c.b16 %v392, %v391
      %v408 = vpack.c.b16 %v394, %v393
      %v409 = vpack.c.b16 %v396, %v395
      %v410 = vpack.c.b16 %v398, %v397
      %v411 = vpack.c.b16 %v400, %v399
      %v412 = vpack.c.b16 %v402, %v401
      %v413 = vpack.c.b16 %v404, %v403
      %v414 = vpack.c.b16 %v406, %v405
      %423 = vmatprep.subr.bf16.mxu0 0
      %424 = vmatpush1.bf16.msra.mxu0 %v407
      %425 = vmatprep.subr.bf16.mxu0 0
      %426 = vmatpush1.bf16.msra.mxu0 %v408
      %427 = vmatprep.subr.bf16.mxu0 0
      %428 = vmatpush1.bf16.msra.mxu0 %v409
      %429 = vmatprep.subr.bf16.mxu0 0
      %430 = vmatpush1.bf16.msra.mxu0 %v410
      %431 = vmatprep.subr.bf16.mxu0 0
      %432 = vmatpush1.bf16.msra.mxu0 %v411
      %433 = vmatprep.subr.bf16.mxu0 0
      %434 = vmatpush1.bf16.msra.mxu0 %v412
      %435 = vmatprep.subr.bf16.mxu0 0
      %436 = vmatpush1.bf16.msra.mxu0 %v413
      %437 = vmatprep.subr.bf16.mxu0 0
      %438 = vmatpush1.bf16.msra.mxu0 %v414
      %439 = vmatprep.subr.bf16.mxu0 0
      %440 = vmatpush1.bf16.msra.mxu0 0
      %441 = vmatprep.subr.bf16.mxu0 0
      %442 = vmatpush1.bf16.msra.mxu0 0
      %443 = vmatprep.subr.bf16.mxu0 0
      %444 = vmatpush1.bf16.msra.mxu0 0
      %445 = vmatprep.subr.bf16.mxu0 0
      %446 = vmatpush1.bf16.msra.mxu0 0
      %447 = vmatprep.subr.bf16.mxu0 0
      %448 = vmatpush1.bf16.msra.mxu0 0
      %449 = vmatprep.subr.bf16.mxu0 0
      %450 = vmatpush1.bf16.msra.mxu0 0
      %451 = vmatprep.subr.bf16.mxu0 0
      %452 = vmatpush1.bf16.msra.mxu0 0
      %453 = vmatprep.subr.bf16.mxu0 0
      %454 = vmatpush1.bf16.msra.mxu0 0
      %455 = vmatprep.mubr.bf16.mxu0 0
      %456 = vmatmul.mubr.bf16.gmra.mrb[0].mxu0 %v343
      %v457 = vpop.f32.mrb[0].mxu0
      %v458 = vadd.f32 %v277, %v457
      %v459 = vpop.f32.mrb[0].mxu0
      %v460 = vpop.f32.mrb[0].mxu0
      %v461 = vadd.f32 %v277, %v460
      %v462 = vpop.f32.mrb[0].mxu0
      %463 = vmatprep.mubr.bf16.mxu0 0
      %464 = vmatmul.mubr.bf16.gmra.mrb[0].mxu0 %v344
      %v465 = vpop.f32.mrb[0].mxu0
      %v466 = vadd.f32 %v277, %v465
      %v467 = vpop.f32.mrb[0].mxu0
      %v468 = vpop.f32.mrb[0].mxu0
      %v469 = vadd.f32 %v277, %v468
      %v470 = vpop.f32.mrb[0].mxu0
      %471 = vmatprep.mubr.bf16.mxu0 0
      %472 = vmatmul.mubr.bf16.gmra.mrb[0].mxu0 %v345
      %v473 = vpop.f32.mrb[0].mxu0
      %v474 = vadd.f32 %v277, %v473
      %v475 = vpop.f32.mrb[0].mxu0
      %v476 = vpop.f32.mrb[0].mxu0
      %v477 = vadd.f32 %v277, %v476
      %v478 = vpop.f32.mrb[0].mxu0
      %479 = vmatprep.mubr.bf16.mxu0 0
      %480 = vmatmul.mubr.bf16.gmra.mrb[0].mxu0 %v346
      %v481 = vpop.f32.mrb[0].mxu0
      %v482 = vadd.f32 %v277, %v481
      %v483 = vpop.f32.mrb[0].mxu0
      %v484 = vpop.f32.mrb[0].mxu0
      %v485 = vadd.f32 %v277, %v484
      %v486 = vpop.f32.mrb[0].mxu0
      %487 = vmatprep.mubr.bf16.mxu0 0
      %488 = vmatmul.mubr.bf16.gmra.mrb[0].mxu0 %v347
      %v489 = vpop.f32.mrb[0].mxu0
      %v490 = vadd.f32 %v277, %v489
      %v491 = vpop.f32.mrb[0].mxu0
      %v492 = vpop.f32.mrb[0].mxu0
      %v493 = vadd.f32 %v277, %v492
      %v494 = vpop.f32.mrb[0].mxu0
      %495 = vmatprep.mubr.bf16.mxu0 0
      %496 = vmatmul.mubr.bf16.gmra.mrb[0].mxu0 %v348
      %v497 = vpop.f32.mrb[0].mxu0
      %v498 = vadd.f32 %v277, %v497
      %v499 = vpop.f32.mrb[0].mxu0
      %v500 = vpop.f32.mrb[0].mxu0
      %v501 = vadd.f32 %v277, %v500
      %v502 = vpop.f32.mrb[0].mxu0
      %503 = vmatprep.mubr.bf16.mxu0 0
      %504 = vmatmul.mubr.bf16.gmra.mrb[0].mxu0 %v349
      %v505 = vpop.f32.mrb[0].mxu0
      %v506 = vadd.f32 %v277, %v505
      %v507 = vpop.f32.mrb[0].mxu0
      %v508 = vpop.f32.mrb[0].mxu0
      %v509 = vadd.f32 %v277, %v508
      %v510 = vpop.f32.mrb[0].mxu0
      %511 = vmatprep.mubr.bf16.mxu0 0
      %512 = vmatmul.mubr.bf16.gmra.mrb[0].mxu0 %v350
      %v513 = vpop.f32.mrb[0].mxu0
      %v514 = vadd.f32 %v277, %v513
      %v515 = vpop.f32.mrb[0].mxu0
      %v516 = vpop.f32.mrb[0].mxu0
      %v517 = vadd.f32 %v277, %v516
      %v518 = vpop.f32.mrb[0].mxu0
      %519 = vmatprep.mubr.bf16.mxu0 0
      %520 = vmatmul.mubr.bf16.gmra.mrb[0].mxu0 %v351
      %v521 = vpop.f32.mrb[0].mxu0
      %v522 = vadd.f32 %v277, %v521
      %v523 = vpop.f32.mrb[0].mxu0
      %v524 = vpop.f32.mrb[0].mxu0
      %v525 = vadd.f32 %v277, %v524
      %v526 = vpop.f32.mrb[0].mxu0
      %527 = vmatprep.mubr.bf16.mxu0 0
      %528 = vmatmul.mubr.bf16.gmra.mrb[0].mxu0 %v352
      %v529 = vpop.f32.mrb[0].mxu0
      %v530 = vadd.f32 %v277, %v529
      %v531 = vpop.f32.mrb[0].mxu0
      %v532 = vpop.f32.mrb[0].mxu0
      %v533 = vadd.f32 %v277, %v532
      %v534 = vpop.f32.mrb[0].mxu0
      %535 = vmatprep.mubr.bf16.mxu0 0
      %536 = vmatmul.mubr.bf16.gmra.mrb[0].mxu0 %v353
      %v537 = vpop.f32.mrb[0].mxu0
      %v538 = vadd.f32 %v277, %v537
      %v539 = vpop.f32.mrb[0].mxu0
      %v540 = vpop.f32.mrb[0].mxu0
      %v541 = vadd.f32 %v277, %v540
      %v542 = vpop.f32.mrb[0].mxu0
      %543 = vmatprep.mubr.bf16.mxu0 0
      %544 = vmatmul.mubr.bf16.gmra.mrb[0].mxu0 %v354
      %v545 = vpop.f32.mrb[0].mxu0
      %v546 = vadd.f32 %v277, %v545
      %v547 = vpop.f32.mrb[0].mxu0
      %v548 = vpop.f32.mrb[0].mxu0
      %v549 = vadd.f32 %v277, %v548
      %v550 = vpop.f32.mrb[0].mxu0
      %551 = vmatprep.mubr.bf16.mxu0 0
      %552 = vmatmul.mubr.bf16.gmra.mrb[0].mxu0 %v355
      %v553 = vpop.f32.mrb[0].mxu0
      %v554 = vadd.f32 %v277, %v553
      %v555 = vpop.f32.mrb[0].mxu0
      %v556 = vpop.f32.mrb[0].mxu0
      %v557 = vadd.f32 %v277, %v556
      %v558 = vpop.f32.mrb[0].mxu0
      %559 = vmatprep.mubr.bf16.mxu0 0
      %560 = vmatmul.mubr.bf16.gmra.mrb[0].mxu0 %v356
      %v561 = vpop.f32.mrb[0].mxu0
      %v562 = vadd.f32 %v277, %v561
      %v563 = vpop.f32.mrb[0].mxu0
      %v564 = vpop.f32.mrb[0].mxu0
      %v565 = vadd.f32 %v277, %v564
      %v566 = vpop.f32.mrb[0].mxu0
      %567 = vmatprep.mubr.bf16.mxu0 0
      %568 = vmatmul.mubr.bf16.gmra.mrb[0].mxu0 %v357
      %v569 = vpop.f32.mrb[0].mxu0
      %v570 = vadd.f32 %v277, %v569
      %v571 = vpop.f32.mrb[0].mxu0
      %v572 = vpop.f32.mrb[0].mxu0
      %v573 = vadd.f32 %v277, %v572
      %v574 = vpop.f32.mrb[0].mxu0
      %575 = vmatprep.mubr.bf16.mxu0 0
      %576 = vmatmul.mubr.bf16.gmra.mrb[0].mxu0 %v358
      %v577 = vpop.f32.mrb[0].mxu0
      %v578 = vadd.f32 %v277, %v577
      %v579 = vpop.f32.mrb[0].mxu0
      %v580 = vpop.f32.mrb[0].mxu0
      %v581 = vadd.f32 %v277, %v580
      %v582 = vpop.f32.mrb[0].mxu0
      %583 = vdwg.mxu0
      %v584 = vld [vmem:[%s215] sm:$0xf]
      %v585 = vld [vmem:[%s215 + $0x4] sm:$0xf]
      %v586 = vld [vmem:[%s215 + $0x8] sm:$0xf]
      %v587 = vld [vmem:[%s215 + $0xc] sm:$0xf]
      %v588 = vld [vmem:[%s215 + $0x10] sm:$0xf]
      %v589 = vld [vmem:[%s215 + $0x14] sm:$0xf]
      %v590 = vld [vmem:[%s215 + $0x18] sm:$0xf]
      %v591 = vld [vmem:[%s215 + $0x1c] sm:$0xf]
      %v592 = vld [vmem:[%s215 + $0x20] sm:$0xf]
      %v593 = vld [vmem:[%s215 + $0x24] sm:$0xf]
      %v594 = vld [vmem:[%s215 + $0x28] sm:$0xf]
      %v595 = vld [vmem:[%s215 + $0x2c] sm:$0xf]
      %v596 = vld [vmem:[%s215 + $0x30] sm:$0xf]
      %v597 = vld [vmem:[%s215 + $0x34] sm:$0xf]
      %v598 = vld [vmem:[%s215 + $0x38] sm:$0xf]
      %v599 = vld [vmem:[%s215 + $0x3c] sm:$0xf]
      %v600 = vld [vmem:[%s215 + $0x40] sm:$0xf]
      %v601 = vld [vmem:[%s215 + $0x44] sm:$0xf]
      %v602 = vld [vmem:[%s215 + $0x48] sm:$0xf]
      %v603 = vld [vmem:[%s215 + $0x4c] sm:$0xf]
      %v604 = vld [vmem:[%s215 + $0x50] sm:$0xf]
      %v605 = vld [vmem:[%s215 + $0x54] sm:$0xf]
      %v606 = vld [vmem:[%s215 + $0x58] sm:$0xf]
      %v607 = vld [vmem:[%s215 + $0x5c] sm:$0xf]
      %v608 = vld [vmem:[%s215 + $0x60] sm:$0xf]
      %v609 = vld [vmem:[%s215 + $0x64] sm:$0xf]
      %v610 = vld [vmem:[%s215 + $0x68] sm:$0xf]
      %v611 = vld [vmem:[%s215 + $0x6c] sm:$0xf]
      %v612 = vld [vmem:[%s215 + $0x70] sm:$0xf]
      %v613 = vld [vmem:[%s215 + $0x74] sm:$0xf]
      %v614 = vld [vmem:[%s215 + $0x78] sm:$0xf]
      %v615 = vld [vmem:[%s215 + $0x7c] sm:$0xf]
      %v616 = vunpack.c.l.bf16 %v584
      %v617 = vunpack.c.l.bf16 %v585
      %v618 = vunpack.c.l.bf16 %v586
      %v619 = vunpack.c.l.bf16 %v587
      %v620 = vunpack.c.l.bf16 %v588
      %v621 = vunpack.c.l.bf16 %v589
      %v622 = vunpack.c.l.bf16 %v590
      %v623 = vunpack.c.l.bf16 %v591
      %v624 = vunpack.c.l.bf16 %v592
      %v625 = vunpack.c.l.bf16 %v593
      %v626 = vunpack.c.l.bf16 %v594
      %v627 = vunpack.c.l.bf16 %v595
      %v628 = vunpack.c.l.bf16 %v596
      %v629 = vunpack.c.l.bf16 %v597
      %v630 = vunpack.c.l.bf16 %v598
      %v631 = vunpack.c.l.bf16 %v599
      %v632 = vunpack.c.l.bf16 %v600
      %v633 = vunpack.c.l.bf16 %v601
      %v634 = vunpack.c.l.bf16 %v602
      %v635 = vunpack.c.l.bf16 %v603
      %v636 = vunpack.c.l.bf16 %v604
      %v637 = vunpack.c.l.bf16 %v605
      %v638 = vunpack.c.l.bf16 %v606
      %v639 = vunpack.c.l.bf16 %v607
      %v640 = vunpack.c.l.bf16 %v608
      %v641 = vunpack.c.l.bf16 %v609
      %v642 = vunpack.c.l.bf16 %v610
      %v643 = vunpack.c.l.bf16 %v611
      %v644 = vunpack.c.l.bf16 %v612
      %v645 = vunpack.c.l.bf16 %v613
      %v646 = vunpack.c.l.bf16 %v614
      %v647 = vunpack.c.l.bf16 %v615
      %v648 = vadd.f32 %v458, %v616
      %v649 = vadd.f32 %v461, %v617
      %v650 = vadd.f32 %v466, %v618
      %v651 = vadd.f32 %v469, %v619
      %v652 = vadd.f32 %v474, %v620
      %v653 = vadd.f32 %v477, %v621
      %v654 = vadd.f32 %v482, %v622
      %v655 = vadd.f32 %v485, %v623
      %v656 = vadd.f32 %v490, %v624
      %v657 = vadd.f32 %v493, %v625
      %v658 = vadd.f32 %v498, %v626
      %v659 = vadd.f32 %v501, %v627
      %v660 = vadd.f32 %v506, %v628
      %v661 = vadd.f32 %v509, %v629
      %v662 = vadd.f32 %v514, %v630
      %v663 = vadd.f32 %v517, %v631
      %v664 = vadd.f32 %v522, %v632
      %v665 = vadd.f32 %v525, %v633
      %v666 = vadd.f32 %v530, %v634
      %v667 = vadd.f32 %v533, %v635
      %v668 = vadd.f32 %v538, %v636
      %v669 = vadd.f32 %v541, %v637
      %v670 = vadd.f32 %v546, %v638
      %v671 = vadd.f32 %v549, %v639
      %v672 = vadd.f32 %v554, %v640
      %v673 = vadd.f32 %v557, %v641
      %v674 = vadd.f32 %v562, %v642
      %v675 = vadd.f32 %v565, %v643
      %v676 = vadd.f32 %v570, %v644
      %v677 = vadd.f32 %v573, %v645
      %v678 = vadd.f32 %v578, %v646
      %v679 = vadd.f32 %v581, %v647
      %v680 = vmax.f32 %v648, 0.0
      %v681 = vmax.f32 %v649, 0.0
      %v682 = vmax.f32 %v650, 0.0
      %v683 = vmax.f32 %v651, 0.0
      %v684 = vmax.f32 %v652, 0.0
      %v685 = vmax.f32 %v653, 0.0
      %v686 = vmax.f32 %v654, 0.0
      %v687 = vmax.f32 %v655, 0.0
      %v688 = vmax.f32 %v656, 0.0
      %v689 = vmax.f32 %v657, 0.0
      %v690 = vmax.f32 %v658, 0.0
      %v691 = vmax.f32 %v659, 0.0
      %v692 = vmax.f32 %v660, 0.0
      %v693 = vmax.f32 %v661, 0.0
      %v694 = vmax.f32 %v662, 0.0
      %v695 = vmax.f32 %v663, 0.0
      %v696 = vmax.f32 %v664, 0.0
      %v697 = vmax.f32 %v665, 0.0
      %v698 = vmax.f32 %v666, 0.0
      %v699 = vmax.f32 %v667, 0.0
      %v700 = vmax.f32 %v668, 0.0
      %v701 = vmax.f32 %v669, 0.0
      %v702 = vmax.f32 %v670, 0.0
      %v703 = vmax.f32 %v671, 0.0
      %v704 = vmax.f32 %v672, 0.0
      %v705 = vmax.f32 %v673, 0.0
      %v706 = vmax.f32 %v674, 0.0
      %v707 = vmax.f32 %v675, 0.0
      %v708 = vmax.f32 %v676, 0.0
      %v709 = vmax.f32 %v677, 0.0
      %v710 = vmax.f32 %v678, 0.0
      %v711 = vmax.f32 %v679, 0.0
      %v712 = vpack.c.bf16 %v681, %v680
      %v713 = vpack.c.bf16 %v683, %v682
      %v714 = vpack.c.bf16 %v685, %v684
      %v715 = vpack.c.bf16 %v687, %v686
      %v716 = vpack.c.bf16 %v689, %v688
      %v717 = vpack.c.bf16 %v691, %v690
      %v718 = vpack.c.bf16 %v693, %v692
      %v719 = vpack.c.bf16 %v695, %v694
      %v720 = vpack.c.bf16 %v697, %v696
      %v721 = vpack.c.bf16 %v699, %v698
      %v722 = vpack.c.bf16 %v701, %v700
      %v723 = vpack.c.bf16 %v703, %v702
      %v724 = vpack.c.bf16 %v705, %v704
      %v725 = vpack.c.bf16 %v707, %v706
      %v726 = vpack.c.bf16 %v709, %v708
      %v727 = vpack.c.bf16 %v711, %v710
      %v744 = vunpack.c.l.b16 %v712
      %v745 = vunpack.c.h.b16 %v712
      %v746 = vunpack.c.l.b16 %v713
      %v747 = vunpack.c.h.b16 %v713
      %v748 = vunpack.c.l.b16 %v714
      %v749 = vunpack.c.h.b16 %v714
      %v750 = vunpack.c.l.b16 %v715
      %v751 = vunpack.c.h.b16 %v715
      %v752 = vunpack.c.l.b16 %v716
      %v753 = vunpack.c.h.b16 %v716
      %v754 = vunpack.c.l.b16 %v717
      %v755 = vunpack.c.h.b16 %v717
      %v756 = vunpack.c.l.b16 %v718
      %v757 = vunpack.c.h.b16 %v718
      %v758 = vunpack.c.l.b16 %v719
      %v759 = vunpack.c.h.b16 %v719
      %v760 = vunpack.c.l.b16 %v720
      %v761 = vunpack.c.h.b16 %v720
      %v762 = vunpack.c.l.b16 %v721
      %v763 = vunpack.c.h.b16 %v721
      %v764 = vunpack.c.l.b16 %v722
      %v765 = vunpack.c.h.b16 %v722
      %v766 = vunpack.c.l.b16 %v723
      %v767 = vunpack.c.h.b16 %v723
      %v768 = vunpack.c.l.b16 %v724
      %v769 = vunpack.c.h.b16 %v724
      %v770 = vunpack.c.l.b16 %v725
      %v771 = vunpack.c.h.b16 %v725
      %v772 = vunpack.c.l.b16 %v726
      %v773 = vunpack.c.h.b16 %v726
      %v774 = vunpack.c.l.b16 %v727
      %v775 = vunpack.c.h.b16 %v727
      %v776 = vpack.c.b16 %v744, %v744
      %v777 = vpack.c.b16 %v745, %v745
      %v778 = vpack.c.b16 %v746, %v746
      %v779 = vpack.c.b16 %v747, %v747
      %v780 = vpack.c.b16 %v748, %v748
      %v781 = vpack.c.b16 %v749, %v749
      %v782 = vpack.c.b16 %v750, %v750
      %v783 = vpack.c.b16 %v751, %v751
      %v784 = vpack.c.b16 %v752, %v752
      %v785 = vpack.c.b16 %v753, %v753
      %v786 = vpack.c.b16 %v754, %v754
      %v787 = vpack.c.b16 %v755, %v755
      %v788 = vpack.c.b16 %v756, %v756
      %v789 = vpack.c.b16 %v757, %v757
      %v790 = vpack.c.b16 %v758, %v758
      %v791 = vpack.c.b16 %v759, %v759
      %v792 = vpack.c.b16 %v760, %v760
      %v793 = vpack.c.b16 %v761, %v761
      %v794 = vpack.c.b16 %v762, %v762
      %v795 = vpack.c.b16 %v763, %v763
      %v796 = vpack.c.b16 %v764, %v764
      %v797 = vpack.c.b16 %v765, %v765
      %v798 = vpack.c.b16 %v766, %v766
      %v799 = vpack.c.b16 %v767, %v767
      %v800 = vpack.c.b16 %v768, %v768
      %v801 = vpack.c.b16 %v769, %v769
      %v802 = vpack.c.b16 %v770, %v770
      %v803 = vpack.c.b16 %v771, %v771
      %v804 = vpack.c.b16 %v772, %v772
      %v805 = vpack.c.b16 %v773, %v773
      %v806 = vpack.c.b16 %v774, %v774
      %v807 = vpack.c.b16 %v775, %v775
      %840 = vst [vmem:[%s221] sm:$0xf] %v776
      %841 = vst [vmem:[%s221 + $0x4] sm:$0xf] %v777
      %842 = vst [vmem:[%s221 + $0x8] sm:$0xf] %v778
      %843 = vst [vmem:[%s221 + $0xc] sm:$0xf] %v779
      %844 = vst [vmem:[%s221 + $0x10] sm:$0xf] %v780
      %845 = vst [vmem:[%s221 + $0x14] sm:$0xf] %v781
      %846 = vst [vmem:[%s221 + $0x18] sm:$0xf] %v782
      %847 = vst [vmem:[%s221 + $0x1c] sm:$0xf] %v783
      %848 = vst [vmem:[%s221 + $0x20] sm:$0xf] %v784
      %849 = vst [vmem:[%s221 + $0x24] sm:$0xf] %v785
      %850 = vst [vmem:[%s221 + $0x28] sm:$0xf] %v786
      %851 = vst [vmem:[%s221 + $0x2c] sm:$0xf] %v787
      %852 = vst [vmem:[%s221 + $0x30] sm:$0xf] %v788
      %853 = vst [vmem:[%s221 + $0x34] sm:$0xf] %v789
      %854 = vst [vmem:[%s221 + $0x38] sm:$0xf] %v790
      %855 = vst [vmem:[%s221 + $0x3c] sm:$0xf] %v791
      %856 = vst [vmem:[%s221 + $0x40] sm:$0xf] %v792
      %857 = vst [vmem:[%s221 + $0x44] sm:$0xf] %v793
      %858 = vst [vmem:[%s221 + $0x48] sm:$0xf] %v794
      %859 = vst [vmem:[%s221 + $0x4c] sm:$0xf] %v795
      %860 = vst [vmem:[%s221 + $0x50] sm:$0xf] %v796
      %861 = vst [vmem:[%s221 + $0x54] sm:$0xf] %v797
      %862 = vst [vmem:[%s221 + $0x58] sm:$0xf] %v798
      %863 = vst [vmem:[%s221 + $0x5c] sm:$0xf] %v799
      %864 = vst [vmem:[%s221 + $0x60] sm:$0xf] %v800
      %865 = vst [vmem:[%s221 + $0x64] sm:$0xf] %v801
      %866 = vst [vmem:[%s221 + $0x68] sm:$0xf] %v802
      %867 = vst [vmem:[%s221 + $0x6c] sm:$0xf] %v803
      %868 = vst [vmem:[%s221 + $0x70] sm:$0xf] %v804
      %869 = vst [vmem:[%s221 + $0x74] sm:$0xf] %v805
      %870 = vst [vmem:[%s221 + $0x78] sm:$0xf] %v806
      %871 = vst [vmem:[%s221 + $0x7c] sm:$0xf] %v807
      %s872 = smul.u32 32, %s15
      %p873 = scmp.lt.s32.totalorder %s872, 63
      %s874 = scalar_select %p873, %s872, 63
      %s875 = smul.addr %s874, 4
      %s876 = scalar_lea.vmem %s4, %s875
      // Predicated region
      $region37: #{_lambda_.17} parent=35 // pred_check
        %p877 = pneg %p127
      $region38: #{_lambda_.17} parent=35 // pred_check_branch
        %879 = sbr.rel (%p877) target = $region40
      $region39: #{_lambda_.17} parent=35 // pred_region
        %s880 = smul.u32 32, %s15
      $region40: #{_lambda_.17} parent=35 // pred_fallthru
        _
    $region36: #{_lambda_.17} parent=5 // pred_fallthru
      _
    %p881 = scmp.le.s32.totalorder 2, %s10
    // Predicated region
    $region41: #{_lambda_.17} parent=5 // pred_check
      %p882 = pneg %p881
    $region42: #{_lambda_.17} parent=5 // pred_check_branch
      %884 = sbr.rel (%p882) target = $region44
    $region43: #{_lambda_.17} parent=5 // pred_region
      %s885 = ssub.s32 %s10, 2
      // Predicated region
      $region45: #{_lambda_.17} parent=43 // pred_check
        %p886 = pneg %p133
      $region46: #{_lambda_.17} parent=43 // pred_check_branch
        %888 = sbr.rel (%p886) target = $region48
      $region47: #{_lambda_.17} parent=43 // pred_region
        %s889 = smul.u32 32, %s16
        %p890 = scmp.lt.s32.totalorder %s889, 63
        %s891 = scalar_select %p890, %s889, 63
        %s892 = smul.addr %s891, 4
        %s893 = scalar_lea.vmem %s4, %s892
      $region48: #{_lambda_.17} parent=43 // pred_fallthru
        _
    $region44: #{_lambda_.17} parent=5 // pred_fallthru
      _
  $region6: #{_lambda_.17} parent=0 // loop_footer
    %s14 = sadd.s32 1, %s10
  $region7: #{_lambda_.17} parent=0 // loop_footer_branch
    %9 = sbr.rel target = $region3
  $region8: #{_lambda_.17} parent=0 // loop_exit
    _

// kernel: _lambda_.18
$region0: #{_lambda_.18}
  #allocation0 [shape = 'u32[]', space=smem, size = 0x4, offset = 0x4, fixed_abs, tag = 'smem constant byte address 0x4 - core index']
  #allocation1 [shape = 'u32[144,128]{1,0:T(1,128)}', space=vmem, size = 0x12000, scoped, tag = 'internal scratch']
  %s0 = inlined_call_operand.vmem [shape: bf16[128,128], index: 0, kind: input, shape index: {}]
  %s1 = inlined_call_operand.vmem [shape: bf16[128,128], index: 1, kind: input, shape index: {}]
  %s2 = inlined_call_operand.vmem [shape: f32[1,128], index: 2, kind: input, shape index: {}]
  %s3 = inlined_call_operand.vmem [shape: bf16[128,128], index: 3, kind: output, shape index: {}]
  %s4 = sld [smem:[#allocation0]]
  $region45: #{_lambda_.18} parent=0
    _
  %s6 = ssub.s32 1, %s4
  %s7 = scalar_select 0, %s6, %s4
  loop: start=0, step=1, limit=4
  $region2: #{_lambda_.18} parent=0 // loop_pre_header
    _
  $region3: #{_lambda_.18} parent=0 // loop_header
    %s9 = sphi 0, %s13
    %p10 = scmp.ge.s32.totalorder %s9, 4
    %s19 = sphi 0, %s21
    %s22 = sphi 0, %s19
    %s23 = sphi 0, %s22
    %s39 = sphi 0, %s23
    %s43 = sphi 0, %s43
    %s45 = sphi 0, %s43
    %s46 = sphi 0, %s45
    %s60 = sphi 0, %s46
    %s64 = sphi 0, %s64
    %s66 = sphi 0, %s64
    %s67 = sphi 0, %s66
    %s81 = sphi 0, %s67
    %s87 = sphi 0, %s89
    %s90 = sphi 0, %s87
    %s91 = sphi 0, %s90
    %s107 = sphi 0, %s91
  $region4: #{_lambda_.18} parent=0 // loop_header_branch
    %12 = sbr.rel (%p10) target = $region8
  $region5: #{_lambda_.18} parent=0 // loop_body
    %s14 = ssub.s32 %s9, 1
    %s15 = ssub.s32 %s9, 2
    %s16 = sadd.s32 %s9, 1
    %s17 = ssub.s32 %s9, %s16
    %p18 = scmp.eq.s32.totalorder %s17, 0
    %s20 = sadd.s32 %s19, 1
    %s21 = scalar_select %p18, %s19, %s20
    %p24 = pneg %p18
    %p25 = scmp.eq.s32.totalorder %s9, 1
    %p26 = por %p24, %p25
    %p27 = scmp.ne.s32.totalorder %s19, %s22
    %p28 = scmp.eq.s32.totalorder %s9, 0
    %p29 = por %p27, %p28
    %p30 = scmp.ne.s32.totalorder %s19, %s22
    %p31 = scmp.eq.s32.totalorder %s14, 1
    %p32 = por %p30, %p31
    %p33 = scmp.ne.s32.totalorder %s22, %s23
    %p34 = scmp.eq.s32.totalorder %s14, 0
    %p35 = por %p33, %p34
    %p36 = scmp.ne.s32.totalorder %s22, %s23
    %p37 = scmp.eq.s32.totalorder %s15, 1
    %p38 = por %p36, %p37
    %p40 = scmp.ne.s32.totalorder %s23, %s39
    %p41 = scmp.eq.s32.totalorder %s15, 0
    %p42 = por %p40, %p41
    %s44 = sadd.s32 %s43, 1
    %p47 = scmp.eq.s32.totalorder %s9, 1
    %p48 = scmp.ne.s32.totalorder %s43, %s45
    %p49 = scmp.eq.s32.totalorder %s9, 0
    %p50 = por %p48, %p49
    %p51 = scmp.ne.s32.totalorder %s43, %s45
    %p52 = scmp.eq.s32.totalorder %s14, 1
    %p53 = por %p51, %p52
    %p54 = scmp.ne.s32.totalorder %s45, %s46
    %p55 = scmp.eq.s32.totalorder %s14, 0
    %p56 = por %p54, %p55
    %p57 = scmp.ne.s32.totalorder %s45, %s46
    %p58 = scmp.eq.s32.totalorder %s15, 1
    %p59 = por %p57, %p58
    %p61 = scmp.ne.s32.totalorder %s46, %s60
    %p62 = scmp.eq.s32.totalorder %s15, 0
    %p63 = por %p61, %p62
    %s65 = sadd.s32 %s64, 1
    %p68 = scmp.eq.s32.totalorder %s9, 1
    %p69 = scmp.ne.s32.totalorder %s64, %s66
    %p70 = scmp.eq.s32.totalorder %s9, 0
    %p71 = por %p69, %p70
    %p72 = scmp.ne.s32.totalorder %s64, %s66
    %p73 = scmp.eq.s32.totalorder %s14, 1
    %p74 = por %p72, %p73
    %p75 = scmp.ne.s32.totalorder %s66, %s67
    %p76 = scmp.eq.s32.totalorder %s14, 0
    %p77 = por %p75, %p76
    %p78 = scmp.ne.s32.totalorder %s66, %s67
    %p79 = scmp.eq.s32.totalorder %s15, 1
    %p80 = por %p78, %p79
    %p82 = scmp.ne.s32.totalorder %s67, %s81
    %p83 = scmp.eq.s32.totalorder %s15, 0
    %p84 = por %p82, %p83
    %s85 = ssub.s32 %s9, %s16
    %p86 = scmp.eq.s32.totalorder %s85, 0
    %s88 = sadd.s32 %s87, 1
    %s89 = scalar_select %p86, %s87, %s88
    %p92 = pneg %p86
    %p93 = scmp.eq.s32.totalorder %s9, 1
    %p94 = por %p92, %p93
    %p95 = scmp.ne.s32.totalorder %s87, %s90
    %p96 = scmp.eq.s32.totalorder %s9, 0
    %p97 = por %p95, %p96
    %p98 = scmp.ne.s32.totalorder %s87, %s90
    %p99 = scmp.eq.s32.totalorder %s14, 1
    %p100 = por %p98, %p99
    %p101 = scmp.ne.s32.totalorder %s90, %s91
    %p102 = scmp.eq.s32.totalorder %s14, 0
    %p103 = por %p101, %p102
    %p104 = scmp.ne.s32.totalorder %s90, %s91
    %p105 = scmp.eq.s32.totalorder %s15, 1
    %p106 = por %p104, %p105
    %p108 = scmp.ne.s32.totalorder %s91, %s107
    %p109 = scmp.eq.s32.totalorder %s15, 0
    %p110 = por %p108, %p109
    %p111 = scmp.le.s32.totalorder 1, %s9
    %p112 = scmp.lt.s32.totalorder %s9, 3
    %p113 = pnand %p111, %p112
    %p114 = pneg %p113
    // Predicated region
    $region9: #{_lambda_.18} parent=5 // pred_check
      _
    $region10: #{_lambda_.18} parent=5 // pred_check_branch
      %116 = sbr.rel (%p113) target = $region12
    $region11: #{_lambda_.18} parent=5 // pred_region
      %s117 = ssub.s32 %s9, 1
      // Predicated region
      $region13: #{_lambda_.18} parent=11 // pred_check
        %p118 = pneg %p56
      $region14: #{_lambda_.18} parent=11 // pred_check_branch
        %120 = sbr.rel (%p118) target = $region16
      $region15: #{_lambda_.18} parent=11 // pred_region
        _
      $region16: #{_lambda_.18} parent=11 // pred_fallthru
        _
      // Predicated region
      $region17: #{_lambda_.18} parent=11 // pred_check
        %p121 = pneg %p77
      $region18: #{_lambda_.18} parent=11 // pred_check_branch
        %123 = sbr.rel (%p121) target = $region20
      $region19: #{_lambda_.18} parent=11 // pred_region
        _
      $region20: #{_lambda_.18} parent=11 // pred_fallthru
        _
    $region12: #{_lambda_.18} parent=5 // pred_fallthru
      _
    %p124 = scmp.lt.s32.totalorder %s9, 2
    // Predicated region
    $region21: #{_lambda_.18} parent=5 // pred_check
      %p125 = pneg %p124
    $region22: #{_lambda_.18} parent=5 // pred_check_branch
      %127 = sbr.rel (%p125) target = $region24
    $region23: #{_lambda_.18} parent=5 // pred_region
      // Predicated region
      $region25: #{_lambda_.18} parent=23 // pred_check
        %p128 = pneg %p29
      $region26: #{_lambda_.18} parent=23 // pred_check_branch
        %130 = sbr.rel (%p128) target = $region28
      $region27: #{_lambda_.18} parent=23 // pred_region
        %s131 = smul.u32 8, %s9
        %p132 = scmp.lt.s32.totalorder %s131, 15
        %s133 = scalar_select %p132, %s131, 15
        %s134 = smul.addr %s133, 4
        %s135 = scalar_lea.vmem %s0, %s134
        %s136 = smul.u32 8, %s9
      $region28: #{_lambda_.18} parent=23 // pred_fallthru
        _
    $region24: #{_lambda_.18} parent=5 // pred_fallthru
      _
    %p137 = scmp.le.s32.totalorder 1, %s9
    %p138 = scmp.lt.s32.totalorder %s9, 3
    %p139 = pnand %p137, %p138
    %p140 = pneg %p139
    // Predicated region
    $region29: #{_lambda_.18} parent=5 // pred_check
      _
    $region30: #{_lambda_.18} parent=5 // pred_check_branch
      %142 = sbr.rel (%p139) target = $region32
    $region31: #{_lambda_.18} parent=5 // pred_region
      %s143 = ssub.s32 %s9, 1
      %s144 = smul.u32 8, %s14
      %p145 = scmp.lt.s32.totalorder %s144, 15
      %s146 = scalar_select %p145, %s144, 15
      %s147 = smul.addr %s146, 4
      %s148 = scalar_lea.vmem %s0, %s147
      %p149 = pneg %p35
      %p150 = pneg %p32
      %p151 = pneg %p56
      %p152 = pneg %p53
      %p153 = pneg %p77
      %p154 = pneg %p74
      %p155 = pneg %p103
      %p156 = pneg %p100
      %s157 = smul.u32 8, %s14
      %p158 = scmp.lt.s32.totalorder %s157, 15
      %s159 = scalar_select %p158, %s157, 15
      %s160 = smul.addr %s159, 4
      %s161 = scalar_lea.vmem %s3, %s160
      %s162 = smul.u32 8, %s14
      %p163 = scmp.lt.s32.totalorder %s162, 15
      %s164 = scalar_select %p163, %s162, 15
      %s165 = smul.addr %s164, 4
      %s166 = scalar_lea.vmem %s0, %s165
      %s167 = smul.u32 8, %s14
      %s168 = smul.u32 8, %s14
      %p169 = scmp.lt.s32.totalorder %s168, 15
      %s170 = scalar_select %p169, %s168, 15
      %s171 = smul.addr %s170, 4
      %s172 = scalar_lea.vmem %s3, %s171
      %s173 = smul.u32 8, %s14
      %v175 = vld [vmem:[%s166] sm:$0xf]
      %v176 = vld [vmem:[%s166 + $0x4] sm:$0xf]
      %v177 = vld [vmem:[%s166 + $0x8] sm:$0xf]
      %v178 = vld [vmem:[%s166 + $0xc] sm:$0xf]
      %v179 = vld [vmem:[%s166 + $0x10] sm:$0xf]
      %v180 = vld [vmem:[%s166 + $0x14] sm:$0xf]
      %v181 = vld [vmem:[%s166 + $0x18] sm:$0xf]
      %v182 = vld [vmem:[%s166 + $0x1c] sm:$0xf]
      %v183 = vld [vmem:[%s1] sm:$0xf]
      %v184 = vld [vmem:[%s1 + $0x4] sm:$0xf]
      %v185 = vld [vmem:[%s1 + $0x8] sm:$0xf]
      %v186 = vld [vmem:[%s1 + $0xc] sm:$0xf]
      %v187 = vld [vmem:[%s1 + $0x10] sm:$0xf]
      %v188 = vld [vmem:[%s1 + $0x14] sm:$0xf]
      %v189 = vld [vmem:[%s1 + $0x18] sm:$0xf]
      %v190 = vld [vmem:[%s1 + $0x1c] sm:$0xf]
      %v191 = vld [vmem:[%s1 + $0x20] sm:$0xf]
      %v192 = vld [vmem:[%s1 + $0x24] sm:$0xf]
      %v193 = vld [vmem:[%s1 + $0x28] sm:$0xf]
      %v194 = vld [vmem:[%s1 + $0x2c] sm:$0xf]
      %v195 = vld [vmem:[%s1 + $0x30] sm:$0xf]
      %v196 = vld [vmem:[%s1 + $0x34] sm:$0xf]
      %v197 = vld [vmem:[%s1 + $0x38] sm:$0xf]
      %v198 = vld [vmem:[%s1 + $0x3c] sm:$0xf]
      %v199 = vld [vmem:[%s2] sm:$0x1]
      %v201 = vlaneseq
      %v202 = vshrl.u32 %v201, 7
      %v203 = vsub.s32 0, %v202
      %v204 = vrot.slane %v199, %v203
      %v214 = vunpack.c.l.b16 %v175
      %v215 = vunpack.c.l.b16 %v176
      %v216 = vunpack.c.l.b16 %v177
      %v217 = vunpack.c.l.b16 %v178
      %v218 = vunpack.c.l.b16 %v179
      %v219 = vunpack.c.l.b16 %v180
      %v220 = vunpack.c.l.b16 %v181
      %v221 = vunpack.c.l.b16 %v182
      %v222 = vpack.c.b16 %v215, %v214
      %v223 = vpack.c.b16 %v217, %v216
      %v224 = vpack.c.b16 %v219, %v218
      %v225 = vpack.c.b16 %v221, %v220
      %v246 = vunpack.c.l.b16 %v183
      %v247 = vunpack.c.l.b16 %v184
      %v248 = vunpack.c.l.b16 %v185
      %v249 = vunpack.c.l.b16 %v186
      %v250 = vunpack.c.l.b16 %v187
      %v251 = vunpack.c.l.b16 %v188
      %v252 = vunpack.c.l.b16 %v189
      %v253 = vunpack.c.l.b16 %v190
      %v254 = vunpack.c.l.b16 %v191
      %v255 = vunpack.c.l.b16 %v192
      %v256 = vunpack.c.l.b16 %v193
      %v257 = vunpack.c.l.b16 %v194
      %v258 = vunpack.c.l.b16 %v195
      %v259 = vunpack.c.l.b16 %v196
      %v260 = vunpack.c.l.b16 %v197
      %v261 = vunpack.c.l.b16 %v198
      %v262 = vpack.c.b16 %v247, %v246
      %v263 = vpack.c.b16 %v249, %v248
      %v264 = vpack.c.b16 %v251, %v250
      %v265 = vpack.c.b16 %v253, %v252
      %v266 = vpack.c.b16 %v255, %v254
      %v267 = vpack.c.b16 %v257, %v256
      %v268 = vpack.c.b16 %v259, %v258
      %v269 = vpack.c.b16 %v261, %v260
      %278 = vmatprep.subr.bf16.mxu0 0
      %279 = vmatpush1.bf16.msra.mxu0 %v262
      %280 = vmatprep.subr.bf16.mxu0 0
      %281 = vmatpush1.bf16.msra.mxu0 %v263
      %282 = vmatprep.subr.bf16.mxu0 0
      %283 = vmatpush1.bf16.msra.mxu0 %v264
      %284 = vmatprep.subr.bf16.mxu0 0
      %285 = vmatpush1.bf16.msra.mxu0 %v265
      %286 = vmatprep.subr.bf16.mxu0 0
      %287 = vmatpush1.bf16.msra.mxu0 %v266
      %288 = vmatprep.subr.bf16.mxu0 0
      %289 = vmatpush1.bf16.msra.mxu0 %v267
      %290 = vmatprep.subr.bf16.mxu0 0
      %291 = vmatpush1.bf16.msra.mxu0 %v268
      %292 = vmatprep.subr.bf16.mxu0 0
      %293 = vmatpush1.bf16.msra.mxu0 %v269
      %294 = vmatprep.subr.bf16.mxu0 0
      %295 = vmatpush1.bf16.msra.mxu0 0
      %296 = vmatprep.subr.bf16.mxu0 0
      %297 = vmatpush1.bf16.msra.mxu0 0
      %298 = vmatprep.subr.bf16.mxu0 0
      %299 = vmatpush1.bf16.msra.mxu0 0
      %300 = vmatprep.subr.bf16.mxu0 0
      %301 = vmatpush1.bf16.msra.mxu0 0
      %302 = vmatprep.subr.bf16.mxu0 0
      %303 = vmatpush1.bf16.msra.mxu0 0
      %304 = vmatprep.subr.bf16.mxu0 0
      %305 = vmatpush1.bf16.msra.mxu0 0
      %306 = vmatprep.subr.bf16.mxu0 0
      %307 = vmatpush1.bf16.msra.mxu0 0
      %308 = vmatprep.subr.bf16.mxu0 0
      %309 = vmatpush1.bf16.msra.mxu0 0
      %310 = vmatprep.mubr.bf16.mxu0 0
      %311 = vmatmul.mubr.bf16.gmra.mrb[0].mxu0 %v222
      %v312 = vpop.f32.mrb[0].mxu0
      %v313 = vadd.f32 %v204, %v312
      %v314 = vpop.f32.mrb[0].mxu0
      %v315 = vpop.f32.mrb[0].mxu0
      %v316 = vadd.f32 %v204, %v315
      %v317 = vpop.f32.mrb[0].mxu0
      %318 = vmatprep.mubr.bf16.mxu0 0
      %319 = vmatmul.mubr.bf16.gmra.mrb[0].mxu0 %v223
      %v320 = vpop.f32.mrb[0].mxu0
      %v321 = vadd.f32 %v204, %v320
      %v322 = vpop.f32.mrb[0].mxu0
      %v323 = vpop.f32.mrb[0].mxu0
      %v324 = vadd.f32 %v204, %v323
      %v325 = vpop.f32.mrb[0].mxu0
      %326 = vmatprep.mubr.bf16.mxu0 0
      %327 = vmatmul.mubr.bf16.gmra.mrb[0].mxu0 %v224
      %v328 = vpop.f32.mrb[0].mxu0
      %v329 = vadd.f32 %v204, %v328
      %v330 = vpop.f32.mrb[0].mxu0
      %v331 = vpop.f32.mrb[0].mxu0
      %v332 = vadd.f32 %v204, %v331
      %v333 = vpop.f32.mrb[0].mxu0
      %334 = vmatprep.mubr.bf16.mxu0 0
      %335 = vmatmul.mubr.bf16.gmra.mrb[0].mxu0 %v225
      %v336 = vpop.f32.mrb[0].mxu0
      %v337 = vadd.f32 %v204, %v336
      %v338 = vpop.f32.mrb[0].mxu0
      %v339 = vpop.f32.mrb[0].mxu0
      %v340 = vadd.f32 %v204, %v339
      %v341 = vpop.f32.mrb[0].mxu0
      %342 = vdwg.mxu0
      %v343 = vmax.f32 %v313, 0.0
      %v344 = vmax.f32 %v316, 0.0
      %v345 = vmax.f32 %v321, 0.0
      %v346 = vmax.f32 %v324, 0.0
      %v347 = vmax.f32 %v329, 0.0
      %v348 = vmax.f32 %v332, 0.0
      %v349 = vmax.f32 %v337, 0.0
      %v350 = vmax.f32 %v340, 0.0
      %v351 = vpack.c.bf16 %v344, %v343
      %v352 = vpack.c.bf16 %v346, %v345
      %v353 = vpack.c.bf16 %v348, %v347
      %v354 = vpack.c.bf16 %v350, %v349
      %v359 = vunpack.c.l.b16 %v351
      %v360 = vunpack.c.h.b16 %v351
      %v361 = vunpack.c.l.b16 %v352
      %v362 = vunpack.c.h.b16 %v352
      %v363 = vunpack.c.l.b16 %v353
      %v364 = vunpack.c.h.b16 %v353
      %v365 = vunpack.c.l.b16 %v354
      %v366 = vunpack.c.h.b16 %v354
      %v367 = vpack.c.b16 %v359, %v359
      %v368 = vpack.c.b16 %v360, %v360
      %v369 = vpack.c.b16 %v361, %v361
      %v370 = vpack.c.b16 %v362, %v362
      %v371 = vpack.c.b16 %v363, %v363
      %v372 = vpack.c.b16 %v364, %v364
      %v373 = vpack.c.b16 %v365, %v365
      %v374 = vpack.c.b16 %v366, %v366
      %383 = vst [vmem:[%s172] sm:$0xf] %v367
      %384 = vst [vmem:[%s172 + $0x4] sm:$0xf] %v368
      %385 = vst [vmem:[%s172 + $0x8] sm:$0xf] %v369
      %386 = vst [vmem:[%s172 + $0xc] sm:$0xf] %v370
      %387 = vst [vmem:[%s172 + $0x10] sm:$0xf] %v371
      %388 = vst [vmem:[%s172 + $0x14] sm:$0xf] %v372
      %389 = vst [vmem:[%s172 + $0x18] sm:$0xf] %v373
      %390 = vst [vmem:[%s172 + $0x1c] sm:$0xf] %v374
      %s391 = smul.u32 8, %s14
      %p392 = scmp.lt.s32.totalorder %s391, 15
      %s393 = scalar_select %p392, %s391, 15
      %s394 = smul.addr %s393, 4
      %s395 = scalar_lea.vmem %s3, %s394
      // Predicated region
      $region33: #{_lambda_.18} parent=31 // pred_check
        %p396 = pneg %p100
      $region34: #{_lambda_.18} parent=31 // pred_check_branch
        %398 = sbr.rel (%p396) target = $region36
      $region35: #{_lambda_.18} parent=31 // pred_region
        %s399 = smul.u32 8, %s14
      $region36: #{_lambda_.18} parent=31 // pred_fallthru
        _
    $region32: #{_lambda_.18} parent=5 // pred_fallthru
      _
    %p400 = scmp.le.s32.totalorder 2, %s9
    // Predicated region
    $region37: #{_lambda_.18} parent=5 // pred_check
      %p401 = pneg %p400
    $region38: #{_lambda_.18} parent=5 // pred_check_branch
      %403 = sbr.rel (%p401) target = $region40
    $region39: #{_lambda_.18} parent=5 // pred_region
      %s404 = ssub.s32 %s9, 2
      // Predicated region
      $region41: #{_lambda_.18} parent=39 // pred_check
        %p405 = pneg %p106
      $region42: #{_lambda_.18} parent=39 // pred_check_branch
        %407 = sbr.rel (%p405) target = $region44
      $region43: #{_lambda_.18} parent=39 // pred_region
        %s408 = smul.u32 8, %s15
        %p409 = scmp.lt.s32.totalorder %s408, 15
        %s410 = scalar_select %p409, %s408, 15
        %s411 = smul.addr %s410, 4
        %s412 = scalar_lea.vmem %s3, %s411
      $region44: #{_lambda_.18} parent=39 // pred_fallthru
        _
    $region40: #{_lambda_.18} parent=5 // pred_fallthru
      _
  $region6: #{_lambda_.18} parent=0 // loop_footer
    %s13 = sadd.s32 1, %s9
  $region7: #{_lambda_.18} parent=0 // loop_footer_branch
    %8 = sbr.rel target = $region3
  $region8: #{_lambda_.18} parent=0 // loop_exit
    _

// kernel: _lambda_.20
$region0: #{_lambda_.20}
  #allocation0 [shape = 'u32[]', space=smem, size = 0x4, offset = 0x4, fixed_abs, tag = 'smem constant byte address 0x4 - core index']
  #allocation1 [shape = 'u32[144,128]{1,0:T(1,128)}', space=vmem, size = 0x12000, scoped, tag = 'internal scratch']
  %s0 = inlined_call_operand.vmem [shape: bf16[128,256], index: 0, kind: input, shape index: {}]
  %s1 = inlined_call_operand.vmem [shape: bf16[256,128], index: 1, kind: input, shape index: {}]
  %s2 = inlined_call_operand.vmem [shape: f32[1,128], index: 2, kind: input, shape index: {}]
  %s3 = inlined_call_operand.vmem [shape: bf16[128,128], index: 3, kind: input, shape index: {}]
  %s4 = inlined_call_operand.vmem [shape: bf16[128,128], index: 4, kind: output, shape index: {}]
  %s5 = sld [smem:[#allocation0]]
  $region49: #{_lambda_.20} parent=0
    _
  %s7 = ssub.s32 1, %s5
  %s8 = scalar_select 0, %s7, %s5
  loop: start=0, step=1, limit=4
  $region2: #{_lambda_.20} parent=0 // loop_pre_header
    _
  $region3: #{_lambda_.20} parent=0 // loop_header
    %s10 = sphi 0, %s14
    %p11 = scmp.ge.s32.totalorder %s10, 4
    %s20 = sphi 0, %s22
    %s23 = sphi 0, %s20
    %s24 = sphi 0, %s23
    %s40 = sphi 0, %s24
    %s44 = sphi 0, %s44
    %s46 = sphi 0, %s44
    %s47 = sphi 0, %s46
    %s61 = sphi 0, %s47
    %s65 = sphi 0, %s65
    %s67 = sphi 0, %s65
    %s68 = sphi 0, %s67
    %s82 = sphi 0, %s68
    %s88 = sphi 0, %s90
    %s91 = sphi 0, %s88
    %s92 = sphi 0, %s91
    %s108 = sphi 0, %s92
    %s114 = sphi 0, %s116
    %s117 = sphi 0, %s114
    %s118 = sphi 0, %s117
    %s134 = sphi 0, %s118
  $region4: #{_lambda_.20} parent=0 // loop_header_branch
    %13 = sbr.rel (%p11) target = $region8
  $region5: #{_lambda_.20} parent=0 // loop_body
    %s15 = ssub.s32 %s10, 1
    %s16 = ssub.s32 %s10, 2
    %s17 = sadd.s32 %s10, 1
    %s18 = ssub.s32 %s10, %s17
    %p19 = scmp.eq.s32.totalorder %s18, 0
    %s21 = sadd.s32 %s20, 1
    %s22 = scalar_select %p19, %s20, %s21
    %p25 = pneg %p19
    %p26 = scmp.eq.s32.totalorder %s10, 1
    %p27 = por %p25, %p26
    %p28 = scmp.ne.s32.totalorder %s20, %s23
    %p29 = scmp.eq.s32.totalorder %s10, 0
    %p30 = por %p28, %p29
    %p31 = scmp.ne.s32.totalorder %s20, %s23
    %p32 = scmp.eq.s32.totalorder %s15, 1
    %p33 = por %p31, %p32
    %p34 = scmp.ne.s32.totalorder %s23, %s24
    %p35 = scmp.eq.s32.totalorder %s15, 0
    %p36 = por %p34, %p35
    %p37 = scmp.ne.s32.totalorder %s23, %s24
    %p38 = scmp.eq.s32.totalorder %s16, 1
    %p39 = por %p37, %p38
    %p41 = scmp.ne.s32.totalorder %s24, %s40
    %p42 = scmp.eq.s32.totalorder %s16, 0
    %p43 = por %p41, %p42
    %s45 = sadd.s32 %s44, 1
    %p48 = scmp.eq.s32.totalorder %s10, 1
    %p49 = scmp.ne.s32.totalorder %s44, %s46
    %p50 = scmp.eq.s32.totalorder %s10, 0
    %p51 = por %p49, %p50
    %p52 = scmp.ne.s32.totalorder %s44, %s46
    %p53 = scmp.eq.s32.totalorder %s15, 1
    %p54 = por %p52, %p53
    %p55 = scmp.ne.s32.totalorder %s46, %s47
    %p56 = scmp.eq.s32.totalorder %s15, 0
    %p57 = por %p55, %p56
    %p58 = scmp.ne.s32.totalorder %s46, %s47
    %p59 = scmp.eq.s32.totalorder %s16, 1
    %p60 = por %p58, %p59
    %p62 = scmp.ne.s32.totalorder %s47, %s61
    %p63 = scmp.eq.s32.totalorder %s16, 0
    %p64 = por %p62, %p63
    %s66 = sadd.s32 %s65, 1
    %p69 = scmp.eq.s32.totalorder %s10, 1
    %p70 = scmp.ne.s32.totalorder %s65, %s67
    %p71 = scmp.eq.s32.totalorder %s10, 0
    %p72 = por %p70, %p71
    %p73 = scmp.ne.s32.totalorder %s65, %s67
    %p74 = scmp.eq.s32.totalorder %s15, 1
    %p75 = por %p73, %p74
    %p76 = scmp.ne.s32.totalorder %s67, %s68
    %p77 = scmp.eq.s32.totalorder %s15, 0
    %p78 = por %p76, %p77
    %p79 = scmp.ne.s32.totalorder %s67, %s68
    %p80 = scmp.eq.s32.totalorder %s16, 1
    %p81 = por %p79, %p80
    %p83 = scmp.ne.s32.totalorder %s68, %s82
    %p84 = scmp.eq.s32.totalorder %s16, 0
    %p85 = por %p83, %p84
    %s86 = ssub.s32 %s10, %s17
    %p87 = scmp.eq.s32.totalorder %s86, 0
    %s89 = sadd.s32 %s88, 1
    %s90 = scalar_select %p87, %s88, %s89
    %p93 = pneg %p87
    %p94 = scmp.eq.s32.totalorder %s10, 1
    %p95 = por %p93, %p94
    %p96 = scmp.ne.s32.totalorder %s88, %s91
    %p97 = scmp.eq.s32.totalorder %s10, 0
    %p98 = por %p96, %p97
    %p99 = scmp.ne.s32.totalorder %s88, %s91
    %p100 = scmp.eq.s32.totalorder %s15, 1
    %p101 = por %p99, %p100
    %p102 = scmp.ne.s32.totalorder %s91, %s92
    %p103 = scmp.eq.s32.totalorder %s15, 0
    %p104 = por %p102, %p103
    %p105 = scmp.ne.s32.totalorder %s91, %s92
    %p106 = scmp.eq.s32.totalorder %s16, 1
    %p107 = por %p105, %p106
    %p109 = scmp.ne.s32.totalorder %s92, %s108
    %p110 = scmp.eq.s32.totalorder %s16, 0
    %p111 = por %p109, %p110
    %s112 = ssub.s32 %s10, %s17
    %p113 = scmp.eq.s32.totalorder %s112, 0
    %s115 = sadd.s32 %s114, 1
    %s116 = scalar_select %p113, %s114, %s115
    %p119 = pneg %p113
    %p120 = scmp.eq.s32.totalorder %s10, 1
    %p121 = por %p119, %p120
    %p122 = scmp.ne.s32.totalorder %s114, %s117
    %p123 = scmp.eq.s32.totalorder %s10, 0
    %p124 = por %p122, %p123
    %p125 = scmp.ne.s32.totalorder %s114, %s117
    %p126 = scmp.eq.s32.totalorder %s15, 1
    %p127 = por %p125, %p126
    %p128 = scmp.ne.s32.totalorder %s117, %s118
    %p129 = scmp.eq.s32.totalorder %s15, 0
    %p130 = por %p128, %p129
    %p131 = scmp.ne.s32.totalorder %s117, %s118
    %p132 = scmp.eq.s32.totalorder %s16, 1
    %p133 = por %p131, %p132
    %p135 = scmp.ne.s32.totalorder %s118, %s134
    %p136 = scmp.eq.s32.totalorder %s16, 0
    %p137 = por %p135, %p136
    %p138 = scmp.le.s32.totalorder 1, %s10
    %p139 = scmp.lt.s32.totalorder %s10, 3
    %p140 = pnand %p138, %p139
    %p141 = pneg %p140
    // Predicated region
    $region9: #{_lambda_.20} parent=5 // pred_check
      _
    $region10: #{_lambda_.20} parent=5 // pred_check_branch
      %143 = sbr.rel (%p140) target = $region12
    $region11: #{_lambda_.20} parent=5 // pred_region
      %s144 = ssub.s32 %s10, 1
      // Predicated region
      $region13: #{_lambda_.20} parent=11 // pred_check
        %p145 = pneg %p57
      $region14: #{_lambda_.20} parent=11 // pred_check_branch
        %147 = sbr.rel (%p145) target = $region16
      $region15: #{_lambda_.20} parent=11 // pred_region
        _
      $region16: #{_lambda_.20} parent=11 // pred_fallthru
        _
      // Predicated region
      $region17: #{_lambda_.20} parent=11 // pred_check
        %p148 = pneg %p78
      $region18: #{_lambda_.20} parent=11 // pred_check_branch
        %150 = sbr.rel (%p148) target = $region20
      $region19: #{_lambda_.20} parent=11 // pred_region
        _
      $region20: #{_lambda_.20} parent=11 // pred_fallthru
        _
    $region12: #{_lambda_.20} parent=5 // pred_fallthru
      _
    %p151 = scmp.lt.s32.totalorder %s10, 2
    // Predicated region
    $region21: #{_lambda_.20} parent=5 // pred_check
      %p152 = pneg %p151
    $region22: #{_lambda_.20} parent=5 // pred_check_branch
      %154 = sbr.rel (%p152) target = $region24
    $region23: #{_lambda_.20} parent=5 // pred_region
      // Predicated region
      $region25: #{_lambda_.20} parent=23 // pred_check
        %p155 = pneg %p30
      $region26: #{_lambda_.20} parent=23 // pred_check_branch
        %157 = sbr.rel (%p155) target = $region28
      $region27: #{_lambda_.20} parent=23 // pred_region
        %s158 = smul.u32 8, %s10
        %p159 = scmp.lt.s32.totalorder %s158, 15
        %s160 = scalar_select %p159, %s158, 15
        %s161 = smul.addr %s160, 2
        %s162 = smul.addr %s161, 4
        %s163 = scalar_lea.vmem %s0, %s162
        %s164 = smul.u32 8, %s10
      $region28: #{_lambda_.20} parent=23 // pred_fallthru
        _
      // Predicated region
      $region29: #{_lambda_.20} parent=23 // pred_check
        %p165 = pneg %p98
      $region30: #{_lambda_.20} parent=23 // pred_check_branch
        %167 = sbr.rel (%p165) target = $region32
      $region31: #{_lambda_.20} parent=23 // pred_region
        %s168 = smul.u32 8, %s10
        %p169 = scmp.lt.s32.totalorder %s168, 15
        %s170 = scalar_select %p169, %s168, 15
        %s171 = smul.addr %s170, 4
        %s172 = scalar_lea.vmem %s3, %s171
        %s173 = smul.u32 8, %s10
      $region32: #{_lambda_.20} parent=23 // pred_fallthru
        _
    $region24: #{_lambda_.20} parent=5 // pred_fallthru
      _
    %p174 = scmp.le.s32.totalorder 1, %s10
    %p175 = scmp.lt.s32.totalorder %s10, 3
    %p176 = pnand %p174, %p175
    %p177 = pneg %p176
    // Predicated region
    $region33: #{_lambda_.20} parent=5 // pred_check
      _
    $region34: #{_lambda_.20} parent=5 // pred_check_branch
      %179 = sbr.rel (%p176) target = $region36
    $region35: #{_lambda_.20} parent=5 // pred_region
      %s180 = ssub.s32 %s10, 1
      %s181 = smul.u32 8, %s15
      %p182 = scmp.lt.s32.totalorder %s181, 15
      %s183 = scalar_select %p182, %s181, 15
      %s184 = smul.addr %s183, 2
      %s185 = smul.addr %s184, 4
      %s186 = scalar_lea.vmem %s0, %s185
      %p187 = pneg %p36
      %p188 = pneg %p33
      %p189 = pneg %p57
      %p190 = pneg %p54
      %p191 = pneg %p78
      %p192 = pneg %p75
      %s193 = smul.u32 8, %s15
      %p194 = scmp.lt.s32.totalorder %s193, 15
      %s195 = scalar_select %p194, %s193, 15
      %s196 = smul.addr %s195, 4
      %s197 = scalar_lea.vmem %s3, %s196
      %p198 = pneg %p104
      %p199 = pneg %p101
      %p200 = pneg %p130
      %p201 = pneg %p127
      %s202 = smul.u32 8, %s15
      %p203 = scmp.lt.s32.totalorder %s202, 15
      %s204 = scalar_select %p203, %s202, 15
      %s205 = smul.addr %s204, 4
      %s206 = scalar_lea.vmem %s4, %s205
      %s207 = smul.u32 8, %s15
      %p208 = scmp.lt.s32.totalorder %s207, 15
      %s209 = scalar_select %p208, %s207, 15
      %s210 = smul.addr %s209, 2
      %s211 = smul.addr %s210, 4
      %s212 = scalar_lea.vmem %s0, %s211
      %s213 = smul.u32 8, %s15
      %s214 = smul.u32 8, %s15
      %p215 = scmp.lt.s32.totalorder %s214, 15
      %s216 = scalar_select %p215, %s214, 15
      %s217 = smul.addr %s216, 4
      %s218 = scalar_lea.vmem %s3, %s217
      %s219 = smul.u32 8, %s15
      %s220 = smul.u32 8, %s15
      %p221 = scmp.lt.s32.totalorder %s220, 15
      %s222 = scalar_select %p221, %s220, 15
      %s223 = smul.addr %s222, 4
      %s224 = scalar_lea.vmem %s4, %s223
      %s225 = smul.u32 8, %s15
      %v227 = vld [vmem:[%s212] sm:$0xff]
      %v228 = vld [vmem:[%s212 + $0x8] sm:$0xff]
      %v229 = vld [vmem:[%s212 + $0x10] sm:$0xff]
      %v230 = vld [vmem:[%s212 + $0x18] sm:$0xff]
      %v231 = vld [vmem:[%s212 + $0x20] sm:$0xff]
      %v232 = vld [vmem:[%s212 + $0x28] sm:$0xff]
      %v233 = vld [vmem:[%s212 + $0x30] sm:$0xff]
      %v234 = vld [vmem:[%s212 + $0x38] sm:$0xff]
      %v235 = vld [vmem:[%s1] sm:$0xf]
      %v236 = vld [vmem:[%s1 + $0x4] sm:$0xf]
      %v237 = vld [vmem:[%s1 + $0x8] sm:$0xf]
      %v238 = vld [vmem:[%s1 + $0xc] sm:$0xf]
      %v239 = vld [vmem:[%s1 + $0x10] sm:$0xf]
      %v240 = vld [vmem:[%s1 + $0x14] sm:$0xf]
      %v241 = vld [vmem:[%s1 + $0x18] sm:$0xf]
      %v242 = vld [vmem:[%s1 + $0x1c] sm:$0xf]
      %v243 = vld [vmem:[%s1 + $0x20] sm:$0xf]
      %v244 = vld [vmem:[%s1 + $0x24] sm:$0xf]
      %v245 = vld [vmem:[%s1 + $0x28] sm:$0xf]
      %v246 = vld [vmem:[%s1 + $0x2c] sm:$0xf]
      %v247 = vld [vmem:[%s1 + $0x30] sm:$0xf]
      %v248 = vld [vmem:[%s1 + $0x34] sm:$0xf]
      %v249 = vld [vmem:[%s1 + $0x38] sm:$0xf]
      %v250 = vld [vmem:[%s1 + $0x3c] sm:$0xf]
      %v251 = vld [vmem:[%s1 + $0x40] sm:$0xf]
      %v252 = vld [vmem:[%s1 + $0x44] sm:$0xf]
      %v253 = vld [vmem:[%s1 + $0x48] sm:$0xf]
      %v254 = vld [vmem:[%s1 + $0x4c] sm:$0xf]
      %v255 = vld [vmem:[%s1 + $0x50] sm:$0xf]
      %v256 = vld [vmem:[%s1 + $0x54] sm:$0xf]
      %v257 = vld [vmem:[%s1 + $0x58] sm:$0xf]
      %v258 = vld [vmem:[%s1 + $0x5c] sm:$0xf]
      %v259 = vld [vmem:[%s1 + $0x60] sm:$0xf]
      %v260 = vld [vmem:[%s1 + $0x64] sm:$0xf]
      %v261 = vld [vmem:[%s1 + $0x68] sm:$0xf]
      %v262 = vld [vmem:[%s1 + $0x6c] sm:$0xf]
      %v263 = vld [vmem:[%s1 + $0x70] sm:$0xf]
      %v264 = vld [vmem:[%s1 + $0x74] sm:$0xf]
      %v265 = vld [vmem:[%s1 + $0x78] sm:$0xf]
      %v266 = vld [vmem:[%s1 + $0x7c] sm:$0xf]
      %v267 = vld [vmem:[%s2] sm:$0x1]
      %v269 = vlaneseq
      %v270 = vshrl.u32 %v269, 7
      %v271 = vsub.s32 0, %v270
      %v272 = vrot.slane %v267, %v271
      %v282 = vunpack.c.l.b16 %v227
      %v283 = vunpack.c.h.b16 %v227
      %v284 = vunpack.c.l.b16 %v228
      %v285 = vunpack.c.h.b16 %v228
      %v286 = vunpack.c.l.b16 %v229
      %v287 = vunpack.c.h.b16 %v229
      %v288 = vunpack.c.l.b16 %v230
      %v289 = vunpack.c.h.b16 %v230
      %v290 = vunpack.c.l.b16 %v231
      %v291 = vunpack.c.h.b16 %v231
      %v292 = vunpack.c.l.b16 %v232
      %v293 = vunpack.c.h.b16 %v232
      %v294 = vunpack.c.l.b16 %v233
      %v295 = vunpack.c.h.b16 %v233
      %v296 = vunpack.c.l.b16 %v234
      %v297 = vunpack.c.h.b16 %v234
      %v298 = vpack.c.b16 %v284, %v282
      %v299 = vpack.c.b16 %v285, %v283
      %v300 = vpack.c.b16 %v288, %v286
      %v301 = vpack.c.b16 %v289, %v287
      %v302 = vpack.c.b16 %v292, %v290
      %v303 = vpack.c.b16 %v293, %v291
      %v304 = vpack.c.b16 %v296, %v294
      %v305 = vpack.c.b16 %v297, %v295
      %v346 = vunpack.c.l.b16 %v235
      %v347 = vunpack.c.l.b16 %v236
      %v348 = vunpack.c.l.b16 %v237
      %v349 = vunpack.c.l.b16 %v238
      %v350 = vunpack.c.l.b16 %v239
      %v351 = vunpack.c.l.b16 %v240
      %v352 = vunpack.c.l.b16 %v241
      %v353 = vunpack.c.l.b16 %v242
      %v354 = vunpack.c.l.b16 %v243
      %v355 = vunpack.c.l.b16 %v244
      %v356 = vunpack.c.l.b16 %v245
      %v357 = vunpack.c.l.b16 %v246
      %v358 = vunpack.c.l.b16 %v247
      %v359 = vunpack.c.l.b16 %v248
      %v360 = vunpack.c.l.b16 %v249
      %v361 = vunpack.c.l.b16 %v250
      %v362 = vunpack.c.l.b16 %v251
      %v363 = vunpack.c.l.b16 %v252
      %v364 = vunpack.c.l.b16 %v253
      %v365 = vunpack.c.l.b16 %v254
      %v366 = vunpack.c.l.b16 %v255
      %v367 = vunpack.c.l.b16 %v256
      %v368 = vunpack.c.l.b16 %v257
      %v369 = vunpack.c.l.b16 %v258
      %v370 = vunpack.c.l.b16 %v259
      %v371 = vunpack.c.l.b16 %v260
      %v372 = vunpack.c.l.b16 %v261
      %v373 = vunpack.c.l.b16 %v262
      %v374 = vunpack.c.l.b16 %v263
      %v375 = vunpack.c.l.b16 %v264
      %v376 = vunpack.c.l.b16 %v265
      %v377 = vunpack.c.l.b16 %v266
      %v378 = vpack.c.b16 %v347, %v346
      %v379 = vpack.c.b16 %v349, %v348
      %v380 = vpack.c.b16 %v351, %v350
      %v381 = vpack.c.b16 %v353, %v352
      %v382 = vpack.c.b16 %v355, %v354
      %v383 = vpack.c.b16 %v357, %v356
      %v384 = vpack.c.b16 %v359, %v358
      %v385 = vpack.c.b16 %v361, %v360
      %v386 = vpack.c.b16 %v363, %v362
      %v387 = vpack.c.b16 %v365, %v364
      %v388 = vpack.c.b16 %v367, %v366
      %v389 = vpack.c.b16 %v369, %v368
      %v390 = vpack.c.b16 %v371, %v370
      %v391 = vpack.c.b16 %v373, %v372
      %v392 = vpack.c.b16 %v375, %v374
      %v393 = vpack.c.b16 %v377, %v376
      %410 = vmatprep.subr.bf16.mxu0 0
      %411 = vmatpush1.bf16.msra.mxu0 %v378
      %412 = vmatprep.subr.bf16.mxu0 0
      %413 = vmatpush1.bf16.msra.mxu0 %v379
      %414 = vmatprep.subr.bf16.mxu0 0
      %415 = vmatpush1.bf16.msra.mxu0 %v380
      %416 = vmatprep.subr.bf16.mxu0 0
      %417 = vmatpush1.bf16.msra.mxu0 %v381
      %418 = vmatprep.subr.bf16.mxu0 0
      %419 = vmatpush1.bf16.msra.mxu0 %v382
      %420 = vmatprep.subr.bf16.mxu0 0
      %421 = vmatpush1.bf16.msra.mxu0 %v383
      %422 = vmatprep.subr.bf16.mxu0 0
      %423 = vmatpush1.bf16.msra.mxu0 %v384
      %424 = vmatprep.subr.bf16.mxu0 0
      %425 = vmatpush1.bf16.msra.mxu0 %v385
      %426 = vmatprep.subr.bf16.mxu0 0
      %427 = vmatpush1.bf16.msra.mxu0 %v386
      %428 = vmatprep.subr.bf16.mxu0 0
      %429 = vmatpush1.bf16.msra.mxu0 %v387
      %430 = vmatprep.subr.bf16.mxu0 0
      %431 = vmatpush1.bf16.msra.mxu0 %v388
      %432 = vmatprep.subr.bf16.mxu0 0
      %433 = vmatpush1.bf16.msra.mxu0 %v389
      %434 = vmatprep.subr.bf16.mxu0 0
      %435 = vmatpush1.bf16.msra.mxu0 %v390
      %436 = vmatprep.subr.bf16.mxu0 0
      %437 = vmatpush1.bf16.msra.mxu0 %v391
      %438 = vmatprep.subr.bf16.mxu0 0
      %439 = vmatpush1.bf16.msra.mxu0 %v392
      %440 = vmatprep.subr.bf16.mxu0 0
      %441 = vmatpush1.bf16.msra.mxu0 %v393
      %442 = vmatprep.mubr.bf16.mxu0 %v299
      %443 = vmatmul.mubr.bf16.gmra.mrb[0].mxu0 %v298
      %v444 = vpop.f32.mrb[0].mxu0
      %v445 = vadd.f32 %v272, %v444
      %v446 = vpop.f32.mrb[0].mxu0
      %v447 = vpop.f32.mrb[0].mxu0
      %v448 = vadd.f32 %v272, %v447
      %v449 = vpop.f32.mrb[0].mxu0
      %450 = vmatprep.mubr.bf16.mxu0 %v301
      %451 = vmatmul.mubr.bf16.gmra.mrb[0].mxu0 %v300
      %v452 = vpop.f32.mrb[0].mxu0
      %v453 = vadd.f32 %v272, %v452
      %v454 = vpop.f32.mrb[0].mxu0
      %v455 = vpop.f32.mrb[0].mxu0
      %v456 = vadd.f32 %v272, %v455
      %v457 = vpop.f32.mrb[0].mxu0
      %458 = vmatprep.mubr.bf16.mxu0 %v303
      %459 = vmatmul.mubr.bf16.gmra.mrb[0].mxu0 %v302
      %v460 = vpop.f32.mrb[0].mxu0
      %v461 = vadd.f32 %v272, %v460
      %v462 = vpop.f32.mrb[0].mxu0
      %v463 = vpop.f32.mrb[0].mxu0
      %v464 = vadd.f32 %v272, %v463
      %v465 = vpop.f32.mrb[0].mxu0
      %466 = vmatprep.mubr.bf16.mxu0 %v305
      %467 = vmatmul.mubr.bf16.gmra.mrb[0].mxu0 %v304
      %v468 = vpop.f32.mrb[0].mxu0
      %v469 = vadd.f32 %v272, %v468
      %v470 = vpop.f32.mrb[0].mxu0
      %v471 = vpop.f32.mrb[0].mxu0
      %v472 = vadd.f32 %v272, %v471
      %v473 = vpop.f32.mrb[0].mxu0
      %474 = vdwg.mxu0
      %v475 = vld [vmem:[%s218] sm:$0xf]
      %v476 = vld [vmem:[%s218 + $0x4] sm:$0xf]
      %v477 = vld [vmem:[%s218 + $0x8] sm:$0xf]
      %v478 = vld [vmem:[%s218 + $0xc] sm:$0xf]
      %v479 = vld [vmem:[%s218 + $0x10] sm:$0xf]
      %v480 = vld [vmem:[%s218 + $0x14] sm:$0xf]
      %v481 = vld [vmem:[%s218 + $0x18] sm:$0xf]
      %v482 = vld [vmem:[%s218 + $0x1c] sm:$0xf]
      %v483 = vunpack.c.l.bf16 %v475
      %v484 = vunpack.c.l.bf16 %v476
      %v485 = vunpack.c.l.bf16 %v477
      %v486 = vunpack.c.l.bf16 %v478
      %v487 = vunpack.c.l.bf16 %v479
      %v488 = vunpack.c.l.bf16 %v480
      %v489 = vunpack.c.l.bf16 %v481
      %v490 = vunpack.c.l.bf16 %v482
      %v491 = vadd.f32 %v445, %v483
      %v492 = vadd.f32 %v448, %v484
      %v493 = vadd.f32 %v453, %v485
      %v494 = vadd.f32 %v456, %v486
      %v495 = vadd.f32 %v461, %v487
      %v496 = vadd.f32 %v464, %v488
      %v497 = vadd.f32 %v469, %v489
      %v498 = vadd.f32 %v472, %v490
      %v499 = vmax.f32 %v491, 0.0
      %v500 = vmax.f32 %v492, 0.0
      %v501 = vmax.f32 %v493, 0.0
      %v502 = vmax.f32 %v494, 0.0
      %v503 = vmax.f32 %v495, 0.0
      %v504 = vmax.f32 %v496, 0.0
      %v505 = vmax.f32 %v497, 0.0
      %v506 = vmax.f32 %v498, 0.0
      %v507 = vpack.c.bf16 %v500, %v499
      %v508 = vpack.c.bf16 %v502, %v501
      %v509 = vpack.c.bf16 %v504, %v503
      %v510 = vpack.c.bf16 %v506, %v505
      %v515 = vunpack.c.l.b16 %v507
      %v516 = vunpack.c.h.b16 %v507
      %v517 = vunpack.c.l.b16 %v508
      %v518 = vunpack.c.h.b16 %v508
      %v519 = vunpack.c.l.b16 %v509
      %v520 = vunpack.c.h.b16 %v509
      %v521 = vunpack.c.l.b16 %v510
      %v522 = vunpack.c.h.b16 %v510
      %v523 = vpack.c.b16 %v515, %v515
      %v524 = vpack.c.b16 %v516, %v516
      %v525 = vpack.c.b16 %v517, %v517
      %v526 = vpack.c.b16 %v518, %v518
      %v527 = vpack.c.b16 %v519, %v519
      %v528 = vpack.c.b16 %v520, %v520
      %v529 = vpack.c.b16 %v521, %v521
      %v530 = vpack.c.b16 %v522, %v522
      %539 = vst [vmem:[%s224] sm:$0xf] %v523
      %540 = vst [vmem:[%s224 + $0x4] sm:$0xf] %v524
      %541 = vst [vmem:[%s224 + $0x8] sm:$0xf] %v525
      %542 = vst [vmem:[%s224 + $0xc] sm:$0xf] %v526
      %543 = vst [vmem:[%s224 + $0x10] sm:$0xf] %v527
      %544 = vst [vmem:[%s224 + $0x14] sm:$0xf] %v528
      %545 = vst [vmem:[%s224 + $0x18] sm:$0xf] %v529
      %546 = vst [vmem:[%s224 + $0x1c] sm:$0xf] %v530
      %s547 = smul.u32 8, %s15
      %p548 = scmp.lt.s32.totalorder %s547, 15
      %s549 = scalar_select %p548, %s547, 15
      %s550 = smul.addr %s549, 4
      %s551 = scalar_lea.vmem %s4, %s550
      // Predicated region
      $region37: #{_lambda_.20} parent=35 // pred_check
        %p552 = pneg %p127
      $region38: #{_lambda_.20} parent=35 // pred_check_branch
        %554 = sbr.rel (%p552) target = $region40
      $region39: #{_lambda_.20} parent=35 // pred_region
        %s555 = smul.u32 8, %s15
      $region40: #{_lambda_.20} parent=35 // pred_fallthru
        _
    $region36: #{_lambda_.20} parent=5 // pred_fallthru
      _
    %p556 = scmp.le.s32.totalorder 2, %s10
    // Predicated region
    $region41: #{_lambda_.20} parent=5 // pred_check
      %p557 = pneg %p556
    $region42: #{_lambda_.20} parent=5 // pred_check_branch
      %559 = sbr.rel (%p557) target = $region44
    $region43: #{_lambda_.20} parent=5 // pred_region
      %s560 = ssub.s32 %s10, 2
      // Predicated region
      $region45: #{_lambda_.20} parent=43 // pred_check
        %p561 = pneg %p133
      $region46: #{_lambda_.20} parent=43 // pred_check_branch
        %563 = sbr.rel (%p561) target = $region48
      $region47: #{_lambda_.20} parent=43 // pred_region
        %s564 = smul.u32 8, %s16
        %p565 = scmp.lt.s32.totalorder %s564, 15
        %s566 = scalar_select %p565, %s564, 15
        %s567 = smul.addr %s566, 4
        %s568 = scalar_lea.vmem %s4, %s567
      $region48: #{_lambda_.20} parent=43 // pred_fallthru
        _
    $region44: #{_lambda_.20} parent=5 // pred_fallthru
      _
  $region6: #{_lambda_.20} parent=0 // loop_footer
    %s14 = sadd.s32 1, %s10
  $region7: #{_lambda_.20} parent=0 // loop_footer_branch
    %9 = sbr.rel target = $region3
  $region8: #{_lambda_.20} parent=0 // loop_exit
    _

// kernel: _lambda_.22
$region0: #{_lambda_.22}
  #allocation0 [shape = 'u32[]', space=smem, size = 0x4, offset = 0x4, fixed_abs, tag = 'smem constant byte address 0x4 - core index']
  #allocation1 [shape = 'u32[144,128]{1,0:T(1,128)}', space=vmem, size = 0x12000, scoped, tag = 'internal scratch']
  %s0 = inlined_call_operand.vmem [shape: bf16[32,128], index: 0, kind: input, shape index: {}]
  %s1 = inlined_call_operand.vmem [shape: bf16[128,128], index: 1, kind: input, shape index: {}]
  %s2 = inlined_call_operand.vmem [shape: f32[1,128], index: 2, kind: input, shape index: {}]
  %s3 = inlined_call_operand.vmem [shape: bf16[32,128], index: 3, kind: output, shape index: {}]
  %s4 = sld [smem:[#allocation0]]
  $region45: #{_lambda_.22} parent=0
    _
  %s6 = ssub.s32 1, %s4
  %s7 = scalar_select 0, %s6, %s4
  loop: start=0, step=1, limit=4
  $region2: #{_lambda_.22} parent=0 // loop_pre_header
    _
  $region3: #{_lambda_.22} parent=0 // loop_header
    %s9 = sphi 0, %s13
    %p10 = scmp.ge.s32.totalorder %s9, 4
    %s19 = sphi 0, %s21
    %s22 = sphi 0, %s19
    %s23 = sphi 0, %s22
    %s39 = sphi 0, %s23
    %s43 = sphi 0, %s43
    %s45 = sphi 0, %s43
    %s46 = sphi 0, %s45
    %s60 = sphi 0, %s46
    %s64 = sphi 0, %s64
    %s66 = sphi 0, %s64
    %s67 = sphi 0, %s66
    %s81 = sphi 0, %s67
    %s87 = sphi 0, %s89
    %s90 = sphi 0, %s87
    %s91 = sphi 0, %s90
    %s107 = sphi 0, %s91
  $region4: #{_lambda_.22} parent=0 // loop_header_branch
    %12 = sbr.rel (%p10) target = $region8
  $region5: #{_lambda_.22} parent=0 // loop_body
    %s14 = ssub.s32 %s9, 1
    %s15 = ssub.s32 %s9, 2
    %s16 = sadd.s32 %s9, 1
    %s17 = ssub.s32 %s9, %s16
    %p18 = scmp.eq.s32.totalorder %s17, 0
    %s20 = sadd.s32 %s19, 1
    %s21 = scalar_select %p18, %s19, %s20
    %p24 = pneg %p18
    %p25 = scmp.eq.s32.totalorder %s9, 1
    %p26 = por %p24, %p25
    %p27 = scmp.ne.s32.totalorder %s19, %s22
    %p28 = scmp.eq.s32.totalorder %s9, 0
    %p29 = por %p27, %p28
    %p30 = scmp.ne.s32.totalorder %s19, %s22
    %p31 = scmp.eq.s32.totalorder %s14, 1
    %p32 = por %p30, %p31
    %p33 = scmp.ne.s32.totalorder %s22, %s23
    %p34 = scmp.eq.s32.totalorder %s14, 0
    %p35 = por %p33, %p34
    %p36 = scmp.ne.s32.totalorder %s22, %s23
    %p37 = scmp.eq.s32.totalorder %s15, 1
    %p38 = por %p36, %p37
    %p40 = scmp.ne.s32.totalorder %s23, %s39
    %p41 = scmp.eq.s32.totalorder %s15, 0
    %p42 = por %p40, %p41
    %s44 = sadd.s32 %s43, 1
    %p47 = scmp.eq.s32.totalorder %s9, 1
    %p48 = scmp.ne.s32.totalorder %s43, %s45
    %p49 = scmp.eq.s32.totalorder %s9, 0
    %p50 = por %p48, %p49
    %p51 = scmp.ne.s32.totalorder %s43, %s45
    %p52 = scmp.eq.s32.totalorder %s14, 1
    %p53 = por %p51, %p52
    %p54 = scmp.ne.s32.totalorder %s45, %s46
    %p55 = scmp.eq.s32.totalorder %s14, 0
    %p56 = por %p54, %p55
    %p57 = scmp.ne.s32.totalorder %s45, %s46
    %p58 = scmp.eq.s32.totalorder %s15, 1
    %p59 = por %p57, %p58
    %p61 = scmp.ne.s32.totalorder %s46, %s60
    %p62 = scmp.eq.s32.totalorder %s15, 0
    %p63 = por %p61, %p62
    %s65 = sadd.s32 %s64, 1
    %p68 = scmp.eq.s32.totalorder %s9, 1
    %p69 = scmp.ne.s32.totalorder %s64, %s66
    %p70 = scmp.eq.s32.totalorder %s9, 0
    %p71 = por %p69, %p70
    %p72 = scmp.ne.s32.totalorder %s64, %s66
    %p73 = scmp.eq.s32.totalorder %s14, 1
    %p74 = por %p72, %p73
    %p75 = scmp.ne.s32.totalorder %s66, %s67
    %p76 = scmp.eq.s32.totalorder %s14, 0
    %p77 = por %p75, %p76
    %p78 = scmp.ne.s32.totalorder %s66, %s67
    %p79 = scmp.eq.s32.totalorder %s15, 1
    %p80 = por %p78, %p79
    %p82 = scmp.ne.s32.totalorder %s67, %s81
    %p83 = scmp.eq.s32.totalorder %s15, 0
    %p84 = por %p82, %p83
    %s85 = ssub.s32 %s9, %s16
    %p86 = scmp.eq.s32.totalorder %s85, 0
    %s88 = sadd.s32 %s87, 1
    %s89 = scalar_select %p86, %s87, %s88
    %p92 = pneg %p86
    %p93 = scmp.eq.s32.totalorder %s9, 1
    %p94 = por %p92, %p93
    %p95 = scmp.ne.s32.totalorder %s87, %s90
    %p96 = scmp.eq.s32.totalorder %s9, 0
    %p97 = por %p95, %p96
    %p98 = scmp.ne.s32.totalorder %s87, %s90
    %p99 = scmp.eq.s32.totalorder %s14, 1
    %p100 = por %p98, %p99
    %p101 = scmp.ne.s32.totalorder %s90, %s91
    %p102 = scmp.eq.s32.totalorder %s14, 0
    %p103 = por %p101, %p102
    %p104 = scmp.ne.s32.totalorder %s90, %s91
    %p105 = scmp.eq.s32.totalorder %s15, 1
    %p106 = por %p104, %p105
    %p108 = scmp.ne.s32.totalorder %s91, %s107
    %p109 = scmp.eq.s32.totalorder %s15, 0
    %p110 = por %p108, %p109
    %p111 = scmp.le.s32.totalorder 1, %s9
    %p112 = scmp.lt.s32.totalorder %s9, 3
    %p113 = pnand %p111, %p112
    %p114 = pneg %p113
    // Predicated region
    $region9: #{_lambda_.22} parent=5 // pred_check
      _
    $region10: #{_lambda_.22} parent=5 // pred_check_branch
      %116 = sbr.rel (%p113) target = $region12
    $region11: #{_lambda_.22} parent=5 // pred_region
      %s117 = ssub.s32 %s9, 1
      // Predicated region
      $region13: #{_lambda_.22} parent=11 // pred_check
        %p118 = pneg %p56
      $region14: #{_lambda_.22} parent=11 // pred_check_branch
        %120 = sbr.rel (%p118) target = $region16
      $region15: #{_lambda_.22} parent=11 // pred_region
        _
      $region16: #{_lambda_.22} parent=11 // pred_fallthru
        _
      // Predicated region
      $region17: #{_lambda_.22} parent=11 // pred_check
        %p121 = pneg %p77
      $region18: #{_lambda_.22} parent=11 // pred_check_branch
        %123 = sbr.rel (%p121) target = $region20
      $region19: #{_lambda_.22} parent=11 // pred_region
        _
      $region20: #{_lambda_.22} parent=11 // pred_fallthru
        _
    $region12: #{_lambda_.22} parent=5 // pred_fallthru
      _
    %p124 = scmp.lt.s32.totalorder %s9, 2
    // Predicated region
    $region21: #{_lambda_.22} parent=5 // pred_check
      %p125 = pneg %p124
    $region22: #{_lambda_.22} parent=5 // pred_check_branch
      %127 = sbr.rel (%p125) target = $region24
    $region23: #{_lambda_.22} parent=5 // pred_region
      // Predicated region
      $region25: #{_lambda_.22} parent=23 // pred_check
        %p128 = pneg %p29
      $region26: #{_lambda_.22} parent=23 // pred_check_branch
        %130 = sbr.rel (%p128) target = $region28
      $region27: #{_lambda_.22} parent=23 // pred_region
        %s131 = smul.u32 2, %s9
        %p132 = scmp.lt.s32.totalorder %s131, 3
        %s133 = scalar_select %p132, %s131, 3
        %s134 = smul.addr %s133, 4
        %s135 = scalar_lea.vmem %s0, %s134
        %s136 = smul.u32 2, %s9
      $region28: #{_lambda_.22} parent=23 // pred_fallthru
        _
    $region24: #{_lambda_.22} parent=5 // pred_fallthru
      _
    %p137 = scmp.le.s32.totalorder 1, %s9
    %p138 = scmp.lt.s32.totalorder %s9, 3
    %p139 = pnand %p137, %p138
    %p140 = pneg %p139
    // Predicated region
    $region29: #{_lambda_.22} parent=5 // pred_check
      _
    $region30: #{_lambda_.22} parent=5 // pred_check_branch
      %142 = sbr.rel (%p139) target = $region32
    $region31: #{_lambda_.22} parent=5 // pred_region
      %s143 = ssub.s32 %s9, 1
      %s144 = smul.u32 2, %s14
      %p145 = scmp.lt.s32.totalorder %s144, 3
      %s146 = scalar_select %p145, %s144, 3
      %s147 = smul.addr %s146, 4
      %s148 = scalar_lea.vmem %s0, %s147
      %p149 = pneg %p35
      %p150 = pneg %p32
      %p151 = pneg %p56
      %p152 = pneg %p53
      %p153 = pneg %p77
      %p154 = pneg %p74
      %p155 = pneg %p103
      %p156 = pneg %p100
      %s157 = smul.u32 2, %s14
      %p158 = scmp.lt.s32.totalorder %s157, 3
      %s159 = scalar_select %p158, %s157, 3
      %s160 = smul.addr %s159, 4
      %s161 = scalar_lea.vmem %s3, %s160
      %s162 = smul.u32 2, %s14
      %p163 = scmp.lt.s32.totalorder %s162, 3
      %s164 = scalar_select %p163, %s162, 3
      %s165 = smul.addr %s164, 4
      %s166 = scalar_lea.vmem %s0, %s165
      %s167 = smul.u32 2, %s14
      %s168 = smul.u32 2, %s14
      %p169 = scmp.lt.s32.totalorder %s168, 3
      %s170 = scalar_select %p169, %s168, 3
      %s171 = smul.addr %s170, 4
      %s172 = scalar_lea.vmem %s3, %s171
      %s173 = smul.u32 2, %s14
      %v175 = vld [vmem:[%s166] sm:$0xf]
      %v176 = vld [vmem:[%s166 + $0x4] sm:$0xf]
      %v177 = vld [vmem:[%s1] sm:$0xf]
      %v178 = vld [vmem:[%s1 + $0x4] sm:$0xf]
      %v179 = vld [vmem:[%s1 + $0x8] sm:$0xf]
      %v180 = vld [vmem:[%s1 + $0xc] sm:$0xf]
      %v181 = vld [vmem:[%s1 + $0x10] sm:$0xf]
      %v182 = vld [vmem:[%s1 + $0x14] sm:$0xf]
      %v183 = vld [vmem:[%s1 + $0x18] sm:$0xf]
      %v184 = vld [vmem:[%s1 + $0x1c] sm:$0xf]
      %v185 = vld [vmem:[%s1 + $0x20] sm:$0xf]
      %v186 = vld [vmem:[%s1 + $0x24] sm:$0xf]
      %v187 = vld [vmem:[%s1 + $0x28] sm:$0xf]
      %v188 = vld [vmem:[%s1 + $0x2c] sm:$0xf]
      %v189 = vld [vmem:[%s1 + $0x30] sm:$0xf]
      %v190 = vld [vmem:[%s1 + $0x34] sm:$0xf]
      %v191 = vld [vmem:[%s1 + $0x38] sm:$0xf]
      %v192 = vld [vmem:[%s1 + $0x3c] sm:$0xf]
      %v193 = vld [vmem:[%s2] sm:$0x1]
      %v195 = vlaneseq
      %v196 = vshrl.u32 %v195, 7
      %v197 = vsub.s32 0, %v196
      %v198 = vrot.slane %v193, %v197
      %v202 = vunpack.c.l.b16 %v175
      %v203 = vunpack.c.l.b16 %v176
      %v204 = vpack.c.b16 %v203, %v202
      %v222 = vunpack.c.l.b16 %v177
      %v223 = vunpack.c.l.b16 %v178
      %v224 = vunpack.c.l.b16 %v179
      %v225 = vunpack.c.l.b16 %v180
      %v226 = vunpack.c.l.b16 %v181
      %v227 = vunpack.c.l.b16 %v182
      %v228 = vunpack.c.l.b16 %v183
      %v229 = vunpack.c.l.b16 %v184
      %v230 = vunpack.c.l.b16 %v185
      %v231 = vunpack.c.l.b16 %v186
      %v232 = vunpack.c.l.b16 %v187
      %v233 = vunpack.c.l.b16 %v188
      %v234 = vunpack.c.l.b16 %v189
      %v235 = vunpack.c.l.b16 %v190
      %v236 = vunpack.c.l.b16 %v191
      %v237 = vunpack.c.l.b16 %v192
      %v238 = vpack.c.b16 %v223, %v222
      %v239 = vpack.c.b16 %v225, %v224
      %v240 = vpack.c.b16 %v227, %v226
      %v241 = vpack.c.b16 %v229, %v228
      %v242 = vpack.c.b16 %v231, %v230
      %v243 = vpack.c.b16 %v233, %v232
      %v244 = vpack.c.b16 %v235, %v234
      %v245 = vpack.c.b16 %v237, %v236
      %254 = vmatprep.subr.bf16.mxu0 0
      %255 = vmatpush1.bf16.msra.mxu0 %v238
      %256 = vmatprep.subr.bf16.mxu0 0
      %257 = vmatpush1.bf16.msra.mxu0 %v239
      %258 = vmatprep.subr.bf16.mxu0 0
      %259 = vmatpush1.bf16.msra.mxu0 %v240
      %260 = vmatprep.subr.bf16.mxu0 0
      %261 = vmatpush1.bf16.msra.mxu0 %v241
      %262 = vmatprep.subr.bf16.mxu0 0
      %263 = vmatpush1.bf16.msra.mxu0 %v242
      %264 = vmatprep.subr.bf16.mxu0 0
      %265 = vmatpush1.bf16.msra.mxu0 %v243
      %266 = vmatprep.subr.bf16.mxu0 0
      %267 = vmatpush1.bf16.msra.mxu0 %v244
      %268 = vmatprep.subr.bf16.mxu0 0
      %269 = vmatpush1.bf16.msra.mxu0 %v245
      %270 = vmatprep.subr.bf16.mxu0 0
      %271 = vmatpush1.bf16.msra.mxu0 0
      %272 = vmatprep.subr.bf16.mxu0 0
      %273 = vmatpush1.bf16.msra.mxu0 0
      %274 = vmatprep.subr.bf16.mxu0 0
      %275 = vmatpush1.bf16.msra.mxu0 0
      %276 = vmatprep.subr.bf16.mxu0 0
      %277 = vmatpush1.bf16.msra.mxu0 0
      %278 = vmatprep.subr.bf16.mxu0 0
      %279 = vmatpush1.bf16.msra.mxu0 0
      %280 = vmatprep.subr.bf16.mxu0 0
      %281 = vmatpush1.bf16.msra.mxu0 0
      %282 = vmatprep.subr.bf16.mxu0 0
      %283 = vmatpush1.bf16.msra.mxu0 0
      %284 = vmatprep.subr.bf16.mxu0 0
      %285 = vmatpush1.bf16.msra.mxu0 0
      %286 = vmatprep.mubr.bf16.mxu0 0
      %287 = vmatmul.mubr.bf16.gmra.mrb[0].mxu0 %v204
      %v288 = vpop.f32.mrb[0].mxu0
      %v289 = vadd.f32 %v198, %v288
      %v290 = vpop.f32.mrb[0].mxu0
      %v291 = vpop.f32.mrb[0].mxu0
      %v292 = vadd.f32 %v198, %v291
      %v293 = vpop.f32.mrb[0].mxu0
      %294 = vdwg.mxu0
      %v295 = vpack.c.bf16 %v292, %v289
      %v297 = vunpack.c.l.b16 %v295
      %v298 = vunpack.c.h.b16 %v295
      %v299 = vpack.c.b16 %v297, %v297
      %v300 = vpack.c.b16 %v298, %v298
      %303 = vst [vmem:[%s172] sm:$0xf] %v299
      %304 = vst [vmem:[%s172 + $0x4] sm:$0xf] %v300
      %s305 = smul.u32 2, %s14
      %p306 = scmp.lt.s32.totalorder %s305, 3
      %s307 = scalar_select %p306, %s305, 3
      %s308 = smul.addr %s307, 4
      %s309 = scalar_lea.vmem %s3, %s308
      // Predicated region
      $region33: #{_lambda_.22} parent=31 // pred_check
        %p310 = pneg %p100
      $region34: #{_lambda_.22} parent=31 // pred_check_branch
        %312 = sbr.rel (%p310) target = $region36
      $region35: #{_lambda_.22} parent=31 // pred_region
        %s313 = smul.u32 2, %s14
      $region36: #{_lambda_.22} parent=31 // pred_fallthru
        _
    $region32: #{_lambda_.22} parent=5 // pred_fallthru
      _
    %p314 = scmp.le.s32.totalorder 2, %s9
    // Predicated region
    $region37: #{_lambda_.22} parent=5 // pred_check
      %p315 = pneg %p314
    $region38: #{_lambda_.22} parent=5 // pred_check_branch
      %317 = sbr.rel (%p315) target = $region40
    $region39: #{_lambda_.22} parent=5 // pred_region
      %s318 = ssub.s32 %s9, 2
      // Predicated region
      $region41: #{_lambda_.22} parent=39 // pred_check
        %p319 = pneg %p106
      $region42: #{_lambda_.22} parent=39 // pred_check_branch
        %321 = sbr.rel (%p319) target = $region44
      $region43: #{_lambda_.22} parent=39 // pred_region
        %s322 = smul.u32 2, %s15
        %p323 = scmp.lt.s32.totalorder %s322, 3
        %s324 = scalar_select %p323, %s322, 3
        %s325 = smul.addr %s324, 4
        %s326 = scalar_lea.vmem %s3, %s325
      $region44: #{_lambda_.22} parent=39 // pred_fallthru
        _
    $region40: #{_lambda_.22} parent=5 // pred_fallthru
      _
  $region6: #{_lambda_.22} parent=0 // loop_footer
    %s13 = sadd.s32 1, %s9
  $region7: #{_lambda_.22} parent=0 // loop_footer_branch
    %8 = sbr.rel target = $region3
  $region8: #{_lambda_.22} parent=0 // loop_exit
    _

// kernel: _lambda_.21
$region0: #{_lambda_.21}
  #allocation0 [shape = 'u32[]', space=smem, size = 0x4, offset = 0x4, fixed_abs, tag = 'smem constant byte address 0x4 - core index']
  #allocation1 [shape = 'u32[144,128]{1,0:T(1,128)}', space=vmem, size = 0x12000, scoped, tag = 'internal scratch']
  %s0 = inlined_call_operand.vmem [shape: bf16[32,256], index: 0, kind: input, shape index: {}]
  %s1 = inlined_call_operand.vmem [shape: bf16[256,128], index: 1, kind: input, shape index: {}]
  %s2 = inlined_call_operand.vmem [shape: f32[1,128], index: 2, kind: input, shape index: {}]
  %s3 = inlined_call_operand.vmem [shape: bf16[32,128], index: 3, kind: output, shape index: {}]
  %s4 = sld [smem:[#allocation0]]
  $region45: #{_lambda_.21} parent=0
    _
  %s6 = ssub.s32 1, %s4
  %s7 = scalar_select 0, %s6, %s4
  loop: start=0, step=1, limit=4
  $region2: #{_lambda_.21} parent=0 // loop_pre_header
    _
  $region3: #{_lambda_.21} parent=0 // loop_header
    %s9 = sphi 0, %s13
    %p10 = scmp.ge.s32.totalorder %s9, 4
    %s19 = sphi 0, %s21
    %s22 = sphi 0, %s19
    %s23 = sphi 0, %s22
    %s39 = sphi 0, %s23
    %s43 = sphi 0, %s43
    %s45 = sphi 0, %s43
    %s46 = sphi 0, %s45
    %s60 = sphi 0, %s46
    %s64 = sphi 0, %s64
    %s66 = sphi 0, %s64
    %s67 = sphi 0, %s66
    %s81 = sphi 0, %s67
    %s87 = sphi 0, %s89
    %s90 = sphi 0, %s87
    %s91 = sphi 0, %s90
    %s107 = sphi 0, %s91
  $region4: #{_lambda_.21} parent=0 // loop_header_branch
    %12 = sbr.rel (%p10) target = $region8
  $region5: #{_lambda_.21} parent=0 // loop_body
    %s14 = ssub.s32 %s9, 1
    %s15 = ssub.s32 %s9, 2
    %s16 = sadd.s32 %s9, 1
    %s17 = ssub.s32 %s9, %s16
    %p18 = scmp.eq.s32.totalorder %s17, 0
    %s20 = sadd.s32 %s19, 1
    %s21 = scalar_select %p18, %s19, %s20
    %p24 = pneg %p18
    %p25 = scmp.eq.s32.totalorder %s9, 1
    %p26 = por %p24, %p25
    %p27 = scmp.ne.s32.totalorder %s19, %s22
    %p28 = scmp.eq.s32.totalorder %s9, 0
    %p29 = por %p27, %p28
    %p30 = scmp.ne.s32.totalorder %s19, %s22
    %p31 = scmp.eq.s32.totalorder %s14, 1
    %p32 = por %p30, %p31
    %p33 = scmp.ne.s32.totalorder %s22, %s23
    %p34 = scmp.eq.s32.totalorder %s14, 0
    %p35 = por %p33, %p34
    %p36 = scmp.ne.s32.totalorder %s22, %s23
    %p37 = scmp.eq.s32.totalorder %s15, 1
    %p38 = por %p36, %p37
    %p40 = scmp.ne.s32.totalorder %s23, %s39
    %p41 = scmp.eq.s32.totalorder %s15, 0
    %p42 = por %p40, %p41
    %s44 = sadd.s32 %s43, 1
    %p47 = scmp.eq.s32.totalorder %s9, 1
    %p48 = scmp.ne.s32.totalorder %s43, %s45
    %p49 = scmp.eq.s32.totalorder %s9, 0
    %p50 = por %p48, %p49
    %p51 = scmp.ne.s32.totalorder %s43, %s45
    %p52 = scmp.eq.s32.totalorder %s14, 1
    %p53 = por %p51, %p52
    %p54 = scmp.ne.s32.totalorder %s45, %s46
    %p55 = scmp.eq.s32.totalorder %s14, 0
    %p56 = por %p54, %p55
    %p57 = scmp.ne.s32.totalorder %s45, %s46
    %p58 = scmp.eq.s32.totalorder %s15, 1
    %p59 = por %p57, %p58
    %p61 = scmp.ne.s32.totalorder %s46, %s60
    %p62 = scmp.eq.s32.totalorder %s15, 0
    %p63 = por %p61, %p62
    %s65 = sadd.s32 %s64, 1
    %p68 = scmp.eq.s32.totalorder %s9, 1
    %p69 = scmp.ne.s32.totalorder %s64, %s66
    %p70 = scmp.eq.s32.totalorder %s9, 0
    %p71 = por %p69, %p70
    %p72 = scmp.ne.s32.totalorder %s64, %s66
    %p73 = scmp.eq.s32.totalorder %s14, 1
    %p74 = por %p72, %p73
    %p75 = scmp.ne.s32.totalorder %s66, %s67
    %p76 = scmp.eq.s32.totalorder %s14, 0
    %p77 = por %p75, %p76
    %p78 = scmp.ne.s32.totalorder %s66, %s67
    %p79 = scmp.eq.s32.totalorder %s15, 1
    %p80 = por %p78, %p79
    %p82 = scmp.ne.s32.totalorder %s67, %s81
    %p83 = scmp.eq.s32.totalorder %s15, 0
    %p84 = por %p82, %p83
    %s85 = ssub.s32 %s9, %s16
    %p86 = scmp.eq.s32.totalorder %s85, 0
    %s88 = sadd.s32 %s87, 1
    %s89 = scalar_select %p86, %s87, %s88
    %p92 = pneg %p86
    %p93 = scmp.eq.s32.totalorder %s9, 1
    %p94 = por %p92, %p93
    %p95 = scmp.ne.s32.totalorder %s87, %s90
    %p96 = scmp.eq.s32.totalorder %s9, 0
    %p97 = por %p95, %p96
    %p98 = scmp.ne.s32.totalorder %s87, %s90
    %p99 = scmp.eq.s32.totalorder %s14, 1
    %p100 = por %p98, %p99
    %p101 = scmp.ne.s32.totalorder %s90, %s91
    %p102 = scmp.eq.s32.totalorder %s14, 0
    %p103 = por %p101, %p102
    %p104 = scmp.ne.s32.totalorder %s90, %s91
    %p105 = scmp.eq.s32.totalorder %s15, 1
    %p106 = por %p104, %p105
    %p108 = scmp.ne.s32.totalorder %s91, %s107
    %p109 = scmp.eq.s32.totalorder %s15, 0
    %p110 = por %p108, %p109
    %p111 = scmp.le.s32.totalorder 1, %s9
    %p112 = scmp.lt.s32.totalorder %s9, 3
    %p113 = pnand %p111, %p112
    %p114 = pneg %p113
    // Predicated region
    $region9: #{_lambda_.21} parent=5 // pred_check
      _
    $region10: #{_lambda_.21} parent=5 // pred_check_branch
      %116 = sbr.rel (%p113) target = $region12
    $region11: #{_lambda_.21} parent=5 // pred_region
      %s117 = ssub.s32 %s9, 1
      // Predicated region
      $region13: #{_lambda_.21} parent=11 // pred_check
        %p118 = pneg %p56
      $region14: #{_lambda_.21} parent=11 // pred_check_branch
        %120 = sbr.rel (%p118) target = $region16
      $region15: #{_lambda_.21} parent=11 // pred_region
        _
      $region16: #{_lambda_.21} parent=11 // pred_fallthru
        _
      // Predicated region
      $region17: #{_lambda_.21} parent=11 // pred_check
        %p121 = pneg %p77
      $region18: #{_lambda_.21} parent=11 // pred_check_branch
        %123 = sbr.rel (%p121) target = $region20
      $region19: #{_lambda_.21} parent=11 // pred_region
        _
      $region20: #{_lambda_.21} parent=11 // pred_fallthru
        _
    $region12: #{_lambda_.21} parent=5 // pred_fallthru
      _
    %p124 = scmp.lt.s32.totalorder %s9, 2
    // Predicated region
    $region21: #{_lambda_.21} parent=5 // pred_check
      %p125 = pneg %p124
    $region22: #{_lambda_.21} parent=5 // pred_check_branch
      %127 = sbr.rel (%p125) target = $region24
    $region23: #{_lambda_.21} parent=5 // pred_region
      // Predicated region
      $region25: #{_lambda_.21} parent=23 // pred_check
        %p128 = pneg %p29
      $region26: #{_lambda_.21} parent=23 // pred_check_branch
        %130 = sbr.rel (%p128) target = $region28
      $region27: #{_lambda_.21} parent=23 // pred_region
        %s131 = smul.u32 2, %s9
        %p132 = scmp.lt.s32.totalorder %s131, 3
        %s133 = scalar_select %p132, %s131, 3
        %s134 = smul.addr %s133, 2
        %s135 = smul.addr %s134, 4
        %s136 = scalar_lea.vmem %s0, %s135
        %s137 = smul.u32 2, %s9
      $region28: #{_lambda_.21} parent=23 // pred_fallthru
        _
    $region24: #{_lambda_.21} parent=5 // pred_fallthru
      _
    %p138 = scmp.le.s32.totalorder 1, %s9
    %p139 = scmp.lt.s32.totalorder %s9, 3
    %p140 = pnand %p138, %p139
    %p141 = pneg %p140
    // Predicated region
    $region29: #{_lambda_.21} parent=5 // pred_check
      _
    $region30: #{_lambda_.21} parent=5 // pred_check_branch
      %143 = sbr.rel (%p140) target = $region32
    $region31: #{_lambda_.21} parent=5 // pred_region
      %s144 = ssub.s32 %s9, 1
      %s145 = smul.u32 2, %s14
      %p146 = scmp.lt.s32.totalorder %s145, 3
      %s147 = scalar_select %p146, %s145, 3
      %s148 = smul.addr %s147, 2
      %s149 = smul.addr %s148, 4
      %s150 = scalar_lea.vmem %s0, %s149
      %p151 = pneg %p35
      %p152 = pneg %p32
      %p153 = pneg %p56
      %p154 = pneg %p53
      %p155 = pneg %p77
      %p156 = pneg %p74
      %p157 = pneg %p103
      %p158 = pneg %p100
      %s159 = smul.u32 2, %s14
      %p160 = scmp.lt.s32.totalorder %s159, 3
      %s161 = scalar_select %p160, %s159, 3
      %s162 = smul.addr %s161, 4
      %s163 = scalar_lea.vmem %s3, %s162
      %s164 = smul.u32 2, %s14
      %p165 = scmp.lt.s32.totalorder %s164, 3
      %s166 = scalar_select %p165, %s164, 3
      %s167 = smul.addr %s166, 2
      %s168 = smul.addr %s167, 4
      %s169 = scalar_lea.vmem %s0, %s168
      %s170 = smul.u32 2, %s14
      %s171 = smul.u32 2, %s14
      %p172 = scmp.lt.s32.totalorder %s171, 3
      %s173 = scalar_select %p172, %s171, 3
      %s174 = smul.addr %s173, 4
      %s175 = scalar_lea.vmem %s3, %s174
      %s176 = smul.u32 2, %s14
      %v178 = vld [vmem:[%s169] sm:$0xff]
      %v179 = vld [vmem:[%s169 + $0x8] sm:$0xff]
      %v180 = vld [vmem:[%s1] sm:$0xf]
      %v181 = vld [vmem:[%s1 + $0x4] sm:$0xf]
      %v182 = vld [vmem:[%s1 + $0x8] sm:$0xf]
      %v183 = vld [vmem:[%s1 + $0xc] sm:$0xf]
      %v184 = vld [vmem:[%s1 + $0x10] sm:$0xf]
      %v185 = vld [vmem:[%s1 + $0x14] sm:$0xf]
      %v186 = vld [vmem:[%s1 + $0x18] sm:$0xf]
      %v187 = vld [vmem:[%s1 + $0x1c] sm:$0xf]
      %v188 = vld [vmem:[%s1 + $0x20] sm:$0xf]
      %v189 = vld [vmem:[%s1 + $0x24] sm:$0xf]
      %v190 = vld [vmem:[%s1 + $0x28] sm:$0xf]
      %v191 = vld [vmem:[%s1 + $0x2c] sm:$0xf]
      %v192 = vld [vmem:[%s1 + $0x30] sm:$0xf]
      %v193 = vld [vmem:[%s1 + $0x34] sm:$0xf]
      %v194 = vld [vmem:[%s1 + $0x38] sm:$0xf]
      %v195 = vld [vmem:[%s1 + $0x3c] sm:$0xf]
      %v196 = vld [vmem:[%s1 + $0x40] sm:$0xf]
      %v197 = vld [vmem:[%s1 + $0x44] sm:$0xf]
      %v198 = vld [vmem:[%s1 + $0x48] sm:$0xf]
      %v199 = vld [vmem:[%s1 + $0x4c] sm:$0xf]
      %v200 = vld [vmem:[%s1 + $0x50] sm:$0xf]
      %v201 = vld [vmem:[%s1 + $0x54] sm:$0xf]
      %v202 = vld [vmem:[%s1 + $0x58] sm:$0xf]
      %v203 = vld [vmem:[%s1 + $0x5c] sm:$0xf]
      %v204 = vld [vmem:[%s1 + $0x60] sm:$0xf]
      %v205 = vld [vmem:[%s1 + $0x64] sm:$0xf]
      %v206 = vld [vmem:[%s1 + $0x68] sm:$0xf]
      %v207 = vld [vmem:[%s1 + $0x6c] sm:$0xf]
      %v208 = vld [vmem:[%s1 + $0x70] sm:$0xf]
      %v209 = vld [vmem:[%s1 + $0x74] sm:$0xf]
      %v210 = vld [vmem:[%s1 + $0x78] sm:$0xf]
      %v211 = vld [vmem:[%s1 + $0x7c] sm:$0xf]
      %v212 = vld [vmem:[%s2] sm:$0x1]
      %v214 = vlaneseq
      %v215 = vshrl.u32 %v214, 7
      %v216 = vsub.s32 0, %v215
      %v217 = vrot.slane %v212, %v216
      %v221 = vunpack.c.l.b16 %v178
      %v222 = vunpack.c.h.b16 %v178
      %v223 = vunpack.c.l.b16 %v179
      %v224 = vunpack.c.h.b16 %v179
      %v225 = vpack.c.b16 %v223, %v221
      %v226 = vpack.c.b16 %v224, %v222
      %v261 = vunpack.c.l.b16 %v180
      %v262 = vunpack.c.l.b16 %v181
      %v263 = vunpack.c.l.b16 %v182
      %v264 = vunpack.c.l.b16 %v183
      %v265 = vunpack.c.l.b16 %v184
      %v266 = vunpack.c.l.b16 %v185
      %v267 = vunpack.c.l.b16 %v186
      %v268 = vunpack.c.l.b16 %v187
      %v269 = vunpack.c.l.b16 %v188
      %v270 = vunpack.c.l.b16 %v189
      %v271 = vunpack.c.l.b16 %v190
      %v272 = vunpack.c.l.b16 %v191
      %v273 = vunpack.c.l.b16 %v192
      %v274 = vunpack.c.l.b16 %v193
      %v275 = vunpack.c.l.b16 %v194
      %v276 = vunpack.c.l.b16 %v195
      %v277 = vunpack.c.l.b16 %v196
      %v278 = vunpack.c.l.b16 %v197
      %v279 = vunpack.c.l.b16 %v198
      %v280 = vunpack.c.l.b16 %v199
      %v281 = vunpack.c.l.b16 %v200
      %v282 = vunpack.c.l.b16 %v201
      %v283 = vunpack.c.l.b16 %v202
      %v284 = vunpack.c.l.b16 %v203
      %v285 = vunpack.c.l.b16 %v204
      %v286 = vunpack.c.l.b16 %v205
      %v287 = vunpack.c.l.b16 %v206
      %v288 = vunpack.c.l.b16 %v207
      %v289 = vunpack.c.l.b16 %v208
      %v290 = vunpack.c.l.b16 %v209
      %v291 = vunpack.c.l.b16 %v210
      %v292 = vunpack.c.l.b16 %v211
      %v293 = vpack.c.b16 %v262, %v261
      %v294 = vpack.c.b16 %v264, %v263
      %v295 = vpack.c.b16 %v266, %v265
      %v296 = vpack.c.b16 %v268, %v267
      %v297 = vpack.c.b16 %v270, %v269
      %v298 = vpack.c.b16 %v272, %v271
      %v299 = vpack.c.b16 %v274, %v273
      %v300 = vpack.c.b16 %v276, %v275
      %v301 = vpack.c.b16 %v278, %v277
      %v302 = vpack.c.b16 %v280, %v279
      %v303 = vpack.c.b16 %v282, %v281
      %v304 = vpack.c.b16 %v284, %v283
      %v305 = vpack.c.b16 %v286, %v285
      %v306 = vpack.c.b16 %v288, %v287
      %v307 = vpack.c.b16 %v290, %v289
      %v308 = vpack.c.b16 %v292, %v291
      %325 = vmatprep.subr.bf16.mxu0 0
      %326 = vmatpush1.bf16.msra.mxu0 %v293
      %327 = vmatprep.subr.bf16.mxu0 0
      %328 = vmatpush1.bf16.msra.mxu0 %v294
      %329 = vmatprep.subr.bf16.mxu0 0
      %330 = vmatpush1.bf16.msra.mxu0 %v295
      %331 = vmatprep.subr.bf16.mxu0 0
      %332 = vmatpush1.bf16.msra.mxu0 %v296
      %333 = vmatprep.subr.bf16.mxu0 0
      %334 = vmatpush1.bf16.msra.mxu0 %v297
      %335 = vmatprep.subr.bf16.mxu0 0
      %336 = vmatpush1.bf16.msra.mxu0 %v298
      %337 = vmatprep.subr.bf16.mxu0 0
      %338 = vmatpush1.bf16.msra.mxu0 %v299
      %339 = vmatprep.subr.bf16.mxu0 0
      %340 = vmatpush1.bf16.msra.mxu0 %v300
      %341 = vmatprep.subr.bf16.mxu0 0
      %342 = vmatpush1.bf16.msra.mxu0 %v301
      %343 = vmatprep.subr.bf16.mxu0 0
      %344 = vmatpush1.bf16.msra.mxu0 %v302
      %345 = vmatprep.subr.bf16.mxu0 0
      %346 = vmatpush1.bf16.msra.mxu0 %v303
      %347 = vmatprep.subr.bf16.mxu0 0
      %348 = vmatpush1.bf16.msra.mxu0 %v304
      %349 = vmatprep.subr.bf16.mxu0 0
      %350 = vmatpush1.bf16.msra.mxu0 %v305
      %351 = vmatprep.subr.bf16.mxu0 0
      %352 = vmatpush1.bf16.msra.mxu0 %v306
      %353 = vmatprep.subr.bf16.mxu0 0
      %354 = vmatpush1.bf16.msra.mxu0 %v307
      %355 = vmatprep.subr.bf16.mxu0 0
      %356 = vmatpush1.bf16.msra.mxu0 %v308
      %357 = vmatprep.mubr.bf16.mxu0 %v226
      %358 = vmatmul.mubr.bf16.gmra.mrb[0].mxu0 %v225
      %v359 = vpop.f32.mrb[0].mxu0
      %v360 = vadd.f32 %v217, %v359
      %v361 = vpop.f32.mrb[0].mxu0
      %v362 = vpop.f32.mrb[0].mxu0
      %v363 = vadd.f32 %v217, %v362
      %v364 = vpop.f32.mrb[0].mxu0
      %365 = vdwg.mxu0
      %v366 = vmax.f32 %v360, 0.0
      %v367 = vmax.f32 %v363, 0.0
      %v368 = vpack.c.bf16 %v367, %v366
      %v370 = vunpack.c.l.b16 %v368
      %v371 = vunpack.c.h.b16 %v368
      %v372 = vpack.c.b16 %v370, %v370
      %v373 = vpack.c.b16 %v371, %v371
      %376 = vst [vmem:[%s175] sm:$0xf] %v372
      %377 = vst [vmem:[%s175 + $0x4] sm:$0xf] %v373
      %s378 = smul.u32 2, %s14
      %p379 = scmp.lt.s32.totalorder %s378, 3
      %s380 = scalar_select %p379, %s378, 3
      %s381 = smul.addr %s380, 4
      %s382 = scalar_lea.vmem %s3, %s381
      // Predicated region
      $region33: #{_lambda_.21} parent=31 // pred_check
        %p383 = pneg %p100
      $region34: #{_lambda_.21} parent=31 // pred_check_branch
        %385 = sbr.rel (%p383) target = $region36
      $region35: #{_lambda_.21} parent=31 // pred_region
        %s386 = smul.u32 2, %s14
      $region36: #{_lambda_.21} parent=31 // pred_fallthru
        _
    $region32: #{_lambda_.21} parent=5 // pred_fallthru
      _
    %p387 = scmp.le.s32.totalorder 2, %s9
    // Predicated region
    $region37: #{_lambda_.21} parent=5 // pred_check
      %p388 = pneg %p387
    $region38: #{_lambda_.21} parent=5 // pred_check_branch
      %390 = sbr.rel (%p388) target = $region40
    $region39: #{_lambda_.21} parent=5 // pred_region
      %s391 = ssub.s32 %s9, 2
      // Predicated region
      $region41: #{_lambda_.21} parent=39 // pred_check
        %p392 = pneg %p106
      $region42: #{_lambda_.21} parent=39 // pred_check_branch
        %394 = sbr.rel (%p392) target = $region44
      $region43: #{_lambda_.21} parent=39 // pred_region
        %s395 = smul.u32 2, %s15
        %p396 = scmp.lt.s32.totalorder %s395, 3
        %s397 = scalar_select %p396, %s395, 3
        %s398 = smul.addr %s397, 4
        %s399 = scalar_lea.vmem %s3, %s398
      $region44: #{_lambda_.21} parent=39 // pred_fallthru
        _
    $region40: #{_lambda_.21} parent=5 // pred_fallthru
      _
  $region6: #{_lambda_.21} parent=0 // loop_footer
    %s13 = sadd.s32 1, %s9
  $region7: #{_lambda_.21} parent=0 // loop_footer_branch
    %8 = sbr.rel target = $region3
  $region8: #{_lambda_.21} parent=0 // loop_exit
    _

// kernel: _lambda_.25
$region0: #{_lambda_.25}
  #allocation0 [shape = 'u32[]', space=smem, size = 0x4, offset = 0x4, fixed_abs, tag = 'smem constant byte address 0x4 - core index']
  #allocation1 [shape = 'u32[144,128]{1,0:T(1,128)}', space=vmem, size = 0x12000, scoped, tag = 'internal scratch']
  %s0 = inlined_call_operand.vmem [shape: bf16[8,128], index: 0, kind: input, shape index: {}]
  %s1 = inlined_call_operand.vmem [shape: bf16[128,128], index: 1, kind: input, shape index: {}]
  %s2 = inlined_call_operand.vmem [shape: f32[1,128], index: 2, kind: input, shape index: {}]
  %s3 = inlined_call_operand.vmem [shape: bf16[8,128], index: 3, kind: output, shape index: {}]
  %s4 = sld [smem:[#allocation0]]
  $region22: #{_lambda_.25} parent=0
    _
  %s6 = ssub.s32 1, %s4
  %s7 = scalar_select 0, %s6, %s4
  // Predicated region
  $region2: #{_lambda_.25} parent=0 // pred_check
    _
  $region3: #{_lambda_.25} parent=0 // pred_check_branch
    %9 = sbr.rel (0) target = $region5
  $region4: #{_lambda_.25} parent=0 // pred_region
    _
  $region5: #{_lambda_.25} parent=0 // pred_fallthru
    _
  // Predicated region
  $region6: #{_lambda_.25} parent=0 // pred_check
    _
  $region7: #{_lambda_.25} parent=0 // pred_check_branch
    %11 = sbr.rel (0) target = $region9
  $region8: #{_lambda_.25} parent=0 // pred_region
    _
  $region9: #{_lambda_.25} parent=0 // pred_fallthru
    _
  // Predicated region
  $region10: #{_lambda_.25} parent=0 // pred_check
    _
  $region11: #{_lambda_.25} parent=0 // pred_check_branch
    %13 = sbr.rel (0) target = $region13
  $region12: #{_lambda_.25} parent=0 // pred_region
    _
  $region13: #{_lambda_.25} parent=0 // pred_fallthru
    _
  %v15 = vld [vmem:[%s0] sm:$0xf]
  %v16 = vld [vmem:[%s1] sm:$0xf]
  %v17 = vld [vmem:[%s1 + $0x4] sm:$0xf]
  %v18 = vld [vmem:[%s1 + $0x8] sm:$0xf]
  %v19 = vld [vmem:[%s1 + $0xc] sm:$0xf]
  %v20 = vld [vmem:[%s1 + $0x10] sm:$0xf]
  %v21 = vld [vmem:[%s1 + $0x14] sm:$0xf]
  %v22 = vld [vmem:[%s1 + $0x18] sm:$0xf]
  %v23 = vld [vmem:[%s1 + $0x1c] sm:$0xf]
  %v24 = vld [vmem:[%s1 + $0x20] sm:$0xf]
  %v25 = vld [vmem:[%s1 + $0x24] sm:$0xf]
  %v26 = vld [vmem:[%s1 + $0x28] sm:$0xf]
  %v27 = vld [vmem:[%s1 + $0x2c] sm:$0xf]
  %v28 = vld [vmem:[%s1 + $0x30] sm:$0xf]
  %v29 = vld [vmem:[%s1 + $0x34] sm:$0xf]
  %v30 = vld [vmem:[%s1 + $0x38] sm:$0xf]
  %v31 = vld [vmem:[%s1 + $0x3c] sm:$0xf]
  %v32 = vld [vmem:[%s2] sm:$0x1]
  %v34 = vlaneseq
  %v35 = vshrl.u32 %v34, 7
  %v36 = vsub.s32 0, %v35
  %v37 = vrot.slane %v32, %v36
  %v55 = vunpack.c.l.b16 %v16
  %v56 = vunpack.c.l.b16 %v17
  %v57 = vunpack.c.l.b16 %v18
  %v58 = vunpack.c.l.b16 %v19
  %v59 = vunpack.c.l.b16 %v20
  %v60 = vunpack.c.l.b16 %v21
  %v61 = vunpack.c.l.b16 %v22
  %v62 = vunpack.c.l.b16 %v23
  %v63 = vunpack.c.l.b16 %v24
  %v64 = vunpack.c.l.b16 %v25
  %v65 = vunpack.c.l.b16 %v26
  %v66 = vunpack.c.l.b16 %v27
  %v67 = vunpack.c.l.b16 %v28
  %v68 = vunpack.c.l.b16 %v29
  %v69 = vunpack.c.l.b16 %v30
  %v70 = vunpack.c.l.b16 %v31
  %v71 = vpack.c.b16 %v56, %v55
  %v72 = vpack.c.b16 %v58, %v57
  %v73 = vpack.c.b16 %v60, %v59
  %v74 = vpack.c.b16 %v62, %v61
  %v75 = vpack.c.b16 %v64, %v63
  %v76 = vpack.c.b16 %v66, %v65
  %v77 = vpack.c.b16 %v68, %v67
  %v78 = vpack.c.b16 %v70, %v69
  %87 = vmatprep.subr.bf16.mxu0 0
  %88 = vmatpush1.bf16.msra.mxu0 %v71
  %89 = vmatprep.subr.bf16.mxu0 0
  %90 = vmatpush1.bf16.msra.mxu0 %v72
  %91 = vmatprep.subr.bf16.mxu0 0
  %92 = vmatpush1.bf16.msra.mxu0 %v73
  %93 = vmatprep.subr.bf16.mxu0 0
  %94 = vmatpush1.bf16.msra.mxu0 %v74
  %95 = vmatprep.subr.bf16.mxu0 0
  %96 = vmatpush1.bf16.msra.mxu0 %v75
  %97 = vmatprep.subr.bf16.mxu0 0
  %98 = vmatpush1.bf16.msra.mxu0 %v76
  %99 = vmatprep.subr.bf16.mxu0 0
  %100 = vmatpush1.bf16.msra.mxu0 %v77
  %101 = vmatprep.subr.bf16.mxu0 0
  %102 = vmatpush1.bf16.msra.mxu0 %v78
  %103 = vmatprep.subr.bf16.mxu0 0
  %104 = vmatpush1.bf16.msra.mxu0 0
  %105 = vmatprep.subr.bf16.mxu0 0
  %106 = vmatpush1.bf16.msra.mxu0 0
  %107 = vmatprep.subr.bf16.mxu0 0
  %108 = vmatpush1.bf16.msra.mxu0 0
  %109 = vmatprep.subr.bf16.mxu0 0
  %110 = vmatpush1.bf16.msra.mxu0 0
  %111 = vmatprep.subr.bf16.mxu0 0
  %112 = vmatpush1.bf16.msra.mxu0 0
  %113 = vmatprep.subr.bf16.mxu0 0
  %114 = vmatpush1.bf16.msra.mxu0 0
  %115 = vmatprep.subr.bf16.mxu0 0
  %116 = vmatpush1.bf16.msra.mxu0 0
  %117 = vmatprep.subr.bf16.mxu0 0
  %118 = vmatpush1.bf16.msra.mxu0 0
  %119 = vmatprep.mubr.bf16.mxu0 0
  %120 = vmatmul.mubr.bf16.gmra.mrb[0].mxu0 %v15
  %v121 = vpop.f32.mrb[0].mxu0
  %v122 = vadd.f32 %v37, %v121
  %v123 = vpop.f32.mrb[0].mxu0
  %v124 = vpop.f32.mrb[0].mxu0
  %v125 = vpop.f32.mrb[0].mxu0
  %126 = vdwg.mxu0
  %v127 = vpack.c.bf16 %v122, %v122
  %128 = vst [vmem:[%s3] sm:$0xf] %v127
  // Predicated region
  $region14: #{_lambda_.25} parent=0 // pred_check
    _
  $region15: #{_lambda_.25} parent=0 // pred_check_branch
    %130 = sbr.rel (0) target = $region17
  $region16: #{_lambda_.25} parent=0 // pred_region
    _
  $region17: #{_lambda_.25} parent=0 // pred_fallthru
    _
  // Predicated region
  $region18: #{_lambda_.25} parent=0 // pred_check
    _
  $region19: #{_lambda_.25} parent=0 // pred_check_branch
    %132 = sbr.rel (0) target = $region21
  $region20: #{_lambda_.25} parent=0 // pred_region
    _
  $region21: #{_lambda_.25} parent=0 // pred_fallthru
    _

// kernel: _lambda_.23
$region0: #{_lambda_.23}
  #allocation0 [shape = 'u32[]', space=smem, size = 0x4, offset = 0x4, fixed_abs, tag = 'smem constant byte address 0x4 - core index']
  #allocation1 [shape = 'u32[144,128]{1,0:T(1,128)}', space=vmem, size = 0x12000, scoped, tag = 'internal scratch']
  %s0 = inlined_call_operand.vmem [shape: bf16[32,384], index: 0, kind: input, shape index: {}]
  %s1 = inlined_call_operand.vmem [shape: bf16[384,128], index: 1, kind: input, shape index: {}]
  %s2 = inlined_call_operand.vmem [shape: f32[1,128], index: 2, kind: input, shape index: {}]
  %s3 = inlined_call_operand.vmem [shape: bf16[32,128], index: 3, kind: input, shape index: {}]
  %s4 = inlined_call_operand.vmem [shape: bf16[32,128], index: 4, kind: output, shape index: {}]
  %s5 = sld [smem:[#allocation0]]
  $region49: #{_lambda_.23} parent=0
    _
  %s7 = ssub.s32 1, %s5
  %s8 = scalar_select 0, %s7, %s5
  loop: start=0, step=1, limit=4
  $region2: #{_lambda_.23} parent=0 // loop_pre_header
    _
  $region3: #{_lambda_.23} parent=0 // loop_header
    %s10 = sphi 0, %s14
    %p11 = scmp.ge.s32.totalorder %s10, 4
    %s20 = sphi 0, %s22
    %s23 = sphi 0, %s20
    %s24 = sphi 0, %s23
    %s40 = sphi 0, %s24
    %s44 = sphi 0, %s44
    %s46 = sphi 0, %s44
    %s47 = sphi 0, %s46
    %s61 = sphi 0, %s47
    %s65 = sphi 0, %s65
    %s67 = sphi 0, %s65
    %s68 = sphi 0, %s67
    %s82 = sphi 0, %s68
    %s88 = sphi 0, %s90
    %s91 = sphi 0, %s88
    %s92 = sphi 0, %s91
    %s108 = sphi 0, %s92
    %s114 = sphi 0, %s116
    %s117 = sphi 0, %s114
    %s118 = sphi 0, %s117
    %s134 = sphi 0, %s118
  $region4: #{_lambda_.23} parent=0 // loop_header_branch
    %13 = sbr.rel (%p11) target = $region8
  $region5: #{_lambda_.23} parent=0 // loop_body
    %s15 = ssub.s32 %s10, 1
    %s16 = ssub.s32 %s10, 2
    %s17 = sadd.s32 %s10, 1
    %s18 = ssub.s32 %s10, %s17
    %p19 = scmp.eq.s32.totalorder %s18, 0
    %s21 = sadd.s32 %s20, 1
    %s22 = scalar_select %p19, %s20, %s21
    %p25 = pneg %p19
    %p26 = scmp.eq.s32.totalorder %s10, 1
    %p27 = por %p25, %p26
    %p28 = scmp.ne.s32.totalorder %s20, %s23
    %p29 = scmp.eq.s32.totalorder %s10, 0
    %p30 = por %p28, %p29
    %p31 = scmp.ne.s32.totalorder %s20, %s23
    %p32 = scmp.eq.s32.totalorder %s15, 1
    %p33 = por %p31, %p32
    %p34 = scmp.ne.s32.totalorder %s23, %s24
    %p35 = scmp.eq.s32.totalorder %s15, 0
    %p36 = por %p34, %p35
    %p37 = scmp.ne.s32.totalorder %s23, %s24
    %p38 = scmp.eq.s32.totalorder %s16, 1
    %p39 = por %p37, %p38
    %p41 = scmp.ne.s32.totalorder %s24, %s40
    %p42 = scmp.eq.s32.totalorder %s16, 0
    %p43 = por %p41, %p42
    %s45 = sadd.s32 %s44, 1
    %p48 = scmp.eq.s32.totalorder %s10, 1
    %p49 = scmp.ne.s32.totalorder %s44, %s46
    %p50 = scmp.eq.s32.totalorder %s10, 0
    %p51 = por %p49, %p50
    %p52 = scmp.ne.s32.totalorder %s44, %s46
    %p53 = scmp.eq.s32.totalorder %s15, 1
    %p54 = por %p52, %p53
    %p55 = scmp.ne.s32.totalorder %s46, %s47
    %p56 = scmp.eq.s32.totalorder %s15, 0
    %p57 = por %p55, %p56
    %p58 = scmp.ne.s32.totalorder %s46, %s47
    %p59 = scmp.eq.s32.totalorder %s16, 1
    %p60 = por %p58, %p59
    %p62 = scmp.ne.s32.totalorder %s47, %s61
    %p63 = scmp.eq.s32.totalorder %s16, 0
    %p64 = por %p62, %p63
    %s66 = sadd.s32 %s65, 1
    %p69 = scmp.eq.s32.totalorder %s10, 1
    %p70 = scmp.ne.s32.totalorder %s65, %s67
    %p71 = scmp.eq.s32.totalorder %s10, 0
    %p72 = por %p70, %p71
    %p73 = scmp.ne.s32.totalorder %s65, %s67
    %p74 = scmp.eq.s32.totalorder %s15, 1
    %p75 = por %p73, %p74
    %p76 = scmp.ne.s32.totalorder %s67, %s68
    %p77 = scmp.eq.s32.totalorder %s15, 0
    %p78 = por %p76, %p77
    %p79 = scmp.ne.s32.totalorder %s67, %s68
    %p80 = scmp.eq.s32.totalorder %s16, 1
    %p81 = por %p79, %p80
    %p83 = scmp.ne.s32.totalorder %s68, %s82
    %p84 = scmp.eq.s32.totalorder %s16, 0
    %p85 = por %p83, %p84
    %s86 = ssub.s32 %s10, %s17
    %p87 = scmp.eq.s32.totalorder %s86, 0
    %s89 = sadd.s32 %s88, 1
    %s90 = scalar_select %p87, %s88, %s89
    %p93 = pneg %p87
    %p94 = scmp.eq.s32.totalorder %s10, 1
    %p95 = por %p93, %p94
    %p96 = scmp.ne.s32.totalorder %s88, %s91
    %p97 = scmp.eq.s32.totalorder %s10, 0
    %p98 = por %p96, %p97
    %p99 = scmp.ne.s32.totalorder %s88, %s91
    %p100 = scmp.eq.s32.totalorder %s15, 1
    %p101 = por %p99, %p100
    %p102 = scmp.ne.s32.totalorder %s91, %s92
    %p103 = scmp.eq.s32.totalorder %s15, 0
    %p104 = por %p102, %p103
    %p105 = scmp.ne.s32.totalorder %s91, %s92
    %p106 = scmp.eq.s32.totalorder %s16, 1
    %p107 = por %p105, %p106
    %p109 = scmp.ne.s32.totalorder %s92, %s108
    %p110 = scmp.eq.s32.totalorder %s16, 0
    %p111 = por %p109, %p110
    %s112 = ssub.s32 %s10, %s17
    %p113 = scmp.eq.s32.totalorder %s112, 0
    %s115 = sadd.s32 %s114, 1
    %s116 = scalar_select %p113, %s114, %s115
    %p119 = pneg %p113
    %p120 = scmp.eq.s32.totalorder %s10, 1
    %p121 = por %p119, %p120
    %p122 = scmp.ne.s32.totalorder %s114, %s117
    %p123 = scmp.eq.s32.totalorder %s10, 0
    %p124 = por %p122, %p123
    %p125 = scmp.ne.s32.totalorder %s114, %s117
    %p126 = scmp.eq.s32.totalorder %s15, 1
    %p127 = por %p125, %p126
    %p128 = scmp.ne.s32.totalorder %s117, %s118
    %p129 = scmp.eq.s32.totalorder %s15, 0
    %p130 = por %p128, %p129
    %p131 = scmp.ne.s32.totalorder %s117, %s118
    %p132 = scmp.eq.s32.totalorder %s16, 1
    %p133 = por %p131, %p132
    %p135 = scmp.ne.s32.totalorder %s118, %s134
    %p136 = scmp.eq.s32.totalorder %s16, 0
    %p137 = por %p135, %p136
    %p138 = scmp.le.s32.totalorder 1, %s10
    %p139 = scmp.lt.s32.totalorder %s10, 3
    %p140 = pnand %p138, %p139
    %p141 = pneg %p140
    // Predicated region
    $region9: #{_lambda_.23} parent=5 // pred_check
      _
    $region10: #{_lambda_.23} parent=5 // pred_check_branch
      %143 = sbr.rel (%p140) target = $region12
    $region11: #{_lambda_.23} parent=5 // pred_region
      %s144 = ssub.s32 %s10, 1
      // Predicated region
      $region13: #{_lambda_.23} parent=11 // pred_check
        %p145 = pneg %p57
      $region14: #{_lambda_.23} parent=11 // pred_check_branch
        %147 = sbr.rel (%p145) target = $region16
      $region15: #{_lambda_.23} parent=11 // pred_region
        _
      $region16: #{_lambda_.23} parent=11 // pred_fallthru
        _
      // Predicated region
      $region17: #{_lambda_.23} parent=11 // pred_check
        %p148 = pneg %p78
      $region18: #{_lambda_.23} parent=11 // pred_check_branch
        %150 = sbr.rel (%p148) target = $region20
      $region19: #{_lambda_.23} parent=11 // pred_region
        _
      $region20: #{_lambda_.23} parent=11 // pred_fallthru
        _
    $region12: #{_lambda_.23} parent=5 // pred_fallthru
      _
    %p151 = scmp.lt.s32.totalorder %s10, 2
    // Predicated region
    $region21: #{_lambda_.23} parent=5 // pred_check
      %p152 = pneg %p151
    $region22: #{_lambda_.23} parent=5 // pred_check_branch
      %154 = sbr.rel (%p152) target = $region24
    $region23: #{_lambda_.23} parent=5 // pred_region
      // Predicated region
      $region25: #{_lambda_.23} parent=23 // pred_check
        %p155 = pneg %p30
      $region26: #{_lambda_.23} parent=23 // pred_check_branch
        %157 = sbr.rel (%p155) target = $region28
      $region27: #{_lambda_.23} parent=23 // pred_region
        %s158 = smul.u32 2, %s10
        %p159 = scmp.lt.s32.totalorder %s158, 3
        %s160 = scalar_select %p159, %s158, 3
        %s161 = smul.addr %s160, 3
        %s162 = smul.addr %s161, 4
        %s163 = scalar_lea.vmem %s0, %s162
        %s164 = smul.u32 2, %s10
      $region28: #{_lambda_.23} parent=23 // pred_fallthru
        _
      // Predicated region
      $region29: #{_lambda_.23} parent=23 // pred_check
        %p165 = pneg %p98
      $region30: #{_lambda_.23} parent=23 // pred_check_branch
        %167 = sbr.rel (%p165) target = $region32
      $region31: #{_lambda_.23} parent=23 // pred_region
        %s168 = smul.u32 2, %s10
        %p169 = scmp.lt.s32.totalorder %s168, 3
        %s170 = scalar_select %p169, %s168, 3
        %s171 = smul.addr %s170, 4
        %s172 = scalar_lea.vmem %s3, %s171
        %s173 = smul.u32 2, %s10
      $region32: #{_lambda_.23} parent=23 // pred_fallthru
        _
    $region24: #{_lambda_.23} parent=5 // pred_fallthru
      _
    %p174 = scmp.le.s32.totalorder 1, %s10
    %p175 = scmp.lt.s32.totalorder %s10, 3
    %p176 = pnand %p174, %p175
    %p177 = pneg %p176
    // Predicated region
    $region33: #{_lambda_.23} parent=5 // pred_check
      _
    $region34: #{_lambda_.23} parent=5 // pred_check_branch
      %179 = sbr.rel (%p176) target = $region36
    $region35: #{_lambda_.23} parent=5 // pred_region
      %s180 = ssub.s32 %s10, 1
      %s181 = smul.u32 2, %s15
      %p182 = scmp.lt.s32.totalorder %s181, 3
      %s183 = scalar_select %p182, %s181, 3
      %s184 = smul.addr %s183, 3
      %s185 = smul.addr %s184, 4
      %s186 = scalar_lea.vmem %s0, %s185
      %p187 = pneg %p36
      %p188 = pneg %p33
      %p189 = pneg %p57
      %p190 = pneg %p54
      %p191 = pneg %p78
      %p192 = pneg %p75
      %s193 = smul.u32 2, %s15
      %p194 = scmp.lt.s32.totalorder %s193, 3
      %s195 = scalar_select %p194, %s193, 3
      %s196 = smul.addr %s195, 4
      %s197 = scalar_lea.vmem %s3, %s196
      %p198 = pneg %p104
      %p199 = pneg %p101
      %p200 = pneg %p130
      %p201 = pneg %p127
      %s202 = smul.u32 2, %s15
      %p203 = scmp.lt.s32.totalorder %s202, 3
      %s204 = scalar_select %p203, %s202, 3
      %s205 = smul.addr %s204, 4
      %s206 = scalar_lea.vmem %s4, %s205
      %s207 = smul.u32 2, %s15
      %p208 = scmp.lt.s32.totalorder %s207, 3
      %s209 = scalar_select %p208, %s207, 3
      %s210 = smul.addr %s209, 3
      %s211 = smul.addr %s210, 4
      %s212 = scalar_lea.vmem %s0, %s211
      %s213 = smul.u32 2, %s15
      %s214 = smul.u32 2, %s15
      %p215 = scmp.lt.s32.totalorder %s214, 3
      %s216 = scalar_select %p215, %s214, 3
      %s217 = smul.addr %s216, 4
      %s218 = scalar_lea.vmem %s3, %s217
      %s219 = smul.u32 2, %s15
      %s220 = smul.u32 2, %s15
      %p221 = scmp.lt.s32.totalorder %s220, 3
      %s222 = scalar_select %p221, %s220, 3
      %s223 = smul.addr %s222, 4
      %s224 = scalar_lea.vmem %s4, %s223
      %s225 = smul.u32 2, %s15
      %v227 = vld [vmem:[%s212] sm:$0xff]
      %v228 = vld [vmem:[%s212 + $0x8] sm:$0xf]
      %v229 = vld [vmem:[%s212 + $0xc] sm:$0xff]
      %v230 = vld [vmem:[%s212 + $0x14] sm:$0xf]
      %v231 = vld [vmem:[%s1] sm:$0xf]
      %v232 = vld [vmem:[%s1 + $0x4] sm:$0xf]
      %v233 = vld [vmem:[%s1 + $0x8] sm:$0xf]
      %v234 = vld [vmem:[%s1 + $0xc] sm:$0xf]
      %v235 = vld [vmem:[%s1 + $0x10] sm:$0xf]
      %v236 = vld [vmem:[%s1 + $0x14] sm:$0xf]
      %v237 = vld [vmem:[%s1 + $0x18] sm:$0xf]
      %v238 = vld [vmem:[%s1 + $0x1c] sm:$0xf]
      %v239 = vld [vmem:[%s1 + $0x20] sm:$0xf]
      %v240 = vld [vmem:[%s1 + $0x24] sm:$0xf]
      %v241 = vld [vmem:[%s1 + $0x28] sm:$0xf]
      %v242 = vld [vmem:[%s1 + $0x2c] sm:$0xf]
      %v243 = vld [vmem:[%s1 + $0x30] sm:$0xf]
      %v244 = vld [vmem:[%s1 + $0x34] sm:$0xf]
      %v245 = vld [vmem:[%s1 + $0x38] sm:$0xf]
      %v246 = vld [vmem:[%s1 + $0x3c] sm:$0xf]
      %v247 = vld [vmem:[%s1 + $0x40] sm:$0xf]
      %v248 = vld [vmem:[%s1 + $0x44] sm:$0xf]
      %v249 = vld [vmem:[%s1 + $0x48] sm:$0xf]
      %v250 = vld [vmem:[%s1 + $0x4c] sm:$0xf]
      %v251 = vld [vmem:[%s1 + $0x50] sm:$0xf]
      %v252 = vld [vmem:[%s1 + $0x54] sm:$0xf]
      %v253 = vld [vmem:[%s1 + $0x58] sm:$0xf]
      %v254 = vld [vmem:[%s1 + $0x5c] sm:$0xf]
      %v255 = vld [vmem:[%s1 + $0x60] sm:$0xf]
      %v256 = vld [vmem:[%s1 + $0x64] sm:$0xf]
      %v257 = vld [vmem:[%s1 + $0x68] sm:$0xf]
      %v258 = vld [vmem:[%s1 + $0x6c] sm:$0xf]
      %v259 = vld [vmem:[%s1 + $0x70] sm:$0xf]
      %v260 = vld [vmem:[%s1 + $0x74] sm:$0xf]
      %v261 = vld [vmem:[%s1 + $0x78] sm:$0xf]
      %v262 = vld [vmem:[%s1 + $0x7c] sm:$0xf]
      %v263 = vld [vmem:[%s1 + $0x80] sm:$0xf]
      %v264 = vld [vmem:[%s1 + $0x84] sm:$0xf]
      %v265 = vld [vmem:[%s1 + $0x88] sm:$0xf]
      %v266 = vld [vmem:[%s1 + $0x8c] sm:$0xf]
      %v267 = vld [vmem:[%s1 + $0x90] sm:$0xf]
      %v268 = vld [vmem:[%s1 + $0x94] sm:$0xf]
      %v269 = vld [vmem:[%s1 + $0x98] sm:$0xf]
      %v270 = vld [vmem:[%s1 + $0x9c] sm:$0xf]
      %v271 = vld [vmem:[%s1 + $0xa0] sm:$0xf]
      %v272 = vld [vmem:[%s1 + $0xa4] sm:$0xf]
      %v273 = vld [vmem:[%s1 + $0xa8] sm:$0xf]
      %v274 = vld [vmem:[%s1 + $0xac] sm:$0xf]
      %v275 = vld [vmem:[%s1 + $0xb0] sm:$0xf]
      %v276 = vld [vmem:[%s1 + $0xb4] sm:$0xf]
      %v277 = vld [vmem:[%s1 + $0xb8] sm:$0xf]
      %v278 = vld [vmem:[%s1 + $0xbc] sm:$0xf]
      %v279 = vld [vmem:[%s2] sm:$0x1]
      %v281 = vlaneseq
      %v282 = vshrl.u32 %v281, 7
      %v283 = vsub.s32 0, %v282
      %v284 = vrot.slane %v279, %v283
      %v290 = vunpack.c.l.b16 %v227
      %v291 = vunpack.c.h.b16 %v227
      %v292 = vunpack.c.l.b16 %v228
      %v293 = vunpack.c.l.b16 %v229
      %v294 = vunpack.c.h.b16 %v229
      %v295 = vunpack.c.l.b16 %v230
      %v296 = vpack.c.b16 %v293, %v290
      %v297 = vpack.c.b16 %v294, %v291
      %v298 = vpack.c.b16 %v295, %v292
      %v350 = vunpack.c.l.b16 %v231
      %v351 = vunpack.c.l.b16 %v232
      %v352 = vunpack.c.l.b16 %v233
      %v353 = vunpack.c.l.b16 %v234
      %v354 = vunpack.c.l.b16 %v235
      %v355 = vunpack.c.l.b16 %v236
      %v356 = vunpack.c.l.b16 %v237
      %v357 = vunpack.c.l.b16 %v238
      %v358 = vunpack.c.l.b16 %v239
      %v359 = vunpack.c.l.b16 %v240
      %v360 = vunpack.c.l.b16 %v241
      %v361 = vunpack.c.l.b16 %v242
      %v362 = vunpack.c.l.b16 %v243
      %v363 = vunpack.c.l.b16 %v244
      %v364 = vunpack.c.l.b16 %v245
      %v365 = vunpack.c.l.b16 %v246
      %v366 = vunpack.c.l.b16 %v247
      %v367 = vunpack.c.l.b16 %v248
      %v368 = vunpack.c.l.b16 %v249
      %v369 = vunpack.c.l.b16 %v250
      %v370 = vunpack.c.l.b16 %v251
      %v371 = vunpack.c.l.b16 %v252
      %v372 = vunpack.c.l.b16 %v253
      %v373 = vunpack.c.l.b16 %v254
      %v374 = vunpack.c.l.b16 %v255
      %v375 = vunpack.c.l.b16 %v256
      %v376 = vunpack.c.l.b16 %v257
      %v377 = vunpack.c.l.b16 %v258
      %v378 = vunpack.c.l.b16 %v259
      %v379 = vunpack.c.l.b16 %v260
      %v380 = vunpack.c.l.b16 %v261
      %v381 = vunpack.c.l.b16 %v262
      %v382 = vunpack.c.l.b16 %v263
      %v383 = vunpack.c.l.b16 %v264
      %v384 = vunpack.c.l.b16 %v265
      %v385 = vunpack.c.l.b16 %v266
      %v386 = vunpack.c.l.b16 %v267
      %v387 = vunpack.c.l.b16 %v268
      %v388 = vunpack.c.l.b16 %v269
      %v389 = vunpack.c.l.b16 %v270
      %v390 = vunpack.c.l.b16 %v271
      %v391 = vunpack.c.l.b16 %v272
      %v392 = vunpack.c.l.b16 %v273
      %v393 = vunpack.c.l.b16 %v274
      %v394 = vunpack.c.l.b16 %v275
      %v395 = vunpack.c.l.b16 %v276
      %v396 = vunpack.c.l.b16 %v277
      %v397 = vunpack.c.l.b16 %v278
      %v398 = vpack.c.b16 %v351, %v350
      %v399 = vpack.c.b16 %v353, %v352
      %v400 = vpack.c.b16 %v355, %v354
      %v401 = vpack.c.b16 %v357, %v356
      %v402 = vpack.c.b16 %v359, %v358
      %v403 = vpack.c.b16 %v361, %v360
      %v404 = vpack.c.b16 %v363, %v362
      %v405 = vpack.c.b16 %v365, %v364
      %v406 = vpack.c.b16 %v367, %v366
      %v407 = vpack.c.b16 %v369, %v368
      %v408 = vpack.c.b16 %v371, %v370
      %v409 = vpack.c.b16 %v373, %v372
      %v410 = vpack.c.b16 %v375, %v374
      %v411 = vpack.c.b16 %v377, %v376
      %v412 = vpack.c.b16 %v379, %v378
      %v413 = vpack.c.b16 %v381, %v380
      %v414 = vpack.c.b16 %v383, %v382
      %v415 = vpack.c.b16 %v385, %v384
      %v416 = vpack.c.b16 %v387, %v386
      %v417 = vpack.c.b16 %v389, %v388
      %v418 = vpack.c.b16 %v391, %v390
      %v419 = vpack.c.b16 %v393, %v392
      %v420 = vpack.c.b16 %v395, %v394
      %v421 = vpack.c.b16 %v397, %v396
      %446 = vmatprep.subr.bf16.mxu0 0
      %447 = vmatpush1.bf16.msra.mxu0 %v398
      %448 = vmatprep.subr.bf16.mxu0 0
      %449 = vmatpush1.bf16.msra.mxu0 %v399
      %450 = vmatprep.subr.bf16.mxu0 0
      %451 = vmatpush1.bf16.msra.mxu0 %v400
      %452 = vmatprep.subr.bf16.mxu0 0
      %453 = vmatpush1.bf16.msra.mxu0 %v401
      %454 = vmatprep.subr.bf16.mxu0 0
      %455 = vmatpush1.bf16.msra.mxu0 %v402
      %456 = vmatprep.subr.bf16.mxu0 0
      %457 = vmatpush1.bf16.msra.mxu0 %v403
      %458 = vmatprep.subr.bf16.mxu0 0
      %459 = vmatpush1.bf16.msra.mxu0 %v404
      %460 = vmatprep.subr.bf16.mxu0 0
      %461 = vmatpush1.bf16.msra.mxu0 %v405
      %462 = vmatprep.subr.bf16.mxu0 0
      %463 = vmatpush1.bf16.msra.mxu0 %v406
      %464 = vmatprep.subr.bf16.mxu0 0
      %465 = vmatpush1.bf16.msra.mxu0 %v407
      %466 = vmatprep.subr.bf16.mxu0 0
      %467 = vmatpush1.bf16.msra.mxu0 %v408
      %468 = vmatprep.subr.bf16.mxu0 0
      %469 = vmatpush1.bf16.msra.mxu0 %v409
      %470 = vmatprep.subr.bf16.mxu0 0
      %471 = vmatpush1.bf16.msra.mxu0 %v410
      %472 = vmatprep.subr.bf16.mxu0 0
      %473 = vmatpush1.bf16.msra.mxu0 %v411
      %474 = vmatprep.subr.bf16.mxu0 0
      %475 = vmatpush1.bf16.msra.mxu0 %v412
      %476 = vmatprep.subr.bf16.mxu0 0
      %477 = vmatpush1.bf16.msra.mxu0 %v413
      %478 = vmatprep.mubr.bf16.mxu0 %v297
      %479 = vmatmul.mubr.bf16.gmra.mrb[0].mxu0 %v296
      %v480 = vpop.f32.mrb[0].mxu0
      %v481 = vadd.f32 %v284, %v480
      %v482 = vpop.f32.mrb[0].mxu0
      %v483 = vpop.f32.mrb[0].mxu0
      %v484 = vadd.f32 %v284, %v483
      %v485 = vpop.f32.mrb[0].mxu0
      %486 = vdwg.mxu0
      %487 = vmatprep.subr.bf16.mxu0 0
      %488 = vmatpush1.bf16.msra.mxu0 %v414
      %489 = vmatprep.subr.bf16.mxu0 0
      %490 = vmatpush1.bf16.msra.mxu0 %v415
      %491 = vmatprep.subr.bf16.mxu0 0
      %492 = vmatpush1.bf16.msra.mxu0 %v416
      %493 = vmatprep.subr.bf16.mxu0 0
      %494 = vmatpush1.bf16.msra.mxu0 %v417
      %495 = vmatprep.subr.bf16.mxu0 0
      %496 = vmatpush1.bf16.msra.mxu0 %v418
      %497 = vmatprep.subr.bf16.mxu0 0
      %498 = vmatpush1.bf16.msra.mxu0 %v419
      %499 = vmatprep.subr.bf16.mxu0 0
      %500 = vmatpush1.bf16.msra.mxu0 %v420
      %501 = vmatprep.subr.bf16.mxu0 0
      %502 = vmatpush1.bf16.msra.mxu0 %v421
      %503 = vmatprep.subr.bf16.mxu0 0
      %504 = vmatpush1.bf16.msra.mxu0 0
      %505 = vmatprep.subr.bf16.mxu0 0
      %506 = vmatpush1.bf16.msra.mxu0 0
      %507 = vmatprep.subr.bf16.mxu0 0
      %508 = vmatpush1.bf16.msra.mxu0 0
      %509 = vmatprep.subr.bf16.mxu0 0
      %510 = vmatpush1.bf16.msra.mxu0 0
      %511 = vmatprep.subr.bf16.mxu0 0
      %512 = vmatpush1.bf16.msra.mxu0 0
      %513 = vmatprep.subr.bf16.mxu0 0
      %514 = vmatpush1.bf16.msra.mxu0 0
      %515 = vmatprep.subr.bf16.mxu0 0
      %516 = vmatpush1.bf16.msra.mxu0 0
      %517 = vmatprep.subr.bf16.mxu0 0
      %518 = vmatpush1.bf16.msra.mxu0 0
      %519 = vmatprep.mubr.bf16.mxu0 0
      %520 = vmatmul.mubr.bf16.gmra.mrb[0].mxu0 %v298
      %v521 = vpop.f32.mrb[0].mxu0
      %v522 = vadd.f32 %v481, %v521
      %v523 = vpop.f32.mrb[0].mxu0
      %v524 = vpop.f32.mrb[0].mxu0
      %v525 = vadd.f32 %v484, %v524
      %v526 = vpop.f32.mrb[0].mxu0
      %527 = vdwg.mxu0
      %v528 = vld [vmem:[%s218] sm:$0xf]
      %v529 = vld [vmem:[%s218 + $0x4] sm:$0xf]
      %v530 = vunpack.c.l.bf16 %v528
      %v531 = vunpack.c.l.bf16 %v529
      %v532 = vadd.f32 %v522, %v530
      %v533 = vadd.f32 %v525, %v531
      %v534 = vmax.f32 %v532, 0.0
      %v535 = vmax.f32 %v533, 0.0
      %v536 = vpack.c.bf16 %v535, %v534
      %v538 = vunpack.c.l.b16 %v536
      %v539 = vunpack.c.h.b16 %v536
      %v540 = vpack.c.b16 %v538, %v538
      %v541 = vpack.c.b16 %v539, %v539
      %544 = vst [vmem:[%s224] sm:$0xf] %v540
      %545 = vst [vmem:[%s224 + $0x4] sm:$0xf] %v541
      %s546 = smul.u32 2, %s15
      %p547 = scmp.lt.s32.totalorder %s546, 3
      %s548 = scalar_select %p547, %s546, 3
      %s549 = smul.addr %s548, 4
      %s550 = scalar_lea.vmem %s4, %s549
      // Predicated region
      $region37: #{_lambda_.23} parent=35 // pred_check
        %p551 = pneg %p127
      $region38: #{_lambda_.23} parent=35 // pred_check_branch
        %553 = sbr.rel (%p551) target = $region40
      $region39: #{_lambda_.23} parent=35 // pred_region
        %s554 = smul.u32 2, %s15
      $region40: #{_lambda_.23} parent=35 // pred_fallthru
        _
    $region36: #{_lambda_.23} parent=5 // pred_fallthru
      _
    %p555 = scmp.le.s32.totalorder 2, %s10
    // Predicated region
    $region41: #{_lambda_.23} parent=5 // pred_check
      %p556 = pneg %p555
    $region42: #{_lambda_.23} parent=5 // pred_check_branch
      %558 = sbr.rel (%p556) target = $region44
    $region43: #{_lambda_.23} parent=5 // pred_region
      %s559 = ssub.s32 %s10, 2
      // Predicated region
      $region45: #{_lambda_.23} parent=43 // pred_check
        %p560 = pneg %p133
      $region46: #{_lambda_.23} parent=43 // pred_check_branch
        %562 = sbr.rel (%p560) target = $region48
      $region47: #{_lambda_.23} parent=43 // pred_region
        %s563 = smul.u32 2, %s16
        %p564 = scmp.lt.s32.totalorder %s563, 3
        %s565 = scalar_select %p564, %s563, 3
        %s566 = smul.addr %s565, 4
        %s567 = scalar_lea.vmem %s4, %s566
      $region48: #{_lambda_.23} parent=43 // pred_fallthru
        _
    $region44: #{_lambda_.23} parent=5 // pred_fallthru
      _
  $region6: #{_lambda_.23} parent=0 // loop_footer
    %s14 = sadd.s32 1, %s10
  $region7: #{_lambda_.23} parent=0 // loop_footer_branch
    %9 = sbr.rel target = $region3
  $region8: #{_lambda_.23} parent=0 // loop_exit
    _

// kernel: _lambda_.27
$region0: #{_lambda_.27}
  #allocation0 [shape = 'u32[]', space=smem, size = 0x4, offset = 0x4, fixed_abs, tag = 'smem constant byte address 0x4 - core index']
  #allocation1 [shape = 'u32[144,128]{1,0:T(1,128)}', space=vmem, size = 0x12000, scoped, tag = 'internal scratch']
  %s0 = inlined_call_operand.vmem [shape: bf16[2,4,64], index: 0, kind: input, shape index: {}]
  %s1 = inlined_call_operand.vmem [shape: bf16[64,128], index: 1, kind: input, shape index: {}]
  %s2 = inlined_call_operand.vmem [shape: f32[1,128], index: 2, kind: input, shape index: {}]
  %s3 = inlined_call_operand.hbm [shape: f32[2,128], index: 3, kind: output, shape index: {}]
  %s4 = sld [smem:[#allocation0]]
  $region22: #{_lambda_.27} parent=0
    _
  %s6 = ssub.s32 1, %s4
  %s7 = scalar_select 0, %s6, %s4
  $region1: #{_lambda_.27} parent=0
    #allocation2 [shape = 'u8[1024]{0}', space=vmem, size = 0x400, scoped, tag = 'output window, operand 0, single buffered']
    #allocation3 [shape = 's32[1]{0}', space=sflag, size = 0x4, scoped, tag = 'scoped memory for _lambda_.27']
    %8 = vsyncpa [#allocation3], 0
    // Predicated region
    $region2: #{_lambda_.27} parent=1 // pred_check
      _
    $region3: #{_lambda_.27} parent=1 // pred_check_branch
      %10 = sbr.rel (0) target = $region5
    $region4: #{_lambda_.27} parent=1 // pred_region
      _
    $region5: #{_lambda_.27} parent=1 // pred_fallthru
      _
    // Predicated region
    $region6: #{_lambda_.27} parent=1 // pred_check
      _
    $region7: #{_lambda_.27} parent=1 // pred_check_branch
      %12 = sbr.rel (0) target = $region9
    $region8: #{_lambda_.27} parent=1 // pred_region
      _
    $region9: #{_lambda_.27} parent=1 // pred_fallthru
      _
    // Predicated region
    $region10: #{_lambda_.27} parent=1 // pred_check
      _
    $region11: #{_lambda_.27} parent=1 // pred_check_branch
      %14 = sbr.rel (0) target = $region13
    $region12: #{_lambda_.27} parent=1 // pred_region
      _
    $region13: #{_lambda_.27} parent=1 // pred_fallthru
      _
    %v16 = vld [vmem:[%s0] sm:$0x3]
    %v17 = vld [vmem:[%s0 + $0x2] sm:$0x3]
    %v18 = vunpack.c.l.bf16 %v16
    %v19 = vunpack.c.l.bf16 %v17
    %vm20 = vcmask 519168
    %v21 = vsel %vm20, %v18, 0.0
    %v22 = vrot.slane %v21, 4
    %v23 = vadd.f32 %v21, %v22
    %v24 = vrot.slane %v23, 2
    %v25 = vadd.f32 %v23, %v24
    %v26 = vrot.slane %v25, 1
    %v27 = vadd.f32 %v25, %v26
    %v28 = vsel %vm20, %v19, 0.0
    %v29 = vrot.slane %v28, 4
    %v30 = vadd.f32 %v28, %v29
    %v31 = vrot.slane %v30, 2
    %v32 = vadd.f32 %v30, %v31
    %v33 = vrot.slane %v32, 1
    %v34 = vadd.f32 %v32, %v33
    %v35 = vrcp.pop 4.0
    %v36 = vmul.f32 %v27, %v35
    %v37 = vmul.f32 %v34, %v35
    %v38 = vpack.c.bf16 %v36, %v36
    %v39 = vpack.c.bf16 %v37, %v37
    %v40 = vld [vmem:[%s1] sm:$0xf]
    %v41 = vld [vmem:[%s1 + $0x4] sm:$0xf]
    %v42 = vld [vmem:[%s1 + $0x8] sm:$0xf]
    %v43 = vld [vmem:[%s1 + $0xc] sm:$0xf]
    %v44 = vld [vmem:[%s1 + $0x10] sm:$0xf]
    %v45 = vld [vmem:[%s1 + $0x14] sm:$0xf]
    %v46 = vld [vmem:[%s1 + $0x18] sm:$0xf]
    %v47 = vld [vmem:[%s1 + $0x1c] sm:$0xf]
    %v48 = vld [vmem:[%s2] sm:$0x1]
    %v50 = vlaneseq
    %v51 = vshrl.u32 %v50, 7
    %v52 = vsub.s32 0, %v51
    %v53 = vrot.slane %v48, %v52
    %v57 = vunpack.c.l.b16 %v38
    %v58 = vunpack.c.l.b16 %v39
    %vm59 = vcmask 1041409
    %v60 = vsel %vm59, %v58, %v57
    %v61 = vpack.c.b16 %v60, %v60
    %v70 = vunpack.c.l.b16 %v40
    %v71 = vunpack.c.l.b16 %v41
    %v72 = vunpack.c.l.b16 %v42
    %v73 = vunpack.c.l.b16 %v43
    %v74 = vunpack.c.l.b16 %v44
    %v75 = vunpack.c.l.b16 %v45
    %v76 = vunpack.c.l.b16 %v46
    %v77 = vunpack.c.l.b16 %v47
    %v78 = vpack.c.b16 %v71, %v70
    %v79 = vpack.c.b16 %v73, %v72
    %v80 = vpack.c.b16 %v75, %v74
    %v81 = vpack.c.b16 %v77, %v76
    %vm86 = vcmask 523264
    %v88 = vsel %vm86, %v61, 0
    %90 = vmatprep.subr.bf16.mxu0 0
    %91 = vmatpush1.bf16.msra.mxu0 %v78
    %92 = vmatprep.subr.bf16.mxu0 0
    %93 = vmatpush1.bf16.msra.mxu0 %v79
    %94 = vmatprep.subr.bf16.mxu0 0
    %95 = vmatpush1.bf16.msra.mxu0 %v80
    %96 = vmatprep.subr.bf16.mxu0 0
    %97 = vmatpush1.bf16.msra.mxu0 %v81
    %98 = vmatprep.subr.bf16.mxu0 0
    %99 = vmatpush1.bf16.msra.mxu0 0
    %100 = vmatprep.subr.bf16.mxu0 0
    %101 = vmatpush1.bf16.msra.mxu0 0
    %102 = vmatprep.subr.bf16.mxu0 0
    %103 = vmatpush1.bf16.msra.mxu0 0
    %104 = vmatprep.subr.bf16.mxu0 0
    %105 = vmatpush1.bf16.msra.mxu0 0
    %106 = vmatprep.subr.bf16.mxu0 0
    %107 = vmatpush1.bf16.msra.mxu0 0
    %108 = vmatprep.subr.bf16.mxu0 0
    %109 = vmatpush1.bf16.msra.mxu0 0
    %110 = vmatprep.subr.bf16.mxu0 0
    %111 = vmatpush1.bf16.msra.mxu0 0
    %112 = vmatprep.subr.bf16.mxu0 0
    %113 = vmatpush1.bf16.msra.mxu0 0
    %114 = vmatprep.subr.bf16.mxu0 0
    %115 = vmatpush1.bf16.msra.mxu0 0
    %116 = vmatprep.subr.bf16.mxu0 0
    %117 = vmatpush1.bf16.msra.mxu0 0
    %118 = vmatprep.subr.bf16.mxu0 0
    %119 = vmatpush1.bf16.msra.mxu0 0
    %120 = vmatprep.subr.bf16.mxu0 0
    %121 = vmatpush1.bf16.msra.mxu0 0
    %122 = vmatprep.mubr.bf16.mxu0 0
    %123 = vmatmul.mubr.bf16.gmra.mrb[0].mxu0 %v88
    %v124 = vpop.f32.mrb[0].mxu0
    %v125 = vadd.f32 %v53, %v124
    %v126 = vpop.f32.mrb[0].mxu0
    %v127 = vpop.f32.mrb[0].mxu0
    %v128 = vpop.f32.mrb[0].mxu0
    %129 = vdwg.mxu0
    %130 = vst [vmem:[#allocation2] sm:$0x3] %v125
    // Predicated region
    $region14: #{_lambda_.27} parent=1 // pred_check
      _
    $region15: #{_lambda_.27} parent=1 // pred_check_branch
      %132 = sbr.rel (0) target = $region17
    $region16: #{_lambda_.27} parent=1 // pred_region
      %s134 = ssub.s32 32, 32
      %135 = vsyncadd [#allocation3], %s134
      %s137 = sshll.u32 [#allocation2], 4
      %s138 = int_to_ptr.vmem [resolvable:$true] %s137
      %140 = dma.vmem_to_hbm [thread:$0]  %s138, 32, %s3, [#allocation3]
    $region17: #{_lambda_.27} parent=1 // pred_fallthru
      _
    // Predicated region
    $region18: #{_lambda_.27} parent=1 // pred_check
      _
    $region19: #{_lambda_.27} parent=1 // pred_check_branch
      %142 = sbr.rel (0) target = $region21
    $region20: #{_lambda_.27} parent=1 // pred_region
      %143 = dma.done [#allocation3], 32
    $region21: #{_lambda_.27} parent=1 // pred_fallthru
      _
    %144 = vsyncpa [#allocation3], 1

// kernel: _lambda_.24
$region0: #{_lambda_.24}
  #allocation0 [shape = 'u32[]', space=smem, size = 0x4, offset = 0x4, fixed_abs, tag = 'smem constant byte address 0x4 - core index']
  #allocation1 [shape = 'u32[144,128]{1,0:T(1,128)}', space=vmem, size = 0x12000, scoped, tag = 'internal scratch']
  %s0 = inlined_call_operand.vmem [shape: bf16[8,384], index: 0, kind: input, shape index: {}]
  %s1 = inlined_call_operand.vmem [shape: bf16[384,128], index: 1, kind: input, shape index: {}]
  %s2 = inlined_call_operand.vmem [shape: f32[1,128], index: 2, kind: input, shape index: {}]
  %s3 = inlined_call_operand.vmem [shape: bf16[8,128], index: 3, kind: output, shape index: {}]
  %s4 = sld [smem:[#allocation0]]
  $region22: #{_lambda_.24} parent=0
    _
  %s6 = ssub.s32 1, %s4
  %s7 = scalar_select 0, %s6, %s4
  // Predicated region
  $region2: #{_lambda_.24} parent=0 // pred_check
    _
  $region3: #{_lambda_.24} parent=0 // pred_check_branch
    %9 = sbr.rel (0) target = $region5
  $region4: #{_lambda_.24} parent=0 // pred_region
    _
  $region5: #{_lambda_.24} parent=0 // pred_fallthru
    _
  // Predicated region
  $region6: #{_lambda_.24} parent=0 // pred_check
    _
  $region7: #{_lambda_.24} parent=0 // pred_check_branch
    %11 = sbr.rel (0) target = $region9
  $region8: #{_lambda_.24} parent=0 // pred_region
    _
  $region9: #{_lambda_.24} parent=0 // pred_fallthru
    _
  // Predicated region
  $region10: #{_lambda_.24} parent=0 // pred_check
    _
  $region11: #{_lambda_.24} parent=0 // pred_check_branch
    %13 = sbr.rel (0) target = $region13
  $region12: #{_lambda_.24} parent=0 // pred_region
    _
  $region13: #{_lambda_.24} parent=0 // pred_fallthru
    _
  %v15 = vld [vmem:[%s0] sm:$0xff]
  %v16 = vld [vmem:[%s0 + $0x8] sm:$0xf]
  %v17 = vld [vmem:[%s1] sm:$0xf]
  %v18 = vld [vmem:[%s1 + $0x4] sm:$0xf]
  %v19 = vld [vmem:[%s1 + $0x8] sm:$0xf]
  %v20 = vld [vmem:[%s1 + $0xc] sm:$0xf]
  %v21 = vld [vmem:[%s1 + $0x10] sm:$0xf]
  %v22 = vld [vmem:[%s1 + $0x14] sm:$0xf]
  %v23 = vld [vmem:[%s1 + $0x18] sm:$0xf]
  %v24 = vld [vmem:[%s1 + $0x1c] sm:$0xf]
  %v25 = vld [vmem:[%s1 + $0x20] sm:$0xf]
  %v26 = vld [vmem:[%s1 + $0x24] sm:$0xf]
  %v27 = vld [vmem:[%s1 + $0x28] sm:$0xf]
  %v28 = vld [vmem:[%s1 + $0x2c] sm:$0xf]
  %v29 = vld [vmem:[%s1 + $0x30] sm:$0xf]
  %v30 = vld [vmem:[%s1 + $0x34] sm:$0xf]
  %v31 = vld [vmem:[%s1 + $0x38] sm:$0xf]
  %v32 = vld [vmem:[%s1 + $0x3c] sm:$0xf]
  %v33 = vld [vmem:[%s1 + $0x40] sm:$0xf]
  %v34 = vld [vmem:[%s1 + $0x44] sm:$0xf]
  %v35 = vld [vmem:[%s1 + $0x48] sm:$0xf]
  %v36 = vld [vmem:[%s1 + $0x4c] sm:$0xf]
  %v37 = vld [vmem:[%s1 + $0x50] sm:$0xf]
  %v38 = vld [vmem:[%s1 + $0x54] sm:$0xf]
  %v39 = vld [vmem:[%s1 + $0x58] sm:$0xf]
  %v40 = vld [vmem:[%s1 + $0x5c] sm:$0xf]
  %v41 = vld [vmem:[%s1 + $0x60] sm:$0xf]
  %v42 = vld [vmem:[%s1 + $0x64] sm:$0xf]
  %v43 = vld [vmem:[%s1 + $0x68] sm:$0xf]
  %v44 = vld [vmem:[%s1 + $0x6c] sm:$0xf]
  %v45 = vld [vmem:[%s1 + $0x70] sm:$0xf]
  %v46 = vld [vmem:[%s1 + $0x74] sm:$0xf]
  %v47 = vld [vmem:[%s1 + $0x78] sm:$0xf]
  %v48 = vld [vmem:[%s1 + $0x7c] sm:$0xf]
  %v49 = vld [vmem:[%s1 + $0x80] sm:$0xf]
  %v50 = vld [vmem:[%s1 + $0x84] sm:$0xf]
  %v51 = vld [vmem:[%s1 + $0x88] sm:$0xf]
  %v52 = vld [vmem:[%s1 + $0x8c] sm:$0xf]
  %v53 = vld [vmem:[%s1 + $0x90] sm:$0xf]
  %v54 = vld [vmem:[%s1 + $0x94] sm:$0xf]
  %v55 = vld [vmem:[%s1 + $0x98] sm:$0xf]
  %v56 = vld [vmem:[%s1 + $0x9c] sm:$0xf]
  %v57 = vld [vmem:[%s1 + $0xa0] sm:$0xf]
  %v58 = vld [vmem:[%s1 + $0xa4] sm:$0xf]
  %v59 = vld [vmem:[%s1 + $0xa8] sm:$0xf]
  %v60 = vld [vmem:[%s1 + $0xac] sm:$0xf]
  %v61 = vld [vmem:[%s1 + $0xb0] sm:$0xf]
  %v62 = vld [vmem:[%s1 + $0xb4] sm:$0xf]
  %v63 = vld [vmem:[%s1 + $0xb8] sm:$0xf]
  %v64 = vld [vmem:[%s1 + $0xbc] sm:$0xf]
  %v65 = vld [vmem:[%s2] sm:$0x1]
  %v67 = vlaneseq
  %v68 = vshrl.u32 %v67, 7
  %v69 = vsub.s32 0, %v68
  %v70 = vrot.slane %v65, %v69
  %v74 = vunpack.c.l.b16 %v15
  %v75 = vunpack.c.h.b16 %v15
  %v76 = vunpack.c.l.b16 %v16
  %v77 = vpack.c.b16 %v74, %v74
  %v78 = vpack.c.b16 %v75, %v75
  %v79 = vpack.c.b16 %v76, %v76
  %v131 = vunpack.c.l.b16 %v17
  %v132 = vunpack.c.l.b16 %v18
  %v133 = vunpack.c.l.b16 %v19
  %v134 = vunpack.c.l.b16 %v20
  %v135 = vunpack.c.l.b16 %v21
  %v136 = vunpack.c.l.b16 %v22
  %v137 = vunpack.c.l.b16 %v23
  %v138 = vunpack.c.l.b16 %v24
  %v139 = vunpack.c.l.b16 %v25
  %v140 = vunpack.c.l.b16 %v26
  %v141 = vunpack.c.l.b16 %v27
  %v142 = vunpack.c.l.b16 %v28
  %v143 = vunpack.c.l.b16 %v29
  %v144 = vunpack.c.l.b16 %v30
  %v145 = vunpack.c.l.b16 %v31
  %v146 = vunpack.c.l.b16 %v32
  %v147 = vunpack.c.l.b16 %v33
  %v148 = vunpack.c.l.b16 %v34
  %v149 = vunpack.c.l.b16 %v35
  %v150 = vunpack.c.l.b16 %v36
  %v151 = vunpack.c.l.b16 %v37
  %v152 = vunpack.c.l.b16 %v38
  %v153 = vunpack.c.l.b16 %v39
  %v154 = vunpack.c.l.b16 %v40
  %v155 = vunpack.c.l.b16 %v41
  %v156 = vunpack.c.l.b16 %v42
  %v157 = vunpack.c.l.b16 %v43
  %v158 = vunpack.c.l.b16 %v44
  %v159 = vunpack.c.l.b16 %v45
  %v160 = vunpack.c.l.b16 %v46
  %v161 = vunpack.c.l.b16 %v47
  %v162 = vunpack.c.l.b16 %v48
  %v163 = vunpack.c.l.b16 %v49
  %v164 = vunpack.c.l.b16 %v50
  %v165 = vunpack.c.l.b16 %v51
  %v166 = vunpack.c.l.b16 %v52
  %v167 = vunpack.c.l.b16 %v53
  %v168 = vunpack.c.l.b16 %v54
  %v169 = vunpack.c.l.b16 %v55
  %v170 = vunpack.c.l.b16 %v56
  %v171 = vunpack.c.l.b16 %v57
  %v172 = vunpack.c.l.b16 %v58
  %v173 = vunpack.c.l.b16 %v59
  %v174 = vunpack.c.l.b16 %v60
  %v175 = vunpack.c.l.b16 %v61
  %v176 = vunpack.c.l.b16 %v62
  %v177 = vunpack.c.l.b16 %v63
  %v178 = vunpack.c.l.b16 %v64
  %v179 = vpack.c.b16 %v132, %v131
  %v180 = vpack.c.b16 %v134, %v133
  %v181 = vpack.c.b16 %v136, %v135
  %v182 = vpack.c.b16 %v138, %v137
  %v183 = vpack.c.b16 %v140, %v139
  %v184 = vpack.c.b16 %v142, %v141
  %v185 = vpack.c.b16 %v144, %v143
  %v186 = vpack.c.b16 %v146, %v145
  %v187 = vpack.c.b16 %v148, %v147
  %v188 = vpack.c.b16 %v150, %v149
  %v189 = vpack.c.b16 %v152, %v151
  %v190 = vpack.c.b16 %v154, %v153
  %v191 = vpack.c.b16 %v156, %v155
  %v192 = vpack.c.b16 %v158, %v157
  %v193 = vpack.c.b16 %v160, %v159
  %v194 = vpack.c.b16 %v162, %v161
  %v195 = vpack.c.b16 %v164, %v163
  %v196 = vpack.c.b16 %v166, %v165
  %v197 = vpack.c.b16 %v168, %v167
  %v198 = vpack.c.b16 %v170, %v169
  %v199 = vpack.c.b16 %v172, %v171
  %v200 = vpack.c.b16 %v174, %v173
  %v201 = vpack.c.b16 %v176, %v175
  %v202 = vpack.c.b16 %v178, %v177
  %227 = vmatprep.subr.bf16.mxu0 0
  %228 = vmatpush1.bf16.msra.mxu0 %v179
  %229 = vmatprep.subr.bf16.mxu0 0
  %230 = vmatpush1.bf16.msra.mxu0 %v180
  %231 = vmatprep.subr.bf16.mxu0 0
  %232 = vmatpush1.bf16.msra.mxu0 %v181
  %233 = vmatprep.subr.bf16.mxu0 0
  %234 = vmatpush1.bf16.msra.mxu0 %v182
  %235 = vmatprep.subr.bf16.mxu0 0
  %236 = vmatpush1.bf16.msra.mxu0 %v183
  %237 = vmatprep.subr.bf16.mxu0 0
  %238 = vmatpush1.bf16.msra.mxu0 %v184
  %239 = vmatprep.subr.bf16.mxu0 0
  %240 = vmatpush1.bf16.msra.mxu0 %v185
  %241 = vmatprep.subr.bf16.mxu0 0
  %242 = vmatpush1.bf16.msra.mxu0 %v186
  %243 = vmatprep.subr.bf16.mxu0 0
  %244 = vmatpush1.bf16.msra.mxu0 %v187
  %245 = vmatprep.subr.bf16.mxu0 0
  %246 = vmatpush1.bf16.msra.mxu0 %v188
  %247 = vmatprep.subr.bf16.mxu0 0
  %248 = vmatpush1.bf16.msra.mxu0 %v189
  %249 = vmatprep.subr.bf16.mxu0 0
  %250 = vmatpush1.bf16.msra.mxu0 %v190
  %251 = vmatprep.subr.bf16.mxu0 0
  %252 = vmatpush1.bf16.msra.mxu0 %v191
  %253 = vmatprep.subr.bf16.mxu0 0
  %254 = vmatpush1.bf16.msra.mxu0 %v192
  %255 = vmatprep.subr.bf16.mxu0 0
  %256 = vmatpush1.bf16.msra.mxu0 %v193
  %257 = vmatprep.subr.bf16.mxu0 0
  %258 = vmatpush1.bf16.msra.mxu0 %v194
  %259 = vmatprep.mubr.bf16.mxu0 %v78
  %260 = vmatmul.mubr.bf16.gmra.mrb[0].mxu0 %v77
  %v261 = vpop.f32.mrb[0].mxu0
  %v262 = vadd.f32 %v70, %v261
  %v263 = vpop.f32.mrb[0].mxu0
  %v264 = vpop.f32.mrb[0].mxu0
  %v265 = vpop.f32.mrb[0].mxu0
  %266 = vdwg.mxu0
  %267 = vmatprep.subr.bf16.mxu0 0
  %268 = vmatpush1.bf16.msra.mxu0 %v195
  %269 = vmatprep.subr.bf16.mxu0 0
  %270 = vmatpush1.bf16.msra.mxu0 %v196
  %271 = vmatprep.subr.bf16.mxu0 0
  %272 = vmatpush1.bf16.msra.mxu0 %v197
  %273 = vmatprep.subr.bf16.mxu0 0
  %274 = vmatpush1.bf16.msra.mxu0 %v198
  %275 = vmatprep.subr.bf16.mxu0 0
  %276 = vmatpush1.bf16.msra.mxu0 %v199
  %277 = vmatprep.subr.bf16.mxu0 0
  %278 = vmatpush1.bf16.msra.mxu0 %v200
  %279 = vmatprep.subr.bf16.mxu0 0
  %280 = vmatpush1.bf16.msra.mxu0 %v201
  %281 = vmatprep.subr.bf16.mxu0 0
  %282 = vmatpush1.bf16.msra.mxu0 %v202
  %283 = vmatprep.subr.bf16.mxu0 0
  %284 = vmatpush1.bf16.msra.mxu0 0
  %285 = vmatprep.subr.bf16.mxu0 0
  %286 = vmatpush1.bf16.msra.mxu0 0
  %287 = vmatprep.subr.bf16.mxu0 0
  %288 = vmatpush1.bf16.msra.mxu0 0
  %289 = vmatprep.subr.bf16.mxu0 0
  %290 = vmatpush1.bf16.msra.mxu0 0
  %291 = vmatprep.subr.bf16.mxu0 0
  %292 = vmatpush1.bf16.msra.mxu0 0
  %293 = vmatprep.subr.bf16.mxu0 0
  %294 = vmatpush1.bf16.msra.mxu0 0
  %295 = vmatprep.subr.bf16.mxu0 0
  %296 = vmatpush1.bf16.msra.mxu0 0
  %297 = vmatprep.subr.bf16.mxu0 0
  %298 = vmatpush1.bf16.msra.mxu0 0
  %299 = vmatprep.mubr.bf16.mxu0 0
  %300 = vmatmul.mubr.bf16.gmra.mrb[0].mxu0 %v79
  %v301 = vpop.f32.mrb[0].mxu0
  %v302 = vadd.f32 %v262, %v301
  %v303 = vpop.f32.mrb[0].mxu0
  %v304 = vpop.f32.mrb[0].mxu0
  %v305 = vpop.f32.mrb[0].mxu0
  %306 = vdwg.mxu0
  %v307 = vmax.f32 %v302, 0.0
  %v308 = vpack.c.bf16 %v307, %v307
  %309 = vst [vmem:[%s3] sm:$0xf] %v308
  // Predicated region
  $region14: #{_lambda_.24} parent=0 // pred_check
    _
  $region15: #{_lambda_.24} parent=0 // pred_check_branch
    %311 = sbr.rel (0) target = $region17
  $region16: #{_lambda_.24} parent=0 // pred_region
    _
  $region17: #{_lambda_.24} parent=0 // pred_fallthru
    _
  // Predicated region
  $region18: #{_lambda_.24} parent=0 // pred_check
    _
  $region19: #{_lambda_.24} parent=0 // pred_check_branch
    %313 = sbr.rel (0) target = $region21
  $region20: #{_lambda_.24} parent=0 // pred_region
    _
  $region21: #{_lambda_.24} parent=0 // pred_fallthru
    _

// kernel: _lambda_.26
$region0: #{_lambda_.26}
  #allocation0 [shape = 'u32[]', space=smem, size = 0x4, offset = 0x4, fixed_abs, tag = 'smem constant byte address 0x4 - core index']
  #allocation1 [shape = 'u32[144,128]{1,0:T(1,128)}', space=vmem, size = 0x12000, scoped, tag = 'internal scratch']
  %s0 = inlined_call_operand.vmem [shape: bf16[8,640], index: 0, kind: input, shape index: {}]
  %s1 = inlined_call_operand.vmem [shape: bf16[640,128], index: 1, kind: input, shape index: {}]
  %s2 = inlined_call_operand.vmem [shape: f32[1,128], index: 2, kind: input, shape index: {}]
  %s3 = inlined_call_operand.vmem [shape: bf16[8,128], index: 3, kind: input, shape index: {}]
  %s4 = inlined_call_operand.vmem [shape: bf16[8,128], index: 4, kind: output, shape index: {}]
  %s5 = sld [smem:[#allocation0]]
  $region26: #{_lambda_.26} parent=0
    _
  %s7 = ssub.s32 1, %s5
  %s8 = scalar_select 0, %s7, %s5
  // Predicated region
  $region2: #{_lambda_.26} parent=0 // pred_check
    _
  $region3: #{_lambda_.26} parent=0 // pred_check_branch
    %10 = sbr.rel (0) target = $region5
  $region4: #{_lambda_.26} parent=0 // pred_region
    _
  $region5: #{_lambda_.26} parent=0 // pred_fallthru
    _
  // Predicated region
  $region6: #{_lambda_.26} parent=0 // pred_check
    _
  $region7: #{_lambda_.26} parent=0 // pred_check_branch
    %12 = sbr.rel (0) target = $region9
  $region8: #{_lambda_.26} parent=0 // pred_region
    _
  $region9: #{_lambda_.26} parent=0 // pred_fallthru
    _
  // Predicated region
  $region10: #{_lambda_.26} parent=0 // pred_check
    _
  $region11: #{_lambda_.26} parent=0 // pred_check_branch
    %14 = sbr.rel (0) target = $region13
  $region12: #{_lambda_.26} parent=0 // pred_region
    _
  $region13: #{_lambda_.26} parent=0 // pred_fallthru
    _
  // Predicated region
  $region14: #{_lambda_.26} parent=0 // pred_check
    _
  $region15: #{_lambda_.26} parent=0 // pred_check_branch
    %16 = sbr.rel (0) target = $region17
  $region16: #{_lambda_.26} parent=0 // pred_region
    _
  $region17: #{_lambda_.26} parent=0 // pred_fallthru
    _
  %v18 = vld [vmem:[%s0] sm:$0xff]
  %v19 = vld [vmem:[%s0 + $0x8] sm:$0xff]
  %v20 = vld [vmem:[%s0 + $0x10] sm:$0xf]
  %v21 = vld [vmem:[%s1] sm:$0xf]
  %v22 = vld [vmem:[%s1 + $0x4] sm:$0xf]
  %v23 = vld [vmem:[%s1 + $0x8] sm:$0xf]
  %v24 = vld [vmem:[%s1 + $0xc] sm:$0xf]
  %v25 = vld [vmem:[%s1 + $0x10] sm:$0xf]
  %v26 = vld [vmem:[%s1 + $0x14] sm:$0xf]
  %v27 = vld [vmem:[%s1 + $0x18] sm:$0xf]
  %v28 = vld [vmem:[%s1 + $0x1c] sm:$0xf]
  %v29 = vld [vmem:[%s1 + $0x20] sm:$0xf]
  %v30 = vld [vmem:[%s1 + $0x24] sm:$0xf]
  %v31 = vld [vmem:[%s1 + $0x28] sm:$0xf]
  %v32 = vld [vmem:[%s1 + $0x2c] sm:$0xf]
  %v33 = vld [vmem:[%s1 + $0x30] sm:$0xf]
  %v34 = vld [vmem:[%s1 + $0x34] sm:$0xf]
  %v35 = vld [vmem:[%s1 + $0x38] sm:$0xf]
  %v36 = vld [vmem:[%s1 + $0x3c] sm:$0xf]
  %v37 = vld [vmem:[%s1 + $0x40] sm:$0xf]
  %v38 = vld [vmem:[%s1 + $0x44] sm:$0xf]
  %v39 = vld [vmem:[%s1 + $0x48] sm:$0xf]
  %v40 = vld [vmem:[%s1 + $0x4c] sm:$0xf]
  %v41 = vld [vmem:[%s1 + $0x50] sm:$0xf]
  %v42 = vld [vmem:[%s1 + $0x54] sm:$0xf]
  %v43 = vld [vmem:[%s1 + $0x58] sm:$0xf]
  %v44 = vld [vmem:[%s1 + $0x5c] sm:$0xf]
  %v45 = vld [vmem:[%s1 + $0x60] sm:$0xf]
  %v46 = vld [vmem:[%s1 + $0x64] sm:$0xf]
  %v47 = vld [vmem:[%s1 + $0x68] sm:$0xf]
  %v48 = vld [vmem:[%s1 + $0x6c] sm:$0xf]
  %v49 = vld [vmem:[%s1 + $0x70] sm:$0xf]
  %v50 = vld [vmem:[%s1 + $0x74] sm:$0xf]
  %v51 = vld [vmem:[%s1 + $0x78] sm:$0xf]
  %v52 = vld [vmem:[%s1 + $0x7c] sm:$0xf]
  %v53 = vld [vmem:[%s1 + $0x80] sm:$0xf]
  %v54 = vld [vmem:[%s1 + $0x84] sm:$0xf]
  %v55 = vld [vmem:[%s1 + $0x88] sm:$0xf]
  %v56 = vld [vmem:[%s1 + $0x8c] sm:$0xf]
  %v57 = vld [vmem:[%s1 + $0x90] sm:$0xf]
  %v58 = vld [vmem:[%s1 + $0x94] sm:$0xf]
  %v59 = vld [vmem:[%s1 + $0x98] sm:$0xf]
  %v60 = vld [vmem:[%s1 + $0x9c] sm:$0xf]
  %v61 = vld [vmem:[%s1 + $0xa0] sm:$0xf]
  %v62 = vld [vmem:[%s1 + $0xa4] sm:$0xf]
  %v63 = vld [vmem:[%s1 + $0xa8] sm:$0xf]
  %v64 = vld [vmem:[%s1 + $0xac] sm:$0xf]
  %v65 = vld [vmem:[%s1 + $0xb0] sm:$0xf]
  %v66 = vld [vmem:[%s1 + $0xb4] sm:$0xf]
  %v67 = vld [vmem:[%s1 + $0xb8] sm:$0xf]
  %v68 = vld [vmem:[%s1 + $0xbc] sm:$0xf]
  %v69 = vld [vmem:[%s1 + $0xc0] sm:$0xf]
  %v70 = vld [vmem:[%s1 + $0xc4] sm:$0xf]
  %v71 = vld [vmem:[%s1 + $0xc8] sm:$0xf]
  %v72 = vld [vmem:[%s1 + $0xcc] sm:$0xf]
  %v73 = vld [vmem:[%s1 + $0xd0] sm:$0xf]
  %v74 = vld [vmem:[%s1 + $0xd4] sm:$0xf]
  %v75 = vld [vmem:[%s1 + $0xd8] sm:$0xf]
  %v76 = vld [vmem:[%s1 + $0xdc] sm:$0xf]
  %v77 = vld [vmem:[%s1 + $0xe0] sm:$0xf]
  %v78 = vld [vmem:[%s1 + $0xe4] sm:$0xf]
  %v79 = vld [vmem:[%s1 + $0xe8] sm:$0xf]
  %v80 = vld [vmem:[%s1 + $0xec] sm:$0xf]
  %v81 = vld [vmem:[%s1 + $0xf0] sm:$0xf]
  %v82 = vld [vmem:[%s1 + $0xf4] sm:$0xf]
  %v83 = vld [vmem:[%s1 + $0xf8] sm:$0xf]
  %v84 = vld [vmem:[%s1 + $0xfc] sm:$0xf]
  %v85 = vld [vmem:[%s1 + $0x100] sm:$0xf]
  %v86 = vld [vmem:[%s1 + $0x104] sm:$0xf]
  %v87 = vld [vmem:[%s1 + $0x108] sm:$0xf]
  %v88 = vld [vmem:[%s1 + $0x10c] sm:$0xf]
  %v89 = vld [vmem:[%s1 + $0x110] sm:$0xf]
  %v90 = vld [vmem:[%s1 + $0x114] sm:$0xf]
  %v91 = vld [vmem:[%s1 + $0x118] sm:$0xf]
  %v92 = vld [vmem:[%s1 + $0x11c] sm:$0xf]
  %v93 = vld [vmem:[%s1 + $0x120] sm:$0xf]
  %v94 = vld [vmem:[%s1 + $0x124] sm:$0xf]
  %v95 = vld [vmem:[%s1 + $0x128] sm:$0xf]
  %v96 = vld [vmem:[%s1 + $0x12c] sm:$0xf]
  %v97 = vld [vmem:[%s1 + $0x130] sm:$0xf]
  %v98 = vld [vmem:[%s1 + $0x134] sm:$0xf]
  %v99 = vld [vmem:[%s1 + $0x138] sm:$0xf]
  %v100 = vld [vmem:[%s1 + $0x13c] sm:$0xf]
  %v101 = vld [vmem:[%s2] sm:$0x1]
  %v103 = vlaneseq
  %v104 = vshrl.u32 %v103, 7
  %v105 = vsub.s32 0, %v104
  %v106 = vrot.slane %v101, %v105
  %v111 = vunpack.c.l.b16 %v18
  %v112 = vunpack.c.h.b16 %v18
  %v113 = vunpack.c.l.b16 %v19
  %v114 = vunpack.c.h.b16 %v19
  %v115 = vunpack.c.l.b16 %v20
  %v116 = vpack.c.b16 %v111, %v111
  %v117 = vpack.c.b16 %v112, %v112
  %v118 = vpack.c.b16 %v113, %v113
  %v119 = vpack.c.b16 %v114, %v114
  %v120 = vpack.c.b16 %v115, %v115
  %v206 = vunpack.c.l.b16 %v21
  %v207 = vunpack.c.l.b16 %v22
  %v208 = vunpack.c.l.b16 %v23
  %v209 = vunpack.c.l.b16 %v24
  %v210 = vunpack.c.l.b16 %v25
  %v211 = vunpack.c.l.b16 %v26
  %v212 = vunpack.c.l.b16 %v27
  %v213 = vunpack.c.l.b16 %v28
  %v214 = vunpack.c.l.b16 %v29
  %v215 = vunpack.c.l.b16 %v30
  %v216 = vunpack.c.l.b16 %v31
  %v217 = vunpack.c.l.b16 %v32
  %v218 = vunpack.c.l.b16 %v33
  %v219 = vunpack.c.l.b16 %v34
  %v220 = vunpack.c.l.b16 %v35
  %v221 = vunpack.c.l.b16 %v36
  %v222 = vunpack.c.l.b16 %v37
  %v223 = vunpack.c.l.b16 %v38
  %v224 = vunpack.c.l.b16 %v39
  %v225 = vunpack.c.l.b16 %v40
  %v226 = vunpack.c.l.b16 %v41
  %v227 = vunpack.c.l.b16 %v42
  %v228 = vunpack.c.l.b16 %v43
  %v229 = vunpack.c.l.b16 %v44
  %v230 = vunpack.c.l.b16 %v45
  %v231 = vunpack.c.l.b16 %v46
  %v232 = vunpack.c.l.b16 %v47
  %v233 = vunpack.c.l.b16 %v48
  %v234 = vunpack.c.l.b16 %v49
  %v235 = vunpack.c.l.b16 %v50
  %v236 = vunpack.c.l.b16 %v51
  %v237 = vunpack.c.l.b16 %v52
  %v238 = vunpack.c.l.b16 %v53
  %v239 = vunpack.c.l.b16 %v54
  %v240 = vunpack.c.l.b16 %v55
  %v241 = vunpack.c.l.b16 %v56
  %v242 = vunpack.c.l.b16 %v57
  %v243 = vunpack.c.l.b16 %v58
  %v244 = vunpack.c.l.b16 %v59
  %v245 = vunpack.c.l.b16 %v60
  %v246 = vunpack.c.l.b16 %v61
  %v247 = vunpack.c.l.b16 %v62
  %v248 = vunpack.c.l.b16 %v63
  %v249 = vunpack.c.l.b16 %v64
  %v250 = vunpack.c.l.b16 %v65
  %v251 = vunpack.c.l.b16 %v66
  %v252 = vunpack.c.l.b16 %v67
  %v253 = vunpack.c.l.b16 %v68
  %v254 = vunpack.c.l.b16 %v69
  %v255 = vunpack.c.l.b16 %v70
  %v256 = vunpack.c.l.b16 %v71
  %v257 = vunpack.c.l.b16 %v72
  %v258 = vunpack.c.l.b16 %v73
  %v259 = vunpack.c.l.b16 %v74
  %v260 = vunpack.c.l.b16 %v75
  %v261 = vunpack.c.l.b16 %v76
  %v262 = vunpack.c.l.b16 %v77
  %v263 = vunpack.c.l.b16 %v78
  %v264 = vunpack.c.l.b16 %v79
  %v265 = vunpack.c.l.b16 %v80
  %v266 = vunpack.c.l.b16 %v81
  %v267 = vunpack.c.l.b16 %v82
  %v268 = vunpack.c.l.b16 %v83
  %v269 = vunpack.c.l.b16 %v84
  %v270 = vunpack.c.l.b16 %v85
  %v271 = vunpack.c.l.b16 %v86
  %v272 = vunpack.c.l.b16 %v87
  %v273 = vunpack.c.l.b16 %v88
  %v274 = vunpack.c.l.b16 %v89
  %v275 = vunpack.c.l.b16 %v90
  %v276 = vunpack.c.l.b16 %v91
  %v277 = vunpack.c.l.b16 %v92
  %v278 = vunpack.c.l.b16 %v93
  %v279 = vunpack.c.l.b16 %v94
  %v280 = vunpack.c.l.b16 %v95
  %v281 = vunpack.c.l.b16 %v96
  %v282 = vunpack.c.l.b16 %v97
  %v283 = vunpack.c.l.b16 %v98
  %v284 = vunpack.c.l.b16 %v99
  %v285 = vunpack.c.l.b16 %v100
  %v286 = vpack.c.b16 %v207, %v206
  %v287 = vpack.c.b16 %v209, %v208
  %v288 = vpack.c.b16 %v211, %v210
  %v289 = vpack.c.b16 %v213, %v212
  %v290 = vpack.c.b16 %v215, %v214
  %v291 = vpack.c.b16 %v217, %v216
  %v292 = vpack.c.b16 %v219, %v218
  %v293 = vpack.c.b16 %v221, %v220
  %v294 = vpack.c.b16 %v223, %v222
  %v295 = vpack.c.b16 %v225, %v224
  %v296 = vpack.c.b16 %v227, %v226
  %v297 = vpack.c.b16 %v229, %v228
  %v298 = vpack.c.b16 %v231, %v230
  %v299 = vpack.c.b16 %v233, %v232
  %v300 = vpack.c.b16 %v235, %v234
  %v301 = vpack.c.b16 %v237, %v236
  %v302 = vpack.c.b16 %v239, %v238
  %v303 = vpack.c.b16 %v241, %v240
  %v304 = vpack.c.b16 %v243, %v242
  %v305 = vpack.c.b16 %v245, %v244
  %v306 = vpack.c.b16 %v247, %v246
  %v307 = vpack.c.b16 %v249, %v248
  %v308 = vpack.c.b16 %v251, %v250
  %v309 = vpack.c.b16 %v253, %v252
  %v310 = vpack.c.b16 %v255, %v254
  %v311 = vpack.c.b16 %v257, %v256
  %v312 = vpack.c.b16 %v259, %v258
  %v313 = vpack.c.b16 %v261, %v260
  %v314 = vpack.c.b16 %v263, %v262
  %v315 = vpack.c.b16 %v265, %v264
  %v316 = vpack.c.b16 %v267, %v266
  %v317 = vpack.c.b16 %v269, %v268
  %v318 = vpack.c.b16 %v271, %v270
  %v319 = vpack.c.b16 %v273, %v272
  %v320 = vpack.c.b16 %v275, %v274
  %v321 = vpack.c.b16 %v277, %v276
  %v322 = vpack.c.b16 %v279, %v278
  %v323 = vpack.c.b16 %v281, %v280
  %v324 = vpack.c.b16 %v283, %v282
  %v325 = vpack.c.b16 %v285, %v284
  %366 = vmatprep.subr.bf16.mxu0 0
  %367 = vmatpush1.bf16.msra.mxu0 %v286
  %368 = vmatprep.subr.bf16.mxu0 0
  %369 = vmatpush1.bf16.msra.mxu0 %v287
  %370 = vmatprep.subr.bf16.mxu0 0
  %371 = vmatpush1.bf16.msra.mxu0 %v288
  %372 = vmatprep.subr.bf16.mxu0 0
  %373 = vmatpush1.bf16.msra.mxu0 %v289
  %374 = vmatprep.subr.bf16.mxu0 0
  %375 = vmatpush1.bf16.msra.mxu0 %v290
  %376 = vmatprep.subr.bf16.mxu0 0
  %377 = vmatpush1.bf16.msra.mxu0 %v291
  %378 = vmatprep.subr.bf16.mxu0 0
  %379 = vmatpush1.bf16.msra.mxu0 %v292
  %380 = vmatprep.subr.bf16.mxu0 0
  %381 = vmatpush1.bf16.msra.mxu0 %v293
  %382 = vmatprep.subr.bf16.mxu0 0
  %383 = vmatpush1.bf16.msra.mxu0 %v294
  %384 = vmatprep.subr.bf16.mxu0 0
  %385 = vmatpush1.bf16.msra.mxu0 %v295
  %386 = vmatprep.subr.bf16.mxu0 0
  %387 = vmatpush1.bf16.msra.mxu0 %v296
  %388 = vmatprep.subr.bf16.mxu0 0
  %389 = vmatpush1.bf16.msra.mxu0 %v297
  %390 = vmatprep.subr.bf16.mxu0 0
  %391 = vmatpush1.bf16.msra.mxu0 %v298
  %392 = vmatprep.subr.bf16.mxu0 0
  %393 = vmatpush1.bf16.msra.mxu0 %v299
  %394 = vmatprep.subr.bf16.mxu0 0
  %395 = vmatpush1.bf16.msra.mxu0 %v300
  %396 = vmatprep.subr.bf16.mxu0 0
  %397 = vmatpush1.bf16.msra.mxu0 %v301
  %398 = vmatprep.mubr.bf16.mxu0 %v117
  %399 = vmatmul.mubr.bf16.gmra.mrb[0].mxu0 %v116
  %v400 = vpop.f32.mrb[0].mxu0
  %v401 = vadd.f32 %v106, %v400
  %v402 = vpop.f32.mrb[0].mxu0
  %v403 = vpop.f32.mrb[0].mxu0
  %v404 = vpop.f32.mrb[0].mxu0
  %405 = vdwg.mxu0
  %406 = vmatprep.subr.bf16.mxu0 0
  %407 = vmatpush1.bf16.msra.mxu0 %v302
  %408 = vmatprep.subr.bf16.mxu0 0
  %409 = vmatpush1.bf16.msra.mxu0 %v303
  %410 = vmatprep.subr.bf16.mxu0 0
  %411 = vmatpush1.bf16.msra.mxu0 %v304
  %412 = vmatprep.subr.bf16.mxu0 0
  %413 = vmatpush1.bf16.msra.mxu0 %v305
  %414 = vmatprep.subr.bf16.mxu0 0
  %415 = vmatpush1.bf16.msra.mxu0 %v306
  %416 = vmatprep.subr.bf16.mxu0 0
  %417 = vmatpush1.bf16.msra.mxu0 %v307
  %418 = vmatprep.subr.bf16.mxu0 0
  %419 = vmatpush1.bf16.msra.mxu0 %v308
  %420 = vmatprep.subr.bf16.mxu0 0
  %421 = vmatpush1.bf16.msra.mxu0 %v309
  %422 = vmatprep.subr.bf16.mxu0 0
  %423 = vmatpush1.bf16.msra.mxu0 %v310
  %424 = vmatprep.subr.bf16.mxu0 0
  %425 = vmatpush1.bf16.msra.mxu0 %v311
  %426 = vmatprep.subr.bf16.mxu0 0
  %427 = vmatpush1.bf16.msra.mxu0 %v312
  %428 = vmatprep.subr.bf16.mxu0 0
  %429 = vmatpush1.bf16.msra.mxu0 %v313
  %430 = vmatprep.subr.bf16.mxu0 0
  %431 = vmatpush1.bf16.msra.mxu0 %v314
  %432 = vmatprep.subr.bf16.mxu0 0
  %433 = vmatpush1.bf16.msra.mxu0 %v315
  %434 = vmatprep.subr.bf16.mxu0 0
  %435 = vmatpush1.bf16.msra.mxu0 %v316
  %436 = vmatprep.subr.bf16.mxu0 0
  %437 = vmatpush1.bf16.msra.mxu0 %v317
  %438 = vmatprep.mubr.bf16.mxu0 %v119
  %439 = vmatmul.mubr.bf16.gmra.mrb[0].mxu0 %v118
  %v440 = vpop.f32.mrb[0].mxu0
  %v441 = vadd.f32 %v401, %v440
  %v442 = vpop.f32.mrb[0].mxu0
  %v443 = vpop.f32.mrb[0].mxu0
  %v444 = vpop.f32.mrb[0].mxu0
  %445 = vdwg.mxu0
  %446 = vmatprep.subr.bf16.mxu0 0
  %447 = vmatpush1.bf16.msra.mxu0 %v318
  %448 = vmatprep.subr.bf16.mxu0 0
  %449 = vmatpush1.bf16.msra.mxu0 %v319
  %450 = vmatprep.subr.bf16.mxu0 0
  %451 = vmatpush1.bf16.msra.mxu0 %v320
  %452 = vmatprep.subr.bf16.mxu0 0
  %453 = vmatpush1.bf16.msra.mxu0 %v321
  %454 = vmatprep.subr.bf16.mxu0 0
  %455 = vmatpush1.bf16.msra.mxu0 %v322
  %456 = vmatprep.subr.bf16.mxu0 0
  %457 = vmatpush1.bf16.msra.mxu0 %v323
  %458 = vmatprep.subr.bf16.mxu0 0
  %459 = vmatpush1.bf16.msra.mxu0 %v324
  %460 = vmatprep.subr.bf16.mxu0 0
  %461 = vmatpush1.bf16.msra.mxu0 %v325
  %462 = vmatprep.subr.bf16.mxu0 0
  %463 = vmatpush1.bf16.msra.mxu0 0
  %464 = vmatprep.subr.bf16.mxu0 0
  %465 = vmatpush1.bf16.msra.mxu0 0
  %466 = vmatprep.subr.bf16.mxu0 0
  %467 = vmatpush1.bf16.msra.mxu0 0
  %468 = vmatprep.subr.bf16.mxu0 0
  %469 = vmatpush1.bf16.msra.mxu0 0
  %470 = vmatprep.subr.bf16.mxu0 0
  %471 = vmatpush1.bf16.msra.mxu0 0
  %472 = vmatprep.subr.bf16.mxu0 0
  %473 = vmatpush1.bf16.msra.mxu0 0
  %474 = vmatprep.subr.bf16.mxu0 0
  %475 = vmatpush1.bf16.msra.mxu0 0
  %476 = vmatprep.subr.bf16.mxu0 0
  %477 = vmatpush1.bf16.msra.mxu0 0
  %478 = vmatprep.mubr.bf16.mxu0 0
  %479 = vmatmul.mubr.bf16.gmra.mrb[0].mxu0 %v120
  %v480 = vpop.f32.mrb[0].mxu0
  %v481 = vadd.f32 %v441, %v480
  %v482 = vpop.f32.mrb[0].mxu0
  %v483 = vpop.f32.mrb[0].mxu0
  %v484 = vpop.f32.mrb[0].mxu0
  %485 = vdwg.mxu0
  %v486 = vld [vmem:[%s3] sm:$0xf]
  %v487 = vunpack.c.l.bf16 %v486
  %v488 = vadd.f32 %v481, %v487
  %v489 = vmax.f32 %v488, 0.0
  %v490 = vpack.c.bf16 %v489, %v489
  %491 = vst [vmem:[%s4] sm:$0xf] %v490
  // Predicated region
  $region18: #{_lambda_.26} parent=0 // pred_check
    _
  $region19: #{_lambda_.26} parent=0 // pred_check_branch
    %493 = sbr.rel (0) target = $region21
  $region20: #{_lambda_.26} parent=0 // pred_region
    _
  $region21: #{_lambda_.26} parent=0 // pred_fallthru
    _
  // Predicated region
  $region22: #{_lambda_.26} parent=0 // pred_check
    _
  $region23: #{_lambda_.26} parent=0 // pred_check_branch
    %495 = sbr.rel (0) target = $region25
  $region24: #{_lambda_.26} parent=0 // pred_region
    _
  $region25: #{_lambda_.26} parent=0 // pred_fallthru
    _

</llo_original>
